<compile_context>
chip_gen: v7x
topology: tpu7x:2x2x1
jax: 0.10.0
libtpu: 0.0.40
codegen_flags: <defaults>
</compile_context>

<pallas_src>
import functools

import jax
import jax.numpy as jnp
from jax import lax
from jax.experimental import pallas as pl
from jax.experimental.pallas import tpu as pltpu
import numpy as np

# ---------------- model hyperparameters (from module __init__) ----------------
EMB_DIM = 10          # embedding_dim
PTM_EMB_DIM = 10      # assumed ptm embedding dim
CIN = EMB_DIM + PTM_EMB_DIM
C1 = 70               # conv1_out_channels
C2 = 140              # conv2_out_channels
K = 10                # kernel_size
NUM_CLASSES = 2
NUM_PTM_CATEGORIES = 4
BN_EPS = 1e-5

# ---------------- lane-dense padded sizes ----------------
C1P = 128             # conv1 channels padded to one full lane tile
C2P = 256             # conv2 channels padded
KC1P = 256            # conv1 im2col contraction (K*CIN = 200 -> 256)
NCLSP = 128           # fc output lanes (2 -> 128), sliced back in the wrapper


def _ceil_to(x, m):
    return (x + m - 1) // m * m


# ------------------------------- Pallas kernel --------------------------------
def _saliency_kernel(xc_ref, w1_ref, s1_ref, t1_ref,
                     w2_ref, s2_ref, t2_ref,
                     wf_ref, bf_ref, out_ref,
                     *, Bb, L2P, L3, L3P):
    # conv1 (+ folded bias/BN) + ReLU: ONE im2col matmul on the MXU.
    # xc_ref rows are ordered (batch, parity(even/odd conv row), pooled row).
    xc = xc_ref[...]                                   # (Bb*2*L2P, KC1P) bf16
    h1 = jnp.dot(xc, w1_ref[...], preferred_element_type=jnp.float32)
    h1 = jnp.maximum(h1 * s1_ref[...] + t1_ref[...], 0.0)
    h1 = h1.reshape(Bb, 2, L2P, C1P)

    # MaxPool1d(kernel=2, stride=2): elementwise max of even/odd conv rows (VPU).
    # (the odd trailing conv row when L1 is odd was never materialized — matches
    #  torch floor behavior; padded rows beyond L2 feed only masked-out outputs)
    h1p = jnp.maximum(h1[:, 0], h1[:, 1]).astype(jnp.bfloat16)   # (Bb, L2P, C1P)

    # conv2 (+ folded bias/BN) + ReLU: K tap matmuls accumulated in f32.
    # No im2col concat buffer — per the perf review that relayout (not the
    # matmul) was the conv2 bottleneck on v6e/v7x.
    h2 = None
    for t in range(K):
        xt = h1p[:, t:t + L3P, :].reshape(Bb * L3P, C1P)
        pt = jnp.dot(xt, w2_ref[t], preferred_element_type=jnp.float32)
        h2 = pt if h2 is None else h2 + pt
    h2 = jnp.maximum(h2 * s2_ref[...] + t2_ref[...], 0.0)
    h2 = h2.reshape(Bb, L3P, C2P)

    # Global average pool over the valid conv2 rows: tile-aligned masked sum
    # over the full L3P extent; the 1/L3 factor is folded into wf in the wrapper.
    valid = lax.broadcasted_iota(jnp.int32, (L3P, 1), 0) < L3     # (L3P, 1)
    g = jnp.sum(jnp.where(valid, h2, 0.0), axis=1)                # (Bb, C2P) f32

    # dropout (eval) = identity; fc1 (bias + 1/L3-scaled weight).
    out_ref[...] = (jnp.dot(g, wf_ref[...], preferred_element_type=jnp.float32)
                    + bf_ref[...])


# --------------------------------- wrapper -------------------------------------
def saliency_forward(x_embedded, rsa, ptm_embedded, params, block_b=32):
    """x_embedded: (B, L, EMB_DIM) f32, rsa: (B, L) f32, ptm_embedded: (B, L, PTM_EMB_DIM)."""
    B, L, _ = x_embedded.shape
    w1, s1, t1, w2, s2, t2, wf, bf = params

    L1 = L - K + 1            # conv1 output length ('valid')
    L2 = L1 // 2              # maxpool(2) output length (floor)
    L3 = L2 - K + 1           # conv2 output length
    assert L3 >= 1, "sequence too short for two K=10 convs + pool"
    L3P = _ceil_to(L3, 8)
    L2P = _ceil_to(max(L2, L3P + K - 1), 8)
    # Padded pooled rows beyond L2 hold relu(t1) != 0; correctness requires
    # conv2 taps for the *valid* output rows never to read them, and the masked
    # pool to exclude padded output rows.  Keep this invariant explicit:
    assert L2P >= L3P + K - 1, "conv2 taps would read past the padded pooled rows"

    # ---- batch block: multiple of 8; keep grid >= 2 when the batch allows it
    # ---- so dimension_semantics=('parallel',) can use both v7x TensorCores.
    Bb = int(max(1, min(block_b, _ceil_to(B, 8))))
    Bb = _ceil_to(Bb, 8)
    if B > 8 and Bb >= _ceil_to(B, 8):
        Bb = max(8, _ceil_to((B + 1) // 2, 8))
    Bpad = _ceil_to(B, Bb)

    # ---- input prep (layout only): fuse rsa scale + ptm concat, build conv1
    # ---- im2col directly as the even / odd conv rows that maxpool will pair.
    x = jnp.concatenate([x_embedded * rsa[..., None], ptm_embedded], axis=-1)
    x = x.astype(jnp.bfloat16)                                   # (B, L, CIN)
    if Bpad != B:
        x = jnp.pad(x, ((0, Bpad - B), (0, 0), (0, 0)))
    cols_e = jnp.concatenate(                                     # conv rows 0,2,...
        [x[:, t:t + 2 * L2:2, :] for t in range(K)], axis=-1)
    cols_o = jnp.concatenate(                                     # conv rows 1,3,...
        [x[:, t + 1:t + 1 + 2 * L2:2, :] for t in range(K)], axis=-1)
    cols = jnp.stack([cols_e, cols_o], axis=1)                    # (Bpad, 2, L2, K*CIN)
    cols = jnp.pad(cols, ((0, 0), (0, 0), (0, L2P - L2), (0, KC1P - K * CIN)))
    cols = cols.reshape(Bpad * 2 * L2P, KC1P)                     # lane-dense bf16 slab

    # ---- parameter prep: pad to lane multiples, matmul operands in bf16,
    # ---- BN scale/shift (already folded with conv bias) kept in f32.
    w1p = jnp.pad(w1.reshape(K * CIN, C1),
                  ((0, KC1P - K * CIN), (0, C1P - C1))).astype(jnp.bfloat16)
    w2p = jnp.pad(w2, ((0, 0), (0, C1P - C1), (0, C2P - C2))).astype(jnp.bfloat16)
    s1p = jnp.pad(s1, (0, C1P - C1)).reshape(1, C1P).astype(jnp.float32)
    t1p = jnp.pad(t1, (0, C1P - C1)).reshape(1, C1P).astype(jnp.float32)
    s2p = jnp.pad(s2, (0, C2P - C2)).reshape(1, C2P).astype(jnp.float32)
    t2p = jnp.pad(t2, (0, C2P - C2)).reshape(1, C2P).astype(jnp.float32)
    # fold the 1/L3 global-average-pool factor into the fc weight (not the bias)
    wfp = jnp.pad(wf / float(L3),
                  ((0, C2P - C2), (0, NCLSP - NUM_CLASSES))).astype(jnp.float32)
    bfp = jnp.pad(bf, (0, NCLSP - NUM_CLASSES)).reshape(1, NCLSP).astype(jnp.float32)

    kernel = functools.partial(_saliency_kernel, Bb=Bb, L2P=L2P, L3=L3, L3P=L3P)
    # constant index maps -> Pallas revisit detection keeps these resident
    rep = lambda a: pl.BlockSpec(a.shape, lambda b: (0,) * a.ndim)

    flops = int(2 * (Bpad * 2 * L2P) * KC1P * C1P
                + 2 * (Bpad * L3P) * (K * C1P) * C2P
                + 2 * Bpad * C2P * NCLSP)
    bytes_accessed = int(cols.size * 2 + w1p.size * 2 + w2p.size * 2
                         + (s1p.size + t1p.size + s2p.size + t2p.size
                            + wfp.size + bfp.size) * 4
                         + Bpad * NCLSP * 4)

    out = pl.pallas_call(
        kernel,
        out_shape=jax.ShapeDtypeStruct((Bpad, NCLSP), jnp.float32),
        grid_spec=pltpu.PrefetchScalarGridSpec(
            num_scalar_prefetch=0,
            grid=(Bpad // Bb,),
            in_specs=[
                pl.BlockSpec((Bb * 2 * L2P, KC1P), lambda b: (b, 0)),
                rep(w1p), rep(s1p), rep(t1p),
                rep(w2p), rep(s2p), rep(t2p),
                rep(wfp), rep(bfp),
            ],
            out_specs=pl.BlockSpec((Bb, NCLSP), lambda b: (b, 0)),
        ),
        compiler_params=pltpu.CompilerParams(
            dimension_semantics=("parallel",),
            vmem_limit_bytes=48 * 1024 * 1024),
        cost_estimate=pl.CostEstimate(flops=flops, transcendentals=0,
                                      bytes_accessed=bytes_accessed),
    )(cols, w1p, s1p, t1p, w2p, s2p, t2p, wfp, bfp)
    return out[:B, :NUM_CLASSES]


# ------------------------- pure-JAX reference (check) --------------------------
def reference_forward(x_embedded, rsa, ptm_embedded, raw):
    (w1_kic, b1, g1, be1, m1, v1,
     w2_kic, b2, g2, be2, m2, v2, wf, bf) = raw
    X = jnp.concatenate([x_embedded * rsa[..., None], ptm_embedded], axis=-1)
    Xc = jnp.transpose(X, (0, 2, 1))                     # NCL
    w1_oih = jnp.transpose(w1_kic, (2, 1, 0))            # (Cout, Cin, K)
    y = lax.conv_general_dilated(Xc, w1_oih, (1,), 'VALID',
                                 dimension_numbers=('NCH', 'OIH', 'NCH'))
    y = y + b1[None, :, None]
    y = (y - m1[None, :, None]) / jnp.sqrt(v1[None, :, None] + BN_EPS)
    y = y * g1[None, :, None] + be1[None, :, None]
    y = jnp.maximum(y, 0.0)
    L1 = y.shape[-1]; L2 = L1 // 2
    y = y[:, :, :2 * L2].reshape(y.shape[0], C1, L2, 2).max(axis=-1)
    w2_oih = jnp.transpose(w2_kic, (2, 1, 0))
    z = lax.conv_general_dilated(y, w2_oih, (1,), 'VALID',
                                 dimension_numbers=('NCH', 'OIH', 'NCH'))
    z = z + b2[None, :, None]
    z = (z - m2[None, :, None]) / jnp.sqrt(v2[None, :, None] + BN_EPS)
    z = z * g2[None, :, None] + be2[None, :, None]
    z = jnp.maximum(z, 0.0)
    g = jnp.mean(z, axis=-1)                             # (B, C2)
    return g @ wf + bf


# ----------------------------------- main --------------------------------------
if __name__ == "__main__":
    key = jax.random.PRNGKey(0)
    ks = jax.random.split(key, 12)

    B, L = 32, 64            # small, but enough batch to exercise grid blocking

    # deterministic synthetic parameters
    w1 = 0.1 * jax.random.normal(ks[0], (K, CIN, C1), jnp.float32)   # (K, Cin, Cout)
    b1 = 0.05 * jax.random.normal(ks[1], (C1,), jnp.float32)
    g1 = 1.0 + 0.1 * jax.random.normal(ks[2], (C1,), jnp.float32)
    be1 = 0.05 * jax.random.normal(ks[3], (C1,), jnp.float32)
    m1 = 0.02 * jax.random.normal(ks[4], (C1,), jnp.float32)
    v1 = 1.0 + 0.1 * jax.random.uniform(ks[5], (C1,), jnp.float32)

    w2 = 0.05 * jax.random.normal(ks[6], (K, C1, C2), jnp.float32)
    b2 = 0.05 * jax.random.normal(ks[7], (C2,), jnp.float32)
    g2 = 1.0 + 0.1 * jax.random.normal(ks[8], (C2,), jnp.float32)
    be2 = 0.05 * jax.random.normal(ks[9], (C2,), jnp.float32)
    m2 = 0.02 * jax.random.normal(ks[10], (C2,), jnp.float32)
    v2 = 1.0 + 0.1 * jax.random.uniform(ks[11], (C2,), jnp.float32)

    k2 = jax.random.split(jax.random.PRNGKey(1), 5)
    wf = 0.1 * jax.random.normal(k2[0], (C2, NUM_CLASSES), jnp.float32)
    bf = 0.05 * jax.random.normal(k2[1], (NUM_CLASSES,), jnp.float32)
    ptm_table = 0.1 * jax.random.normal(k2[2], (NUM_PTM_CATEGORIES, PTM_EMB_DIM),
                                        jnp.float32)

    # inputs: already-embedded sequence, fixed rsa and ptm (as in SaliencyWrapper)
    x_embedded = jax.random.normal(k2[3], (B, L, EMB_DIM), jnp.float32)
    rsa = jax.random.uniform(k2[4], (B, L), jnp.float32)
    ptm = jax.random.randint(jax.random.PRNGKey(2), (B, L), 0, NUM_PTM_CATEGORIES)

    # glue: ptm embedding lookup (gather) + eval-mode BN/bias folding
    ptm_embedded = ptm_table[ptm]                         # (B, L, PTM_EMB_DIM)
    s1 = g1 / jnp.sqrt(v1 + BN_EPS); t1 = (b1 - m1) * s1 + be1
    s2 = g2 / jnp.sqrt(v2 + BN_EPS); t2 = (b2 - m2) * s2 + be2
    params = (w1, s1, t1, w2, s2, t2, wf, bf)

    out = saliency_forward(x_embedded, rsa, ptm_embedded, params, block_b=32)
    out = jax.block_until_ready(out)

    ref = reference_forward(x_embedded, rsa, ptm_embedded,
                            (w1, b1, g1, be1, m1, v1,
                             w2, b2, g2, be2, m2, v2, wf, bf))
    # bf16 matmul operands (f32 accumulation) -> looser tolerance than an all-f32
    # path; outputs are not bitwise-comparable to the f32 PyTorch model.
    np.testing.assert_allclose(np.asarray(out), np.asarray(ref),
                               rtol=3e-2, atol=3e-2)
    print("KERNEL_OK")
</pallas_src>

<mosaic_0001>
module attributes {stable_mosaic.version = 11 : i64} {
  func.func @_saliency_kernel(%arg0: i32, %arg1: memref<1280x256xbf16, #tpu.memory_space<vmem>>, %arg2: memref<256x128xbf16, #tpu.memory_space<vmem>>, %arg3: memref<1x128xf32, #tpu.memory_space<vmem>>, %arg4: memref<1x128xf32, #tpu.memory_space<vmem>>, %arg5: memref<10x128x256xbf16, #tpu.memory_space<vmem>>, %arg6: memref<1x256xf32, #tpu.memory_space<vmem>>, %arg7: memref<1x256xf32, #tpu.memory_space<vmem>>, %arg8: memref<256x128xf32, #tpu.memory_space<vmem>>, %arg9: memref<1x128xf32, #tpu.memory_space<vmem>>, %arg10: memref<16x128xf32, #tpu.memory_space<vmem>>) attributes {dimension_semantics = [#tpu.dimension_semantics<parallel>], iteration_bounds = array<i64: 2>, scalar_prefetch = 0 : i64, scratch_operands = 0 : i64, tpu.core_type = #tpu.core_type<tc>, window_params = [{transform_indices = @transform_0, window_bounds = array<i64: 1280, 256>}, {pipeline_mode = #tpu.pipeline_mode<synchronous>, transform_indices = @transform_1, window_bounds = array<i64: 256, 128>}, {pipeline_mode = #tpu.pipeline_mode<synchronous>, transform_indices = @transform_2, window_bounds = array<i64: 1, 128>}, {pipeline_mode = #tpu.pipeline_mode<synchronous>, transform_indices = @transform_3, window_bounds = array<i64: 1, 128>}, {pipeline_mode = #tpu.pipeline_mode<synchronous>, transform_indices = @transform_4, window_bounds = array<i64: 10, 128, 256>}, {pipeline_mode = #tpu.pipeline_mode<synchronous>, transform_indices = @transform_5, window_bounds = array<i64: 1, 256>}, {pipeline_mode = #tpu.pipeline_mode<synchronous>, transform_indices = @transform_6, window_bounds = array<i64: 1, 256>}, {pipeline_mode = #tpu.pipeline_mode<synchronous>, transform_indices = @transform_7, window_bounds = array<i64: 256, 128>}, {pipeline_mode = #tpu.pipeline_mode<synchronous>, transform_indices = @transform_8, window_bounds = array<i64: 1, 128>}, {transform_indices = @transform_9, window_bounds = array<i64: 16, 128>}]} {
    %c0 = arith.constant 0 : index
    %c0_0 = arith.constant 0 : index
    %0 = vector.load %arg1[%c0, %c0_0] : memref<1280x256xbf16, #tpu.memory_space<vmem>>, vector<1280x256xbf16>
    %c0_1 = arith.constant 0 : index
    %c0_2 = arith.constant 0 : index
    %1 = vector.load %arg2[%c0_1, %c0_2] : memref<256x128xbf16, #tpu.memory_space<vmem>>, vector<256x128xbf16>
    %cst = arith.constant dense<0.000000e+00> : vector<1280x128xf32>
    %2 = tpu.matmul %0, %1, %cst {dimension_numbers = #tpu.dot_dimension_numbers<[1], [0], [0], [1], [0, 0, 1, 1], [], []>} : vector<1280x256xbf16>, vector<256x128xbf16>, vector<1280x128xf32> -> vector<1280x128xf32>
    %c0_3 = arith.constant 0 : index
    %c0_4 = arith.constant 0 : index
    %3 = vector.load %arg3[%c0_3, %c0_4] : memref<1x128xf32, #tpu.memory_space<vmem>>, vector<1x128xf32>
    %4 = vector.broadcast %3 : vector<1x128xf32> to vector<1280x128xf32>
    %5 = arith.mulf %2, %4 : vector<1280x128xf32>
    %c0_5 = arith.constant 0 : index
    %c0_6 = arith.constant 0 : index
    %6 = vector.load %arg4[%c0_5, %c0_6] : memref<1x128xf32, #tpu.memory_space<vmem>>, vector<1x128xf32>
    %7 = vector.broadcast %6 : vector<1x128xf32> to vector<1280x128xf32>
    %8 = arith.addf %5, %7 : vector<1280x128xf32>
    %cst_7 = arith.constant 0.000000e+00 : f32
    %9 = vector.broadcast %cst_7 : f32 to vector<1280x128xf32>
    %10 = arith.maximumf %8, %9 : vector<1280x128xf32>
    %11 = vector.shape_cast %10 : vector<1280x128xf32> to vector<16x2x40x128xf32>
    %12 = vector.extract_strided_slice %11 {offsets = [0, 0, 0, 0], sizes = [16, 1, 40, 128], strides = [1, 1, 1, 1]} : vector<16x2x40x128xf32> to vector<16x1x40x128xf32>
    %13 = vector.shape_cast %12 : vector<16x1x40x128xf32> to vector<16x40x128xf32>
    %14 = vector.extract_strided_slice %11 {offsets = [0, 1, 0, 0], sizes = [16, 1, 40, 128], strides = [1, 1, 1, 1]} : vector<16x2x40x128xf32> to vector<16x1x40x128xf32>
    %15 = vector.shape_cast %14 : vector<16x1x40x128xf32> to vector<16x40x128xf32>
    %16 = arith.maximumf %13, %15 : vector<16x40x128xf32>
    %17 = arith.truncf %16 : vector<16x40x128xf32> to vector<16x40x128xbf16>
    %18 = vector.extract_strided_slice %17 {offsets = [0, 0, 0], sizes = [16, 24, 128], strides = [1, 1, 1]} : vector<16x40x128xbf16> to vector<16x24x128xbf16>
    %19 = vector.shape_cast %18 : vector<16x24x128xbf16> to vector<384x128xbf16>
    %c0_8 = arith.constant 0 : index
    %c0_9 = arith.constant 0 : index
    %c0_10 = arith.constant 0 : index
    %20 = vector.load %arg5[%c0_8, %c0_9, %c0_10] : memref<10x128x256xbf16, #tpu.memory_space<vmem>>, vector<1x128x256xbf16>
    %21 = vector.shape_cast %20 : vector<1x128x256xbf16> to vector<128x256xbf16>
    %cst_11 = arith.constant dense<0.000000e+00> : vector<384x256xf32>
    %22 = tpu.matmul %19, %21, %cst_11 {dimension_numbers = #tpu.dot_dimension_numbers<[1], [0], [0], [1], [0, 0, 1, 1], [], []>} : vector<384x128xbf16>, vector<128x256xbf16>, vector<384x256xf32> -> vector<384x256xf32>
    %23 = vector.extract_strided_slice %17 {offsets = [0, 1, 0], sizes = [16, 24, 128], strides = [1, 1, 1]} : vector<16x40x128xbf16> to vector<16x24x128xbf16>
    %24 = vector.shape_cast %23 : vector<16x24x128xbf16> to vector<384x128xbf16>
    %c1 = arith.constant 1 : index
    %c0_12 = arith.constant 0 : index
    %c0_13 = arith.constant 0 : index
    %25 = vector.load %arg5[%c1, %c0_12, %c0_13] : memref<10x128x256xbf16, #tpu.memory_space<vmem>>, vector<1x128x256xbf16>
    %26 = vector.shape_cast %25 : vector<1x128x256xbf16> to vector<128x256xbf16>
    %cst_14 = arith.constant dense<0.000000e+00> : vector<384x256xf32>
    %27 = tpu.matmul %24, %26, %cst_14 {dimension_numbers = #tpu.dot_dimension_numbers<[1], [0], [0], [1], [0, 0, 1, 1], [], []>} : vector<384x128xbf16>, vector<128x256xbf16>, vector<384x256xf32> -> vector<384x256xf32>
    %28 = arith.addf %22, %27 : vector<384x256xf32>
    %29 = vector.extract_strided_slice %17 {offsets = [0, 2, 0], sizes = [16, 24, 128], strides = [1, 1, 1]} : vector<16x40x128xbf16> to vector<16x24x128xbf16>
    %30 = vector.shape_cast %29 : vector<16x24x128xbf16> to vector<384x128xbf16>
    %c2 = arith.constant 2 : index
    %c0_15 = arith.constant 0 : index
    %c0_16 = arith.constant 0 : index
    %31 = vector.load %arg5[%c2, %c0_15, %c0_16] : memref<10x128x256xbf16, #tpu.memory_space<vmem>>, vector<1x128x256xbf16>
    %32 = vector.shape_cast %31 : vector<1x128x256xbf16> to vector<128x256xbf16>
    %cst_17 = arith.constant dense<0.000000e+00> : vector<384x256xf32>
    %33 = tpu.matmul %30, %32, %cst_17 {dimension_numbers = #tpu.dot_dimension_numbers<[1], [0], [0], [1], [0, 0, 1, 1], [], []>} : vector<384x128xbf16>, vector<128x256xbf16>, vector<384x256xf32> -> vector<384x256xf32>
    %34 = arith.addf %28, %33 : vector<384x256xf32>
    %35 = vector.extract_strided_slice %17 {offsets = [0, 3, 0], sizes = [16, 24, 128], strides = [1, 1, 1]} : vector<16x40x128xbf16> to vector<16x24x128xbf16>
    %36 = vector.shape_cast %35 : vector<16x24x128xbf16> to vector<384x128xbf16>
    %c3 = arith.constant 3 : index
    %c0_18 = arith.constant 0 : index
    %c0_19 = arith.constant 0 : index
    %37 = vector.load %arg5[%c3, %c0_18, %c0_19] : memref<10x128x256xbf16, #tpu.memory_space<vmem>>, vector<1x128x256xbf16>
    %38 = vector.shape_cast %37 : vector<1x128x256xbf16> to vector<128x256xbf16>
    %cst_20 = arith.constant dense<0.000000e+00> : vector<384x256xf32>
    %39 = tpu.matmul %36, %38, %cst_20 {dimension_numbers = #tpu.dot_dimension_numbers<[1], [0], [0], [1], [0, 0, 1, 1], [], []>} : vector<384x128xbf16>, vector<128x256xbf16>, vector<384x256xf32> -> vector<384x256xf32>
    %40 = arith.addf %34, %39 : vector<384x256xf32>
    %41 = vector.extract_strided_slice %17 {offsets = [0, 4, 0], sizes = [16, 24, 128], strides = [1, 1, 1]} : vector<16x40x128xbf16> to vector<16x24x128xbf16>
    %42 = vector.shape_cast %41 : vector<16x24x128xbf16> to vector<384x128xbf16>
    %c4 = arith.constant 4 : index
    %c0_21 = arith.constant 0 : index
    %c0_22 = arith.constant 0 : index
    %43 = vector.load %arg5[%c4, %c0_21, %c0_22] : memref<10x128x256xbf16, #tpu.memory_space<vmem>>, vector<1x128x256xbf16>
    %44 = vector.shape_cast %43 : vector<1x128x256xbf16> to vector<128x256xbf16>
    %cst_23 = arith.constant dense<0.000000e+00> : vector<384x256xf32>
    %45 = tpu.matmul %42, %44, %cst_23 {dimension_numbers = #tpu.dot_dimension_numbers<[1], [0], [0], [1], [0, 0, 1, 1], [], []>} : vector<384x128xbf16>, vector<128x256xbf16>, vector<384x256xf32> -> vector<384x256xf32>
    %46 = arith.addf %40, %45 : vector<384x256xf32>
    %47 = vector.extract_strided_slice %17 {offsets = [0, 5, 0], sizes = [16, 24, 128], strides = [1, 1, 1]} : vector<16x40x128xbf16> to vector<16x24x128xbf16>
    %48 = vector.shape_cast %47 : vector<16x24x128xbf16> to vector<384x128xbf16>
    %c5 = arith.constant 5 : index
    %c0_24 = arith.constant 0 : index
    %c0_25 = arith.constant 0 : index
    %49 = vector.load %arg5[%c5, %c0_24, %c0_25] : memref<10x128x256xbf16, #tpu.memory_space<vmem>>, vector<1x128x256xbf16>
    %50 = vector.shape_cast %49 : vector<1x128x256xbf16> to vector<128x256xbf16>
    %cst_26 = arith.constant dense<0.000000e+00> : vector<384x256xf32>
    %51 = tpu.matmul %48, %50, %cst_26 {dimension_numbers = #tpu.dot_dimension_numbers<[1], [0], [0], [1], [0, 0, 1, 1], [], []>} : vector<384x128xbf16>, vector<128x256xbf16>, vector<384x256xf32> -> vector<384x256xf32>
    %52 = arith.addf %46, %51 : vector<384x256xf32>
    %53 = vector.extract_strided_slice %17 {offsets = [0, 6, 0], sizes = [16, 24, 128], strides = [1, 1, 1]} : vector<16x40x128xbf16> to vector<16x24x128xbf16>
    %54 = vector.shape_cast %53 : vector<16x24x128xbf16> to vector<384x128xbf16>
    %c6 = arith.constant 6 : index
    %c0_27 = arith.constant 0 : index
    %c0_28 = arith.constant 0 : index
    %55 = vector.load %arg5[%c6, %c0_27, %c0_28] : memref<10x128x256xbf16, #tpu.memory_space<vmem>>, vector<1x128x256xbf16>
    %56 = vector.shape_cast %55 : vector<1x128x256xbf16> to vector<128x256xbf16>
    %cst_29 = arith.constant dense<0.000000e+00> : vector<384x256xf32>
    %57 = tpu.matmul %54, %56, %cst_29 {dimension_numbers = #tpu.dot_dimension_numbers<[1], [0], [0], [1], [0, 0, 1, 1], [], []>} : vector<384x128xbf16>, vector<128x256xbf16>, vector<384x256xf32> -> vector<384x256xf32>
    %58 = arith.addf %52, %57 : vector<384x256xf32>
    %59 = vector.extract_strided_slice %17 {offsets = [0, 7, 0], sizes = [16, 24, 128], strides = [1, 1, 1]} : vector<16x40x128xbf16> to vector<16x24x128xbf16>
    %60 = vector.shape_cast %59 : vector<16x24x128xbf16> to vector<384x128xbf16>
    %c7 = arith.constant 7 : index
    %c0_30 = arith.constant 0 : index
    %c0_31 = arith.constant 0 : index
    %61 = vector.load %arg5[%c7, %c0_30, %c0_31] : memref<10x128x256xbf16, #tpu.memory_space<vmem>>, vector<1x128x256xbf16>
    %62 = vector.shape_cast %61 : vector<1x128x256xbf16> to vector<128x256xbf16>
    %cst_32 = arith.constant dense<0.000000e+00> : vector<384x256xf32>
    %63 = tpu.matmul %60, %62, %cst_32 {dimension_numbers = #tpu.dot_dimension_numbers<[1], [0], [0], [1], [0, 0, 1, 1], [], []>} : vector<384x128xbf16>, vector<128x256xbf16>, vector<384x256xf32> -> vector<384x256xf32>
    %64 = arith.addf %58, %63 : vector<384x256xf32>
    %65 = vector.extract_strided_slice %17 {offsets = [0, 8, 0], sizes = [16, 24, 128], strides = [1, 1, 1]} : vector<16x40x128xbf16> to vector<16x24x128xbf16>
    %66 = vector.shape_cast %65 : vector<16x24x128xbf16> to vector<384x128xbf16>
    %c8 = arith.constant 8 : index
    %c0_33 = arith.constant 0 : index
    %c0_34 = arith.constant 0 : index
    %67 = vector.load %arg5[%c8, %c0_33, %c0_34] : memref<10x128x256xbf16, #tpu.memory_space<vmem>>, vector<1x128x256xbf16>
    %68 = vector.shape_cast %67 : vector<1x128x256xbf16> to vector<128x256xbf16>
    %cst_35 = arith.constant dense<0.000000e+00> : vector<384x256xf32>
    %69 = tpu.matmul %66, %68, %cst_35 {dimension_numbers = #tpu.dot_dimension_numbers<[1], [0], [0], [1], [0, 0, 1, 1], [], []>} : vector<384x128xbf16>, vector<128x256xbf16>, vector<384x256xf32> -> vector<384x256xf32>
    %70 = arith.addf %64, %69 : vector<384x256xf32>
    %71 = vector.extract_strided_slice %17 {offsets = [0, 9, 0], sizes = [16, 24, 128], strides = [1, 1, 1]} : vector<16x40x128xbf16> to vector<16x24x128xbf16>
    %72 = vector.shape_cast %71 : vector<16x24x128xbf16> to vector<384x128xbf16>
    %c9 = arith.constant 9 : index
    %c0_36 = arith.constant 0 : index
    %c0_37 = arith.constant 0 : index
    %73 = vector.load %arg5[%c9, %c0_36, %c0_37] : memref<10x128x256xbf16, #tpu.memory_space<vmem>>, vector<1x128x256xbf16>
    %74 = vector.shape_cast %73 : vector<1x128x256xbf16> to vector<128x256xbf16>
    %cst_38 = arith.constant dense<0.000000e+00> : vector<384x256xf32>
    %75 = tpu.matmul %72, %74, %cst_38 {dimension_numbers = #tpu.dot_dimension_numbers<[1], [0], [0], [1], [0, 0, 1, 1], [], []>} : vector<384x128xbf16>, vector<128x256xbf16>, vector<384x256xf32> -> vector<384x256xf32>
    %76 = arith.addf %70, %75 : vector<384x256xf32>
    %c0_39 = arith.constant 0 : index
    %c0_40 = arith.constant 0 : index
    %77 = vector.load %arg6[%c0_39, %c0_40] : memref<1x256xf32, #tpu.memory_space<vmem>>, vector<1x256xf32>
    %78 = vector.broadcast %77 : vector<1x256xf32> to vector<384x256xf32>
    %79 = arith.mulf %76, %78 : vector<384x256xf32>
    %c0_41 = arith.constant 0 : index
    %c0_42 = arith.constant 0 : index
    %80 = vector.load %arg7[%c0_41, %c0_42] : memref<1x256xf32, #tpu.memory_space<vmem>>, vector<1x256xf32>
    %81 = vector.broadcast %80 : vector<1x256xf32> to vector<384x256xf32>
    %82 = arith.addf %79, %81 : vector<384x256xf32>
    %cst_43 = arith.constant 0.000000e+00 : f32
    %83 = vector.broadcast %cst_43 : f32 to vector<384x256xf32>
    %84 = arith.maximumf %82, %83 : vector<384x256xf32>
    %85 = vector.shape_cast %84 : vector<384x256xf32> to vector<16x24x256xf32>
    %86 = tpu.iota {dimensions = array<i32: 0>} : vector<24x1xi32>
    %c18_i32 = arith.constant 18 : i32
    %87 = vector.broadcast %c18_i32 : i32 to vector<24x1xi32>
    %88 = arith.cmpi slt, %86, %87 : vector<24x1xi32>
    %cst_44 = arith.constant 0.000000e+00 : f32
    %89 = vector.shape_cast %88 : vector<24x1xi1> to vector<1x24x1xi1>
    %90 = vector.broadcast %89 : vector<1x24x1xi1> to vector<16x24x256xi1>
    %91 = vector.broadcast %cst_44 : f32 to vector<16x24x256xf32>
    %92 = arith.select %90, %85, %91 : vector<16x24x256xi1>, vector<16x24x256xf32>
    %cst_45 = arith.constant dense<0.000000e+00> : vector<16x256xf32>
    %93 = vector.multi_reduction <add>, %92, %cst_45 [1] : vector<16x24x256xf32> to vector<16x256xf32>
    %c0_46 = arith.constant 0 : index
    %c0_47 = arith.constant 0 : index
    %94 = vector.load %arg8[%c0_46, %c0_47] : memref<256x128xf32, #tpu.memory_space<vmem>>, vector<256x128xf32>
    %cst_48 = arith.constant dense<0.000000e+00> : vector<16x128xf32>
    %95 = tpu.matmul %93, %94, %cst_48 {dimension_numbers = #tpu.dot_dimension_numbers<[1], [0], [0], [1], [0, 0, 1, 1], [], []>} : vector<16x256xf32>, vector<256x128xf32>, vector<16x128xf32> -> vector<16x128xf32>
    %c0_49 = arith.constant 0 : index
    %c0_50 = arith.constant 0 : index
    %96 = vector.load %arg9[%c0_49, %c0_50] : memref<1x128xf32, #tpu.memory_space<vmem>>, vector<1x128xf32>
    %97 = vector.broadcast %96 : vector<1x128xf32> to vector<16x128xf32>
    %98 = arith.addf %95, %97 : vector<16x128xf32>
    %c0_51 = arith.constant 0 : index
    %c0_52 = arith.constant 0 : index
    %99 = vector.load %arg10[%c0_51, %c0_52] : memref<16x128xf32, #tpu.memory_space<vmem>>, vector<16x128xf32>
    tpu.vector_store %arg10[%c0_51, %c0_52], %98 {strides = array<i32>} : memref<16x128xf32, #tpu.memory_space<vmem>>, vector<16x128xf32>,
    return
  }
  func.func @transform_0(%arg0: i32) -> (i32, i32) {
    %c0_i32 = arith.constant 0 : i32
    %c0_i32_0 = arith.constant 0 : i32
    return %arg0, %c0_i32 : i32, i32
  }
  func.func @transform_1(%arg0: i32) -> (i32, i32) {
    %c0_i32 = arith.constant 0 : i32
    %c0_i32_0 = arith.constant 0 : i32
    %c0_i32_1 = arith.constant 0 : i32
    return %c0_i32, %c0_i32_0 : i32, i32
  }
  func.func @transform_2(%arg0: i32) -> (i32, i32) {
    %c0_i32 = arith.constant 0 : i32
    %c0_i32_0 = arith.constant 0 : i32
    %c0_i32_1 = arith.constant 0 : i32
    return %c0_i32, %c0_i32_0 : i32, i32
  }
  func.func @transform_3(%arg0: i32) -> (i32, i32) {
    %c0_i32 = arith.constant 0 : i32
    %c0_i32_0 = arith.constant 0 : i32
    %c0_i32_1 = arith.constant 0 : i32
    return %c0_i32, %c0_i32_0 : i32, i32
  }
  func.func @transform_4(%arg0: i32) -> (i32, i32, i32) {
    %c0_i32 = arith.constant 0 : i32
    %c0_i32_0 = arith.constant 0 : i32
    %c0_i32_1 = arith.constant 0 : i32
    %c0_i32_2 = arith.constant 0 : i32
    return %c0_i32, %c0_i32_0, %c0_i32_1 : i32, i32, i32
  }
  func.func @transform_5(%arg0: i32) -> (i32, i32) {
    %c0_i32 = arith.constant 0 : i32
    %c0_i32_0 = arith.constant 0 : i32
    %c0_i32_1 = arith.constant 0 : i32
    return %c0_i32, %c0_i32_0 : i32, i32
  }
  func.func @transform_6(%arg0: i32) -> (i32, i32) {
    %c0_i32 = arith.constant 0 : i32
    %c0_i32_0 = arith.constant 0 : i32
    %c0_i32_1 = arith.constant 0 : i32
    return %c0_i32, %c0_i32_0 : i32, i32
  }
  func.func @transform_7(%arg0: i32) -> (i32, i32) {
    %c0_i32 = arith.constant 0 : i32
    %c0_i32_0 = arith.constant 0 : i32
    %c0_i32_1 = arith.constant 0 : i32
    return %c0_i32, %c0_i32_0 : i32, i32
  }
  func.func @transform_8(%arg0: i32) -> (i32, i32) {
    %c0_i32 = arith.constant 0 : i32
    %c0_i32_0 = arith.constant 0 : i32
    %c0_i32_1 = arith.constant 0 : i32
    return %c0_i32, %c0_i32_0 : i32, i32
  }
  func.func @transform_9(%arg0: i32) -> (i32, i32) {
    %c0_i32 = arith.constant 0 : i32
    %c0_i32_0 = arith.constant 0 : i32
    return %arg0, %c0_i32 : i32, i32
  }
}

</mosaic_0001>

<llo_original>
// kernel: tpu_custom_call.1
$region0: #{tpu_custom_call.1}
  #allocation0 [shape = 'u32[]', space=smem, size = 0x4, offset = 0x4, fixed_abs, tag = 'smem constant byte address 0x4 - core index']
  #allocation1 [shape = 'u32[144,128]{1,0:T(1,128)}', space=vmem, size = 0x12000, scoped, tag = 'internal scratch']
  %s0 = inlined_call_operand.hbm [shape: bf16[2560,256], index: 0, kind: input, shape index: {}]
  %s1 = inlined_call_operand.hbm [shape: bf16[256,128], index: 1, kind: input, shape index: {}]
  %s2 = inlined_call_operand.hbm [shape: f32[1,128], index: 2, kind: input, shape index: {}]
  %s3 = inlined_call_operand.hbm [shape: f32[1,128], index: 3, kind: input, shape index: {}]
  %s4 = inlined_call_operand.hbm [shape: bf16[10,128,256], index: 4, kind: input, shape index: {}]
  %s5 = inlined_call_operand.hbm [shape: f32[1,256], index: 5, kind: input, shape index: {}]
  %s6 = inlined_call_operand.hbm [shape: f32[1,256], index: 6, kind: input, shape index: {}]
  %s7 = inlined_call_operand.hbm [shape: f32[256,128], index: 7, kind: input, shape index: {}]
  %s8 = inlined_call_operand.hbm [shape: f32[1,128], index: 8, kind: input, shape index: {}]
  %s9 = inlined_call_operand.hbm [shape: f32[32,128], index: 9, kind: output, shape index: {}]
  %s10 = sld [smem:[#allocation0]]
  $region105: #{tpu_custom_call.1} parent=0
    _
  %s12 = ssub.s32 1, %s10
  %s13 = scalar_select 0, %s12, %s10
  $region1: #{tpu_custom_call.1} parent=0
    #allocation2 [shape = 'u8[1310720]{0}', space=vmem, size = 0x140000, scoped, tag = 'input window, operand 0']
    #allocation3 [shape = 's32[2]{0}', space=sflag, size = 0x8, scoped, tag = 'scoped memory for tpu_custom_call.1']
    #allocation4 [shape = 's32[2]{0}', space=sflag, size = 0x8, scoped, tag = 'scoped memory for tpu_custom_call.1']
    #allocation5 [shape = 'u8[65536]{0}', space=vmem, size = 0x10000, scoped, tag = 'input window, operand 1, single buffered']
    #allocation6 [shape = 's32[1]{0}', space=sflag, size = 0x4, scoped, tag = 'scoped memory for tpu_custom_call.1']
    #allocation7 [shape = 'u8[512]{0}', space=vmem, size = 0x400, scoped, tag = 'input window, operand 2, single buffered']
    #allocation8 [shape = 'u8[512]{0}', space=vmem, size = 0x400, scoped, tag = 'input window, operand 3, single buffered']
    #allocation9 [shape = 's32[1]{0}', space=sflag, size = 0x4, scoped, tag = 'scoped memory for tpu_custom_call.1']
    #allocation10 [shape = 'u8[655360]{0}', space=vmem, size = 0xa0000, scoped, tag = 'input window, operand 4, single buffered']
    #allocation11 [shape = 'u8[1024]{0}', space=vmem, size = 0x400, scoped, tag = 'input window, operand 5, single buffered']
    #allocation12 [shape = 's32[1]{0}', space=sflag, size = 0x4, scoped, tag = 'scoped memory for tpu_custom_call.1']
    #allocation13 [shape = 'u8[1024]{0}', space=vmem, size = 0x400, scoped, tag = 'input window, operand 6, single buffered']
    #allocation14 [shape = 'u8[131072]{0}', space=vmem, size = 0x20000, scoped, tag = 'input window, operand 7, single buffered']
    #allocation15 [shape = 's32[1]{0}', space=sflag, size = 0x4, scoped, tag = 'scoped memory for tpu_custom_call.1']
    #allocation16 [shape = 'u8[512]{0}', space=vmem, size = 0x400, scoped, tag = 'input window, operand 8, single buffered']
    #allocation17 [shape = 'u8[16384]{0}', space=vmem, size = 0x4000, scoped, tag = 'output window, operand 0']
    %14 = vsyncpa [#allocation3], 0
    %s15 = scalar_lea.sflag [#allocation3], 1
    %16 = vsyncpa %s15, 0
    %17 = vsyncpa [#allocation6], 0
    %18 = vsyncpa [#allocation9], 0
    %19 = vsyncpa [#allocation12], 0
    %20 = vsyncpa [#allocation15], 0
    %21 = vsyncpa [#allocation4], 0
    %s22 = scalar_lea.sflag [#allocation4], 1
    %23 = vsyncpa %s22, 0
    loop: start=0, step=1, limit=4
    $region2: #{tpu_custom_call.1} parent=1 // loop_pre_header
      _
    $region3: #{tpu_custom_call.1} parent=1 // loop_header
      %s25 = sphi 0, %s29
      %p26 = scmp.ge.s32.totalorder %s25, 4
      %s35 = sphi 0, %s37
      %s38 = sphi 0, %s35
      %s39 = sphi 0, %s38
      %s55 = sphi 0, %s39
      %s59 = sphi 0, %s59
      %s61 = sphi 0, %s59
      %s62 = sphi 0, %s61
      %s76 = sphi 0, %s62
      %s80 = sphi 0, %s80
      %s82 = sphi 0, %s80
      %s83 = sphi 0, %s82
      %s97 = sphi 0, %s83
      %s101 = sphi 0, %s101
      %s103 = sphi 0, %s101
      %s104 = sphi 0, %s103
      %s118 = sphi 0, %s104
      %s122 = sphi 0, %s122
      %s124 = sphi 0, %s122
      %s125 = sphi 0, %s124
      %s139 = sphi 0, %s125
      %s143 = sphi 0, %s143
      %s145 = sphi 0, %s143
      %s146 = sphi 0, %s145
      %s160 = sphi 0, %s146
      %s164 = sphi 0, %s164
      %s166 = sphi 0, %s164
      %s167 = sphi 0, %s166
      %s181 = sphi 0, %s167
      %s185 = sphi 0, %s185
      %s187 = sphi 0, %s185
      %s188 = sphi 0, %s187
      %s202 = sphi 0, %s188
      %s206 = sphi 0, %s206
      %s208 = sphi 0, %s206
      %s209 = sphi 0, %s208
      %s223 = sphi 0, %s209
      %s229 = sphi 0, %s231
      %s232 = sphi 0, %s229
      %s233 = sphi 0, %s232
      %s249 = sphi 0, %s233
    $region4: #{tpu_custom_call.1} parent=1 // loop_header_branch
      %28 = sbr.rel (%p26) target = $region8
    $region5: #{tpu_custom_call.1} parent=1 // loop_body
      %s30 = ssub.s32 %s25, 1
      %s31 = ssub.s32 %s25, 2
      %s32 = sadd.s32 %s25, 1
      %s33 = ssub.s32 %s25, %s32
      %p34 = scmp.eq.s32.totalorder %s33, 0
      %s36 = sadd.s32 %s35, 1
      %s37 = scalar_select %p34, %s35, %s36
      %p40 = pneg %p34
      %p41 = scmp.eq.s32.totalorder %s25, 1
      %p42 = por %p40, %p41
      %p43 = scmp.ne.s32.totalorder %s35, %s38
      %p44 = scmp.eq.s32.totalorder %s25, 0
      %p45 = por %p43, %p44
      %p46 = scmp.ne.s32.totalorder %s35, %s38
      %p47 = scmp.eq.s32.totalorder %s30, 1
      %p48 = por %p46, %p47
      %p49 = scmp.ne.s32.totalorder %s38, %s39
      %p50 = scmp.eq.s32.totalorder %s30, 0
      %p51 = por %p49, %p50
      %p52 = scmp.ne.s32.totalorder %s38, %s39
      %p53 = scmp.eq.s32.totalorder %s31, 1
      %p54 = por %p52, %p53
      %p56 = scmp.ne.s32.totalorder %s39, %s55
      %p57 = scmp.eq.s32.totalorder %s31, 0
      %p58 = por %p56, %p57
      %s60 = sadd.s32 %s59, 1
      %p63 = scmp.eq.s32.totalorder %s25, 1
      %p64 = scmp.ne.s32.totalorder %s59, %s61
      %p65 = scmp.eq.s32.totalorder %s25, 0
      %p66 = por %p64, %p65
      %p67 = scmp.ne.s32.totalorder %s59, %s61
      %p68 = scmp.eq.s32.totalorder %s30, 1
      %p69 = por %p67, %p68
      %p70 = scmp.ne.s32.totalorder %s61, %s62
      %p71 = scmp.eq.s32.totalorder %s30, 0
      %p72 = por %p70, %p71
      %p73 = scmp.ne.s32.totalorder %s61, %s62
      %p74 = scmp.eq.s32.totalorder %s31, 1
      %p75 = por %p73, %p74
      %p77 = scmp.ne.s32.totalorder %s62, %s76
      %p78 = scmp.eq.s32.totalorder %s31, 0
      %p79 = por %p77, %p78
      %s81 = sadd.s32 %s80, 1
      %p84 = scmp.eq.s32.totalorder %s25, 1
      %p85 = scmp.ne.s32.totalorder %s80, %s82
      %p86 = scmp.eq.s32.totalorder %s25, 0
      %p87 = por %p85, %p86
      %p88 = scmp.ne.s32.totalorder %s80, %s82
      %p89 = scmp.eq.s32.totalorder %s30, 1
      %p90 = por %p88, %p89
      %p91 = scmp.ne.s32.totalorder %s82, %s83
      %p92 = scmp.eq.s32.totalorder %s30, 0
      %p93 = por %p91, %p92
      %p94 = scmp.ne.s32.totalorder %s82, %s83
      %p95 = scmp.eq.s32.totalorder %s31, 1
      %p96 = por %p94, %p95
      %p98 = scmp.ne.s32.totalorder %s83, %s97
      %p99 = scmp.eq.s32.totalorder %s31, 0
      %p100 = por %p98, %p99
      %s102 = sadd.s32 %s101, 1
      %p105 = scmp.eq.s32.totalorder %s25, 1
      %p106 = scmp.ne.s32.totalorder %s101, %s103
      %p107 = scmp.eq.s32.totalorder %s25, 0
      %p108 = por %p106, %p107
      %p109 = scmp.ne.s32.totalorder %s101, %s103
      %p110 = scmp.eq.s32.totalorder %s30, 1
      %p111 = por %p109, %p110
      %p112 = scmp.ne.s32.totalorder %s103, %s104
      %p113 = scmp.eq.s32.totalorder %s30, 0
      %p114 = por %p112, %p113
      %p115 = scmp.ne.s32.totalorder %s103, %s104
      %p116 = scmp.eq.s32.totalorder %s31, 1
      %p117 = por %p115, %p116
      %p119 = scmp.ne.s32.totalorder %s104, %s118
      %p120 = scmp.eq.s32.totalorder %s31, 0
      %p121 = por %p119, %p120
      %s123 = sadd.s32 %s122, 1
      %p126 = scmp.eq.s32.totalorder %s25, 1
      %p127 = scmp.ne.s32.totalorder %s122, %s124
      %p128 = scmp.eq.s32.totalorder %s25, 0
      %p129 = por %p127, %p128
      %p130 = scmp.ne.s32.totalorder %s122, %s124
      %p131 = scmp.eq.s32.totalorder %s30, 1
      %p132 = por %p130, %p131
      %p133 = scmp.ne.s32.totalorder %s124, %s125
      %p134 = scmp.eq.s32.totalorder %s30, 0
      %p135 = por %p133, %p134
      %p136 = scmp.ne.s32.totalorder %s124, %s125
      %p137 = scmp.eq.s32.totalorder %s31, 1
      %p138 = por %p136, %p137
      %p140 = scmp.ne.s32.totalorder %s125, %s139
      %p141 = scmp.eq.s32.totalorder %s31, 0
      %p142 = por %p140, %p141
      %s144 = sadd.s32 %s143, 1
      %p147 = scmp.eq.s32.totalorder %s25, 1
      %p148 = scmp.ne.s32.totalorder %s143, %s145
      %p149 = scmp.eq.s32.totalorder %s25, 0
      %p150 = por %p148, %p149
      %p151 = scmp.ne.s32.totalorder %s143, %s145
      %p152 = scmp.eq.s32.totalorder %s30, 1
      %p153 = por %p151, %p152
      %p154 = scmp.ne.s32.totalorder %s145, %s146
      %p155 = scmp.eq.s32.totalorder %s30, 0
      %p156 = por %p154, %p155
      %p157 = scmp.ne.s32.totalorder %s145, %s146
      %p158 = scmp.eq.s32.totalorder %s31, 1
      %p159 = por %p157, %p158
      %p161 = scmp.ne.s32.totalorder %s146, %s160
      %p162 = scmp.eq.s32.totalorder %s31, 0
      %p163 = por %p161, %p162
      %s165 = sadd.s32 %s164, 1
      %p168 = scmp.eq.s32.totalorder %s25, 1
      %p169 = scmp.ne.s32.totalorder %s164, %s166
      %p170 = scmp.eq.s32.totalorder %s25, 0
      %p171 = por %p169, %p170
      %p172 = scmp.ne.s32.totalorder %s164, %s166
      %p173 = scmp.eq.s32.totalorder %s30, 1
      %p174 = por %p172, %p173
      %p175 = scmp.ne.s32.totalorder %s166, %s167
      %p176 = scmp.eq.s32.totalorder %s30, 0
      %p177 = por %p175, %p176
      %p178 = scmp.ne.s32.totalorder %s166, %s167
      %p179 = scmp.eq.s32.totalorder %s31, 1
      %p180 = por %p178, %p179
      %p182 = scmp.ne.s32.totalorder %s167, %s181
      %p183 = scmp.eq.s32.totalorder %s31, 0
      %p184 = por %p182, %p183
      %s186 = sadd.s32 %s185, 1
      %p189 = scmp.eq.s32.totalorder %s25, 1
      %p190 = scmp.ne.s32.totalorder %s185, %s187
      %p191 = scmp.eq.s32.totalorder %s25, 0
      %p192 = por %p190, %p191
      %p193 = scmp.ne.s32.totalorder %s185, %s187
      %p194 = scmp.eq.s32.totalorder %s30, 1
      %p195 = por %p193, %p194
      %p196 = scmp.ne.s32.totalorder %s187, %s188
      %p197 = scmp.eq.s32.totalorder %s30, 0
      %p198 = por %p196, %p197
      %p199 = scmp.ne.s32.totalorder %s187, %s188
      %p200 = scmp.eq.s32.totalorder %s31, 1
      %p201 = por %p199, %p200
      %p203 = scmp.ne.s32.totalorder %s188, %s202
      %p204 = scmp.eq.s32.totalorder %s31, 0
      %p205 = por %p203, %p204
      %s207 = sadd.s32 %s206, 1
      %p210 = scmp.eq.s32.totalorder %s25, 1
      %p211 = scmp.ne.s32.totalorder %s206, %s208
      %p212 = scmp.eq.s32.totalorder %s25, 0
      %p213 = por %p211, %p212
      %p214 = scmp.ne.s32.totalorder %s206, %s208
      %p215 = scmp.eq.s32.totalorder %s30, 1
      %p216 = por %p214, %p215
      %p217 = scmp.ne.s32.totalorder %s208, %s209
      %p218 = scmp.eq.s32.totalorder %s30, 0
      %p219 = por %p217, %p218
      %p220 = scmp.ne.s32.totalorder %s208, %s209
      %p221 = scmp.eq.s32.totalorder %s31, 1
      %p222 = por %p220, %p221
      %p224 = scmp.ne.s32.totalorder %s209, %s223
      %p225 = scmp.eq.s32.totalorder %s31, 0
      %p226 = por %p224, %p225
      %s227 = ssub.s32 %s25, %s32
      %p228 = scmp.eq.s32.totalorder %s227, 0
      %s230 = sadd.s32 %s229, 1
      %s231 = scalar_select %p228, %s229, %s230
      %p234 = pneg %p228
      %p235 = scmp.eq.s32.totalorder %s25, 1
      %p236 = por %p234, %p235
      %p237 = scmp.ne.s32.totalorder %s229, %s232
      %p238 = scmp.eq.s32.totalorder %s25, 0
      %p239 = por %p237, %p238
      %p240 = scmp.ne.s32.totalorder %s229, %s232
      %p241 = scmp.eq.s32.totalorder %s30, 1
      %p242 = por %p240, %p241
      %p243 = scmp.ne.s32.totalorder %s232, %s233
      %p244 = scmp.eq.s32.totalorder %s30, 0
      %p245 = por %p243, %p244
      %p246 = scmp.ne.s32.totalorder %s232, %s233
      %p247 = scmp.eq.s32.totalorder %s31, 1
      %p248 = por %p246, %p247
      %p250 = scmp.ne.s32.totalorder %s233, %s249
      %p251 = scmp.eq.s32.totalorder %s31, 0
      %p252 = por %p250, %p251
      %p253 = scmp.le.s32.totalorder 1, %s25
      %p254 = scmp.lt.s32.totalorder %s25, 3
      %p255 = pnand %p253, %p254
      %p256 = pneg %p255
      // Predicated region
      $region9: #{tpu_custom_call.1} parent=5 // pred_check
        _
      $region10: #{tpu_custom_call.1} parent=5 // pred_check_branch
        %258 = sbr.rel (%p255) target = $region12
      $region11: #{tpu_custom_call.1} parent=5 // pred_region
        %s259 = ssub.s32 %s25, 1
        // Predicated region
        $region13: #{tpu_custom_call.1} parent=11 // pred_check
          %p260 = pneg %p72
        $region14: #{tpu_custom_call.1} parent=11 // pred_check_branch
          %262 = sbr.rel (%p260) target = $region16
        $region15: #{tpu_custom_call.1} parent=11 // pred_region
          %s264 = ssub.s32 2048, 2048
          %265 = vsyncadd [#allocation6], %s264
          %s266 = sshll.u32 [#allocation5], 4
          %s267 = int_to_ptr.vmem [resolvable:$true] %s266
          %272 = dma.hbm_to_vmem [thread:$0]  %s1, 2048, %s267, [#allocation6], 64, 64, 4
        $region16: #{tpu_custom_call.1} parent=11 // pred_fallthru
          _
        // Predicated region
        $region17: #{tpu_custom_call.1} parent=11 // pred_check
          %p273 = pneg %p93
        $region18: #{tpu_custom_call.1} parent=11 // pred_check_branch
          %275 = sbr.rel (%p273) target = $region20
        $region19: #{tpu_custom_call.1} parent=11 // pred_region
          %s277 = ssub.s32 16, 16
          %278 = vsyncadd [#allocation6], %s277
          %s280 = sshll.u32 [#allocation7], 4
          %s281 = int_to_ptr.vmem [resolvable:$true] %s280
          %283 = dma.hbm_to_vmem [thread:$0]  %s2, 16, %s281, [#allocation6]
        $region20: #{tpu_custom_call.1} parent=11 // pred_fallthru
          _
        // Predicated region
        $region21: #{tpu_custom_call.1} parent=11 // pred_check
          %p284 = pneg %p114
        $region22: #{tpu_custom_call.1} parent=11 // pred_check_branch
          %286 = sbr.rel (%p284) target = $region24
        $region23: #{tpu_custom_call.1} parent=11 // pred_region
          %s288 = ssub.s32 16, 16
          %289 = vsyncadd [#allocation9], %s288
          %s291 = sshll.u32 [#allocation8], 4
          %s292 = int_to_ptr.vmem [resolvable:$true] %s291
          %294 = dma.hbm_to_vmem [thread:$0]  %s3, 16, %s292, [#allocation9]
        $region24: #{tpu_custom_call.1} parent=11 // pred_fallthru
          _
        // Predicated region
        $region25: #{tpu_custom_call.1} parent=11 // pred_check
          %p295 = pneg %p135
        $region26: #{tpu_custom_call.1} parent=11 // pred_check_branch
          %297 = sbr.rel (%p295) target = $region28
        $region27: #{tpu_custom_call.1} parent=11 // pred_region
          %s299 = ssub.s32 20480, 20480
          %300 = vsyncadd [#allocation9], %s299
          %s301 = sshll.u32 [#allocation10], 4
          %s302 = int_to_ptr.vmem [resolvable:$true] %s301
          %307 = dma.hbm_to_vmem [thread:$0]  %s4, 20480, %s302, [#allocation9], 128, 128, 8
        $region28: #{tpu_custom_call.1} parent=11 // pred_fallthru
          _
        // Predicated region
        $region29: #{tpu_custom_call.1} parent=11 // pred_check
          %p308 = pneg %p156
        $region30: #{tpu_custom_call.1} parent=11 // pred_check_branch
          %310 = sbr.rel (%p308) target = $region32
        $region31: #{tpu_custom_call.1} parent=11 // pred_region
          %s312 = ssub.s32 32, 32
          %313 = vsyncadd [#allocation12], %s312
          %s315 = sshll.u32 [#allocation11], 4
          %s316 = int_to_ptr.vmem [resolvable:$true] %s315
          %318 = dma.hbm_to_vmem [thread:$0]  %s5, 32, %s316, [#allocation12]
        $region32: #{tpu_custom_call.1} parent=11 // pred_fallthru
          _
        // Predicated region
        $region33: #{tpu_custom_call.1} parent=11 // pred_check
          %p319 = pneg %p177
        $region34: #{tpu_custom_call.1} parent=11 // pred_check_branch
          %321 = sbr.rel (%p319) target = $region36
        $region35: #{tpu_custom_call.1} parent=11 // pred_region
          %s323 = ssub.s32 32, 32
          %324 = vsyncadd [#allocation12], %s323
          %s326 = sshll.u32 [#allocation13], 4
          %s327 = int_to_ptr.vmem [resolvable:$true] %s326
          %329 = dma.hbm_to_vmem [thread:$0]  %s6, 32, %s327, [#allocation12]
        $region36: #{tpu_custom_call.1} parent=11 // pred_fallthru
          _
        // Predicated region
        $region37: #{tpu_custom_call.1} parent=11 // pred_check
          %p330 = pneg %p198
        $region38: #{tpu_custom_call.1} parent=11 // pred_check_branch
          %332 = sbr.rel (%p330) target = $region40
        $region39: #{tpu_custom_call.1} parent=11 // pred_region
          %s334 = ssub.s32 4096, 4096
          %335 = vsyncadd [#allocation15], %s334
          %s336 = sshll.u32 [#allocation14], 4
          %s337 = int_to_ptr.vmem [resolvable:$true] %s336
          %342 = dma.hbm_to_vmem [thread:$0]  %s7, 4096, %s337, [#allocation15], 128, 128, 8
        $region40: #{tpu_custom_call.1} parent=11 // pred_fallthru
          _
        // Predicated region
        $region41: #{tpu_custom_call.1} parent=11 // pred_check
          %p343 = pneg %p219
        $region42: #{tpu_custom_call.1} parent=11 // pred_check_branch
          %345 = sbr.rel (%p343) target = $region44
        $region43: #{tpu_custom_call.1} parent=11 // pred_region
          %s347 = ssub.s32 16, 16
          %348 = vsyncadd [#allocation15], %s347
          %s350 = sshll.u32 [#allocation16], 4
          %s351 = int_to_ptr.vmem [resolvable:$true] %s350
          %353 = dma.hbm_to_vmem [thread:$0]  %s8, 16, %s351, [#allocation15]
        $region44: #{tpu_custom_call.1} parent=11 // pred_fallthru
          _
      $region12: #{tpu_custom_call.1} parent=5 // pred_fallthru
        _
      %p354 = scmp.lt.s32.totalorder %s25, 2
      // Predicated region
      $region45: #{tpu_custom_call.1} parent=5 // pred_check
        %p355 = pneg %p354
      $region46: #{tpu_custom_call.1} parent=5 // pred_check_branch
        %357 = sbr.rel (%p355) target = $region48
      $region47: #{tpu_custom_call.1} parent=5 // pred_region
        // Predicated region
        $region49: #{tpu_custom_call.1} parent=47 // pred_check
          %p358 = pneg %p45
        $region50: #{tpu_custom_call.1} parent=47 // pred_check_branch
          %360 = sbr.rel (%p358) target = $region52
        $region51: #{tpu_custom_call.1} parent=47 // pred_region
          %s361 = sand.u32 %s35, 1
          %s362 = scalar_lea.sflag [#allocation3], %s361
          %s363 = sand.u32 %s35, 1
          %s364 = smul.addr %s363, 1280
          %s365 = scalar_lea.vmem [#allocation2], %s364
          %s366 = smul.u32 160, %s25
          %s368 = ssub.s32 20480, 20480
          %369 = vsyncadd %s362, %s368
          %s370 = smul.addr %s366, 2
          %s371 = smul.addr %s370, 64
          %s372 = scalar_lea.hbm %s0, %s371
          %s373 = sshll.u32 %s365, 4
          %s374 = int_to_ptr.vmem [resolvable:$true] %s373
          %379 = dma.hbm_to_vmem [thread:$0]  %s372, 20480, %s374, %s362, 128, 128, 8
        $region52: #{tpu_custom_call.1} parent=47 // pred_fallthru
          _
      $region48: #{tpu_custom_call.1} parent=5 // pred_fallthru
        _
      %p380 = scmp.le.s32.totalorder 1, %s25
      %p381 = scmp.lt.s32.totalorder %s25, 3
      %p382 = pnand %p380, %p381
      %p383 = pneg %p382
      // Predicated region
      $region53: #{tpu_custom_call.1} parent=5 // pred_check
        _
      $region54: #{tpu_custom_call.1} parent=5 // pred_check_branch
        %385 = sbr.rel (%p382) target = $region56
      $region55: #{tpu_custom_call.1} parent=5 // pred_region
        %s386 = ssub.s32 %s25, 1
        %s387 = sand.u32 %s38, 1
        %s388 = scalar_lea.sflag [#allocation3], %s387
        %s389 = sand.u32 %s38, 1
        %s390 = smul.addr %s389, 1280
        %s391 = scalar_lea.vmem [#allocation2], %s390
        // Predicated region
        $region57: #{tpu_custom_call.1} parent=55 // pred_check
          %p392 = pneg %p51
        $region58: #{tpu_custom_call.1} parent=55 // pred_check_branch
          %394 = sbr.rel (%p392) target = $region60
        $region59: #{tpu_custom_call.1} parent=55 // pred_region
          %395 = dma.done %s388, 20480
        $region60: #{tpu_custom_call.1} parent=55 // pred_fallthru
          _
        // Predicated region
        $region61: #{tpu_custom_call.1} parent=55 // pred_check
          %p396 = pneg %p72
        $region62: #{tpu_custom_call.1} parent=55 // pred_check_branch
          %398 = sbr.rel (%p396) target = $region64
        $region63: #{tpu_custom_call.1} parent=55 // pred_region
          %399 = dma.done [#allocation6], 2048
        $region64: #{tpu_custom_call.1} parent=55 // pred_fallthru
          _
        // Predicated region
        $region65: #{tpu_custom_call.1} parent=55 // pred_check
          %p400 = pneg %p93
        $region66: #{tpu_custom_call.1} parent=55 // pred_check_branch
          %402 = sbr.rel (%p400) target = $region68
        $region67: #{tpu_custom_call.1} parent=55 // pred_region
          %403 = dma.done [#allocation6], 16
        $region68: #{tpu_custom_call.1} parent=55 // pred_fallthru
          _
        // Predicated region
        $region69: #{tpu_custom_call.1} parent=55 // pred_check
          %p404 = pneg %p114
        $region70: #{tpu_custom_call.1} parent=55 // pred_check_branch
          %406 = sbr.rel (%p404) target = $region72
        $region71: #{tpu_custom_call.1} parent=55 // pred_region
          %407 = dma.done [#allocation9], 16
        $region72: #{tpu_custom_call.1} parent=55 // pred_fallthru
          _
        // Predicated region
        $region73: #{tpu_custom_call.1} parent=55 // pred_check
          %p408 = pneg %p135
        $region74: #{tpu_custom_call.1} parent=55 // pred_check_branch
          %410 = sbr.rel (%p408) target = $region76
        $region75: #{tpu_custom_call.1} parent=55 // pred_region
          %411 = dma.done [#allocation9], 20480
        $region76: #{tpu_custom_call.1} parent=55 // pred_fallthru
          _
        // Predicated region
        $region77: #{tpu_custom_call.1} parent=55 // pred_check
          %p412 = pneg %p156
        $region78: #{tpu_custom_call.1} parent=55 // pred_check_branch
          %414 = sbr.rel (%p412) target = $region80
        $region79: #{tpu_custom_call.1} parent=55 // pred_region
          %415 = dma.done [#allocation12], 32
        $region80: #{tpu_custom_call.1} parent=55 // pred_fallthru
          _
        // Predicated region
        $region81: #{tpu_custom_call.1} parent=55 // pred_check
          %p416 = pneg %p177
        $region82: #{tpu_custom_call.1} parent=55 // pred_check_branch
          %418 = sbr.rel (%p416) target = $region84
        $region83: #{tpu_custom_call.1} parent=55 // pred_region
          %419 = dma.done [#allocation12], 32
        $region84: #{tpu_custom_call.1} parent=55 // pred_fallthru
          _
        // Predicated region
        $region85: #{tpu_custom_call.1} parent=55 // pred_check
          %p420 = pneg %p198
        $region86: #{tpu_custom_call.1} parent=55 // pred_check_branch
          %422 = sbr.rel (%p420) target = $region88
        $region87: #{tpu_custom_call.1} parent=55 // pred_region
          %423 = dma.done [#allocation15], 4096
        $region88: #{tpu_custom_call.1} parent=55 // pred_fallthru
          _
        // Predicated region
        $region89: #{tpu_custom_call.1} parent=55 // pred_check
          %p424 = pneg %p219
        $region90: #{tpu_custom_call.1} parent=55 // pred_check_branch
          %426 = sbr.rel (%p424) target = $region92
        $region91: #{tpu_custom_call.1} parent=55 // pred_region
          %427 = dma.done [#allocation15], 16
        $region92: #{tpu_custom_call.1} parent=55 // pred_fallthru
          _
        %s428 = sand.u32 %s38, 1
        %s429 = scalar_lea.sflag [#allocation3], %s428
        %s430 = sand.u32 %s38, 1
        %s431 = smul.addr %s430, 1280
        %s432 = scalar_lea.vmem [#allocation2], %s431
        %p433 = pneg %p51
        %p434 = pneg %p48
        %p435 = pneg %p72
        %p436 = pneg %p69
        %p437 = pneg %p93
        %p438 = pneg %p90
        %p439 = pneg %p114
        %p440 = pneg %p111
        %p441 = pneg %p135
        %p442 = pneg %p132
        %p443 = pneg %p156
        %p444 = pneg %p153
        %p445 = pneg %p177
        %p446 = pneg %p174
        %p447 = pneg %p198
        %p448 = pneg %p195
        %p449 = pneg %p219
        %p450 = pneg %p216
        %p451 = pneg %p245
        %p452 = pneg %p242
        %s453 = sand.u32 %s232, 1
        %s454 = scalar_lea.sflag [#allocation4], %s453
        %s455 = sand.u32 %s232, 1
        %s456 = smul.addr %s455, 16
        %s457 = scalar_lea.vmem [#allocation17], %s456
        %s458 = smul.u32 160, %s30
        %s459 = smul.u32 2, %s30
        %v461 = vld [vmem:[%s391] sm:$0xff]
        %v462 = vld [vmem:[%s391 + $0x8] sm:$0xff]
        %v463 = vld [vmem:[%s391 + $0x10] sm:$0xff]
        %v464 = vld [vmem:[%s391 + $0x18] sm:$0xff]
        %v465 = vld [vmem:[%s391 + $0x20] sm:$0xff]
        %v466 = vld [vmem:[%s391 + $0x28] sm:$0xff]
        %v467 = vld [vmem:[%s391 + $0x30] sm:$0xff]
        %v468 = vld [vmem:[%s391 + $0x38] sm:$0xff]
        %v469 = vld [vmem:[%s391 + $0x40] sm:$0xff]
        %v470 = vld [vmem:[%s391 + $0x48] sm:$0xff]
        %v471 = vld [vmem:[%s391 + $0x50] sm:$0xff]
        %v472 = vld [vmem:[%s391 + $0x58] sm:$0xff]
        %v473 = vld [vmem:[%s391 + $0x60] sm:$0xff]
        %v474 = vld [vmem:[%s391 + $0x68] sm:$0xff]
        %v475 = vld [vmem:[%s391 + $0x70] sm:$0xff]
        %v476 = vld [vmem:[%s391 + $0x78] sm:$0xff]
        %v477 = vld [vmem:[%s391 + $0x80] sm:$0xff]
        %v478 = vld [vmem:[%s391 + $0x88] sm:$0xff]
        %v479 = vld [vmem:[%s391 + $0x90] sm:$0xff]
        %v480 = vld [vmem:[%s391 + $0x98] sm:$0xff]
        %v481 = vld [vmem:[%s391 + $0xa0] sm:$0xff]
        %v482 = vld [vmem:[%s391 + $0xa8] sm:$0xff]
        %v483 = vld [vmem:[%s391 + $0xb0] sm:$0xff]
        %v484 = vld [vmem:[%s391 + $0xb8] sm:$0xff]
        %v485 = vld [vmem:[%s391 + $0xc0] sm:$0xff]
        %v486 = vld [vmem:[%s391 + $0xc8] sm:$0xff]
        %v487 = vld [vmem:[%s391 + $0xd0] sm:$0xff]
        %v488 = vld [vmem:[%s391 + $0xd8] sm:$0xff]
        %v489 = vld [vmem:[%s391 + $0xe0] sm:$0xff]
        %v490 = vld [vmem:[%s391 + $0xe8] sm:$0xff]
        %v491 = vld [vmem:[%s391 + $0xf0] sm:$0xff]
        %v492 = vld [vmem:[%s391 + $0xf8] sm:$0xff]
        %v493 = vld [vmem:[%s391 + $0x100] sm:$0xff]
        %v494 = vld [vmem:[%s391 + $0x108] sm:$0xff]
        %v495 = vld [vmem:[%s391 + $0x110] sm:$0xff]
        %v496 = vld [vmem:[%s391 + $0x118] sm:$0xff]
        %v497 = vld [vmem:[%s391 + $0x120] sm:$0xff]
        %v498 = vld [vmem:[%s391 + $0x128] sm:$0xff]
        %v499 = vld [vmem:[%s391 + $0x130] sm:$0xff]
        %v500 = vld [vmem:[%s391 + $0x138] sm:$0xff]
        %v501 = vld [vmem:[%s391 + $0x140] sm:$0xff]
        %v502 = vld [vmem:[%s391 + $0x148] sm:$0xff]
        %v503 = vld [vmem:[%s391 + $0x150] sm:$0xff]
        %v504 = vld [vmem:[%s391 + $0x158] sm:$0xff]
        %v505 = vld [vmem:[%s391 + $0x160] sm:$0xff]
        %v506 = vld [vmem:[%s391 + $0x168] sm:$0xff]
        %v507 = vld [vmem:[%s391 + $0x170] sm:$0xff]
        %v508 = vld [vmem:[%s391 + $0x178] sm:$0xff]
        %v509 = vld [vmem:[%s391 + $0x180] sm:$0xff]
        %v510 = vld [vmem:[%s391 + $0x188] sm:$0xff]
        %v511 = vld [vmem:[%s391 + $0x190] sm:$0xff]
        %v512 = vld [vmem:[%s391 + $0x198] sm:$0xff]
        %v513 = vld [vmem:[%s391 + $0x1a0] sm:$0xff]
        %v514 = vld [vmem:[%s391 + $0x1a8] sm:$0xff]
        %v515 = vld [vmem:[%s391 + $0x1b0] sm:$0xff]
        %v516 = vld [vmem:[%s391 + $0x1b8] sm:$0xff]
        %v517 = vld [vmem:[%s391 + $0x1c0] sm:$0xff]
        %v518 = vld [vmem:[%s391 + $0x1c8] sm:$0xff]
        %v519 = vld [vmem:[%s391 + $0x1d0] sm:$0xff]
        %v520 = vld [vmem:[%s391 + $0x1d8] sm:$0xff]
        %v521 = vld [vmem:[%s391 + $0x1e0] sm:$0xff]
        %v522 = vld [vmem:[%s391 + $0x1e8] sm:$0xff]
        %v523 = vld [vmem:[%s391 + $0x1f0] sm:$0xff]
        %v524 = vld [vmem:[%s391 + $0x1f8] sm:$0xff]
        %v525 = vld [vmem:[%s391 + $0x200] sm:$0xff]
        %v526 = vld [vmem:[%s391 + $0x208] sm:$0xff]
        %v527 = vld [vmem:[%s391 + $0x210] sm:$0xff]
        %v528 = vld [vmem:[%s391 + $0x218] sm:$0xff]
        %v529 = vld [vmem:[%s391 + $0x220] sm:$0xff]
        %v530 = vld [vmem:[%s391 + $0x228] sm:$0xff]
        %v531 = vld [vmem:[%s391 + $0x230] sm:$0xff]
        %v532 = vld [vmem:[%s391 + $0x238] sm:$0xff]
        %v533 = vld [vmem:[%s391 + $0x240] sm:$0xff]
        %v534 = vld [vmem:[%s391 + $0x248] sm:$0xff]
        %v535 = vld [vmem:[%s391 + $0x250] sm:$0xff]
        %v536 = vld [vmem:[%s391 + $0x258] sm:$0xff]
        %v537 = vld [vmem:[%s391 + $0x260] sm:$0xff]
        %v538 = vld [vmem:[%s391 + $0x268] sm:$0xff]
        %v539 = vld [vmem:[%s391 + $0x270] sm:$0xff]
        %v540 = vld [vmem:[%s391 + $0x278] sm:$0xff]
        %v541 = vld [vmem:[%s391 + $0x280] sm:$0xff]
        %v542 = vld [vmem:[%s391 + $0x288] sm:$0xff]
        %v543 = vld [vmem:[%s391 + $0x290] sm:$0xff]
        %v544 = vld [vmem:[%s391 + $0x298] sm:$0xff]
        %v545 = vld [vmem:[%s391 + $0x2a0] sm:$0xff]
        %v546 = vld [vmem:[%s391 + $0x2a8] sm:$0xff]
        %v547 = vld [vmem:[%s391 + $0x2b0] sm:$0xff]
        %v548 = vld [vmem:[%s391 + $0x2b8] sm:$0xff]
        %v549 = vld [vmem:[%s391 + $0x2c0] sm:$0xff]
        %v550 = vld [vmem:[%s391 + $0x2c8] sm:$0xff]
        %v551 = vld [vmem:[%s391 + $0x2d0] sm:$0xff]
        %v552 = vld [vmem:[%s391 + $0x2d8] sm:$0xff]
        %v553 = vld [vmem:[%s391 + $0x2e0] sm:$0xff]
        %v554 = vld [vmem:[%s391 + $0x2e8] sm:$0xff]
        %v555 = vld [vmem:[%s391 + $0x2f0] sm:$0xff]
        %v556 = vld [vmem:[%s391 + $0x2f8] sm:$0xff]
        %v557 = vld [vmem:[%s391 + $0x300] sm:$0xff]
        %v558 = vld [vmem:[%s391 + $0x308] sm:$0xff]
        %v559 = vld [vmem:[%s391 + $0x310] sm:$0xff]
        %v560 = vld [vmem:[%s391 + $0x318] sm:$0xff]
        %v561 = vld [vmem:[%s391 + $0x320] sm:$0xff]
        %v562 = vld [vmem:[%s391 + $0x328] sm:$0xff]
        %v563 = vld [vmem:[%s391 + $0x330] sm:$0xff]
        %v564 = vld [vmem:[%s391 + $0x338] sm:$0xff]
        %v565 = vld [vmem:[%s391 + $0x340] sm:$0xff]
        %v566 = vld [vmem:[%s391 + $0x348] sm:$0xff]
        %v567 = vld [vmem:[%s391 + $0x350] sm:$0xff]
        %v568 = vld [vmem:[%s391 + $0x358] sm:$0xff]
        %v569 = vld [vmem:[%s391 + $0x360] sm:$0xff]
        %v570 = vld [vmem:[%s391 + $0x368] sm:$0xff]
        %v571 = vld [vmem:[%s391 + $0x370] sm:$0xff]
        %v572 = vld [vmem:[%s391 + $0x378] sm:$0xff]
        %v573 = vld [vmem:[%s391 + $0x380] sm:$0xff]
        %v574 = vld [vmem:[%s391 + $0x388] sm:$0xff]
        %v575 = vld [vmem:[%s391 + $0x390] sm:$0xff]
        %v576 = vld [vmem:[%s391 + $0x398] sm:$0xff]
        %v577 = vld [vmem:[%s391 + $0x3a0] sm:$0xff]
        %v578 = vld [vmem:[%s391 + $0x3a8] sm:$0xff]
        %v579 = vld [vmem:[%s391 + $0x3b0] sm:$0xff]
        %v580 = vld [vmem:[%s391 + $0x3b8] sm:$0xff]
        %v581 = vld [vmem:[%s391 + $0x3c0] sm:$0xff]
        %v582 = vld [vmem:[%s391 + $0x3c8] sm:$0xff]
        %v583 = vld [vmem:[%s391 + $0x3d0] sm:$0xff]
        %v584 = vld [vmem:[%s391 + $0x3d8] sm:$0xff]
        %v585 = vld [vmem:[%s391 + $0x3e0] sm:$0xff]
        %v586 = vld [vmem:[%s391 + $0x3e8] sm:$0xff]
        %v587 = vld [vmem:[%s391 + $0x3f0] sm:$0xff]
        %v588 = vld [vmem:[%s391 + $0x3f8] sm:$0xff]
        %v589 = vld [vmem:[%s391 + $0x400] sm:$0xff]
        %v590 = vld [vmem:[%s391 + $0x408] sm:$0xff]
        %v591 = vld [vmem:[%s391 + $0x410] sm:$0xff]
        %v592 = vld [vmem:[%s391 + $0x418] sm:$0xff]
        %v593 = vld [vmem:[%s391 + $0x420] sm:$0xff]
        %v594 = vld [vmem:[%s391 + $0x428] sm:$0xff]
        %v595 = vld [vmem:[%s391 + $0x430] sm:$0xff]
        %v596 = vld [vmem:[%s391 + $0x438] sm:$0xff]
        %v597 = vld [vmem:[%s391 + $0x440] sm:$0xff]
        %v598 = vld [vmem:[%s391 + $0x448] sm:$0xff]
        %v599 = vld [vmem:[%s391 + $0x450] sm:$0xff]
        %v600 = vld [vmem:[%s391 + $0x458] sm:$0xff]
        %v601 = vld [vmem:[%s391 + $0x460] sm:$0xff]
        %v602 = vld [vmem:[%s391 + $0x468] sm:$0xff]
        %v603 = vld [vmem:[%s391 + $0x470] sm:$0xff]
        %v604 = vld [vmem:[%s391 + $0x478] sm:$0xff]
        %v605 = vld [vmem:[%s391 + $0x480] sm:$0xff]
        %v606 = vld [vmem:[%s391 + $0x488] sm:$0xff]
        %v607 = vld [vmem:[%s391 + $0x490] sm:$0xff]
        %v608 = vld [vmem:[%s391 + $0x498] sm:$0xff]
        %v609 = vld [vmem:[%s391 + $0x4a0] sm:$0xff]
        %v610 = vld [vmem:[%s391 + $0x4a8] sm:$0xff]
        %v611 = vld [vmem:[%s391 + $0x4b0] sm:$0xff]
        %v612 = vld [vmem:[%s391 + $0x4b8] sm:$0xff]
        %v613 = vld [vmem:[%s391 + $0x4c0] sm:$0xff]
        %v614 = vld [vmem:[%s391 + $0x4c8] sm:$0xff]
        %v615 = vld [vmem:[%s391 + $0x4d0] sm:$0xff]
        %v616 = vld [vmem:[%s391 + $0x4d8] sm:$0xff]
        %v617 = vld [vmem:[%s391 + $0x4e0] sm:$0xff]
        %v618 = vld [vmem:[%s391 + $0x4e8] sm:$0xff]
        %v619 = vld [vmem:[%s391 + $0x4f0] sm:$0xff]
        %v620 = vld [vmem:[%s391 + $0x4f8] sm:$0xff]
        %v621 = vld [vmem:[#allocation5] sm:$0xf]
        %v622 = vld [vmem:[#allocation5 + $0x4] sm:$0xf]
        %v623 = vld [vmem:[#allocation5 + $0x8] sm:$0xf]
        %v624 = vld [vmem:[#allocation5 + $0xc] sm:$0xf]
        %v625 = vld [vmem:[#allocation5 + $0x10] sm:$0xf]
        %v626 = vld [vmem:[#allocation5 + $0x14] sm:$0xf]
        %v627 = vld [vmem:[#allocation5 + $0x18] sm:$0xf]
        %v628 = vld [vmem:[#allocation5 + $0x1c] sm:$0xf]
        %v629 = vld [vmem:[#allocation5 + $0x20] sm:$0xf]
        %v630 = vld [vmem:[#allocation5 + $0x24] sm:$0xf]
        %v631 = vld [vmem:[#allocation5 + $0x28] sm:$0xf]
        %v632 = vld [vmem:[#allocation5 + $0x2c] sm:$0xf]
        %v633 = vld [vmem:[#allocation5 + $0x30] sm:$0xf]
        %v634 = vld [vmem:[#allocation5 + $0x34] sm:$0xf]
        %v635 = vld [vmem:[#allocation5 + $0x38] sm:$0xf]
        %v636 = vld [vmem:[#allocation5 + $0x3c] sm:$0xf]
        %v637 = vld [vmem:[#allocation5 + $0x40] sm:$0xf]
        %v638 = vld [vmem:[#allocation5 + $0x44] sm:$0xf]
        %v639 = vld [vmem:[#allocation5 + $0x48] sm:$0xf]
        %v640 = vld [vmem:[#allocation5 + $0x4c] sm:$0xf]
        %v641 = vld [vmem:[#allocation5 + $0x50] sm:$0xf]
        %v642 = vld [vmem:[#allocation5 + $0x54] sm:$0xf]
        %v643 = vld [vmem:[#allocation5 + $0x58] sm:$0xf]
        %v644 = vld [vmem:[#allocation5 + $0x5c] sm:$0xf]
        %v645 = vld [vmem:[#allocation5 + $0x60] sm:$0xf]
        %v646 = vld [vmem:[#allocation5 + $0x64] sm:$0xf]
        %v647 = vld [vmem:[#allocation5 + $0x68] sm:$0xf]
        %v648 = vld [vmem:[#allocation5 + $0x6c] sm:$0xf]
        %v649 = vld [vmem:[#allocation5 + $0x70] sm:$0xf]
        %v650 = vld [vmem:[#allocation5 + $0x74] sm:$0xf]
        %v651 = vld [vmem:[#allocation5 + $0x78] sm:$0xf]
        %v652 = vld [vmem:[#allocation5 + $0x7c] sm:$0xf]
        %v813 = vunpack.c.l.b16 %v461
        %v814 = vunpack.c.h.b16 %v461
        %v815 = vunpack.c.l.b16 %v462
        %v816 = vunpack.c.h.b16 %v462
        %v817 = vunpack.c.l.b16 %v463
        %v818 = vunpack.c.h.b16 %v463
        %v819 = vunpack.c.l.b16 %v464
        %v820 = vunpack.c.h.b16 %v464
        %v821 = vunpack.c.l.b16 %v465
        %v822 = vunpack.c.h.b16 %v465
        %v823 = vunpack.c.l.b16 %v466
        %v824 = vunpack.c.h.b16 %v466
        %v825 = vunpack.c.l.b16 %v467
        %v826 = vunpack.c.h.b16 %v467
        %v827 = vunpack.c.l.b16 %v468
        %v828 = vunpack.c.h.b16 %v468
        %v829 = vunpack.c.l.b16 %v469
        %v830 = vunpack.c.h.b16 %v469
        %v831 = vunpack.c.l.b16 %v470
        %v832 = vunpack.c.h.b16 %v470
        %v833 = vunpack.c.l.b16 %v471
        %v834 = vunpack.c.h.b16 %v471
        %v835 = vunpack.c.l.b16 %v472
        %v836 = vunpack.c.h.b16 %v472
        %v837 = vunpack.c.l.b16 %v473
        %v838 = vunpack.c.h.b16 %v473
        %v839 = vunpack.c.l.b16 %v474
        %v840 = vunpack.c.h.b16 %v474
        %v841 = vunpack.c.l.b16 %v475
        %v842 = vunpack.c.h.b16 %v475
        %v843 = vunpack.c.l.b16 %v476
        %v844 = vunpack.c.h.b16 %v476
        %v845 = vunpack.c.l.b16 %v477
        %v846 = vunpack.c.h.b16 %v477
        %v847 = vunpack.c.l.b16 %v478
        %v848 = vunpack.c.h.b16 %v478
        %v849 = vunpack.c.l.b16 %v479
        %v850 = vunpack.c.h.b16 %v479
        %v851 = vunpack.c.l.b16 %v480
        %v852 = vunpack.c.h.b16 %v480
        %v853 = vunpack.c.l.b16 %v481
        %v854 = vunpack.c.h.b16 %v481
        %v855 = vunpack.c.l.b16 %v482
        %v856 = vunpack.c.h.b16 %v482
        %v857 = vunpack.c.l.b16 %v483
        %v858 = vunpack.c.h.b16 %v483
        %v859 = vunpack.c.l.b16 %v484
        %v860 = vunpack.c.h.b16 %v484
        %v861 = vunpack.c.l.b16 %v485
        %v862 = vunpack.c.h.b16 %v485
        %v863 = vunpack.c.l.b16 %v486
        %v864 = vunpack.c.h.b16 %v486
        %v865 = vunpack.c.l.b16 %v487
        %v866 = vunpack.c.h.b16 %v487
        %v867 = vunpack.c.l.b16 %v488
        %v868 = vunpack.c.h.b16 %v488
        %v869 = vunpack.c.l.b16 %v489
        %v870 = vunpack.c.h.b16 %v489
        %v871 = vunpack.c.l.b16 %v490
        %v872 = vunpack.c.h.b16 %v490
        %v873 = vunpack.c.l.b16 %v491
        %v874 = vunpack.c.h.b16 %v491
        %v875 = vunpack.c.l.b16 %v492
        %v876 = vunpack.c.h.b16 %v492
        %v877 = vunpack.c.l.b16 %v493
        %v878 = vunpack.c.h.b16 %v493
        %v879 = vunpack.c.l.b16 %v494
        %v880 = vunpack.c.h.b16 %v494
        %v881 = vunpack.c.l.b16 %v495
        %v882 = vunpack.c.h.b16 %v495
        %v883 = vunpack.c.l.b16 %v496
        %v884 = vunpack.c.h.b16 %v496
        %v885 = vunpack.c.l.b16 %v497
        %v886 = vunpack.c.h.b16 %v497
        %v887 = vunpack.c.l.b16 %v498
        %v888 = vunpack.c.h.b16 %v498
        %v889 = vunpack.c.l.b16 %v499
        %v890 = vunpack.c.h.b16 %v499
        %v891 = vunpack.c.l.b16 %v500
        %v892 = vunpack.c.h.b16 %v500
        %v893 = vunpack.c.l.b16 %v501
        %v894 = vunpack.c.h.b16 %v501
        %v895 = vunpack.c.l.b16 %v502
        %v896 = vunpack.c.h.b16 %v502
        %v897 = vunpack.c.l.b16 %v503
        %v898 = vunpack.c.h.b16 %v503
        %v899 = vunpack.c.l.b16 %v504
        %v900 = vunpack.c.h.b16 %v504
        %v901 = vunpack.c.l.b16 %v505
        %v902 = vunpack.c.h.b16 %v505
        %v903 = vunpack.c.l.b16 %v506
        %v904 = vunpack.c.h.b16 %v506
        %v905 = vunpack.c.l.b16 %v507
        %v906 = vunpack.c.h.b16 %v507
        %v907 = vunpack.c.l.b16 %v508
        %v908 = vunpack.c.h.b16 %v508
        %v909 = vunpack.c.l.b16 %v509
        %v910 = vunpack.c.h.b16 %v509
        %v911 = vunpack.c.l.b16 %v510
        %v912 = vunpack.c.h.b16 %v510
        %v913 = vunpack.c.l.b16 %v511
        %v914 = vunpack.c.h.b16 %v511
        %v915 = vunpack.c.l.b16 %v512
        %v916 = vunpack.c.h.b16 %v512
        %v917 = vunpack.c.l.b16 %v513
        %v918 = vunpack.c.h.b16 %v513
        %v919 = vunpack.c.l.b16 %v514
        %v920 = vunpack.c.h.b16 %v514
        %v921 = vunpack.c.l.b16 %v515
        %v922 = vunpack.c.h.b16 %v515
        %v923 = vunpack.c.l.b16 %v516
        %v924 = vunpack.c.h.b16 %v516
        %v925 = vunpack.c.l.b16 %v517
        %v926 = vunpack.c.h.b16 %v517
        %v927 = vunpack.c.l.b16 %v518
        %v928 = vunpack.c.h.b16 %v518
        %v929 = vunpack.c.l.b16 %v519
        %v930 = vunpack.c.h.b16 %v519
        %v931 = vunpack.c.l.b16 %v520
        %v932 = vunpack.c.h.b16 %v520
        %v933 = vunpack.c.l.b16 %v521
        %v934 = vunpack.c.h.b16 %v521
        %v935 = vunpack.c.l.b16 %v522
        %v936 = vunpack.c.h.b16 %v522
        %v937 = vunpack.c.l.b16 %v523
        %v938 = vunpack.c.h.b16 %v523
        %v939 = vunpack.c.l.b16 %v524
        %v940 = vunpack.c.h.b16 %v524
        %v941 = vunpack.c.l.b16 %v525
        %v942 = vunpack.c.h.b16 %v525
        %v943 = vunpack.c.l.b16 %v526
        %v944 = vunpack.c.h.b16 %v526
        %v945 = vunpack.c.l.b16 %v527
        %v946 = vunpack.c.h.b16 %v527
        %v947 = vunpack.c.l.b16 %v528
        %v948 = vunpack.c.h.b16 %v528
        %v949 = vunpack.c.l.b16 %v529
        %v950 = vunpack.c.h.b16 %v529
        %v951 = vunpack.c.l.b16 %v530
        %v952 = vunpack.c.h.b16 %v530
        %v953 = vunpack.c.l.b16 %v531
        %v954 = vunpack.c.h.b16 %v531
        %v955 = vunpack.c.l.b16 %v532
        %v956 = vunpack.c.h.b16 %v532
        %v957 = vunpack.c.l.b16 %v533
        %v958 = vunpack.c.h.b16 %v533
        %v959 = vunpack.c.l.b16 %v534
        %v960 = vunpack.c.h.b16 %v534
        %v961 = vunpack.c.l.b16 %v535
        %v962 = vunpack.c.h.b16 %v535
        %v963 = vunpack.c.l.b16 %v536
        %v964 = vunpack.c.h.b16 %v536
        %v965 = vunpack.c.l.b16 %v537
        %v966 = vunpack.c.h.b16 %v537
        %v967 = vunpack.c.l.b16 %v538
        %v968 = vunpack.c.h.b16 %v538
        %v969 = vunpack.c.l.b16 %v539
        %v970 = vunpack.c.h.b16 %v539
        %v971 = vunpack.c.l.b16 %v540
        %v972 = vunpack.c.h.b16 %v540
        %v973 = vunpack.c.l.b16 %v541
        %v974 = vunpack.c.h.b16 %v541
        %v975 = vunpack.c.l.b16 %v542
        %v976 = vunpack.c.h.b16 %v542
        %v977 = vunpack.c.l.b16 %v543
        %v978 = vunpack.c.h.b16 %v543
        %v979 = vunpack.c.l.b16 %v544
        %v980 = vunpack.c.h.b16 %v544
        %v981 = vunpack.c.l.b16 %v545
        %v982 = vunpack.c.h.b16 %v545
        %v983 = vunpack.c.l.b16 %v546
        %v984 = vunpack.c.h.b16 %v546
        %v985 = vunpack.c.l.b16 %v547
        %v986 = vunpack.c.h.b16 %v547
        %v987 = vunpack.c.l.b16 %v548
        %v988 = vunpack.c.h.b16 %v548
        %v989 = vunpack.c.l.b16 %v549
        %v990 = vunpack.c.h.b16 %v549
        %v991 = vunpack.c.l.b16 %v550
        %v992 = vunpack.c.h.b16 %v550
        %v993 = vunpack.c.l.b16 %v551
        %v994 = vunpack.c.h.b16 %v551
        %v995 = vunpack.c.l.b16 %v552
        %v996 = vunpack.c.h.b16 %v552
        %v997 = vunpack.c.l.b16 %v553
        %v998 = vunpack.c.h.b16 %v553
        %v999 = vunpack.c.l.b16 %v554
        %v1000 = vunpack.c.h.b16 %v554
        %v1001 = vunpack.c.l.b16 %v555
        %v1002 = vunpack.c.h.b16 %v555
        %v1003 = vunpack.c.l.b16 %v556
        %v1004 = vunpack.c.h.b16 %v556
        %v1005 = vunpack.c.l.b16 %v557
        %v1006 = vunpack.c.h.b16 %v557
        %v1007 = vunpack.c.l.b16 %v558
        %v1008 = vunpack.c.h.b16 %v558
        %v1009 = vunpack.c.l.b16 %v559
        %v1010 = vunpack.c.h.b16 %v559
        %v1011 = vunpack.c.l.b16 %v560
        %v1012 = vunpack.c.h.b16 %v560
        %v1013 = vunpack.c.l.b16 %v561
        %v1014 = vunpack.c.h.b16 %v561
        %v1015 = vunpack.c.l.b16 %v562
        %v1016 = vunpack.c.h.b16 %v562
        %v1017 = vunpack.c.l.b16 %v563
        %v1018 = vunpack.c.h.b16 %v563
        %v1019 = vunpack.c.l.b16 %v564
        %v1020 = vunpack.c.h.b16 %v564
        %v1021 = vunpack.c.l.b16 %v565
        %v1022 = vunpack.c.h.b16 %v565
        %v1023 = vunpack.c.l.b16 %v566
        %v1024 = vunpack.c.h.b16 %v566
        %v1025 = vunpack.c.l.b16 %v567
        %v1026 = vunpack.c.h.b16 %v567
        %v1027 = vunpack.c.l.b16 %v568
        %v1028 = vunpack.c.h.b16 %v568
        %v1029 = vunpack.c.l.b16 %v569
        %v1030 = vunpack.c.h.b16 %v569
        %v1031 = vunpack.c.l.b16 %v570
        %v1032 = vunpack.c.h.b16 %v570
        %v1033 = vunpack.c.l.b16 %v571
        %v1034 = vunpack.c.h.b16 %v571
        %v1035 = vunpack.c.l.b16 %v572
        %v1036 = vunpack.c.h.b16 %v572
        %v1037 = vunpack.c.l.b16 %v573
        %v1038 = vunpack.c.h.b16 %v573
        %v1039 = vunpack.c.l.b16 %v574
        %v1040 = vunpack.c.h.b16 %v574
        %v1041 = vunpack.c.l.b16 %v575
        %v1042 = vunpack.c.h.b16 %v575
        %v1043 = vunpack.c.l.b16 %v576
        %v1044 = vunpack.c.h.b16 %v576
        %v1045 = vunpack.c.l.b16 %v577
        %v1046 = vunpack.c.h.b16 %v577
        %v1047 = vunpack.c.l.b16 %v578
        %v1048 = vunpack.c.h.b16 %v578
        %v1049 = vunpack.c.l.b16 %v579
        %v1050 = vunpack.c.h.b16 %v579
        %v1051 = vunpack.c.l.b16 %v580
        %v1052 = vunpack.c.h.b16 %v580
        %v1053 = vunpack.c.l.b16 %v581
        %v1054 = vunpack.c.h.b16 %v581
        %v1055 = vunpack.c.l.b16 %v582
        %v1056 = vunpack.c.h.b16 %v582
        %v1057 = vunpack.c.l.b16 %v583
        %v1058 = vunpack.c.h.b16 %v583
        %v1059 = vunpack.c.l.b16 %v584
        %v1060 = vunpack.c.h.b16 %v584
        %v1061 = vunpack.c.l.b16 %v585
        %v1062 = vunpack.c.h.b16 %v585
        %v1063 = vunpack.c.l.b16 %v586
        %v1064 = vunpack.c.h.b16 %v586
        %v1065 = vunpack.c.l.b16 %v587
        %v1066 = vunpack.c.h.b16 %v587
        %v1067 = vunpack.c.l.b16 %v588
        %v1068 = vunpack.c.h.b16 %v588
        %v1069 = vunpack.c.l.b16 %v589
        %v1070 = vunpack.c.h.b16 %v589
        %v1071 = vunpack.c.l.b16 %v590
        %v1072 = vunpack.c.h.b16 %v590
        %v1073 = vunpack.c.l.b16 %v591
        %v1074 = vunpack.c.h.b16 %v591
        %v1075 = vunpack.c.l.b16 %v592
        %v1076 = vunpack.c.h.b16 %v592
        %v1077 = vunpack.c.l.b16 %v593
        %v1078 = vunpack.c.h.b16 %v593
        %v1079 = vunpack.c.l.b16 %v594
        %v1080 = vunpack.c.h.b16 %v594
        %v1081 = vunpack.c.l.b16 %v595
        %v1082 = vunpack.c.h.b16 %v595
        %v1083 = vunpack.c.l.b16 %v596
        %v1084 = vunpack.c.h.b16 %v596
        %v1085 = vunpack.c.l.b16 %v597
        %v1086 = vunpack.c.h.b16 %v597
        %v1087 = vunpack.c.l.b16 %v598
        %v1088 = vunpack.c.h.b16 %v598
        %v1089 = vunpack.c.l.b16 %v599
        %v1090 = vunpack.c.h.b16 %v599
        %v1091 = vunpack.c.l.b16 %v600
        %v1092 = vunpack.c.h.b16 %v600
        %v1093 = vunpack.c.l.b16 %v601
        %v1094 = vunpack.c.h.b16 %v601
        %v1095 = vunpack.c.l.b16 %v602
        %v1096 = vunpack.c.h.b16 %v602
        %v1097 = vunpack.c.l.b16 %v603
        %v1098 = vunpack.c.h.b16 %v603
        %v1099 = vunpack.c.l.b16 %v604
        %v1100 = vunpack.c.h.b16 %v604
        %v1101 = vunpack.c.l.b16 %v605
        %v1102 = vunpack.c.h.b16 %v605
        %v1103 = vunpack.c.l.b16 %v606
        %v1104 = vunpack.c.h.b16 %v606
        %v1105 = vunpack.c.l.b16 %v607
        %v1106 = vunpack.c.h.b16 %v607
        %v1107 = vunpack.c.l.b16 %v608
        %v1108 = vunpack.c.h.b16 %v608
        %v1109 = vunpack.c.l.b16 %v609
        %v1110 = vunpack.c.h.b16 %v609
        %v1111 = vunpack.c.l.b16 %v610
        %v1112 = vunpack.c.h.b16 %v610
        %v1113 = vunpack.c.l.b16 %v611
        %v1114 = vunpack.c.h.b16 %v611
        %v1115 = vunpack.c.l.b16 %v612
        %v1116 = vunpack.c.h.b16 %v612
        %v1117 = vunpack.c.l.b16 %v613
        %v1118 = vunpack.c.h.b16 %v613
        %v1119 = vunpack.c.l.b16 %v614
        %v1120 = vunpack.c.h.b16 %v614
        %v1121 = vunpack.c.l.b16 %v615
        %v1122 = vunpack.c.h.b16 %v615
        %v1123 = vunpack.c.l.b16 %v616
        %v1124 = vunpack.c.h.b16 %v616
        %v1125 = vunpack.c.l.b16 %v617
        %v1126 = vunpack.c.h.b16 %v617
        %v1127 = vunpack.c.l.b16 %v618
        %v1128 = vunpack.c.h.b16 %v618
        %v1129 = vunpack.c.l.b16 %v619
        %v1130 = vunpack.c.h.b16 %v619
        %v1131 = vunpack.c.l.b16 %v620
        %v1132 = vunpack.c.h.b16 %v620
        %v1133 = vpack.c.b16 %v815, %v813
        %v1134 = vpack.c.b16 %v816, %v814
        %v1135 = vpack.c.b16 %v819, %v817
        %v1136 = vpack.c.b16 %v820, %v818
        %v1137 = vpack.c.b16 %v823, %v821
        %v1138 = vpack.c.b16 %v824, %v822
        %v1139 = vpack.c.b16 %v827, %v825
        %v1140 = vpack.c.b16 %v828, %v826
        %v1141 = vpack.c.b16 %v831, %v829
        %v1142 = vpack.c.b16 %v832, %v830
        %v1143 = vpack.c.b16 %v835, %v833
        %v1144 = vpack.c.b16 %v836, %v834
        %v1145 = vpack.c.b16 %v839, %v837
        %v1146 = vpack.c.b16 %v840, %v838
        %v1147 = vpack.c.b16 %v843, %v841
        %v1148 = vpack.c.b16 %v844, %v842
        %v1149 = vpack.c.b16 %v847, %v845
        %v1150 = vpack.c.b16 %v848, %v846
        %v1151 = vpack.c.b16 %v851, %v849
        %v1152 = vpack.c.b16 %v852, %v850
        %v1153 = vpack.c.b16 %v855, %v853
        %v1154 = vpack.c.b16 %v856, %v854
        %v1155 = vpack.c.b16 %v859, %v857
        %v1156 = vpack.c.b16 %v860, %v858
        %v1157 = vpack.c.b16 %v863, %v861
        %v1158 = vpack.c.b16 %v864, %v862
        %v1159 = vpack.c.b16 %v867, %v865
        %v1160 = vpack.c.b16 %v868, %v866
        %v1161 = vpack.c.b16 %v871, %v869
        %v1162 = vpack.c.b16 %v872, %v870
        %v1163 = vpack.c.b16 %v875, %v873
        %v1164 = vpack.c.b16 %v876, %v874
        %v1165 = vpack.c.b16 %v879, %v877
        %v1166 = vpack.c.b16 %v880, %v878
        %v1167 = vpack.c.b16 %v883, %v881
        %v1168 = vpack.c.b16 %v884, %v882
        %v1169 = vpack.c.b16 %v887, %v885
        %v1170 = vpack.c.b16 %v888, %v886
        %v1171 = vpack.c.b16 %v891, %v889
        %v1172 = vpack.c.b16 %v892, %v890
        %v1173 = vpack.c.b16 %v895, %v893
        %v1174 = vpack.c.b16 %v896, %v894
        %v1175 = vpack.c.b16 %v899, %v897
        %v1176 = vpack.c.b16 %v900, %v898
        %v1177 = vpack.c.b16 %v903, %v901
        %v1178 = vpack.c.b16 %v904, %v902
        %v1179 = vpack.c.b16 %v907, %v905
        %v1180 = vpack.c.b16 %v908, %v906
        %v1181 = vpack.c.b16 %v911, %v909
        %v1182 = vpack.c.b16 %v912, %v910
        %v1183 = vpack.c.b16 %v915, %v913
        %v1184 = vpack.c.b16 %v916, %v914
        %v1185 = vpack.c.b16 %v919, %v917
        %v1186 = vpack.c.b16 %v920, %v918
        %v1187 = vpack.c.b16 %v923, %v921
        %v1188 = vpack.c.b16 %v924, %v922
        %v1189 = vpack.c.b16 %v927, %v925
        %v1190 = vpack.c.b16 %v928, %v926
        %v1191 = vpack.c.b16 %v931, %v929
        %v1192 = vpack.c.b16 %v932, %v930
        %v1193 = vpack.c.b16 %v935, %v933
        %v1194 = vpack.c.b16 %v936, %v934
        %v1195 = vpack.c.b16 %v939, %v937
        %v1196 = vpack.c.b16 %v940, %v938
        %v1197 = vpack.c.b16 %v943, %v941
        %v1198 = vpack.c.b16 %v944, %v942
        %v1199 = vpack.c.b16 %v947, %v945
        %v1200 = vpack.c.b16 %v948, %v946
        %v1201 = vpack.c.b16 %v951, %v949
        %v1202 = vpack.c.b16 %v952, %v950
        %v1203 = vpack.c.b16 %v955, %v953
        %v1204 = vpack.c.b16 %v956, %v954
        %v1205 = vpack.c.b16 %v959, %v957
        %v1206 = vpack.c.b16 %v960, %v958
        %v1207 = vpack.c.b16 %v963, %v961
        %v1208 = vpack.c.b16 %v964, %v962
        %v1209 = vpack.c.b16 %v967, %v965
        %v1210 = vpack.c.b16 %v968, %v966
        %v1211 = vpack.c.b16 %v971, %v969
        %v1212 = vpack.c.b16 %v972, %v970
        %v1213 = vpack.c.b16 %v975, %v973
        %v1214 = vpack.c.b16 %v976, %v974
        %v1215 = vpack.c.b16 %v979, %v977
        %v1216 = vpack.c.b16 %v980, %v978
        %v1217 = vpack.c.b16 %v983, %v981
        %v1218 = vpack.c.b16 %v984, %v982
        %v1219 = vpack.c.b16 %v987, %v985
        %v1220 = vpack.c.b16 %v988, %v986
        %v1221 = vpack.c.b16 %v991, %v989
        %v1222 = vpack.c.b16 %v992, %v990
        %v1223 = vpack.c.b16 %v995, %v993
        %v1224 = vpack.c.b16 %v996, %v994
        %v1225 = vpack.c.b16 %v999, %v997
        %v1226 = vpack.c.b16 %v1000, %v998
        %v1227 = vpack.c.b16 %v1003, %v1001
        %v1228 = vpack.c.b16 %v1004, %v1002
        %v1229 = vpack.c.b16 %v1007, %v1005
        %v1230 = vpack.c.b16 %v1008, %v1006
        %v1231 = vpack.c.b16 %v1011, %v1009
        %v1232 = vpack.c.b16 %v1012, %v1010
        %v1233 = vpack.c.b16 %v1015, %v1013
        %v1234 = vpack.c.b16 %v1016, %v1014
        %v1235 = vpack.c.b16 %v1019, %v1017
        %v1236 = vpack.c.b16 %v1020, %v1018
        %v1237 = vpack.c.b16 %v1023, %v1021
        %v1238 = vpack.c.b16 %v1024, %v1022
        %v1239 = vpack.c.b16 %v1027, %v1025
        %v1240 = vpack.c.b16 %v1028, %v1026
        %v1241 = vpack.c.b16 %v1031, %v1029
        %v1242 = vpack.c.b16 %v1032, %v1030
        %v1243 = vpack.c.b16 %v1035, %v1033
        %v1244 = vpack.c.b16 %v1036, %v1034
        %v1245 = vpack.c.b16 %v1039, %v1037
        %v1246 = vpack.c.b16 %v1040, %v1038
        %v1247 = vpack.c.b16 %v1043, %v1041
        %v1248 = vpack.c.b16 %v1044, %v1042
        %v1249 = vpack.c.b16 %v1047, %v1045
        %v1250 = vpack.c.b16 %v1048, %v1046
        %v1251 = vpack.c.b16 %v1051, %v1049
        %v1252 = vpack.c.b16 %v1052, %v1050
        %v1253 = vpack.c.b16 %v1055, %v1053
        %v1254 = vpack.c.b16 %v1056, %v1054
        %v1255 = vpack.c.b16 %v1059, %v1057
        %v1256 = vpack.c.b16 %v1060, %v1058
        %v1257 = vpack.c.b16 %v1063, %v1061
        %v1258 = vpack.c.b16 %v1064, %v1062
        %v1259 = vpack.c.b16 %v1067, %v1065
        %v1260 = vpack.c.b16 %v1068, %v1066
        %v1261 = vpack.c.b16 %v1071, %v1069
        %v1262 = vpack.c.b16 %v1072, %v1070
        %v1263 = vpack.c.b16 %v1075, %v1073
        %v1264 = vpack.c.b16 %v1076, %v1074
        %v1265 = vpack.c.b16 %v1079, %v1077
        %v1266 = vpack.c.b16 %v1080, %v1078
        %v1267 = vpack.c.b16 %v1083, %v1081
        %v1268 = vpack.c.b16 %v1084, %v1082
        %v1269 = vpack.c.b16 %v1087, %v1085
        %v1270 = vpack.c.b16 %v1088, %v1086
        %v1271 = vpack.c.b16 %v1091, %v1089
        %v1272 = vpack.c.b16 %v1092, %v1090
        %v1273 = vpack.c.b16 %v1095, %v1093
        %v1274 = vpack.c.b16 %v1096, %v1094
        %v1275 = vpack.c.b16 %v1099, %v1097
        %v1276 = vpack.c.b16 %v1100, %v1098
        %v1277 = vpack.c.b16 %v1103, %v1101
        %v1278 = vpack.c.b16 %v1104, %v1102
        %v1279 = vpack.c.b16 %v1107, %v1105
        %v1280 = vpack.c.b16 %v1108, %v1106
        %v1281 = vpack.c.b16 %v1111, %v1109
        %v1282 = vpack.c.b16 %v1112, %v1110
        %v1283 = vpack.c.b16 %v1115, %v1113
        %v1284 = vpack.c.b16 %v1116, %v1114
        %v1285 = vpack.c.b16 %v1119, %v1117
        %v1286 = vpack.c.b16 %v1120, %v1118
        %v1287 = vpack.c.b16 %v1123, %v1121
        %v1288 = vpack.c.b16 %v1124, %v1122
        %v1289 = vpack.c.b16 %v1127, %v1125
        %v1290 = vpack.c.b16 %v1128, %v1126
        %v1291 = vpack.c.b16 %v1131, %v1129
        %v1292 = vpack.c.b16 %v1132, %v1130
        %v1485 = vunpack.c.l.b16 %v621
        %v1486 = vunpack.c.l.b16 %v622
        %v1487 = vunpack.c.l.b16 %v623
        %v1488 = vunpack.c.l.b16 %v624
        %v1489 = vunpack.c.l.b16 %v625
        %v1490 = vunpack.c.l.b16 %v626
        %v1491 = vunpack.c.l.b16 %v627
        %v1492 = vunpack.c.l.b16 %v628
        %v1493 = vunpack.c.l.b16 %v629
        %v1494 = vunpack.c.l.b16 %v630
        %v1495 = vunpack.c.l.b16 %v631
        %v1496 = vunpack.c.l.b16 %v632
        %v1497 = vunpack.c.l.b16 %v633
        %v1498 = vunpack.c.l.b16 %v634
        %v1499 = vunpack.c.l.b16 %v635
        %v1500 = vunpack.c.l.b16 %v636
        %v1501 = vunpack.c.l.b16 %v637
        %v1502 = vunpack.c.l.b16 %v638
        %v1503 = vunpack.c.l.b16 %v639
        %v1504 = vunpack.c.l.b16 %v640
        %v1505 = vunpack.c.l.b16 %v641
        %v1506 = vunpack.c.l.b16 %v642
        %v1507 = vunpack.c.l.b16 %v643
        %v1508 = vunpack.c.l.b16 %v644
        %v1509 = vunpack.c.l.b16 %v645
        %v1510 = vunpack.c.l.b16 %v646
        %v1511 = vunpack.c.l.b16 %v647
        %v1512 = vunpack.c.l.b16 %v648
        %v1513 = vunpack.c.l.b16 %v649
        %v1514 = vunpack.c.l.b16 %v650
        %v1515 = vunpack.c.l.b16 %v651
        %v1516 = vunpack.c.l.b16 %v652
        %v1517 = vpack.c.b16 %v1486, %v1485
        %v1518 = vpack.c.b16 %v1488, %v1487
        %v1519 = vpack.c.b16 %v1490, %v1489
        %v1520 = vpack.c.b16 %v1492, %v1491
        %v1521 = vpack.c.b16 %v1494, %v1493
        %v1522 = vpack.c.b16 %v1496, %v1495
        %v1523 = vpack.c.b16 %v1498, %v1497
        %v1524 = vpack.c.b16 %v1500, %v1499
        %v1525 = vpack.c.b16 %v1502, %v1501
        %v1526 = vpack.c.b16 %v1504, %v1503
        %v1527 = vpack.c.b16 %v1506, %v1505
        %v1528 = vpack.c.b16 %v1508, %v1507
        %v1529 = vpack.c.b16 %v1510, %v1509
        %v1530 = vpack.c.b16 %v1512, %v1511
        %v1531 = vpack.c.b16 %v1514, %v1513
        %v1532 = vpack.c.b16 %v1516, %v1515
        %1549 = vmatprep.subr.bf16.mxu0 0
        %1550 = vmatpush1.bf16.msra.mxu0 %v1517
        %1551 = vmatprep.subr.bf16.mxu0 0
        %1552 = vmatpush1.bf16.msra.mxu0 %v1518
        %1553 = vmatprep.subr.bf16.mxu0 0
        %1554 = vmatpush1.bf16.msra.mxu0 %v1519
        %1555 = vmatprep.subr.bf16.mxu0 0
        %1556 = vmatpush1.bf16.msra.mxu0 %v1520
        %1557 = vmatprep.subr.bf16.mxu0 0
        %1558 = vmatpush1.bf16.msra.mxu0 %v1521
        %1559 = vmatprep.subr.bf16.mxu0 0
        %1560 = vmatpush1.bf16.msra.mxu0 %v1522
        %1561 = vmatprep.subr.bf16.mxu0 0
        %1562 = vmatpush1.bf16.msra.mxu0 %v1523
        %1563 = vmatprep.subr.bf16.mxu0 0
        %1564 = vmatpush1.bf16.msra.mxu0 %v1524
        %1565 = vmatprep.subr.bf16.mxu0 0
        %1566 = vmatpush1.bf16.msra.mxu0 %v1525
        %1567 = vmatprep.subr.bf16.mxu0 0
        %1568 = vmatpush1.bf16.msra.mxu0 %v1526
        %1569 = vmatprep.subr.bf16.mxu0 0
        %1570 = vmatpush1.bf16.msra.mxu0 %v1527
        %1571 = vmatprep.subr.bf16.mxu0 0
        %1572 = vmatpush1.bf16.msra.mxu0 %v1528
        %1573 = vmatprep.subr.bf16.mxu0 0
        %1574 = vmatpush1.bf16.msra.mxu0 %v1529
        %1575 = vmatprep.subr.bf16.mxu0 0
        %1576 = vmatpush1.bf16.msra.mxu0 %v1530
        %1577 = vmatprep.subr.bf16.mxu0 0
        %1578 = vmatpush1.bf16.msra.mxu0 %v1531
        %1579 = vmatprep.subr.bf16.mxu0 0
        %1580 = vmatpush1.bf16.msra.mxu0 %v1532
        %1581 = vmatprep.mubr.bf16.mxu0 %v1134
        %1582 = vmatmul.mubr.bf16.gmra.mrb[0].mxu0 %v1133
        %v1583 = vpop.f32.mrb[0].mxu0
        %v1584 = vadd.f32 0.0, %v1583
        %v1585 = vpop.f32.mrb[0].mxu0
        %v1586 = vpop.f32.mrb[0].mxu0
        %v1587 = vadd.f32 0.0, %v1586
        %v1588 = vpop.f32.mrb[0].mxu0
        %1589 = vmatprep.mubr.bf16.mxu0 %v1136
        %1590 = vmatmul.mubr.bf16.gmra.mrb[0].mxu0 %v1135
        %v1591 = vpop.f32.mrb[0].mxu0
        %v1592 = vadd.f32 0.0, %v1591
        %v1593 = vpop.f32.mrb[0].mxu0
        %v1594 = vpop.f32.mrb[0].mxu0
        %v1595 = vadd.f32 0.0, %v1594
        %v1596 = vpop.f32.mrb[0].mxu0
        %1597 = vmatprep.mubr.bf16.mxu0 %v1138
        %1598 = vmatmul.mubr.bf16.gmra.mrb[0].mxu0 %v1137
        %v1599 = vpop.f32.mrb[0].mxu0
        %v1600 = vadd.f32 0.0, %v1599
        %v1601 = vpop.f32.mrb[0].mxu0
        %v1602 = vpop.f32.mrb[0].mxu0
        %v1603 = vadd.f32 0.0, %v1602
        %v1604 = vpop.f32.mrb[0].mxu0
        %1605 = vmatprep.mubr.bf16.mxu0 %v1140
        %1606 = vmatmul.mubr.bf16.gmra.mrb[0].mxu0 %v1139
        %v1607 = vpop.f32.mrb[0].mxu0
        %v1608 = vadd.f32 0.0, %v1607
        %v1609 = vpop.f32.mrb[0].mxu0
        %v1610 = vpop.f32.mrb[0].mxu0
        %v1611 = vadd.f32 0.0, %v1610
        %v1612 = vpop.f32.mrb[0].mxu0
        %1613 = vmatprep.mubr.bf16.mxu0 %v1142
        %1614 = vmatmul.mubr.bf16.gmra.mrb[0].mxu0 %v1141
        %v1615 = vpop.f32.mrb[0].mxu0
        %v1616 = vadd.f32 0.0, %v1615
        %v1617 = vpop.f32.mrb[0].mxu0
        %v1618 = vpop.f32.mrb[0].mxu0
        %v1619 = vadd.f32 0.0, %v1618
        %v1620 = vpop.f32.mrb[0].mxu0
        %1621 = vmatprep.mubr.bf16.mxu0 %v1144
        %1622 = vmatmul.mubr.bf16.gmra.mrb[0].mxu0 %v1143
        %v1623 = vpop.f32.mrb[0].mxu0
        %v1624 = vadd.f32 0.0, %v1623
        %v1625 = vpop.f32.mrb[0].mxu0
        %v1626 = vpop.f32.mrb[0].mxu0
        %v1627 = vadd.f32 0.0, %v1626
        %v1628 = vpop.f32.mrb[0].mxu0
        %1629 = vmatprep.mubr.bf16.mxu0 %v1146
        %1630 = vmatmul.mubr.bf16.gmra.mrb[0].mxu0 %v1145
        %v1631 = vpop.f32.mrb[0].mxu0
        %v1632 = vadd.f32 0.0, %v1631
        %v1633 = vpop.f32.mrb[0].mxu0
        %v1634 = vpop.f32.mrb[0].mxu0
        %v1635 = vadd.f32 0.0, %v1634
        %v1636 = vpop.f32.mrb[0].mxu0
        %1637 = vmatprep.mubr.bf16.mxu0 %v1148
        %1638 = vmatmul.mubr.bf16.gmra.mrb[0].mxu0 %v1147
        %v1639 = vpop.f32.mrb[0].mxu0
        %v1640 = vadd.f32 0.0, %v1639
        %v1641 = vpop.f32.mrb[0].mxu0
        %v1642 = vpop.f32.mrb[0].mxu0
        %v1643 = vadd.f32 0.0, %v1642
        %v1644 = vpop.f32.mrb[0].mxu0
        %1645 = vmatprep.mubr.bf16.mxu0 %v1150
        %1646 = vmatmul.mubr.bf16.gmra.mrb[0].mxu0 %v1149
        %v1647 = vpop.f32.mrb[0].mxu0
        %v1648 = vadd.f32 0.0, %v1647
        %v1649 = vpop.f32.mrb[0].mxu0
        %v1650 = vpop.f32.mrb[0].mxu0
        %v1651 = vadd.f32 0.0, %v1650
        %v1652 = vpop.f32.mrb[0].mxu0
        %1653 = vmatprep.mubr.bf16.mxu0 %v1152
        %1654 = vmatmul.mubr.bf16.gmra.mrb[0].mxu0 %v1151
        %v1655 = vpop.f32.mrb[0].mxu0
        %v1656 = vadd.f32 0.0, %v1655
        %v1657 = vpop.f32.mrb[0].mxu0
        %v1658 = vpop.f32.mrb[0].mxu0
        %v1659 = vadd.f32 0.0, %v1658
        %v1660 = vpop.f32.mrb[0].mxu0
        %1661 = vmatprep.mubr.bf16.mxu0 %v1154
        %1662 = vmatmul.mubr.bf16.gmra.mrb[0].mxu0 %v1153
        %v1663 = vpop.f32.mrb[0].mxu0
        %v1664 = vadd.f32 0.0, %v1663
        %v1665 = vpop.f32.mrb[0].mxu0
        %v1666 = vpop.f32.mrb[0].mxu0
        %v1667 = vadd.f32 0.0, %v1666
        %v1668 = vpop.f32.mrb[0].mxu0
        %1669 = vmatprep.mubr.bf16.mxu0 %v1156
        %1670 = vmatmul.mubr.bf16.gmra.mrb[0].mxu0 %v1155
        %v1671 = vpop.f32.mrb[0].mxu0
        %v1672 = vadd.f32 0.0, %v1671
        %v1673 = vpop.f32.mrb[0].mxu0
        %v1674 = vpop.f32.mrb[0].mxu0
        %v1675 = vadd.f32 0.0, %v1674
        %v1676 = vpop.f32.mrb[0].mxu0
        %1677 = vmatprep.mubr.bf16.mxu0 %v1158
        %1678 = vmatmul.mubr.bf16.gmra.mrb[0].mxu0 %v1157
        %v1679 = vpop.f32.mrb[0].mxu0
        %v1680 = vadd.f32 0.0, %v1679
        %v1681 = vpop.f32.mrb[0].mxu0
        %v1682 = vpop.f32.mrb[0].mxu0
        %v1683 = vadd.f32 0.0, %v1682
        %v1684 = vpop.f32.mrb[0].mxu0
        %1685 = vmatprep.mubr.bf16.mxu0 %v1160
        %1686 = vmatmul.mubr.bf16.gmra.mrb[0].mxu0 %v1159
        %v1687 = vpop.f32.mrb[0].mxu0
        %v1688 = vadd.f32 0.0, %v1687
        %v1689 = vpop.f32.mrb[0].mxu0
        %v1690 = vpop.f32.mrb[0].mxu0
        %v1691 = vadd.f32 0.0, %v1690
        %v1692 = vpop.f32.mrb[0].mxu0
        %1693 = vmatprep.mubr.bf16.mxu0 %v1162
        %1694 = vmatmul.mubr.bf16.gmra.mrb[0].mxu0 %v1161
        %v1695 = vpop.f32.mrb[0].mxu0
        %v1696 = vadd.f32 0.0, %v1695
        %v1697 = vpop.f32.mrb[0].mxu0
        %v1698 = vpop.f32.mrb[0].mxu0
        %v1699 = vadd.f32 0.0, %v1698
        %v1700 = vpop.f32.mrb[0].mxu0
        %1701 = vmatprep.mubr.bf16.mxu0 %v1164
        %1702 = vmatmul.mubr.bf16.gmra.mrb[0].mxu0 %v1163
        %v1703 = vpop.f32.mrb[0].mxu0
        %v1704 = vadd.f32 0.0, %v1703
        %v1705 = vpop.f32.mrb[0].mxu0
        %v1706 = vpop.f32.mrb[0].mxu0
        %v1707 = vadd.f32 0.0, %v1706
        %v1708 = vpop.f32.mrb[0].mxu0
        %1709 = vmatprep.mubr.bf16.mxu0 %v1166
        %1710 = vmatmul.mubr.bf16.gmra.mrb[0].mxu0 %v1165
        %v1711 = vpop.f32.mrb[0].mxu0
        %v1712 = vadd.f32 0.0, %v1711
        %v1713 = vpop.f32.mrb[0].mxu0
        %v1714 = vpop.f32.mrb[0].mxu0
        %v1715 = vadd.f32 0.0, %v1714
        %v1716 = vpop.f32.mrb[0].mxu0
        %1717 = vmatprep.mubr.bf16.mxu0 %v1168
        %1718 = vmatmul.mubr.bf16.gmra.mrb[0].mxu0 %v1167
        %v1719 = vpop.f32.mrb[0].mxu0
        %v1720 = vadd.f32 0.0, %v1719
        %v1721 = vpop.f32.mrb[0].mxu0
        %v1722 = vpop.f32.mrb[0].mxu0
        %v1723 = vadd.f32 0.0, %v1722
        %v1724 = vpop.f32.mrb[0].mxu0
        %1725 = vmatprep.mubr.bf16.mxu0 %v1170
        %1726 = vmatmul.mubr.bf16.gmra.mrb[0].mxu0 %v1169
        %v1727 = vpop.f32.mrb[0].mxu0
        %v1728 = vadd.f32 0.0, %v1727
        %v1729 = vpop.f32.mrb[0].mxu0
        %v1730 = vpop.f32.mrb[0].mxu0
        %v1731 = vadd.f32 0.0, %v1730
        %v1732 = vpop.f32.mrb[0].mxu0
        %1733 = vmatprep.mubr.bf16.mxu0 %v1172
        %1734 = vmatmul.mubr.bf16.gmra.mrb[0].mxu0 %v1171
        %v1735 = vpop.f32.mrb[0].mxu0
        %v1736 = vadd.f32 0.0, %v1735
        %v1737 = vpop.f32.mrb[0].mxu0
        %v1738 = vpop.f32.mrb[0].mxu0
        %v1739 = vadd.f32 0.0, %v1738
        %v1740 = vpop.f32.mrb[0].mxu0
        %1741 = vmatprep.mubr.bf16.mxu0 %v1174
        %1742 = vmatmul.mubr.bf16.gmra.mrb[0].mxu0 %v1173
        %v1743 = vpop.f32.mrb[0].mxu0
        %v1744 = vadd.f32 0.0, %v1743
        %v1745 = vpop.f32.mrb[0].mxu0
        %v1746 = vpop.f32.mrb[0].mxu0
        %v1747 = vadd.f32 0.0, %v1746
        %v1748 = vpop.f32.mrb[0].mxu0
        %1749 = vmatprep.mubr.bf16.mxu0 %v1176
        %1750 = vmatmul.mubr.bf16.gmra.mrb[0].mxu0 %v1175
        %v1751 = vpop.f32.mrb[0].mxu0
        %v1752 = vadd.f32 0.0, %v1751
        %v1753 = vpop.f32.mrb[0].mxu0
        %v1754 = vpop.f32.mrb[0].mxu0
        %v1755 = vadd.f32 0.0, %v1754
        %v1756 = vpop.f32.mrb[0].mxu0
        %1757 = vmatprep.mubr.bf16.mxu0 %v1178
        %1758 = vmatmul.mubr.bf16.gmra.mrb[0].mxu0 %v1177
        %v1759 = vpop.f32.mrb[0].mxu0
        %v1760 = vadd.f32 0.0, %v1759
        %v1761 = vpop.f32.mrb[0].mxu0
        %v1762 = vpop.f32.mrb[0].mxu0
        %v1763 = vadd.f32 0.0, %v1762
        %v1764 = vpop.f32.mrb[0].mxu0
        %1765 = vmatprep.mubr.bf16.mxu0 %v1180
        %1766 = vmatmul.mubr.bf16.gmra.mrb[0].mxu0 %v1179
        %v1767 = vpop.f32.mrb[0].mxu0
        %v1768 = vadd.f32 0.0, %v1767
        %v1769 = vpop.f32.mrb[0].mxu0
        %v1770 = vpop.f32.mrb[0].mxu0
        %v1771 = vadd.f32 0.0, %v1770
        %v1772 = vpop.f32.mrb[0].mxu0
        %1773 = vmatprep.mubr.bf16.mxu0 %v1182
        %1774 = vmatmul.mubr.bf16.gmra.mrb[0].mxu0 %v1181
        %v1775 = vpop.f32.mrb[0].mxu0
        %v1776 = vadd.f32 0.0, %v1775
        %v1777 = vpop.f32.mrb[0].mxu0
        %v1778 = vpop.f32.mrb[0].mxu0
        %v1779 = vadd.f32 0.0, %v1778
        %v1780 = vpop.f32.mrb[0].mxu0
        %1781 = vmatprep.mubr.bf16.mxu0 %v1184
        %1782 = vmatmul.mubr.bf16.gmra.mrb[0].mxu0 %v1183
        %v1783 = vpop.f32.mrb[0].mxu0
        %v1784 = vadd.f32 0.0, %v1783
        %v1785 = vpop.f32.mrb[0].mxu0
        %v1786 = vpop.f32.mrb[0].mxu0
        %v1787 = vadd.f32 0.0, %v1786
        %v1788 = vpop.f32.mrb[0].mxu0
        %1789 = vmatprep.mubr.bf16.mxu0 %v1186
        %1790 = vmatmul.mubr.bf16.gmra.mrb[0].mxu0 %v1185
        %v1791 = vpop.f32.mrb[0].mxu0
        %v1792 = vadd.f32 0.0, %v1791
        %v1793 = vpop.f32.mrb[0].mxu0
        %v1794 = vpop.f32.mrb[0].mxu0
        %v1795 = vadd.f32 0.0, %v1794
        %v1796 = vpop.f32.mrb[0].mxu0
        %1797 = vmatprep.mubr.bf16.mxu0 %v1188
        %1798 = vmatmul.mubr.bf16.gmra.mrb[0].mxu0 %v1187
        %v1799 = vpop.f32.mrb[0].mxu0
        %v1800 = vadd.f32 0.0, %v1799
        %v1801 = vpop.f32.mrb[0].mxu0
        %v1802 = vpop.f32.mrb[0].mxu0
        %v1803 = vadd.f32 0.0, %v1802
        %v1804 = vpop.f32.mrb[0].mxu0
        %1805 = vmatprep.mubr.bf16.mxu0 %v1190
        %1806 = vmatmul.mubr.bf16.gmra.mrb[0].mxu0 %v1189
        %v1807 = vpop.f32.mrb[0].mxu0
        %v1808 = vadd.f32 0.0, %v1807
        %v1809 = vpop.f32.mrb[0].mxu0
        %v1810 = vpop.f32.mrb[0].mxu0
        %v1811 = vadd.f32 0.0, %v1810
        %v1812 = vpop.f32.mrb[0].mxu0
        %1813 = vmatprep.mubr.bf16.mxu0 %v1192
        %1814 = vmatmul.mubr.bf16.gmra.mrb[0].mxu0 %v1191
        %v1815 = vpop.f32.mrb[0].mxu0
        %v1816 = vadd.f32 0.0, %v1815
        %v1817 = vpop.f32.mrb[0].mxu0
        %v1818 = vpop.f32.mrb[0].mxu0
        %v1819 = vadd.f32 0.0, %v1818
        %v1820 = vpop.f32.mrb[0].mxu0
        %1821 = vmatprep.mubr.bf16.mxu0 %v1194
        %1822 = vmatmul.mubr.bf16.gmra.mrb[0].mxu0 %v1193
        %v1823 = vpop.f32.mrb[0].mxu0
        %v1824 = vadd.f32 0.0, %v1823
        %v1825 = vpop.f32.mrb[0].mxu0
        %v1826 = vpop.f32.mrb[0].mxu0
        %v1827 = vadd.f32 0.0, %v1826
        %v1828 = vpop.f32.mrb[0].mxu0
        %1829 = vmatprep.mubr.bf16.mxu0 %v1196
        %1830 = vmatmul.mubr.bf16.gmra.mrb[0].mxu0 %v1195
        %v1831 = vpop.f32.mrb[0].mxu0
        %v1832 = vadd.f32 0.0, %v1831
        %v1833 = vpop.f32.mrb[0].mxu0
        %v1834 = vpop.f32.mrb[0].mxu0
        %v1835 = vadd.f32 0.0, %v1834
        %v1836 = vpop.f32.mrb[0].mxu0
        %1837 = vmatprep.mubr.bf16.mxu0 %v1198
        %1838 = vmatmul.mubr.bf16.gmra.mrb[0].mxu0 %v1197
        %v1839 = vpop.f32.mrb[0].mxu0
        %v1840 = vadd.f32 0.0, %v1839
        %v1841 = vpop.f32.mrb[0].mxu0
        %v1842 = vpop.f32.mrb[0].mxu0
        %v1843 = vadd.f32 0.0, %v1842
        %v1844 = vpop.f32.mrb[0].mxu0
        %1845 = vmatprep.mubr.bf16.mxu0 %v1200
        %1846 = vmatmul.mubr.bf16.gmra.mrb[0].mxu0 %v1199
        %v1847 = vpop.f32.mrb[0].mxu0
        %v1848 = vadd.f32 0.0, %v1847
        %v1849 = vpop.f32.mrb[0].mxu0
        %v1850 = vpop.f32.mrb[0].mxu0
        %v1851 = vadd.f32 0.0, %v1850
        %v1852 = vpop.f32.mrb[0].mxu0
        %1853 = vmatprep.mubr.bf16.mxu0 %v1202
        %1854 = vmatmul.mubr.bf16.gmra.mrb[0].mxu0 %v1201
        %v1855 = vpop.f32.mrb[0].mxu0
        %v1856 = vadd.f32 0.0, %v1855
        %v1857 = vpop.f32.mrb[0].mxu0
        %v1858 = vpop.f32.mrb[0].mxu0
        %v1859 = vadd.f32 0.0, %v1858
        %v1860 = vpop.f32.mrb[0].mxu0
        %1861 = vmatprep.mubr.bf16.mxu0 %v1204
        %1862 = vmatmul.mubr.bf16.gmra.mrb[0].mxu0 %v1203
        %v1863 = vpop.f32.mrb[0].mxu0
        %v1864 = vadd.f32 0.0, %v1863
        %v1865 = vpop.f32.mrb[0].mxu0
        %v1866 = vpop.f32.mrb[0].mxu0
        %v1867 = vadd.f32 0.0, %v1866
        %v1868 = vpop.f32.mrb[0].mxu0
        %1869 = vmatprep.mubr.bf16.mxu0 %v1206
        %1870 = vmatmul.mubr.bf16.gmra.mrb[0].mxu0 %v1205
        %v1871 = vpop.f32.mrb[0].mxu0
        %v1872 = vadd.f32 0.0, %v1871
        %v1873 = vpop.f32.mrb[0].mxu0
        %v1874 = vpop.f32.mrb[0].mxu0
        %v1875 = vadd.f32 0.0, %v1874
        %v1876 = vpop.f32.mrb[0].mxu0
        %1877 = vmatprep.mubr.bf16.mxu0 %v1208
        %1878 = vmatmul.mubr.bf16.gmra.mrb[0].mxu0 %v1207
        %v1879 = vpop.f32.mrb[0].mxu0
        %v1880 = vadd.f32 0.0, %v1879
        %v1881 = vpop.f32.mrb[0].mxu0
        %v1882 = vpop.f32.mrb[0].mxu0
        %v1883 = vadd.f32 0.0, %v1882
        %v1884 = vpop.f32.mrb[0].mxu0
        %1885 = vmatprep.mubr.bf16.mxu0 %v1210
        %1886 = vmatmul.mubr.bf16.gmra.mrb[0].mxu0 %v1209
        %v1887 = vpop.f32.mrb[0].mxu0
        %v1888 = vadd.f32 0.0, %v1887
        %v1889 = vpop.f32.mrb[0].mxu0
        %v1890 = vpop.f32.mrb[0].mxu0
        %v1891 = vadd.f32 0.0, %v1890
        %v1892 = vpop.f32.mrb[0].mxu0
        %1893 = vmatprep.mubr.bf16.mxu0 %v1212
        %1894 = vmatmul.mubr.bf16.gmra.mrb[0].mxu0 %v1211
        %v1895 = vpop.f32.mrb[0].mxu0
        %v1896 = vadd.f32 0.0, %v1895
        %v1897 = vpop.f32.mrb[0].mxu0
        %v1898 = vpop.f32.mrb[0].mxu0
        %v1899 = vadd.f32 0.0, %v1898
        %v1900 = vpop.f32.mrb[0].mxu0
        %1901 = vmatprep.mubr.bf16.mxu0 %v1214
        %1902 = vmatmul.mubr.bf16.gmra.mrb[0].mxu0 %v1213
        %v1903 = vpop.f32.mrb[0].mxu0
        %v1904 = vadd.f32 0.0, %v1903
        %v1905 = vpop.f32.mrb[0].mxu0
        %v1906 = vpop.f32.mrb[0].mxu0
        %v1907 = vadd.f32 0.0, %v1906
        %v1908 = vpop.f32.mrb[0].mxu0
        %1909 = vmatprep.mubr.bf16.mxu0 %v1216
        %1910 = vmatmul.mubr.bf16.gmra.mrb[0].mxu0 %v1215
        %v1911 = vpop.f32.mrb[0].mxu0
        %v1912 = vadd.f32 0.0, %v1911
        %v1913 = vpop.f32.mrb[0].mxu0
        %v1914 = vpop.f32.mrb[0].mxu0
        %v1915 = vadd.f32 0.0, %v1914
        %v1916 = vpop.f32.mrb[0].mxu0
        %1917 = vmatprep.mubr.bf16.mxu0 %v1218
        %1918 = vmatmul.mubr.bf16.gmra.mrb[0].mxu0 %v1217
        %v1919 = vpop.f32.mrb[0].mxu0
        %v1920 = vadd.f32 0.0, %v1919
        %v1921 = vpop.f32.mrb[0].mxu0
        %v1922 = vpop.f32.mrb[0].mxu0
        %v1923 = vadd.f32 0.0, %v1922
        %v1924 = vpop.f32.mrb[0].mxu0
        %1925 = vmatprep.mubr.bf16.mxu0 %v1220
        %1926 = vmatmul.mubr.bf16.gmra.mrb[0].mxu0 %v1219
        %v1927 = vpop.f32.mrb[0].mxu0
        %v1928 = vadd.f32 0.0, %v1927
        %v1929 = vpop.f32.mrb[0].mxu0
        %v1930 = vpop.f32.mrb[0].mxu0
        %v1931 = vadd.f32 0.0, %v1930
        %v1932 = vpop.f32.mrb[0].mxu0
        %1933 = vmatprep.mubr.bf16.mxu0 %v1222
        %1934 = vmatmul.mubr.bf16.gmra.mrb[0].mxu0 %v1221
        %v1935 = vpop.f32.mrb[0].mxu0
        %v1936 = vadd.f32 0.0, %v1935
        %v1937 = vpop.f32.mrb[0].mxu0
        %v1938 = vpop.f32.mrb[0].mxu0
        %v1939 = vadd.f32 0.0, %v1938
        %v1940 = vpop.f32.mrb[0].mxu0
        %1941 = vmatprep.mubr.bf16.mxu0 %v1224
        %1942 = vmatmul.mubr.bf16.gmra.mrb[0].mxu0 %v1223
        %v1943 = vpop.f32.mrb[0].mxu0
        %v1944 = vadd.f32 0.0, %v1943
        %v1945 = vpop.f32.mrb[0].mxu0
        %v1946 = vpop.f32.mrb[0].mxu0
        %v1947 = vadd.f32 0.0, %v1946
        %v1948 = vpop.f32.mrb[0].mxu0
        %1949 = vmatprep.mubr.bf16.mxu0 %v1226
        %1950 = vmatmul.mubr.bf16.gmra.mrb[0].mxu0 %v1225
        %v1951 = vpop.f32.mrb[0].mxu0
        %v1952 = vadd.f32 0.0, %v1951
        %v1953 = vpop.f32.mrb[0].mxu0
        %v1954 = vpop.f32.mrb[0].mxu0
        %v1955 = vadd.f32 0.0, %v1954
        %v1956 = vpop.f32.mrb[0].mxu0
        %1957 = vmatprep.mubr.bf16.mxu0 %v1228
        %1958 = vmatmul.mubr.bf16.gmra.mrb[0].mxu0 %v1227
        %v1959 = vpop.f32.mrb[0].mxu0
        %v1960 = vadd.f32 0.0, %v1959
        %v1961 = vpop.f32.mrb[0].mxu0
        %v1962 = vpop.f32.mrb[0].mxu0
        %v1963 = vadd.f32 0.0, %v1962
        %v1964 = vpop.f32.mrb[0].mxu0
        %1965 = vmatprep.mubr.bf16.mxu0 %v1230
        %1966 = vmatmul.mubr.bf16.gmra.mrb[0].mxu0 %v1229
        %v1967 = vpop.f32.mrb[0].mxu0
        %v1968 = vadd.f32 0.0, %v1967
        %v1969 = vpop.f32.mrb[0].mxu0
        %v1970 = vpop.f32.mrb[0].mxu0
        %v1971 = vadd.f32 0.0, %v1970
        %v1972 = vpop.f32.mrb[0].mxu0
        %1973 = vmatprep.mubr.bf16.mxu0 %v1232
        %1974 = vmatmul.mubr.bf16.gmra.mrb[0].mxu0 %v1231
        %v1975 = vpop.f32.mrb[0].mxu0
        %v1976 = vadd.f32 0.0, %v1975
        %v1977 = vpop.f32.mrb[0].mxu0
        %v1978 = vpop.f32.mrb[0].mxu0
        %v1979 = vadd.f32 0.0, %v1978
        %v1980 = vpop.f32.mrb[0].mxu0
        %1981 = vmatprep.mubr.bf16.mxu0 %v1234
        %1982 = vmatmul.mubr.bf16.gmra.mrb[0].mxu0 %v1233
        %v1983 = vpop.f32.mrb[0].mxu0
        %v1984 = vadd.f32 0.0, %v1983
        %v1985 = vpop.f32.mrb[0].mxu0
        %v1986 = vpop.f32.mrb[0].mxu0
        %v1987 = vadd.f32 0.0, %v1986
        %v1988 = vpop.f32.mrb[0].mxu0
        %1989 = vmatprep.mubr.bf16.mxu0 %v1236
        %1990 = vmatmul.mubr.bf16.gmra.mrb[0].mxu0 %v1235
        %v1991 = vpop.f32.mrb[0].mxu0
        %v1992 = vadd.f32 0.0, %v1991
        %v1993 = vpop.f32.mrb[0].mxu0
        %v1994 = vpop.f32.mrb[0].mxu0
        %v1995 = vadd.f32 0.0, %v1994
        %v1996 = vpop.f32.mrb[0].mxu0
        %1997 = vmatprep.mubr.bf16.mxu0 %v1238
        %1998 = vmatmul.mubr.bf16.gmra.mrb[0].mxu0 %v1237
        %v1999 = vpop.f32.mrb[0].mxu0
        %v2000 = vadd.f32 0.0, %v1999
        %v2001 = vpop.f32.mrb[0].mxu0
        %v2002 = vpop.f32.mrb[0].mxu0
        %v2003 = vadd.f32 0.0, %v2002
        %v2004 = vpop.f32.mrb[0].mxu0
        %2005 = vmatprep.mubr.bf16.mxu0 %v1240
        %2006 = vmatmul.mubr.bf16.gmra.mrb[0].mxu0 %v1239
        %v2007 = vpop.f32.mrb[0].mxu0
        %v2008 = vadd.f32 0.0, %v2007
        %v2009 = vpop.f32.mrb[0].mxu0
        %v2010 = vpop.f32.mrb[0].mxu0
        %v2011 = vadd.f32 0.0, %v2010
        %v2012 = vpop.f32.mrb[0].mxu0
        %2013 = vmatprep.mubr.bf16.mxu0 %v1242
        %2014 = vmatmul.mubr.bf16.gmra.mrb[0].mxu0 %v1241
        %v2015 = vpop.f32.mrb[0].mxu0
        %v2016 = vadd.f32 0.0, %v2015
        %v2017 = vpop.f32.mrb[0].mxu0
        %v2018 = vpop.f32.mrb[0].mxu0
        %v2019 = vadd.f32 0.0, %v2018
        %v2020 = vpop.f32.mrb[0].mxu0
        %2021 = vmatprep.mubr.bf16.mxu0 %v1244
        %2022 = vmatmul.mubr.bf16.gmra.mrb[0].mxu0 %v1243
        %v2023 = vpop.f32.mrb[0].mxu0
        %v2024 = vadd.f32 0.0, %v2023
        %v2025 = vpop.f32.mrb[0].mxu0
        %v2026 = vpop.f32.mrb[0].mxu0
        %v2027 = vadd.f32 0.0, %v2026
        %v2028 = vpop.f32.mrb[0].mxu0
        %2029 = vmatprep.mubr.bf16.mxu0 %v1246
        %2030 = vmatmul.mubr.bf16.gmra.mrb[0].mxu0 %v1245
        %v2031 = vpop.f32.mrb[0].mxu0
        %v2032 = vadd.f32 0.0, %v2031
        %v2033 = vpop.f32.mrb[0].mxu0
        %v2034 = vpop.f32.mrb[0].mxu0
        %v2035 = vadd.f32 0.0, %v2034
        %v2036 = vpop.f32.mrb[0].mxu0
        %2037 = vmatprep.mubr.bf16.mxu0 %v1248
        %2038 = vmatmul.mubr.bf16.gmra.mrb[0].mxu0 %v1247
        %v2039 = vpop.f32.mrb[0].mxu0
        %v2040 = vadd.f32 0.0, %v2039
        %v2041 = vpop.f32.mrb[0].mxu0
        %v2042 = vpop.f32.mrb[0].mxu0
        %v2043 = vadd.f32 0.0, %v2042
        %v2044 = vpop.f32.mrb[0].mxu0
        %2045 = vmatprep.mubr.bf16.mxu0 %v1250
        %2046 = vmatmul.mubr.bf16.gmra.mrb[0].mxu0 %v1249
        %v2047 = vpop.f32.mrb[0].mxu0
        %v2048 = vadd.f32 0.0, %v2047
        %v2049 = vpop.f32.mrb[0].mxu0
        %v2050 = vpop.f32.mrb[0].mxu0
        %v2051 = vadd.f32 0.0, %v2050
        %v2052 = vpop.f32.mrb[0].mxu0
        %2053 = vmatprep.mubr.bf16.mxu0 %v1252
        %2054 = vmatmul.mubr.bf16.gmra.mrb[0].mxu0 %v1251
        %v2055 = vpop.f32.mrb[0].mxu0
        %v2056 = vadd.f32 0.0, %v2055
        %v2057 = vpop.f32.mrb[0].mxu0
        %v2058 = vpop.f32.mrb[0].mxu0
        %v2059 = vadd.f32 0.0, %v2058
        %v2060 = vpop.f32.mrb[0].mxu0
        %2061 = vmatprep.mubr.bf16.mxu0 %v1254
        %2062 = vmatmul.mubr.bf16.gmra.mrb[0].mxu0 %v1253
        %v2063 = vpop.f32.mrb[0].mxu0
        %v2064 = vadd.f32 0.0, %v2063
        %v2065 = vpop.f32.mrb[0].mxu0
        %v2066 = vpop.f32.mrb[0].mxu0
        %v2067 = vadd.f32 0.0, %v2066
        %v2068 = vpop.f32.mrb[0].mxu0
        %2069 = vmatprep.mubr.bf16.mxu0 %v1256
        %2070 = vmatmul.mubr.bf16.gmra.mrb[0].mxu0 %v1255
        %v2071 = vpop.f32.mrb[0].mxu0
        %v2072 = vadd.f32 0.0, %v2071
        %v2073 = vpop.f32.mrb[0].mxu0
        %v2074 = vpop.f32.mrb[0].mxu0
        %v2075 = vadd.f32 0.0, %v2074
        %v2076 = vpop.f32.mrb[0].mxu0
        %2077 = vmatprep.mubr.bf16.mxu0 %v1258
        %2078 = vmatmul.mubr.bf16.gmra.mrb[0].mxu0 %v1257
        %v2079 = vpop.f32.mrb[0].mxu0
        %v2080 = vadd.f32 0.0, %v2079
        %v2081 = vpop.f32.mrb[0].mxu0
        %v2082 = vpop.f32.mrb[0].mxu0
        %v2083 = vadd.f32 0.0, %v2082
        %v2084 = vpop.f32.mrb[0].mxu0
        %2085 = vmatprep.mubr.bf16.mxu0 %v1260
        %2086 = vmatmul.mubr.bf16.gmra.mrb[0].mxu0 %v1259
        %v2087 = vpop.f32.mrb[0].mxu0
        %v2088 = vadd.f32 0.0, %v2087
        %v2089 = vpop.f32.mrb[0].mxu0
        %v2090 = vpop.f32.mrb[0].mxu0
        %v2091 = vadd.f32 0.0, %v2090
        %v2092 = vpop.f32.mrb[0].mxu0
        %2093 = vmatprep.mubr.bf16.mxu0 %v1262
        %2094 = vmatmul.mubr.bf16.gmra.mrb[0].mxu0 %v1261
        %v2095 = vpop.f32.mrb[0].mxu0
        %v2096 = vadd.f32 0.0, %v2095
        %v2097 = vpop.f32.mrb[0].mxu0
        %v2098 = vpop.f32.mrb[0].mxu0
        %v2099 = vadd.f32 0.0, %v2098
        %v2100 = vpop.f32.mrb[0].mxu0
        %2101 = vmatprep.mubr.bf16.mxu0 %v1264
        %2102 = vmatmul.mubr.bf16.gmra.mrb[0].mxu0 %v1263
        %v2103 = vpop.f32.mrb[0].mxu0
        %v2104 = vadd.f32 0.0, %v2103
        %v2105 = vpop.f32.mrb[0].mxu0
        %v2106 = vpop.f32.mrb[0].mxu0
        %v2107 = vadd.f32 0.0, %v2106
        %v2108 = vpop.f32.mrb[0].mxu0
        %2109 = vmatprep.mubr.bf16.mxu0 %v1266
        %2110 = vmatmul.mubr.bf16.gmra.mrb[0].mxu0 %v1265
        %v2111 = vpop.f32.mrb[0].mxu0
        %v2112 = vadd.f32 0.0, %v2111
        %v2113 = vpop.f32.mrb[0].mxu0
        %v2114 = vpop.f32.mrb[0].mxu0
        %v2115 = vadd.f32 0.0, %v2114
        %v2116 = vpop.f32.mrb[0].mxu0
        %2117 = vmatprep.mubr.bf16.mxu0 %v1268
        %2118 = vmatmul.mubr.bf16.gmra.mrb[0].mxu0 %v1267
        %v2119 = vpop.f32.mrb[0].mxu0
        %v2120 = vadd.f32 0.0, %v2119
        %v2121 = vpop.f32.mrb[0].mxu0
        %v2122 = vpop.f32.mrb[0].mxu0
        %v2123 = vadd.f32 0.0, %v2122
        %v2124 = vpop.f32.mrb[0].mxu0
        %2125 = vmatprep.mubr.bf16.mxu0 %v1270
        %2126 = vmatmul.mubr.bf16.gmra.mrb[0].mxu0 %v1269
        %v2127 = vpop.f32.mrb[0].mxu0
        %v2128 = vadd.f32 0.0, %v2127
        %v2129 = vpop.f32.mrb[0].mxu0
        %v2130 = vpop.f32.mrb[0].mxu0
        %v2131 = vadd.f32 0.0, %v2130
        %v2132 = vpop.f32.mrb[0].mxu0
        %2133 = vmatprep.mubr.bf16.mxu0 %v1272
        %2134 = vmatmul.mubr.bf16.gmra.mrb[0].mxu0 %v1271
        %v2135 = vpop.f32.mrb[0].mxu0
        %v2136 = vadd.f32 0.0, %v2135
        %v2137 = vpop.f32.mrb[0].mxu0
        %v2138 = vpop.f32.mrb[0].mxu0
        %v2139 = vadd.f32 0.0, %v2138
        %v2140 = vpop.f32.mrb[0].mxu0
        %2141 = vmatprep.mubr.bf16.mxu0 %v1274
        %2142 = vmatmul.mubr.bf16.gmra.mrb[0].mxu0 %v1273
        %v2143 = vpop.f32.mrb[0].mxu0
        %v2144 = vadd.f32 0.0, %v2143
        %v2145 = vpop.f32.mrb[0].mxu0
        %v2146 = vpop.f32.mrb[0].mxu0
        %v2147 = vadd.f32 0.0, %v2146
        %v2148 = vpop.f32.mrb[0].mxu0
        %2149 = vmatprep.mubr.bf16.mxu0 %v1276
        %2150 = vmatmul.mubr.bf16.gmra.mrb[0].mxu0 %v1275
        %v2151 = vpop.f32.mrb[0].mxu0
        %v2152 = vadd.f32 0.0, %v2151
        %v2153 = vpop.f32.mrb[0].mxu0
        %v2154 = vpop.f32.mrb[0].mxu0
        %v2155 = vadd.f32 0.0, %v2154
        %v2156 = vpop.f32.mrb[0].mxu0
        %2157 = vmatprep.mubr.bf16.mxu0 %v1278
        %2158 = vmatmul.mubr.bf16.gmra.mrb[0].mxu0 %v1277
        %v2159 = vpop.f32.mrb[0].mxu0
        %v2160 = vadd.f32 0.0, %v2159
        %v2161 = vpop.f32.mrb[0].mxu0
        %v2162 = vpop.f32.mrb[0].mxu0
        %v2163 = vadd.f32 0.0, %v2162
        %v2164 = vpop.f32.mrb[0].mxu0
        %2165 = vmatprep.mubr.bf16.mxu0 %v1280
        %2166 = vmatmul.mubr.bf16.gmra.mrb[0].mxu0 %v1279
        %v2167 = vpop.f32.mrb[0].mxu0
        %v2168 = vadd.f32 0.0, %v2167
        %v2169 = vpop.f32.mrb[0].mxu0
        %v2170 = vpop.f32.mrb[0].mxu0
        %v2171 = vadd.f32 0.0, %v2170
        %v2172 = vpop.f32.mrb[0].mxu0
        %2173 = vmatprep.mubr.bf16.mxu0 %v1282
        %2174 = vmatmul.mubr.bf16.gmra.mrb[0].mxu0 %v1281
        %v2175 = vpop.f32.mrb[0].mxu0
        %v2176 = vadd.f32 0.0, %v2175
        %v2177 = vpop.f32.mrb[0].mxu0
        %v2178 = vpop.f32.mrb[0].mxu0
        %v2179 = vadd.f32 0.0, %v2178
        %v2180 = vpop.f32.mrb[0].mxu0
        %2181 = vmatprep.mubr.bf16.mxu0 %v1284
        %2182 = vmatmul.mubr.bf16.gmra.mrb[0].mxu0 %v1283
        %v2183 = vpop.f32.mrb[0].mxu0
        %v2184 = vadd.f32 0.0, %v2183
        %v2185 = vpop.f32.mrb[0].mxu0
        %v2186 = vpop.f32.mrb[0].mxu0
        %v2187 = vadd.f32 0.0, %v2186
        %v2188 = vpop.f32.mrb[0].mxu0
        %2189 = vmatprep.mubr.bf16.mxu0 %v1286
        %2190 = vmatmul.mubr.bf16.gmra.mrb[0].mxu0 %v1285
        %v2191 = vpop.f32.mrb[0].mxu0
        %v2192 = vadd.f32 0.0, %v2191
        %v2193 = vpop.f32.mrb[0].mxu0
        %v2194 = vpop.f32.mrb[0].mxu0
        %v2195 = vadd.f32 0.0, %v2194
        %v2196 = vpop.f32.mrb[0].mxu0
        %2197 = vmatprep.mubr.bf16.mxu0 %v1288
        %2198 = vmatmul.mubr.bf16.gmra.mrb[0].mxu0 %v1287
        %v2199 = vpop.f32.mrb[0].mxu0
        %v2200 = vadd.f32 0.0, %v2199
        %v2201 = vpop.f32.mrb[0].mxu0
        %v2202 = vpop.f32.mrb[0].mxu0
        %v2203 = vadd.f32 0.0, %v2202
        %v2204 = vpop.f32.mrb[0].mxu0
        %2205 = vmatprep.mubr.bf16.mxu0 %v1290
        %2206 = vmatmul.mubr.bf16.gmra.mrb[0].mxu0 %v1289
        %v2207 = vpop.f32.mrb[0].mxu0
        %v2208 = vadd.f32 0.0, %v2207
        %v2209 = vpop.f32.mrb[0].mxu0
        %v2210 = vpop.f32.mrb[0].mxu0
        %v2211 = vadd.f32 0.0, %v2210
        %v2212 = vpop.f32.mrb[0].mxu0
        %2213 = vmatprep.mubr.bf16.mxu0 %v1292
        %2214 = vmatmul.mubr.bf16.gmra.mrb[0].mxu0 %v1291
        %v2215 = vpop.f32.mrb[0].mxu0
        %v2216 = vadd.f32 0.0, %v2215
        %v2217 = vpop.f32.mrb[0].mxu0
        %v2218 = vpop.f32.mrb[0].mxu0
        %v2219 = vadd.f32 0.0, %v2218
        %v2220 = vpop.f32.mrb[0].mxu0
        %2221 = vdwg.mxu0
        %v2222 = vld [vmem:[#allocation7] sm:$0x1]
        %v2224 = vlaneseq
        %v2225 = vshrl.u32 %v2224, 7
        %v2226 = vsub.s32 0, %v2225
        %v2227 = vrot.slane %v2222, %v2226
        %v2229 = vmul.f32 %v1584, %v2227
        %v2230 = vmul.f32 %v1587, %v2227
        %v2231 = vmul.f32 %v1592, %v2227
        %v2232 = vmul.f32 %v1595, %v2227
        %v2233 = vmul.f32 %v1600, %v2227
        %v2234 = vmul.f32 %v1603, %v2227
        %v2235 = vmul.f32 %v1608, %v2227
        %v2236 = vmul.f32 %v1611, %v2227
        %v2237 = vmul.f32 %v1616, %v2227
        %v2238 = vmul.f32 %v1619, %v2227
        %v2239 = vmul.f32 %v1624, %v2227
        %v2240 = vmul.f32 %v1627, %v2227
        %v2241 = vmul.f32 %v1632, %v2227
        %v2242 = vmul.f32 %v1635, %v2227
        %v2243 = vmul.f32 %v1640, %v2227
        %v2244 = vmul.f32 %v1643, %v2227
        %v2245 = vmul.f32 %v1648, %v2227
        %v2246 = vmul.f32 %v1651, %v2227
        %v2247 = vmul.f32 %v1656, %v2227
        %v2248 = vmul.f32 %v1659, %v2227
        %v2249 = vmul.f32 %v1664, %v2227
        %v2250 = vmul.f32 %v1667, %v2227
        %v2251 = vmul.f32 %v1672, %v2227
        %v2252 = vmul.f32 %v1675, %v2227
        %v2253 = vmul.f32 %v1680, %v2227
        %v2254 = vmul.f32 %v1683, %v2227
        %v2255 = vmul.f32 %v1688, %v2227
        %v2256 = vmul.f32 %v1691, %v2227
        %v2257 = vmul.f32 %v1696, %v2227
        %v2258 = vmul.f32 %v1699, %v2227
        %v2259 = vmul.f32 %v1704, %v2227
        %v2260 = vmul.f32 %v1707, %v2227
        %v2261 = vmul.f32 %v1712, %v2227
        %v2262 = vmul.f32 %v1715, %v2227
        %v2263 = vmul.f32 %v1720, %v2227
        %v2264 = vmul.f32 %v1723, %v2227
        %v2265 = vmul.f32 %v1728, %v2227
        %v2266 = vmul.f32 %v1731, %v2227
        %v2267 = vmul.f32 %v1736, %v2227
        %v2268 = vmul.f32 %v1739, %v2227
        %v2269 = vmul.f32 %v1744, %v2227
        %v2270 = vmul.f32 %v1747, %v2227
        %v2271 = vmul.f32 %v1752, %v2227
        %v2272 = vmul.f32 %v1755, %v2227
        %v2273 = vmul.f32 %v1760, %v2227
        %v2274 = vmul.f32 %v1763, %v2227
        %v2275 = vmul.f32 %v1768, %v2227
        %v2276 = vmul.f32 %v1771, %v2227
        %v2277 = vmul.f32 %v1776, %v2227
        %v2278 = vmul.f32 %v1779, %v2227
        %v2279 = vmul.f32 %v1784, %v2227
        %v2280 = vmul.f32 %v1787, %v2227
        %v2281 = vmul.f32 %v1792, %v2227
        %v2282 = vmul.f32 %v1795, %v2227
        %v2283 = vmul.f32 %v1800, %v2227
        %v2284 = vmul.f32 %v1803, %v2227
        %v2285 = vmul.f32 %v1808, %v2227
        %v2286 = vmul.f32 %v1811, %v2227
        %v2287 = vmul.f32 %v1816, %v2227
        %v2288 = vmul.f32 %v1819, %v2227
        %v2289 = vmul.f32 %v1824, %v2227
        %v2290 = vmul.f32 %v1827, %v2227
        %v2291 = vmul.f32 %v1832, %v2227
        %v2292 = vmul.f32 %v1835, %v2227
        %v2293 = vmul.f32 %v1840, %v2227
        %v2294 = vmul.f32 %v1843, %v2227
        %v2295 = vmul.f32 %v1848, %v2227
        %v2296 = vmul.f32 %v1851, %v2227
        %v2297 = vmul.f32 %v1856, %v2227
        %v2298 = vmul.f32 %v1859, %v2227
        %v2299 = vmul.f32 %v1864, %v2227
        %v2300 = vmul.f32 %v1867, %v2227
        %v2301 = vmul.f32 %v1872, %v2227
        %v2302 = vmul.f32 %v1875, %v2227
        %v2303 = vmul.f32 %v1880, %v2227
        %v2304 = vmul.f32 %v1883, %v2227
        %v2305 = vmul.f32 %v1888, %v2227
        %v2306 = vmul.f32 %v1891, %v2227
        %v2307 = vmul.f32 %v1896, %v2227
        %v2308 = vmul.f32 %v1899, %v2227
        %v2309 = vmul.f32 %v1904, %v2227
        %v2310 = vmul.f32 %v1907, %v2227
        %v2311 = vmul.f32 %v1912, %v2227
        %v2312 = vmul.f32 %v1915, %v2227
        %v2313 = vmul.f32 %v1920, %v2227
        %v2314 = vmul.f32 %v1923, %v2227
        %v2315 = vmul.f32 %v1928, %v2227
        %v2316 = vmul.f32 %v1931, %v2227
        %v2317 = vmul.f32 %v1936, %v2227
        %v2318 = vmul.f32 %v1939, %v2227
        %v2319 = vmul.f32 %v1944, %v2227
        %v2320 = vmul.f32 %v1947, %v2227
        %v2321 = vmul.f32 %v1952, %v2227
        %v2322 = vmul.f32 %v1955, %v2227
        %v2323 = vmul.f32 %v1960, %v2227
        %v2324 = vmul.f32 %v1963, %v2227
        %v2325 = vmul.f32 %v1968, %v2227
        %v2326 = vmul.f32 %v1971, %v2227
        %v2327 = vmul.f32 %v1976, %v2227
        %v2328 = vmul.f32 %v1979, %v2227
        %v2329 = vmul.f32 %v1984, %v2227
        %v2330 = vmul.f32 %v1987, %v2227
        %v2331 = vmul.f32 %v1992, %v2227
        %v2332 = vmul.f32 %v1995, %v2227
        %v2333 = vmul.f32 %v2000, %v2227
        %v2334 = vmul.f32 %v2003, %v2227
        %v2335 = vmul.f32 %v2008, %v2227
        %v2336 = vmul.f32 %v2011, %v2227
        %v2337 = vmul.f32 %v2016, %v2227
        %v2338 = vmul.f32 %v2019, %v2227
        %v2339 = vmul.f32 %v2024, %v2227
        %v2340 = vmul.f32 %v2027, %v2227
        %v2341 = vmul.f32 %v2032, %v2227
        %v2342 = vmul.f32 %v2035, %v2227
        %v2343 = vmul.f32 %v2040, %v2227
        %v2344 = vmul.f32 %v2043, %v2227
        %v2345 = vmul.f32 %v2048, %v2227
        %v2346 = vmul.f32 %v2051, %v2227
        %v2347 = vmul.f32 %v2056, %v2227
        %v2348 = vmul.f32 %v2059, %v2227
        %v2349 = vmul.f32 %v2064, %v2227
        %v2350 = vmul.f32 %v2067, %v2227
        %v2351 = vmul.f32 %v2072, %v2227
        %v2352 = vmul.f32 %v2075, %v2227
        %v2353 = vmul.f32 %v2080, %v2227
        %v2354 = vmul.f32 %v2083, %v2227
        %v2355 = vmul.f32 %v2088, %v2227
        %v2356 = vmul.f32 %v2091, %v2227
        %v2357 = vmul.f32 %v2096, %v2227
        %v2358 = vmul.f32 %v2099, %v2227
        %v2359 = vmul.f32 %v2104, %v2227
        %v2360 = vmul.f32 %v2107, %v2227
        %v2361 = vmul.f32 %v2112, %v2227
        %v2362 = vmul.f32 %v2115, %v2227
        %v2363 = vmul.f32 %v2120, %v2227
        %v2364 = vmul.f32 %v2123, %v2227
        %v2365 = vmul.f32 %v2128, %v2227
        %v2366 = vmul.f32 %v2131, %v2227
        %v2367 = vmul.f32 %v2136, %v2227
        %v2368 = vmul.f32 %v2139, %v2227
        %v2369 = vmul.f32 %v2144, %v2227
        %v2370 = vmul.f32 %v2147, %v2227
        %v2371 = vmul.f32 %v2152, %v2227
        %v2372 = vmul.f32 %v2155, %v2227
        %v2373 = vmul.f32 %v2160, %v2227
        %v2374 = vmul.f32 %v2163, %v2227
        %v2375 = vmul.f32 %v2168, %v2227
        %v2376 = vmul.f32 %v2171, %v2227
        %v2377 = vmul.f32 %v2176, %v2227
        %v2378 = vmul.f32 %v2179, %v2227
        %v2379 = vmul.f32 %v2184, %v2227
        %v2380 = vmul.f32 %v2187, %v2227
        %v2381 = vmul.f32 %v2192, %v2227
        %v2382 = vmul.f32 %v2195, %v2227
        %v2383 = vmul.f32 %v2200, %v2227
        %v2384 = vmul.f32 %v2203, %v2227
        %v2385 = vmul.f32 %v2208, %v2227
        %v2386 = vmul.f32 %v2211, %v2227
        %v2387 = vmul.f32 %v2216, %v2227
        %v2388 = vmul.f32 %v2219, %v2227
        %v2389 = vld [vmem:[#allocation8] sm:$0x1]
        %v2391 = vlaneseq
        %v2392 = vshrl.u32 %v2391, 7
        %v2393 = vsub.s32 0, %v2392
        %v2394 = vrot.slane %v2389, %v2393
        %v2396 = vadd.f32 %v2229, %v2394
        %v2397 = vadd.f32 %v2230, %v2394
        %v2398 = vadd.f32 %v2231, %v2394
        %v2399 = vadd.f32 %v2232, %v2394
        %v2400 = vadd.f32 %v2233, %v2394
        %v2401 = vadd.f32 %v2234, %v2394
        %v2402 = vadd.f32 %v2235, %v2394
        %v2403 = vadd.f32 %v2236, %v2394
        %v2404 = vadd.f32 %v2237, %v2394
        %v2405 = vadd.f32 %v2238, %v2394
        %v2406 = vadd.f32 %v2239, %v2394
        %v2407 = vadd.f32 %v2240, %v2394
        %v2408 = vadd.f32 %v2241, %v2394
        %v2409 = vadd.f32 %v2242, %v2394
        %v2410 = vadd.f32 %v2243, %v2394
        %v2411 = vadd.f32 %v2244, %v2394
        %v2412 = vadd.f32 %v2245, %v2394
        %v2413 = vadd.f32 %v2246, %v2394
        %v2414 = vadd.f32 %v2247, %v2394
        %v2415 = vadd.f32 %v2248, %v2394
        %v2416 = vadd.f32 %v2249, %v2394
        %v2417 = vadd.f32 %v2250, %v2394
        %v2418 = vadd.f32 %v2251, %v2394
        %v2419 = vadd.f32 %v2252, %v2394
        %v2420 = vadd.f32 %v2253, %v2394
        %v2421 = vadd.f32 %v2254, %v2394
        %v2422 = vadd.f32 %v2255, %v2394
        %v2423 = vadd.f32 %v2256, %v2394
        %v2424 = vadd.f32 %v2257, %v2394
        %v2425 = vadd.f32 %v2258, %v2394
        %v2426 = vadd.f32 %v2259, %v2394
        %v2427 = vadd.f32 %v2260, %v2394
        %v2428 = vadd.f32 %v2261, %v2394
        %v2429 = vadd.f32 %v2262, %v2394
        %v2430 = vadd.f32 %v2263, %v2394
        %v2431 = vadd.f32 %v2264, %v2394
        %v2432 = vadd.f32 %v2265, %v2394
        %v2433 = vadd.f32 %v2266, %v2394
        %v2434 = vadd.f32 %v2267, %v2394
        %v2435 = vadd.f32 %v2268, %v2394
        %v2436 = vadd.f32 %v2269, %v2394
        %v2437 = vadd.f32 %v2270, %v2394
        %v2438 = vadd.f32 %v2271, %v2394
        %v2439 = vadd.f32 %v2272, %v2394
        %v2440 = vadd.f32 %v2273, %v2394
        %v2441 = vadd.f32 %v2274, %v2394
        %v2442 = vadd.f32 %v2275, %v2394
        %v2443 = vadd.f32 %v2276, %v2394
        %v2444 = vadd.f32 %v2277, %v2394
        %v2445 = vadd.f32 %v2278, %v2394
        %v2446 = vadd.f32 %v2279, %v2394
        %v2447 = vadd.f32 %v2280, %v2394
        %v2448 = vadd.f32 %v2281, %v2394
        %v2449 = vadd.f32 %v2282, %v2394
        %v2450 = vadd.f32 %v2283, %v2394
        %v2451 = vadd.f32 %v2284, %v2394
        %v2452 = vadd.f32 %v2285, %v2394
        %v2453 = vadd.f32 %v2286, %v2394
        %v2454 = vadd.f32 %v2287, %v2394
        %v2455 = vadd.f32 %v2288, %v2394
        %v2456 = vadd.f32 %v2289, %v2394
        %v2457 = vadd.f32 %v2290, %v2394
        %v2458 = vadd.f32 %v2291, %v2394
        %v2459 = vadd.f32 %v2292, %v2394
        %v2460 = vadd.f32 %v2293, %v2394
        %v2461 = vadd.f32 %v2294, %v2394
        %v2462 = vadd.f32 %v2295, %v2394
        %v2463 = vadd.f32 %v2296, %v2394
        %v2464 = vadd.f32 %v2297, %v2394
        %v2465 = vadd.f32 %v2298, %v2394
        %v2466 = vadd.f32 %v2299, %v2394
        %v2467 = vadd.f32 %v2300, %v2394
        %v2468 = vadd.f32 %v2301, %v2394
        %v2469 = vadd.f32 %v2302, %v2394
        %v2470 = vadd.f32 %v2303, %v2394
        %v2471 = vadd.f32 %v2304, %v2394
        %v2472 = vadd.f32 %v2305, %v2394
        %v2473 = vadd.f32 %v2306, %v2394
        %v2474 = vadd.f32 %v2307, %v2394
        %v2475 = vadd.f32 %v2308, %v2394
        %v2476 = vadd.f32 %v2309, %v2394
        %v2477 = vadd.f32 %v2310, %v2394
        %v2478 = vadd.f32 %v2311, %v2394
        %v2479 = vadd.f32 %v2312, %v2394
        %v2480 = vadd.f32 %v2313, %v2394
        %v2481 = vadd.f32 %v2314, %v2394
        %v2482 = vadd.f32 %v2315, %v2394
        %v2483 = vadd.f32 %v2316, %v2394
        %v2484 = vadd.f32 %v2317, %v2394
        %v2485 = vadd.f32 %v2318, %v2394
        %v2486 = vadd.f32 %v2319, %v2394
        %v2487 = vadd.f32 %v2320, %v2394
        %v2488 = vadd.f32 %v2321, %v2394
        %v2489 = vadd.f32 %v2322, %v2394
        %v2490 = vadd.f32 %v2323, %v2394
        %v2491 = vadd.f32 %v2324, %v2394
        %v2492 = vadd.f32 %v2325, %v2394
        %v2493 = vadd.f32 %v2326, %v2394
        %v2494 = vadd.f32 %v2327, %v2394
        %v2495 = vadd.f32 %v2328, %v2394
        %v2496 = vadd.f32 %v2329, %v2394
        %v2497 = vadd.f32 %v2330, %v2394
        %v2498 = vadd.f32 %v2331, %v2394
        %v2499 = vadd.f32 %v2332, %v2394
        %v2500 = vadd.f32 %v2333, %v2394
        %v2501 = vadd.f32 %v2334, %v2394
        %v2502 = vadd.f32 %v2335, %v2394
        %v2503 = vadd.f32 %v2336, %v2394
        %v2504 = vadd.f32 %v2337, %v2394
        %v2505 = vadd.f32 %v2338, %v2394
        %v2506 = vadd.f32 %v2339, %v2394
        %v2507 = vadd.f32 %v2340, %v2394
        %v2508 = vadd.f32 %v2341, %v2394
        %v2509 = vadd.f32 %v2342, %v2394
        %v2510 = vadd.f32 %v2343, %v2394
        %v2511 = vadd.f32 %v2344, %v2394
        %v2512 = vadd.f32 %v2345, %v2394
        %v2513 = vadd.f32 %v2346, %v2394
        %v2514 = vadd.f32 %v2347, %v2394
        %v2515 = vadd.f32 %v2348, %v2394
        %v2516 = vadd.f32 %v2349, %v2394
        %v2517 = vadd.f32 %v2350, %v2394
        %v2518 = vadd.f32 %v2351, %v2394
        %v2519 = vadd.f32 %v2352, %v2394
        %v2520 = vadd.f32 %v2353, %v2394
        %v2521 = vadd.f32 %v2354, %v2394
        %v2522 = vadd.f32 %v2355, %v2394
        %v2523 = vadd.f32 %v2356, %v2394
        %v2524 = vadd.f32 %v2357, %v2394
        %v2525 = vadd.f32 %v2358, %v2394
        %v2526 = vadd.f32 %v2359, %v2394
        %v2527 = vadd.f32 %v2360, %v2394
        %v2528 = vadd.f32 %v2361, %v2394
        %v2529 = vadd.f32 %v2362, %v2394
        %v2530 = vadd.f32 %v2363, %v2394
        %v2531 = vadd.f32 %v2364, %v2394
        %v2532 = vadd.f32 %v2365, %v2394
        %v2533 = vadd.f32 %v2366, %v2394
        %v2534 = vadd.f32 %v2367, %v2394
        %v2535 = vadd.f32 %v2368, %v2394
        %v2536 = vadd.f32 %v2369, %v2394
        %v2537 = vadd.f32 %v2370, %v2394
        %v2538 = vadd.f32 %v2371, %v2394
        %v2539 = vadd.f32 %v2372, %v2394
        %v2540 = vadd.f32 %v2373, %v2394
        %v2541 = vadd.f32 %v2374, %v2394
        %v2542 = vadd.f32 %v2375, %v2394
        %v2543 = vadd.f32 %v2376, %v2394
        %v2544 = vadd.f32 %v2377, %v2394
        %v2545 = vadd.f32 %v2378, %v2394
        %v2546 = vadd.f32 %v2379, %v2394
        %v2547 = vadd.f32 %v2380, %v2394
        %v2548 = vadd.f32 %v2381, %v2394
        %v2549 = vadd.f32 %v2382, %v2394
        %v2550 = vadd.f32 %v2383, %v2394
        %v2551 = vadd.f32 %v2384, %v2394
        %v2552 = vadd.f32 %v2385, %v2394
        %v2553 = vadd.f32 %v2386, %v2394
        %v2554 = vadd.f32 %v2387, %v2394
        %v2555 = vadd.f32 %v2388, %v2394
        %v2556 = vmax.f32 %v2396, 0.0
        %v2557 = vmax.f32 %v2397, 0.0
        %v2558 = vmax.f32 %v2398, 0.0
        %v2559 = vmax.f32 %v2399, 0.0
        %v2560 = vmax.f32 %v2400, 0.0
        %v2561 = vmax.f32 %v2401, 0.0
        %v2562 = vmax.f32 %v2402, 0.0
        %v2563 = vmax.f32 %v2403, 0.0
        %v2564 = vmax.f32 %v2404, 0.0
        %v2565 = vmax.f32 %v2405, 0.0
        %v2566 = vmax.f32 %v2406, 0.0
        %v2567 = vmax.f32 %v2407, 0.0
        %v2568 = vmax.f32 %v2408, 0.0
        %v2569 = vmax.f32 %v2409, 0.0
        %v2570 = vmax.f32 %v2410, 0.0
        %v2571 = vmax.f32 %v2411, 0.0
        %v2572 = vmax.f32 %v2412, 0.0
        %v2573 = vmax.f32 %v2413, 0.0
        %v2574 = vmax.f32 %v2414, 0.0
        %v2575 = vmax.f32 %v2415, 0.0
        %v2576 = vmax.f32 %v2416, 0.0
        %v2577 = vmax.f32 %v2417, 0.0
        %v2578 = vmax.f32 %v2418, 0.0
        %v2579 = vmax.f32 %v2419, 0.0
        %v2580 = vmax.f32 %v2420, 0.0
        %v2581 = vmax.f32 %v2421, 0.0
        %v2582 = vmax.f32 %v2422, 0.0
        %v2583 = vmax.f32 %v2423, 0.0
        %v2584 = vmax.f32 %v2424, 0.0
        %v2585 = vmax.f32 %v2425, 0.0
        %v2586 = vmax.f32 %v2426, 0.0
        %v2587 = vmax.f32 %v2427, 0.0
        %v2588 = vmax.f32 %v2428, 0.0
        %v2589 = vmax.f32 %v2429, 0.0
        %v2590 = vmax.f32 %v2430, 0.0
        %v2591 = vmax.f32 %v2431, 0.0
        %v2592 = vmax.f32 %v2432, 0.0
        %v2593 = vmax.f32 %v2433, 0.0
        %v2594 = vmax.f32 %v2434, 0.0
        %v2595 = vmax.f32 %v2435, 0.0
        %v2596 = vmax.f32 %v2436, 0.0
        %v2597 = vmax.f32 %v2437, 0.0
        %v2598 = vmax.f32 %v2438, 0.0
        %v2599 = vmax.f32 %v2439, 0.0
        %v2600 = vmax.f32 %v2440, 0.0
        %v2601 = vmax.f32 %v2441, 0.0
        %v2602 = vmax.f32 %v2442, 0.0
        %v2603 = vmax.f32 %v2443, 0.0
        %v2604 = vmax.f32 %v2444, 0.0
        %v2605 = vmax.f32 %v2445, 0.0
        %v2606 = vmax.f32 %v2446, 0.0
        %v2607 = vmax.f32 %v2447, 0.0
        %v2608 = vmax.f32 %v2448, 0.0
        %v2609 = vmax.f32 %v2449, 0.0
        %v2610 = vmax.f32 %v2450, 0.0
        %v2611 = vmax.f32 %v2451, 0.0
        %v2612 = vmax.f32 %v2452, 0.0
        %v2613 = vmax.f32 %v2453, 0.0
        %v2614 = vmax.f32 %v2454, 0.0
        %v2615 = vmax.f32 %v2455, 0.0
        %v2616 = vmax.f32 %v2456, 0.0
        %v2617 = vmax.f32 %v2457, 0.0
        %v2618 = vmax.f32 %v2458, 0.0
        %v2619 = vmax.f32 %v2459, 0.0
        %v2620 = vmax.f32 %v2460, 0.0
        %v2621 = vmax.f32 %v2461, 0.0
        %v2622 = vmax.f32 %v2462, 0.0
        %v2623 = vmax.f32 %v2463, 0.0
        %v2624 = vmax.f32 %v2464, 0.0
        %v2625 = vmax.f32 %v2465, 0.0
        %v2626 = vmax.f32 %v2466, 0.0
        %v2627 = vmax.f32 %v2467, 0.0
        %v2628 = vmax.f32 %v2468, 0.0
        %v2629 = vmax.f32 %v2469, 0.0
        %v2630 = vmax.f32 %v2470, 0.0
        %v2631 = vmax.f32 %v2471, 0.0
        %v2632 = vmax.f32 %v2472, 0.0
        %v2633 = vmax.f32 %v2473, 0.0
        %v2634 = vmax.f32 %v2474, 0.0
        %v2635 = vmax.f32 %v2475, 0.0
        %v2636 = vmax.f32 %v2476, 0.0
        %v2637 = vmax.f32 %v2477, 0.0
        %v2638 = vmax.f32 %v2478, 0.0
        %v2639 = vmax.f32 %v2479, 0.0
        %v2640 = vmax.f32 %v2480, 0.0
        %v2641 = vmax.f32 %v2481, 0.0
        %v2642 = vmax.f32 %v2482, 0.0
        %v2643 = vmax.f32 %v2483, 0.0
        %v2644 = vmax.f32 %v2484, 0.0
        %v2645 = vmax.f32 %v2485, 0.0
        %v2646 = vmax.f32 %v2486, 0.0
        %v2647 = vmax.f32 %v2487, 0.0
        %v2648 = vmax.f32 %v2488, 0.0
        %v2649 = vmax.f32 %v2489, 0.0
        %v2650 = vmax.f32 %v2490, 0.0
        %v2651 = vmax.f32 %v2491, 0.0
        %v2652 = vmax.f32 %v2492, 0.0
        %v2653 = vmax.f32 %v2493, 0.0
        %v2654 = vmax.f32 %v2494, 0.0
        %v2655 = vmax.f32 %v2495, 0.0
        %v2656 = vmax.f32 %v2496, 0.0
        %v2657 = vmax.f32 %v2497, 0.0
        %v2658 = vmax.f32 %v2498, 0.0
        %v2659 = vmax.f32 %v2499, 0.0
        %v2660 = vmax.f32 %v2500, 0.0
        %v2661 = vmax.f32 %v2501, 0.0
        %v2662 = vmax.f32 %v2502, 0.0
        %v2663 = vmax.f32 %v2503, 0.0
        %v2664 = vmax.f32 %v2504, 0.0
        %v2665 = vmax.f32 %v2505, 0.0
        %v2666 = vmax.f32 %v2506, 0.0
        %v2667 = vmax.f32 %v2507, 0.0
        %v2668 = vmax.f32 %v2508, 0.0
        %v2669 = vmax.f32 %v2509, 0.0
        %v2670 = vmax.f32 %v2510, 0.0
        %v2671 = vmax.f32 %v2511, 0.0
        %v2672 = vmax.f32 %v2512, 0.0
        %v2673 = vmax.f32 %v2513, 0.0
        %v2674 = vmax.f32 %v2514, 0.0
        %v2675 = vmax.f32 %v2515, 0.0
        %v2676 = vmax.f32 %v2516, 0.0
        %v2677 = vmax.f32 %v2517, 0.0
        %v2678 = vmax.f32 %v2518, 0.0
        %v2679 = vmax.f32 %v2519, 0.0
        %v2680 = vmax.f32 %v2520, 0.0
        %v2681 = vmax.f32 %v2521, 0.0
        %v2682 = vmax.f32 %v2522, 0.0
        %v2683 = vmax.f32 %v2523, 0.0
        %v2684 = vmax.f32 %v2524, 0.0
        %v2685 = vmax.f32 %v2525, 0.0
        %v2686 = vmax.f32 %v2526, 0.0
        %v2687 = vmax.f32 %v2527, 0.0
        %v2688 = vmax.f32 %v2528, 0.0
        %v2689 = vmax.f32 %v2529, 0.0
        %v2690 = vmax.f32 %v2530, 0.0
        %v2691 = vmax.f32 %v2531, 0.0
        %v2692 = vmax.f32 %v2532, 0.0
        %v2693 = vmax.f32 %v2533, 0.0
        %v2694 = vmax.f32 %v2534, 0.0
        %v2695 = vmax.f32 %v2535, 0.0
        %v2696 = vmax.f32 %v2536, 0.0
        %v2697 = vmax.f32 %v2537, 0.0
        %v2698 = vmax.f32 %v2538, 0.0
        %v2699 = vmax.f32 %v2539, 0.0
        %v2700 = vmax.f32 %v2540, 0.0
        %v2701 = vmax.f32 %v2541, 0.0
        %v2702 = vmax.f32 %v2542, 0.0
        %v2703 = vmax.f32 %v2543, 0.0
        %v2704 = vmax.f32 %v2544, 0.0
        %v2705 = vmax.f32 %v2545, 0.0
        %v2706 = vmax.f32 %v2546, 0.0
        %v2707 = vmax.f32 %v2547, 0.0
        %v2708 = vmax.f32 %v2548, 0.0
        %v2709 = vmax.f32 %v2549, 0.0
        %v2710 = vmax.f32 %v2550, 0.0
        %v2711 = vmax.f32 %v2551, 0.0
        %v2712 = vmax.f32 %v2552, 0.0
        %v2713 = vmax.f32 %v2553, 0.0
        %v2714 = vmax.f32 %v2554, 0.0
        %v2715 = vmax.f32 %v2555, 0.0
        %v2716 = vmax.f32 %v2556, %v2561
        %v2717 = vmax.f32 %v2557, %v2562
        %v2718 = vmax.f32 %v2558, %v2563
        %v2719 = vmax.f32 %v2559, %v2564
        %v2720 = vmax.f32 %v2560, %v2565
        %v2721 = vmax.f32 %v2566, %v2571
        %v2722 = vmax.f32 %v2567, %v2572
        %v2723 = vmax.f32 %v2568, %v2573
        %v2724 = vmax.f32 %v2569, %v2574
        %v2725 = vmax.f32 %v2570, %v2575
        %v2726 = vmax.f32 %v2576, %v2581
        %v2727 = vmax.f32 %v2577, %v2582
        %v2728 = vmax.f32 %v2578, %v2583
        %v2729 = vmax.f32 %v2579, %v2584
        %v2730 = vmax.f32 %v2580, %v2585
        %v2731 = vmax.f32 %v2586, %v2591
        %v2732 = vmax.f32 %v2587, %v2592
        %v2733 = vmax.f32 %v2588, %v2593
        %v2734 = vmax.f32 %v2589, %v2594
        %v2735 = vmax.f32 %v2590, %v2595
        %v2736 = vmax.f32 %v2596, %v2601
        %v2737 = vmax.f32 %v2597, %v2602
        %v2738 = vmax.f32 %v2598, %v2603
        %v2739 = vmax.f32 %v2599, %v2604
        %v2740 = vmax.f32 %v2600, %v2605
        %v2741 = vmax.f32 %v2606, %v2611
        %v2742 = vmax.f32 %v2607, %v2612
        %v2743 = vmax.f32 %v2608, %v2613
        %v2744 = vmax.f32 %v2609, %v2614
        %v2745 = vmax.f32 %v2610, %v2615
        %v2746 = vmax.f32 %v2616, %v2621
        %v2747 = vmax.f32 %v2617, %v2622
        %v2748 = vmax.f32 %v2618, %v2623
        %v2749 = vmax.f32 %v2619, %v2624
        %v2750 = vmax.f32 %v2620, %v2625
        %v2751 = vmax.f32 %v2626, %v2631
        %v2752 = vmax.f32 %v2627, %v2632
        %v2753 = vmax.f32 %v2628, %v2633
        %v2754 = vmax.f32 %v2629, %v2634
        %v2755 = vmax.f32 %v2630, %v2635
        %v2756 = vmax.f32 %v2636, %v2641
        %v2757 = vmax.f32 %v2637, %v2642
        %v2758 = vmax.f32 %v2638, %v2643
        %v2759 = vmax.f32 %v2639, %v2644
        %v2760 = vmax.f32 %v2640, %v2645
        %v2761 = vmax.f32 %v2646, %v2651
        %v2762 = vmax.f32 %v2647, %v2652
        %v2763 = vmax.f32 %v2648, %v2653
        %v2764 = vmax.f32 %v2649, %v2654
        %v2765 = vmax.f32 %v2650, %v2655
        %v2766 = vmax.f32 %v2656, %v2661
        %v2767 = vmax.f32 %v2657, %v2662
        %v2768 = vmax.f32 %v2658, %v2663
        %v2769 = vmax.f32 %v2659, %v2664
        %v2770 = vmax.f32 %v2660, %v2665
        %v2771 = vmax.f32 %v2666, %v2671
        %v2772 = vmax.f32 %v2667, %v2672
        %v2773 = vmax.f32 %v2668, %v2673
        %v2774 = vmax.f32 %v2669, %v2674
        %v2775 = vmax.f32 %v2670, %v2675
        %v2776 = vmax.f32 %v2676, %v2681
        %v2777 = vmax.f32 %v2677, %v2682
        %v2778 = vmax.f32 %v2678, %v2683
        %v2779 = vmax.f32 %v2679, %v2684
        %v2780 = vmax.f32 %v2680, %v2685
        %v2781 = vmax.f32 %v2686, %v2691
        %v2782 = vmax.f32 %v2687, %v2692
        %v2783 = vmax.f32 %v2688, %v2693
        %v2784 = vmax.f32 %v2689, %v2694
        %v2785 = vmax.f32 %v2690, %v2695
        %v2786 = vmax.f32 %v2696, %v2701
        %v2787 = vmax.f32 %v2697, %v2702
        %v2788 = vmax.f32 %v2698, %v2703
        %v2789 = vmax.f32 %v2699, %v2704
        %v2790 = vmax.f32 %v2700, %v2705
        %v2791 = vmax.f32 %v2706, %v2711
        %v2792 = vmax.f32 %v2707, %v2712
        %v2793 = vmax.f32 %v2708, %v2713
        %v2794 = vmax.f32 %v2709, %v2714
        %v2795 = vmax.f32 %v2710, %v2715
        %v2796 = vpack.c.bf16 %v2717, %v2716
        %v2797 = vpack.c.bf16 %v2719, %v2718
        %v2798 = vpack.c.bf16 %v2720, %v2720
        %v2799 = vpack.c.bf16 %v2722, %v2721
        %v2800 = vpack.c.bf16 %v2724, %v2723
        %v2801 = vpack.c.bf16 %v2725, %v2725
        %v2802 = vpack.c.bf16 %v2727, %v2726
        %v2803 = vpack.c.bf16 %v2729, %v2728
        %v2804 = vpack.c.bf16 %v2730, %v2730
        %v2805 = vpack.c.bf16 %v2732, %v2731
        %v2806 = vpack.c.bf16 %v2734, %v2733
        %v2807 = vpack.c.bf16 %v2735, %v2735
        %v2808 = vpack.c.bf16 %v2737, %v2736
        %v2809 = vpack.c.bf16 %v2739, %v2738
        %v2810 = vpack.c.bf16 %v2740, %v2740
        %v2811 = vpack.c.bf16 %v2742, %v2741
        %v2812 = vpack.c.bf16 %v2744, %v2743
        %v2813 = vpack.c.bf16 %v2745, %v2745
        %v2814 = vpack.c.bf16 %v2747, %v2746
        %v2815 = vpack.c.bf16 %v2749, %v2748
        %v2816 = vpack.c.bf16 %v2750, %v2750
        %v2817 = vpack.c.bf16 %v2752, %v2751
        %v2818 = vpack.c.bf16 %v2754, %v2753
        %v2819 = vpack.c.bf16 %v2755, %v2755
        %v2820 = vpack.c.bf16 %v2757, %v2756
        %v2821 = vpack.c.bf16 %v2759, %v2758
        %v2822 = vpack.c.bf16 %v2760, %v2760
        %v2823 = vpack.c.bf16 %v2762, %v2761
        %v2824 = vpack.c.bf16 %v2764, %v2763
        %v2825 = vpack.c.bf16 %v2765, %v2765
        %v2826 = vpack.c.bf16 %v2767, %v2766
        %v2827 = vpack.c.bf16 %v2769, %v2768
        %v2828 = vpack.c.bf16 %v2770, %v2770
        %v2829 = vpack.c.bf16 %v2772, %v2771
        %v2830 = vpack.c.bf16 %v2774, %v2773
        %v2831 = vpack.c.bf16 %v2775, %v2775
        %v2832 = vpack.c.bf16 %v2777, %v2776
        %v2833 = vpack.c.bf16 %v2779, %v2778
        %v2834 = vpack.c.bf16 %v2780, %v2780
        %v2835 = vpack.c.bf16 %v2782, %v2781
        %v2836 = vpack.c.bf16 %v2784, %v2783
        %v2837 = vpack.c.bf16 %v2785, %v2785
        %v2838 = vpack.c.bf16 %v2787, %v2786
        %v2839 = vpack.c.bf16 %v2789, %v2788
        %v2840 = vpack.c.bf16 %v2790, %v2790
        %v2841 = vpack.c.bf16 %v2792, %v2791
        %v2842 = vpack.c.bf16 %v2794, %v2793
        %v2843 = vpack.c.bf16 %v2795, %v2795
        %v2876 = vunpack.c.l.b16 %v2796
        %v2877 = vunpack.c.h.b16 %v2796
        %v2878 = vunpack.c.l.b16 %v2797
        %v2879 = vunpack.c.l.b16 %v2799
        %v2880 = vunpack.c.h.b16 %v2799
        %v2881 = vunpack.c.l.b16 %v2800
        %v2882 = vunpack.c.l.b16 %v2802
        %v2883 = vunpack.c.h.b16 %v2802
        %v2884 = vunpack.c.l.b16 %v2803
        %v2885 = vunpack.c.l.b16 %v2805
        %v2886 = vunpack.c.h.b16 %v2805
        %v2887 = vunpack.c.l.b16 %v2806
        %v2888 = vunpack.c.l.b16 %v2808
        %v2889 = vunpack.c.h.b16 %v2808
        %v2890 = vunpack.c.l.b16 %v2809
        %v2891 = vunpack.c.l.b16 %v2811
        %v2892 = vunpack.c.h.b16 %v2811
        %v2893 = vunpack.c.l.b16 %v2812
        %v2894 = vunpack.c.l.b16 %v2814
        %v2895 = vunpack.c.h.b16 %v2814
        %v2896 = vunpack.c.l.b16 %v2815
        %v2897 = vunpack.c.l.b16 %v2817
        %v2898 = vunpack.c.h.b16 %v2817
        %v2899 = vunpack.c.l.b16 %v2818
        %v2900 = vunpack.c.l.b16 %v2820
        %v2901 = vunpack.c.h.b16 %v2820
        %v2902 = vunpack.c.l.b16 %v2821
        %v2903 = vunpack.c.l.b16 %v2823
        %v2904 = vunpack.c.h.b16 %v2823
        %v2905 = vunpack.c.l.b16 %v2824
        %v2906 = vunpack.c.l.b16 %v2826
        %v2907 = vunpack.c.h.b16 %v2826
        %v2908 = vunpack.c.l.b16 %v2827
        %v2909 = vunpack.c.l.b16 %v2829
        %v2910 = vunpack.c.h.b16 %v2829
        %v2911 = vunpack.c.l.b16 %v2830
        %v2912 = vunpack.c.l.b16 %v2832
        %v2913 = vunpack.c.h.b16 %v2832
        %v2914 = vunpack.c.l.b16 %v2833
        %v2915 = vunpack.c.l.b16 %v2835
        %v2916 = vunpack.c.h.b16 %v2835
        %v2917 = vunpack.c.l.b16 %v2836
        %v2918 = vunpack.c.l.b16 %v2838
        %v2919 = vunpack.c.h.b16 %v2838
        %v2920 = vunpack.c.l.b16 %v2839
        %v2921 = vunpack.c.l.b16 %v2841
        %v2922 = vunpack.c.h.b16 %v2841
        %v2923 = vunpack.c.l.b16 %v2842
        %v2924 = vld [vmem:[#allocation10] sm:$0xff]
        %v2925 = vld [vmem:[#allocation10 + $0x8] sm:$0xff]
        %v2926 = vld [vmem:[#allocation10 + $0x10] sm:$0xff]
        %v2927 = vld [vmem:[#allocation10 + $0x18] sm:$0xff]
        %v2928 = vld [vmem:[#allocation10 + $0x20] sm:$0xff]
        %v2929 = vld [vmem:[#allocation10 + $0x28] sm:$0xff]
        %v2930 = vld [vmem:[#allocation10 + $0x30] sm:$0xff]
        %v2931 = vld [vmem:[#allocation10 + $0x38] sm:$0xff]
        %v2932 = vld [vmem:[#allocation10 + $0x40] sm:$0xff]
        %v2933 = vld [vmem:[#allocation10 + $0x48] sm:$0xff]
        %v2934 = vld [vmem:[#allocation10 + $0x50] sm:$0xff]
        %v2935 = vld [vmem:[#allocation10 + $0x58] sm:$0xff]
        %v2936 = vld [vmem:[#allocation10 + $0x60] sm:$0xff]
        %v2937 = vld [vmem:[#allocation10 + $0x68] sm:$0xff]
        %v2938 = vld [vmem:[#allocation10 + $0x70] sm:$0xff]
        %v2939 = vld [vmem:[#allocation10 + $0x78] sm:$0xff]
        %v2940 = vunpack.c.h.b16 %v2797
        %v2941 = vunpack.c.h.b16 %v2800
        %v2942 = vunpack.c.h.b16 %v2803
        %v2943 = vunpack.c.h.b16 %v2806
        %v2944 = vunpack.c.h.b16 %v2809
        %v2945 = vunpack.c.h.b16 %v2812
        %v2946 = vunpack.c.h.b16 %v2815
        %v2947 = vunpack.c.h.b16 %v2818
        %v2948 = vunpack.c.h.b16 %v2821
        %v2949 = vunpack.c.h.b16 %v2824
        %v2950 = vunpack.c.h.b16 %v2827
        %v2951 = vunpack.c.h.b16 %v2830
        %v2952 = vunpack.c.h.b16 %v2833
        %v2953 = vunpack.c.h.b16 %v2836
        %v2954 = vunpack.c.h.b16 %v2839
        %v2955 = vunpack.c.h.b16 %v2842
        %v2956 = vpack.c.b16 %v2876, %v2876
        %v2957 = vpack.c.b16 %v2877, %v2877
        %v2958 = vpack.c.b16 %v2878, %v2878
        %v2959 = vpack.c.b16 %v2940, %v2940
        %v2960 = vpack.c.b16 %v2879, %v2879
        %v2961 = vpack.c.b16 %v2880, %v2880
        %v2962 = vpack.c.b16 %v2881, %v2881
        %v2963 = vpack.c.b16 %v2941, %v2941
        %v2964 = vpack.c.b16 %v2882, %v2882
        %v2965 = vpack.c.b16 %v2883, %v2883
        %v2966 = vpack.c.b16 %v2884, %v2884
        %v2967 = vpack.c.b16 %v2942, %v2942
        %v2968 = vpack.c.b16 %v2885, %v2885
        %v2969 = vpack.c.b16 %v2886, %v2886
        %v2970 = vpack.c.b16 %v2887, %v2887
        %v2971 = vpack.c.b16 %v2943, %v2943
        %v2972 = vpack.c.b16 %v2888, %v2888
        %v2973 = vpack.c.b16 %v2889, %v2889
        %v2974 = vpack.c.b16 %v2890, %v2890
        %v2975 = vpack.c.b16 %v2944, %v2944
        %v2976 = vpack.c.b16 %v2891, %v2891
        %v2977 = vpack.c.b16 %v2892, %v2892
        %v2978 = vpack.c.b16 %v2893, %v2893
        %v2979 = vpack.c.b16 %v2945, %v2945
        %v2980 = vpack.c.b16 %v2894, %v2894
        %v2981 = vpack.c.b16 %v2895, %v2895
        %v2982 = vpack.c.b16 %v2896, %v2896
        %v2983 = vpack.c.b16 %v2946, %v2946
        %v2984 = vpack.c.b16 %v2897, %v2897
        %v2985 = vpack.c.b16 %v2898, %v2898
        %v2986 = vpack.c.b16 %v2899, %v2899
        %v2987 = vpack.c.b16 %v2947, %v2947
        %v2988 = vpack.c.b16 %v2900, %v2900
        %v2989 = vpack.c.b16 %v2901, %v2901
        %v2990 = vpack.c.b16 %v2902, %v2902
        %v2991 = vpack.c.b16 %v2948, %v2948
        %v2992 = vpack.c.b16 %v2903, %v2903
        %v2993 = vpack.c.b16 %v2904, %v2904
        %v2994 = vpack.c.b16 %v2905, %v2905
        %v2995 = vpack.c.b16 %v2949, %v2949
        %v2996 = vpack.c.b16 %v2906, %v2906
        %v2997 = vpack.c.b16 %v2907, %v2907
        %v2998 = vpack.c.b16 %v2908, %v2908
        %v2999 = vpack.c.b16 %v2950, %v2950
        %v3000 = vpack.c.b16 %v2909, %v2909
        %v3001 = vpack.c.b16 %v2910, %v2910
        %v3002 = vpack.c.b16 %v2911, %v2911
        %v3003 = vpack.c.b16 %v2951, %v2951
        %v3004 = vpack.c.b16 %v2912, %v2912
        %v3005 = vpack.c.b16 %v2913, %v2913
        %v3006 = vpack.c.b16 %v2914, %v2914
        %v3007 = vpack.c.b16 %v2952, %v2952
        %v3008 = vpack.c.b16 %v2915, %v2915
        %v3009 = vpack.c.b16 %v2916, %v2916
        %v3010 = vpack.c.b16 %v2917, %v2917
        %v3011 = vpack.c.b16 %v2953, %v2953
        %v3012 = vpack.c.b16 %v2918, %v2918
        %v3013 = vpack.c.b16 %v2919, %v2919
        %v3014 = vpack.c.b16 %v2920, %v2920
        %v3015 = vpack.c.b16 %v2954, %v2954
        %v3016 = vpack.c.b16 %v2921, %v2921
        %v3017 = vpack.c.b16 %v2922, %v2922
        %v3018 = vpack.c.b16 %v2923, %v2923
        %v3019 = vpack.c.b16 %v2955, %v2955
        %vm3020 = vsmask.f32 3328
        %vm3021 = vsmask.f32 7440
        %vm3022 = vmor %vm3020, %vm3021
        %v3024 = vshrl.u32 %v2956, 16
        %v3026 = vrot.slane %v3024, 4
        %v3027 = vshll.u32 %v2956, 16
        %v3029 = vrot.slane %v3027, 5
        %v3030 = vor.u32 %v3026, %v3029
        %v3031 = vrot.slane %v3030, 4
        %v3033 = vshll.u32 %v2957, 16
        %v3035 = vrot.slane %v3033, 5
        %v3036 = vsel %vm3022, %v3031, %v3035
        %v3037 = vshrl.u32 %v2957, 16
        %v3039 = vrot.slane %v3037, 4
        %v3040 = vor.u32 %v3039, %v3035
        %v3041 = vrot.slane %v3040, 4
        %v3043 = vshll.u32 %v2958, 16
        %v3045 = vrot.slane %v3043, 5
        %v3046 = vsel %vm3022, %v3041, %v3045
        %v3047 = vshrl.u32 %v2958, 16
        %v3049 = vrot.slane %v3047, 4
        %v3050 = vor.u32 %v3049, %v3045
        %v3051 = vrot.slane %v3050, 4
        %v3053 = vshll.u32 %v2959, 16
        %v3055 = vrot.slane %v3053, 5
        %v3056 = vsel %vm3022, %v3051, %v3055
        %v3058 = vshrl.u32 %v2960, 16
        %v3060 = vrot.slane %v3058, 4
        %v3061 = vshll.u32 %v2960, 16
        %v3063 = vrot.slane %v3061, 5
        %v3064 = vor.u32 %v3060, %v3063
        %v3065 = vrot.slane %v3064, 4
        %v3067 = vshll.u32 %v2961, 16
        %v3069 = vrot.slane %v3067, 5
        %v3070 = vsel %vm3022, %v3065, %v3069
        %v3071 = vshrl.u32 %v2961, 16
        %v3073 = vrot.slane %v3071, 4
        %v3074 = vor.u32 %v3073, %v3069
        %v3075 = vrot.slane %v3074, 4
        %v3077 = vshll.u32 %v2962, 16
        %v3079 = vrot.slane %v3077, 5
        %v3080 = vsel %vm3022, %v3075, %v3079
        %v3081 = vshrl.u32 %v2962, 16
        %v3083 = vrot.slane %v3081, 4
        %v3084 = vor.u32 %v3083, %v3079
        %v3085 = vrot.slane %v3084, 4
        %v3087 = vshll.u32 %v2963, 16
        %v3089 = vrot.slane %v3087, 5
        %v3090 = vsel %vm3022, %v3085, %v3089
        %v3092 = vshrl.u32 %v2964, 16
        %v3094 = vrot.slane %v3092, 4
        %v3095 = vshll.u32 %v2964, 16
        %v3097 = vrot.slane %v3095, 5
        %v3098 = vor.u32 %v3094, %v3097
        %v3099 = vrot.slane %v3098, 4
        %v3101 = vshll.u32 %v2965, 16
        %v3103 = vrot.slane %v3101, 5
        %v3104 = vsel %vm3022, %v3099, %v3103
        %v3105 = vshrl.u32 %v2965, 16
        %v3107 = vrot.slane %v3105, 4
        %v3108 = vor.u32 %v3107, %v3103
        %v3109 = vrot.slane %v3108, 4
        %v3111 = vshll.u32 %v2966, 16
        %v3113 = vrot.slane %v3111, 5
        %v3114 = vsel %vm3022, %v3109, %v3113
        %v3115 = vshrl.u32 %v2966, 16
        %v3117 = vrot.slane %v3115, 4
        %v3118 = vor.u32 %v3117, %v3113
        %v3119 = vrot.slane %v3118, 4
        %v3121 = vshll.u32 %v2967, 16
        %v3123 = vrot.slane %v3121, 5
        %v3124 = vsel %vm3022, %v3119, %v3123
        %v3126 = vshrl.u32 %v2968, 16
        %v3128 = vrot.slane %v3126, 4
        %v3129 = vshll.u32 %v2968, 16
        %v3131 = vrot.slane %v3129, 5
        %v3132 = vor.u32 %v3128, %v3131
        %v3133 = vrot.slane %v3132, 4
        %v3135 = vshll.u32 %v2969, 16
        %v3137 = vrot.slane %v3135, 5
        %v3138 = vsel %vm3022, %v3133, %v3137
        %v3139 = vshrl.u32 %v2969, 16
        %v3141 = vrot.slane %v3139, 4
        %v3142 = vor.u32 %v3141, %v3137
        %v3143 = vrot.slane %v3142, 4
        %v3145 = vshll.u32 %v2970, 16
        %v3147 = vrot.slane %v3145, 5
        %v3148 = vsel %vm3022, %v3143, %v3147
        %v3149 = vshrl.u32 %v2970, 16
        %v3151 = vrot.slane %v3149, 4
        %v3152 = vor.u32 %v3151, %v3147
        %v3153 = vrot.slane %v3152, 4
        %v3155 = vshll.u32 %v2971, 16
        %v3157 = vrot.slane %v3155, 5
        %v3158 = vsel %vm3022, %v3153, %v3157
        %v3160 = vshrl.u32 %v2972, 16
        %v3162 = vrot.slane %v3160, 4
        %v3163 = vshll.u32 %v2972, 16
        %v3165 = vrot.slane %v3163, 5
        %v3166 = vor.u32 %v3162, %v3165
        %v3167 = vrot.slane %v3166, 4
        %v3169 = vshll.u32 %v2973, 16
        %v3171 = vrot.slane %v3169, 5
        %v3172 = vsel %vm3022, %v3167, %v3171
        %v3173 = vshrl.u32 %v2973, 16
        %v3175 = vrot.slane %v3173, 4
        %v3176 = vor.u32 %v3175, %v3171
        %v3177 = vrot.slane %v3176, 4
        %v3179 = vshll.u32 %v2974, 16
        %v3181 = vrot.slane %v3179, 5
        %v3182 = vsel %vm3022, %v3177, %v3181
        %v3183 = vshrl.u32 %v2974, 16
        %v3185 = vrot.slane %v3183, 4
        %v3186 = vor.u32 %v3185, %v3181
        %v3187 = vrot.slane %v3186, 4
        %v3189 = vshll.u32 %v2975, 16
        %v3191 = vrot.slane %v3189, 5
        %v3192 = vsel %vm3022, %v3187, %v3191
        %v3194 = vshrl.u32 %v2976, 16
        %v3196 = vrot.slane %v3194, 4
        %v3197 = vshll.u32 %v2976, 16
        %v3199 = vrot.slane %v3197, 5
        %v3200 = vor.u32 %v3196, %v3199
        %v3201 = vrot.slane %v3200, 4
        %v3203 = vshll.u32 %v2977, 16
        %v3205 = vrot.slane %v3203, 5
        %v3206 = vsel %vm3022, %v3201, %v3205
        %v3207 = vshrl.u32 %v2977, 16
        %v3209 = vrot.slane %v3207, 4
        %v3210 = vor.u32 %v3209, %v3205
        %v3211 = vrot.slane %v3210, 4
        %v3213 = vshll.u32 %v2978, 16
        %v3215 = vrot.slane %v3213, 5
        %v3216 = vsel %vm3022, %v3211, %v3215
        %v3217 = vshrl.u32 %v2978, 16
        %v3219 = vrot.slane %v3217, 4
        %v3220 = vor.u32 %v3219, %v3215
        %v3221 = vrot.slane %v3220, 4
        %v3223 = vshll.u32 %v2979, 16
        %v3225 = vrot.slane %v3223, 5
        %v3226 = vsel %vm3022, %v3221, %v3225
        %v3228 = vshrl.u32 %v2980, 16
        %v3230 = vrot.slane %v3228, 4
        %v3231 = vshll.u32 %v2980, 16
        %v3233 = vrot.slane %v3231, 5
        %v3234 = vor.u32 %v3230, %v3233
        %v3235 = vrot.slane %v3234, 4
        %v3237 = vshll.u32 %v2981, 16
        %v3239 = vrot.slane %v3237, 5
        %v3240 = vsel %vm3022, %v3235, %v3239
        %v3241 = vshrl.u32 %v2981, 16
        %v3243 = vrot.slane %v3241, 4
        %v3244 = vor.u32 %v3243, %v3239
        %v3245 = vrot.slane %v3244, 4
        %v3247 = vshll.u32 %v2982, 16
        %v3249 = vrot.slane %v3247, 5
        %v3250 = vsel %vm3022, %v3245, %v3249
        %v3251 = vshrl.u32 %v2982, 16
        %v3253 = vrot.slane %v3251, 4
        %v3254 = vor.u32 %v3253, %v3249
        %v3255 = vrot.slane %v3254, 4
        %v3257 = vshll.u32 %v2983, 16
        %v3259 = vrot.slane %v3257, 5
        %v3260 = vsel %vm3022, %v3255, %v3259
        %v3262 = vshrl.u32 %v2984, 16
        %v3264 = vrot.slane %v3262, 4
        %v3265 = vshll.u32 %v2984, 16
        %v3267 = vrot.slane %v3265, 5
        %v3268 = vor.u32 %v3264, %v3267
        %v3269 = vrot.slane %v3268, 4
        %v3271 = vshll.u32 %v2985, 16
        %v3273 = vrot.slane %v3271, 5
        %v3274 = vsel %vm3022, %v3269, %v3273
        %v3275 = vshrl.u32 %v2985, 16
        %v3277 = vrot.slane %v3275, 4
        %v3278 = vor.u32 %v3277, %v3273
        %v3279 = vrot.slane %v3278, 4
        %v3281 = vshll.u32 %v2986, 16
        %v3283 = vrot.slane %v3281, 5
        %v3284 = vsel %vm3022, %v3279, %v3283
        %v3285 = vshrl.u32 %v2986, 16
        %v3287 = vrot.slane %v3285, 4
        %v3288 = vor.u32 %v3287, %v3283
        %v3289 = vrot.slane %v3288, 4
        %v3291 = vshll.u32 %v2987, 16
        %v3293 = vrot.slane %v3291, 5
        %v3294 = vsel %vm3022, %v3289, %v3293
        %v3296 = vshrl.u32 %v2988, 16
        %v3298 = vrot.slane %v3296, 4
        %v3299 = vshll.u32 %v2988, 16
        %v3301 = vrot.slane %v3299, 5
        %v3302 = vor.u32 %v3298, %v3301
        %v3303 = vrot.slane %v3302, 4
        %v3305 = vshll.u32 %v2989, 16
        %v3307 = vrot.slane %v3305, 5
        %v3308 = vsel %vm3022, %v3303, %v3307
        %v3309 = vshrl.u32 %v2989, 16
        %v3311 = vrot.slane %v3309, 4
        %v3312 = vor.u32 %v3311, %v3307
        %v3313 = vrot.slane %v3312, 4
        %v3315 = vshll.u32 %v2990, 16
        %v3317 = vrot.slane %v3315, 5
        %v3318 = vsel %vm3022, %v3313, %v3317
        %v3319 = vshrl.u32 %v2990, 16
        %v3321 = vrot.slane %v3319, 4
        %v3322 = vor.u32 %v3321, %v3317
        %v3323 = vrot.slane %v3322, 4
        %v3325 = vshll.u32 %v2991, 16
        %v3327 = vrot.slane %v3325, 5
        %v3328 = vsel %vm3022, %v3323, %v3327
        %v3330 = vshrl.u32 %v2992, 16
        %v3332 = vrot.slane %v3330, 4
        %v3333 = vshll.u32 %v2992, 16
        %v3335 = vrot.slane %v3333, 5
        %v3336 = vor.u32 %v3332, %v3335
        %v3337 = vrot.slane %v3336, 4
        %v3339 = vshll.u32 %v2993, 16
        %v3341 = vrot.slane %v3339, 5
        %v3342 = vsel %vm3022, %v3337, %v3341
        %v3343 = vshrl.u32 %v2993, 16
        %v3345 = vrot.slane %v3343, 4
        %v3346 = vor.u32 %v3345, %v3341
        %v3347 = vrot.slane %v3346, 4
        %v3349 = vshll.u32 %v2994, 16
        %v3351 = vrot.slane %v3349, 5
        %v3352 = vsel %vm3022, %v3347, %v3351
        %v3353 = vshrl.u32 %v2994, 16
        %v3355 = vrot.slane %v3353, 4
        %v3356 = vor.u32 %v3355, %v3351
        %v3357 = vrot.slane %v3356, 4
        %v3359 = vshll.u32 %v2995, 16
        %v3361 = vrot.slane %v3359, 5
        %v3362 = vsel %vm3022, %v3357, %v3361
        %v3364 = vshrl.u32 %v2996, 16
        %v3366 = vrot.slane %v3364, 4
        %v3367 = vshll.u32 %v2996, 16
        %v3369 = vrot.slane %v3367, 5
        %v3370 = vor.u32 %v3366, %v3369
        %v3371 = vrot.slane %v3370, 4
        %v3373 = vshll.u32 %v2997, 16
        %v3375 = vrot.slane %v3373, 5
        %v3376 = vsel %vm3022, %v3371, %v3375
        %v3377 = vshrl.u32 %v2997, 16
        %v3379 = vrot.slane %v3377, 4
        %v3380 = vor.u32 %v3379, %v3375
        %v3381 = vrot.slane %v3380, 4
        %v3383 = vshll.u32 %v2998, 16
        %v3385 = vrot.slane %v3383, 5
        %v3386 = vsel %vm3022, %v3381, %v3385
        %v3387 = vshrl.u32 %v2998, 16
        %v3389 = vrot.slane %v3387, 4
        %v3390 = vor.u32 %v3389, %v3385
        %v3391 = vrot.slane %v3390, 4
        %v3393 = vshll.u32 %v2999, 16
        %v3395 = vrot.slane %v3393, 5
        %v3396 = vsel %vm3022, %v3391, %v3395
        %v3398 = vshrl.u32 %v3000, 16
        %v3400 = vrot.slane %v3398, 4
        %v3401 = vshll.u32 %v3000, 16
        %v3403 = vrot.slane %v3401, 5
        %v3404 = vor.u32 %v3400, %v3403
        %v3405 = vrot.slane %v3404, 4
        %v3407 = vshll.u32 %v3001, 16
        %v3409 = vrot.slane %v3407, 5
        %v3410 = vsel %vm3022, %v3405, %v3409
        %v3411 = vshrl.u32 %v3001, 16
        %v3413 = vrot.slane %v3411, 4
        %v3414 = vor.u32 %v3413, %v3409
        %v3415 = vrot.slane %v3414, 4
        %v3417 = vshll.u32 %v3002, 16
        %v3419 = vrot.slane %v3417, 5
        %v3420 = vsel %vm3022, %v3415, %v3419
        %v3421 = vshrl.u32 %v3002, 16
        %v3423 = vrot.slane %v3421, 4
        %v3424 = vor.u32 %v3423, %v3419
        %v3425 = vrot.slane %v3424, 4
        %v3427 = vshll.u32 %v3003, 16
        %v3429 = vrot.slane %v3427, 5
        %v3430 = vsel %vm3022, %v3425, %v3429
        %v3432 = vshrl.u32 %v3004, 16
        %v3434 = vrot.slane %v3432, 4
        %v3435 = vshll.u32 %v3004, 16
        %v3437 = vrot.slane %v3435, 5
        %v3438 = vor.u32 %v3434, %v3437
        %v3439 = vrot.slane %v3438, 4
        %v3441 = vshll.u32 %v3005, 16
        %v3443 = vrot.slane %v3441, 5
        %v3444 = vsel %vm3022, %v3439, %v3443
        %v3445 = vshrl.u32 %v3005, 16
        %v3447 = vrot.slane %v3445, 4
        %v3448 = vor.u32 %v3447, %v3443
        %v3449 = vrot.slane %v3448, 4
        %v3451 = vshll.u32 %v3006, 16
        %v3453 = vrot.slane %v3451, 5
        %v3454 = vsel %vm3022, %v3449, %v3453
        %v3455 = vshrl.u32 %v3006, 16
        %v3457 = vrot.slane %v3455, 4
        %v3458 = vor.u32 %v3457, %v3453
        %v3459 = vrot.slane %v3458, 4
        %v3461 = vshll.u32 %v3007, 16
        %v3463 = vrot.slane %v3461, 5
        %v3464 = vsel %vm3022, %v3459, %v3463
        %v3466 = vshrl.u32 %v3008, 16
        %v3468 = vrot.slane %v3466, 4
        %v3469 = vshll.u32 %v3008, 16
        %v3471 = vrot.slane %v3469, 5
        %v3472 = vor.u32 %v3468, %v3471
        %v3473 = vrot.slane %v3472, 4
        %v3475 = vshll.u32 %v3009, 16
        %v3477 = vrot.slane %v3475, 5
        %v3478 = vsel %vm3022, %v3473, %v3477
        %v3479 = vshrl.u32 %v3009, 16
        %v3481 = vrot.slane %v3479, 4
        %v3482 = vor.u32 %v3481, %v3477
        %v3483 = vrot.slane %v3482, 4
        %v3485 = vshll.u32 %v3010, 16
        %v3487 = vrot.slane %v3485, 5
        %v3488 = vsel %vm3022, %v3483, %v3487
        %v3489 = vshrl.u32 %v3010, 16
        %v3491 = vrot.slane %v3489, 4
        %v3492 = vor.u32 %v3491, %v3487
        %v3493 = vrot.slane %v3492, 4
        %v3495 = vshll.u32 %v3011, 16
        %v3497 = vrot.slane %v3495, 5
        %v3498 = vsel %vm3022, %v3493, %v3497
        %v3500 = vshrl.u32 %v3012, 16
        %v3502 = vrot.slane %v3500, 4
        %v3503 = vshll.u32 %v3012, 16
        %v3505 = vrot.slane %v3503, 5
        %v3506 = vor.u32 %v3502, %v3505
        %v3507 = vrot.slane %v3506, 4
        %v3509 = vshll.u32 %v3013, 16
        %v3511 = vrot.slane %v3509, 5
        %v3512 = vsel %vm3022, %v3507, %v3511
        %v3513 = vshrl.u32 %v3013, 16
        %v3515 = vrot.slane %v3513, 4
        %v3516 = vor.u32 %v3515, %v3511
        %v3517 = vrot.slane %v3516, 4
        %v3519 = vshll.u32 %v3014, 16
        %v3521 = vrot.slane %v3519, 5
        %v3522 = vsel %vm3022, %v3517, %v3521
        %v3523 = vshrl.u32 %v3014, 16
        %v3525 = vrot.slane %v3523, 4
        %v3526 = vor.u32 %v3525, %v3521
        %v3527 = vrot.slane %v3526, 4
        %v3529 = vshll.u32 %v3015, 16
        %v3531 = vrot.slane %v3529, 5
        %v3532 = vsel %vm3022, %v3527, %v3531
        %v3534 = vshrl.u32 %v3016, 16
        %v3536 = vrot.slane %v3534, 4
        %v3537 = vshll.u32 %v3016, 16
        %v3539 = vrot.slane %v3537, 5
        %v3540 = vor.u32 %v3536, %v3539
        %v3541 = vrot.slane %v3540, 4
        %v3543 = vshll.u32 %v3017, 16
        %v3545 = vrot.slane %v3543, 5
        %v3546 = vsel %vm3022, %v3541, %v3545
        %v3547 = vshrl.u32 %v3017, 16
        %v3549 = vrot.slane %v3547, 4
        %v3550 = vor.u32 %v3549, %v3545
        %v3551 = vrot.slane %v3550, 4
        %v3553 = vshll.u32 %v3018, 16
        %v3555 = vrot.slane %v3553, 5
        %v3556 = vsel %vm3022, %v3551, %v3555
        %v3557 = vshrl.u32 %v3018, 16
        %v3559 = vrot.slane %v3557, 4
        %v3560 = vor.u32 %v3559, %v3555
        %v3561 = vrot.slane %v3560, 4
        %v3563 = vshll.u32 %v3019, 16
        %v3565 = vrot.slane %v3563, 5
        %v3566 = vsel %vm3022, %v3561, %v3565
        %s3567 = scalar_lea.vmem [#allocation10], 128
        %v3568 = vld [vmem:[%s3567] sm:$0xff]
        %v3569 = vld [vmem:[%s3567 + $0x8] sm:$0xff]
        %v3570 = vld [vmem:[%s3567 + $0x10] sm:$0xff]
        %v3571 = vld [vmem:[%s3567 + $0x18] sm:$0xff]
        %v3572 = vld [vmem:[%s3567 + $0x20] sm:$0xff]
        %v3573 = vld [vmem:[%s3567 + $0x28] sm:$0xff]
        %v3574 = vld [vmem:[%s3567 + $0x30] sm:$0xff]
        %v3575 = vld [vmem:[%s3567 + $0x38] sm:$0xff]
        %v3576 = vld [vmem:[%s3567 + $0x40] sm:$0xff]
        %v3577 = vld [vmem:[%s3567 + $0x48] sm:$0xff]
        %v3578 = vld [vmem:[%s3567 + $0x50] sm:$0xff]
        %v3579 = vld [vmem:[%s3567 + $0x58] sm:$0xff]
        %v3580 = vld [vmem:[%s3567 + $0x60] sm:$0xff]
        %v3581 = vld [vmem:[%s3567 + $0x68] sm:$0xff]
        %v3582 = vld [vmem:[%s3567 + $0x70] sm:$0xff]
        %v3583 = vld [vmem:[%s3567 + $0x78] sm:$0xff]
        %v3584 = vunpack.c.l.b16 %v3036
        %v3585 = vunpack.c.l.b16 %v3046
        %v3586 = vunpack.c.l.b16 %v3056
        %v3587 = vunpack.c.l.b16 %v3070
        %v3588 = vunpack.c.l.b16 %v3080
        %v3589 = vunpack.c.l.b16 %v3090
        %v3590 = vunpack.c.l.b16 %v3104
        %v3591 = vunpack.c.l.b16 %v3114
        %v3592 = vunpack.c.l.b16 %v3124
        %v3593 = vunpack.c.l.b16 %v3138
        %v3594 = vunpack.c.l.b16 %v3148
        %v3595 = vunpack.c.l.b16 %v3158
        %v3596 = vunpack.c.l.b16 %v3172
        %v3597 = vunpack.c.l.b16 %v3182
        %v3598 = vunpack.c.l.b16 %v3192
        %v3599 = vunpack.c.l.b16 %v3206
        %v3600 = vunpack.c.l.b16 %v3216
        %v3601 = vunpack.c.l.b16 %v3226
        %v3602 = vunpack.c.l.b16 %v3240
        %v3603 = vunpack.c.l.b16 %v3250
        %v3604 = vunpack.c.l.b16 %v3260
        %v3605 = vunpack.c.l.b16 %v3274
        %v3606 = vunpack.c.l.b16 %v3284
        %v3607 = vunpack.c.l.b16 %v3294
        %v3608 = vunpack.c.l.b16 %v3308
        %v3609 = vunpack.c.l.b16 %v3318
        %v3610 = vunpack.c.l.b16 %v3328
        %v3611 = vunpack.c.l.b16 %v3342
        %v3612 = vunpack.c.l.b16 %v3352
        %v3613 = vunpack.c.l.b16 %v3362
        %v3614 = vunpack.c.l.b16 %v3376
        %v3615 = vunpack.c.l.b16 %v3386
        %v3616 = vunpack.c.l.b16 %v3396
        %v3617 = vunpack.c.l.b16 %v3410
        %v3618 = vunpack.c.l.b16 %v3420
        %v3619 = vunpack.c.l.b16 %v3430
        %v3620 = vunpack.c.l.b16 %v3444
        %v3621 = vunpack.c.l.b16 %v3454
        %v3622 = vunpack.c.l.b16 %v3464
        %v3623 = vunpack.c.l.b16 %v3478
        %v3624 = vunpack.c.l.b16 %v3488
        %v3625 = vunpack.c.l.b16 %v3498
        %v3626 = vunpack.c.l.b16 %v3512
        %v3627 = vunpack.c.l.b16 %v3522
        %v3628 = vunpack.c.l.b16 %v3532
        %v3629 = vunpack.c.l.b16 %v3546
        %v3630 = vunpack.c.l.b16 %v3556
        %v3631 = vunpack.c.l.b16 %v3566
        %v3632 = vpack.c.b16 %v3585, %v3584
        %v3633 = vpack.c.b16 %v3587, %v3586
        %v3634 = vpack.c.b16 %v3589, %v3588
        %v3635 = vpack.c.b16 %v3591, %v3590
        %v3636 = vpack.c.b16 %v3593, %v3592
        %v3637 = vpack.c.b16 %v3595, %v3594
        %v3638 = vpack.c.b16 %v3597, %v3596
        %v3639 = vpack.c.b16 %v3599, %v3598
        %v3640 = vpack.c.b16 %v3601, %v3600
        %v3641 = vpack.c.b16 %v3603, %v3602
        %v3642 = vpack.c.b16 %v3605, %v3604
        %v3643 = vpack.c.b16 %v3607, %v3606
        %v3644 = vpack.c.b16 %v3609, %v3608
        %v3645 = vpack.c.b16 %v3611, %v3610
        %v3646 = vpack.c.b16 %v3613, %v3612
        %v3647 = vpack.c.b16 %v3615, %v3614
        %v3648 = vpack.c.b16 %v3617, %v3616
        %v3649 = vpack.c.b16 %v3619, %v3618
        %v3650 = vpack.c.b16 %v3621, %v3620
        %v3651 = vpack.c.b16 %v3623, %v3622
        %v3652 = vpack.c.b16 %v3625, %v3624
        %v3653 = vpack.c.b16 %v3627, %v3626
        %v3654 = vpack.c.b16 %v3629, %v3628
        %v3655 = vpack.c.b16 %v3631, %v3630
        %v3696 = vunpack.c.l.b16 %v3568
        %v3697 = vunpack.c.h.b16 %v3568
        %v3698 = vunpack.c.l.b16 %v3569
        %v3699 = vunpack.c.h.b16 %v3569
        %v3700 = vunpack.c.l.b16 %v3570
        %v3701 = vunpack.c.h.b16 %v3570
        %v3702 = vunpack.c.l.b16 %v3571
        %v3703 = vunpack.c.h.b16 %v3571
        %v3704 = vunpack.c.l.b16 %v3572
        %v3705 = vunpack.c.h.b16 %v3572
        %v3706 = vunpack.c.l.b16 %v3573
        %v3707 = vunpack.c.h.b16 %v3573
        %v3708 = vunpack.c.l.b16 %v3574
        %v3709 = vunpack.c.h.b16 %v3574
        %v3710 = vunpack.c.l.b16 %v3575
        %v3711 = vunpack.c.h.b16 %v3575
        %v3712 = vunpack.c.l.b16 %v3576
        %v3713 = vunpack.c.h.b16 %v3576
        %v3714 = vunpack.c.l.b16 %v3577
        %v3715 = vunpack.c.h.b16 %v3577
        %v3716 = vunpack.c.l.b16 %v3578
        %v3717 = vunpack.c.h.b16 %v3578
        %v3718 = vunpack.c.l.b16 %v3579
        %v3719 = vunpack.c.h.b16 %v3579
        %v3720 = vunpack.c.l.b16 %v3580
        %v3721 = vunpack.c.h.b16 %v3580
        %v3722 = vunpack.c.l.b16 %v3581
        %v3723 = vunpack.c.h.b16 %v3581
        %v3724 = vunpack.c.l.b16 %v3582
        %v3725 = vunpack.c.h.b16 %v3582
        %v3726 = vunpack.c.l.b16 %v3583
        %v3727 = vunpack.c.h.b16 %v3583
        %v3728 = vpack.c.b16 %v3698, %v3696
        %v3729 = vpack.c.b16 %v3699, %v3697
        %v3730 = vpack.c.b16 %v3702, %v3700
        %v3731 = vpack.c.b16 %v3703, %v3701
        %v3732 = vpack.c.b16 %v3706, %v3704
        %v3733 = vpack.c.b16 %v3707, %v3705
        %v3734 = vpack.c.b16 %v3710, %v3708
        %v3735 = vpack.c.b16 %v3711, %v3709
        %v3736 = vpack.c.b16 %v3714, %v3712
        %v3737 = vpack.c.b16 %v3715, %v3713
        %v3738 = vpack.c.b16 %v3718, %v3716
        %v3739 = vpack.c.b16 %v3719, %v3717
        %v3740 = vpack.c.b16 %v3722, %v3720
        %v3741 = vpack.c.b16 %v3723, %v3721
        %v3742 = vpack.c.b16 %v3726, %v3724
        %v3743 = vpack.c.b16 %v3727, %v3725
        %3760 = vmatprep.subr.bf16.mxu0 %v3729
        %3761 = vmatpush1.bf16.msra.mxu0 %v3728
        %3762 = vmatprep.subr.bf16.mxu0 %v3731
        %3763 = vmatpush1.bf16.msra.mxu0 %v3730
        %3764 = vmatprep.subr.bf16.mxu0 %v3733
        %3765 = vmatpush1.bf16.msra.mxu0 %v3732
        %3766 = vmatprep.subr.bf16.mxu0 %v3735
        %3767 = vmatpush1.bf16.msra.mxu0 %v3734
        %3768 = vmatprep.subr.bf16.mxu0 %v3737
        %3769 = vmatpush1.bf16.msra.mxu0 %v3736
        %3770 = vmatprep.subr.bf16.mxu0 %v3739
        %3771 = vmatpush1.bf16.msra.mxu0 %v3738
        %3772 = vmatprep.subr.bf16.mxu0 %v3741
        %3773 = vmatpush1.bf16.msra.mxu0 %v3740
        %3774 = vmatprep.subr.bf16.mxu0 %v3743
        %3775 = vmatpush1.bf16.msra.mxu0 %v3742
        %3776 = vmatprep.subr.bf16.mxu0 0
        %3777 = vmatpush1.bf16.msra.mxu0 0
        %3778 = vmatprep.subr.bf16.mxu0 0
        %3779 = vmatpush1.bf16.msra.mxu0 0
        %3780 = vmatprep.subr.bf16.mxu0 0
        %3781 = vmatpush1.bf16.msra.mxu0 0
        %3782 = vmatprep.subr.bf16.mxu0 0
        %3783 = vmatpush1.bf16.msra.mxu0 0
        %3784 = vmatprep.subr.bf16.mxu0 0
        %3785 = vmatpush1.bf16.msra.mxu0 0
        %3786 = vmatprep.subr.bf16.mxu0 0
        %3787 = vmatpush1.bf16.msra.mxu0 0
        %3788 = vmatprep.subr.bf16.mxu0 0
        %3789 = vmatpush1.bf16.msra.mxu0 0
        %3790 = vmatprep.subr.bf16.mxu0 0
        %3791 = vmatpush1.bf16.msra.mxu0 0
        %3792 = vmatprep.mubr.bf16.mxu0 0
        %3793 = vmatmul.mubr.bf16.gmra.mrb[0].mxu0 %v3632
        %v3794 = vpop.f32.mrb[0].mxu0
        %v3795 = vadd.f32 0.0, %v3794
        %v3796 = vpop.f32.mrb[0].mxu0
        %v3797 = vadd.f32 0.0, %v3796
        %v3798 = vpop.f32.mrb[0].mxu0
        %v3799 = vadd.f32 0.0, %v3798
        %v3800 = vpop.f32.mrb[0].mxu0
        %v3801 = vadd.f32 0.0, %v3800
        %3802 = vmatprep.mubr.bf16.mxu0 0
        %3803 = vmatmul.mubr.bf16.gmra.mrb[0].mxu0 %v3633
        %v3804 = vpop.f32.mrb[0].mxu0
        %v3805 = vadd.f32 0.0, %v3804
        %v3806 = vpop.f32.mrb[0].mxu0
        %v3807 = vadd.f32 0.0, %v3806
        %v3808 = vpop.f32.mrb[0].mxu0
        %v3809 = vadd.f32 0.0, %v3808
        %v3810 = vpop.f32.mrb[0].mxu0
        %v3811 = vadd.f32 0.0, %v3810
        %3812 = vmatprep.mubr.bf16.mxu0 0
        %3813 = vmatmul.mubr.bf16.gmra.mrb[0].mxu0 %v3634
        %v3814 = vpop.f32.mrb[0].mxu0
        %v3815 = vadd.f32 0.0, %v3814
        %v3816 = vpop.f32.mrb[0].mxu0
        %v3817 = vadd.f32 0.0, %v3816
        %v3818 = vpop.f32.mrb[0].mxu0
        %v3819 = vadd.f32 0.0, %v3818
        %v3820 = vpop.f32.mrb[0].mxu0
        %v3821 = vadd.f32 0.0, %v3820
        %3822 = vmatprep.mubr.bf16.mxu0 0
        %3823 = vmatmul.mubr.bf16.gmra.mrb[0].mxu0 %v3635
        %v3824 = vpop.f32.mrb[0].mxu0
        %v3825 = vadd.f32 0.0, %v3824
        %v3826 = vpop.f32.mrb[0].mxu0
        %v3827 = vadd.f32 0.0, %v3826
        %v3828 = vpop.f32.mrb[0].mxu0
        %v3829 = vadd.f32 0.0, %v3828
        %v3830 = vpop.f32.mrb[0].mxu0
        %v3831 = vadd.f32 0.0, %v3830
        %3832 = vmatprep.mubr.bf16.mxu0 0
        %3833 = vmatmul.mubr.bf16.gmra.mrb[0].mxu0 %v3636
        %v3834 = vpop.f32.mrb[0].mxu0
        %v3835 = vadd.f32 0.0, %v3834
        %v3836 = vpop.f32.mrb[0].mxu0
        %v3837 = vadd.f32 0.0, %v3836
        %v3838 = vpop.f32.mrb[0].mxu0
        %v3839 = vadd.f32 0.0, %v3838
        %v3840 = vpop.f32.mrb[0].mxu0
        %v3841 = vadd.f32 0.0, %v3840
        %3842 = vmatprep.mubr.bf16.mxu0 0
        %3843 = vmatmul.mubr.bf16.gmra.mrb[0].mxu0 %v3637
        %v3844 = vpop.f32.mrb[0].mxu0
        %v3845 = vadd.f32 0.0, %v3844
        %v3846 = vpop.f32.mrb[0].mxu0
        %v3847 = vadd.f32 0.0, %v3846
        %v3848 = vpop.f32.mrb[0].mxu0
        %v3849 = vadd.f32 0.0, %v3848
        %v3850 = vpop.f32.mrb[0].mxu0
        %v3851 = vadd.f32 0.0, %v3850
        %3852 = vmatprep.mubr.bf16.mxu0 0
        %3853 = vmatmul.mubr.bf16.gmra.mrb[0].mxu0 %v3638
        %v3854 = vpop.f32.mrb[0].mxu0
        %v3855 = vadd.f32 0.0, %v3854
        %v3856 = vpop.f32.mrb[0].mxu0
        %v3857 = vadd.f32 0.0, %v3856
        %v3858 = vpop.f32.mrb[0].mxu0
        %v3859 = vadd.f32 0.0, %v3858
        %v3860 = vpop.f32.mrb[0].mxu0
        %v3861 = vadd.f32 0.0, %v3860
        %3862 = vmatprep.mubr.bf16.mxu0 0
        %3863 = vmatmul.mubr.bf16.gmra.mrb[0].mxu0 %v3639
        %v3864 = vpop.f32.mrb[0].mxu0
        %v3865 = vadd.f32 0.0, %v3864
        %v3866 = vpop.f32.mrb[0].mxu0
        %v3867 = vadd.f32 0.0, %v3866
        %v3868 = vpop.f32.mrb[0].mxu0
        %v3869 = vadd.f32 0.0, %v3868
        %v3870 = vpop.f32.mrb[0].mxu0
        %v3871 = vadd.f32 0.0, %v3870
        %3872 = vmatprep.mubr.bf16.mxu0 0
        %3873 = vmatmul.mubr.bf16.gmra.mrb[0].mxu0 %v3640
        %v3874 = vpop.f32.mrb[0].mxu0
        %v3875 = vadd.f32 0.0, %v3874
        %v3876 = vpop.f32.mrb[0].mxu0
        %v3877 = vadd.f32 0.0, %v3876
        %v3878 = vpop.f32.mrb[0].mxu0
        %v3879 = vadd.f32 0.0, %v3878
        %v3880 = vpop.f32.mrb[0].mxu0
        %v3881 = vadd.f32 0.0, %v3880
        %3882 = vmatprep.mubr.bf16.mxu0 0
        %3883 = vmatmul.mubr.bf16.gmra.mrb[0].mxu0 %v3641
        %v3884 = vpop.f32.mrb[0].mxu0
        %v3885 = vadd.f32 0.0, %v3884
        %v3886 = vpop.f32.mrb[0].mxu0
        %v3887 = vadd.f32 0.0, %v3886
        %v3888 = vpop.f32.mrb[0].mxu0
        %v3889 = vadd.f32 0.0, %v3888
        %v3890 = vpop.f32.mrb[0].mxu0
        %v3891 = vadd.f32 0.0, %v3890
        %3892 = vmatprep.mubr.bf16.mxu0 0
        %3893 = vmatmul.mubr.bf16.gmra.mrb[0].mxu0 %v3642
        %v3894 = vpop.f32.mrb[0].mxu0
        %v3895 = vadd.f32 0.0, %v3894
        %v3896 = vpop.f32.mrb[0].mxu0
        %v3897 = vadd.f32 0.0, %v3896
        %v3898 = vpop.f32.mrb[0].mxu0
        %v3899 = vadd.f32 0.0, %v3898
        %v3900 = vpop.f32.mrb[0].mxu0
        %v3901 = vadd.f32 0.0, %v3900
        %3902 = vmatprep.mubr.bf16.mxu0 0
        %3903 = vmatmul.mubr.bf16.gmra.mrb[0].mxu0 %v3643
        %v3904 = vpop.f32.mrb[0].mxu0
        %v3905 = vadd.f32 0.0, %v3904
        %v3906 = vpop.f32.mrb[0].mxu0
        %v3907 = vadd.f32 0.0, %v3906
        %v3908 = vpop.f32.mrb[0].mxu0
        %v3909 = vadd.f32 0.0, %v3908
        %v3910 = vpop.f32.mrb[0].mxu0
        %v3911 = vadd.f32 0.0, %v3910
        %3912 = vmatprep.mubr.bf16.mxu0 0
        %3913 = vmatmul.mubr.bf16.gmra.mrb[0].mxu0 %v3644
        %v3914 = vpop.f32.mrb[0].mxu0
        %v3915 = vadd.f32 0.0, %v3914
        %v3916 = vpop.f32.mrb[0].mxu0
        %v3917 = vadd.f32 0.0, %v3916
        %v3918 = vpop.f32.mrb[0].mxu0
        %v3919 = vadd.f32 0.0, %v3918
        %v3920 = vpop.f32.mrb[0].mxu0
        %v3921 = vadd.f32 0.0, %v3920
        %3922 = vmatprep.mubr.bf16.mxu0 0
        %3923 = vmatmul.mubr.bf16.gmra.mrb[0].mxu0 %v3645
        %v3924 = vpop.f32.mrb[0].mxu0
        %v3925 = vadd.f32 0.0, %v3924
        %v3926 = vpop.f32.mrb[0].mxu0
        %v3927 = vadd.f32 0.0, %v3926
        %v3928 = vpop.f32.mrb[0].mxu0
        %v3929 = vadd.f32 0.0, %v3928
        %v3930 = vpop.f32.mrb[0].mxu0
        %v3931 = vadd.f32 0.0, %v3930
        %3932 = vmatprep.mubr.bf16.mxu0 0
        %3933 = vmatmul.mubr.bf16.gmra.mrb[0].mxu0 %v3646
        %v3934 = vpop.f32.mrb[0].mxu0
        %v3935 = vadd.f32 0.0, %v3934
        %v3936 = vpop.f32.mrb[0].mxu0
        %v3937 = vadd.f32 0.0, %v3936
        %v3938 = vpop.f32.mrb[0].mxu0
        %v3939 = vadd.f32 0.0, %v3938
        %v3940 = vpop.f32.mrb[0].mxu0
        %v3941 = vadd.f32 0.0, %v3940
        %3942 = vmatprep.mubr.bf16.mxu0 0
        %3943 = vmatmul.mubr.bf16.gmra.mrb[0].mxu0 %v3647
        %v3944 = vpop.f32.mrb[0].mxu0
        %v3945 = vadd.f32 0.0, %v3944
        %v3946 = vpop.f32.mrb[0].mxu0
        %v3947 = vadd.f32 0.0, %v3946
        %v3948 = vpop.f32.mrb[0].mxu0
        %v3949 = vadd.f32 0.0, %v3948
        %v3950 = vpop.f32.mrb[0].mxu0
        %v3951 = vadd.f32 0.0, %v3950
        %3952 = vmatprep.mubr.bf16.mxu0 0
        %3953 = vmatmul.mubr.bf16.gmra.mrb[0].mxu0 %v3648
        %v3954 = vpop.f32.mrb[0].mxu0
        %v3955 = vadd.f32 0.0, %v3954
        %v3956 = vpop.f32.mrb[0].mxu0
        %v3957 = vadd.f32 0.0, %v3956
        %v3958 = vpop.f32.mrb[0].mxu0
        %v3959 = vadd.f32 0.0, %v3958
        %v3960 = vpop.f32.mrb[0].mxu0
        %v3961 = vadd.f32 0.0, %v3960
        %3962 = vmatprep.mubr.bf16.mxu0 0
        %3963 = vmatmul.mubr.bf16.gmra.mrb[0].mxu0 %v3649
        %v3964 = vpop.f32.mrb[0].mxu0
        %v3965 = vadd.f32 0.0, %v3964
        %v3966 = vpop.f32.mrb[0].mxu0
        %v3967 = vadd.f32 0.0, %v3966
        %v3968 = vpop.f32.mrb[0].mxu0
        %v3969 = vadd.f32 0.0, %v3968
        %v3970 = vpop.f32.mrb[0].mxu0
        %v3971 = vadd.f32 0.0, %v3970
        %3972 = vmatprep.mubr.bf16.mxu0 0
        %3973 = vmatmul.mubr.bf16.gmra.mrb[0].mxu0 %v3650
        %v3974 = vpop.f32.mrb[0].mxu0
        %v3975 = vadd.f32 0.0, %v3974
        %v3976 = vpop.f32.mrb[0].mxu0
        %v3977 = vadd.f32 0.0, %v3976
        %v3978 = vpop.f32.mrb[0].mxu0
        %v3979 = vadd.f32 0.0, %v3978
        %v3980 = vpop.f32.mrb[0].mxu0
        %v3981 = vadd.f32 0.0, %v3980
        %3982 = vmatprep.mubr.bf16.mxu0 0
        %3983 = vmatmul.mubr.bf16.gmra.mrb[0].mxu0 %v3651
        %v3984 = vpop.f32.mrb[0].mxu0
        %v3985 = vadd.f32 0.0, %v3984
        %v3986 = vpop.f32.mrb[0].mxu0
        %v3987 = vadd.f32 0.0, %v3986
        %v3988 = vpop.f32.mrb[0].mxu0
        %v3989 = vadd.f32 0.0, %v3988
        %v3990 = vpop.f32.mrb[0].mxu0
        %v3991 = vadd.f32 0.0, %v3990
        %3992 = vmatprep.mubr.bf16.mxu0 0
        %3993 = vmatmul.mubr.bf16.gmra.mrb[0].mxu0 %v3652
        %v3994 = vpop.f32.mrb[0].mxu0
        %v3995 = vadd.f32 0.0, %v3994
        %v3996 = vpop.f32.mrb[0].mxu0
        %v3997 = vadd.f32 0.0, %v3996
        %v3998 = vpop.f32.mrb[0].mxu0
        %v3999 = vadd.f32 0.0, %v3998
        %v4000 = vpop.f32.mrb[0].mxu0
        %v4001 = vadd.f32 0.0, %v4000
        %4002 = vmatprep.mubr.bf16.mxu0 0
        %4003 = vmatmul.mubr.bf16.gmra.mrb[0].mxu0 %v3653
        %v4004 = vpop.f32.mrb[0].mxu0
        %v4005 = vadd.f32 0.0, %v4004
        %v4006 = vpop.f32.mrb[0].mxu0
        %v4007 = vadd.f32 0.0, %v4006
        %v4008 = vpop.f32.mrb[0].mxu0
        %v4009 = vadd.f32 0.0, %v4008
        %v4010 = vpop.f32.mrb[0].mxu0
        %v4011 = vadd.f32 0.0, %v4010
        %4012 = vmatprep.mubr.bf16.mxu0 0
        %4013 = vmatmul.mubr.bf16.gmra.mrb[0].mxu0 %v3654
        %v4014 = vpop.f32.mrb[0].mxu0
        %v4015 = vadd.f32 0.0, %v4014
        %v4016 = vpop.f32.mrb[0].mxu0
        %v4017 = vadd.f32 0.0, %v4016
        %v4018 = vpop.f32.mrb[0].mxu0
        %v4019 = vadd.f32 0.0, %v4018
        %v4020 = vpop.f32.mrb[0].mxu0
        %v4021 = vadd.f32 0.0, %v4020
        %4022 = vmatprep.mubr.bf16.mxu0 0
        %4023 = vmatmul.mubr.bf16.gmra.mrb[0].mxu0 %v3655
        %v4024 = vpop.f32.mrb[0].mxu0
        %v4025 = vadd.f32 0.0, %v4024
        %v4026 = vpop.f32.mrb[0].mxu0
        %v4027 = vadd.f32 0.0, %v4026
        %v4028 = vpop.f32.mrb[0].mxu0
        %v4029 = vadd.f32 0.0, %v4028
        %v4030 = vpop.f32.mrb[0].mxu0
        %v4031 = vadd.f32 0.0, %v4030
        %4032 = vdwg.mxu0
        %v4033 = vpack.c.b16 %v2877, %v2876
        %v4034 = vpack.c.b16 %v2879, %v2878
        %v4035 = vpack.c.b16 %v2881, %v2880
        %v4036 = vpack.c.b16 %v2883, %v2882
        %v4037 = vpack.c.b16 %v2885, %v2884
        %v4038 = vpack.c.b16 %v2887, %v2886
        %v4039 = vpack.c.b16 %v2889, %v2888
        %v4040 = vpack.c.b16 %v2891, %v2890
        %v4041 = vpack.c.b16 %v2893, %v2892
        %v4042 = vpack.c.b16 %v2895, %v2894
        %v4043 = vpack.c.b16 %v2897, %v2896
        %v4044 = vpack.c.b16 %v2899, %v2898
        %v4045 = vpack.c.b16 %v2901, %v2900
        %v4046 = vpack.c.b16 %v2903, %v2902
        %v4047 = vpack.c.b16 %v2905, %v2904
        %v4048 = vpack.c.b16 %v2907, %v2906
        %v4049 = vpack.c.b16 %v2909, %v2908
        %v4050 = vpack.c.b16 %v2911, %v2910
        %v4051 = vpack.c.b16 %v2913, %v2912
        %v4052 = vpack.c.b16 %v2915, %v2914
        %v4053 = vpack.c.b16 %v2917, %v2916
        %v4054 = vpack.c.b16 %v2919, %v2918
        %v4055 = vpack.c.b16 %v2921, %v2920
        %v4056 = vpack.c.b16 %v2923, %v2922
        %v4097 = vunpack.c.l.b16 %v2924
        %v4098 = vunpack.c.h.b16 %v2924
        %v4099 = vunpack.c.l.b16 %v2925
        %v4100 = vunpack.c.h.b16 %v2925
        %v4101 = vunpack.c.l.b16 %v2926
        %v4102 = vunpack.c.h.b16 %v2926
        %v4103 = vunpack.c.l.b16 %v2927
        %v4104 = vunpack.c.h.b16 %v2927
        %v4105 = vunpack.c.l.b16 %v2928
        %v4106 = vunpack.c.h.b16 %v2928
        %v4107 = vunpack.c.l.b16 %v2929
        %v4108 = vunpack.c.h.b16 %v2929
        %v4109 = vunpack.c.l.b16 %v2930
        %v4110 = vunpack.c.h.b16 %v2930
        %v4111 = vunpack.c.l.b16 %v2931
        %v4112 = vunpack.c.h.b16 %v2931
        %v4113 = vunpack.c.l.b16 %v2932
        %v4114 = vunpack.c.h.b16 %v2932
        %v4115 = vunpack.c.l.b16 %v2933
        %v4116 = vunpack.c.h.b16 %v2933
        %v4117 = vunpack.c.l.b16 %v2934
        %v4118 = vunpack.c.h.b16 %v2934
        %v4119 = vunpack.c.l.b16 %v2935
        %v4120 = vunpack.c.h.b16 %v2935
        %v4121 = vunpack.c.l.b16 %v2936
        %v4122 = vunpack.c.h.b16 %v2936
        %v4123 = vunpack.c.l.b16 %v2937
        %v4124 = vunpack.c.h.b16 %v2937
        %v4125 = vunpack.c.l.b16 %v2938
        %v4126 = vunpack.c.h.b16 %v2938
        %v4127 = vunpack.c.l.b16 %v2939
        %v4128 = vunpack.c.h.b16 %v2939
        %v4129 = vpack.c.b16 %v4099, %v4097
        %v4130 = vpack.c.b16 %v4100, %v4098
        %v4131 = vpack.c.b16 %v4103, %v4101
        %v4132 = vpack.c.b16 %v4104, %v4102
        %v4133 = vpack.c.b16 %v4107, %v4105
        %v4134 = vpack.c.b16 %v4108, %v4106
        %v4135 = vpack.c.b16 %v4111, %v4109
        %v4136 = vpack.c.b16 %v4112, %v4110
        %v4137 = vpack.c.b16 %v4115, %v4113
        %v4138 = vpack.c.b16 %v4116, %v4114
        %v4139 = vpack.c.b16 %v4119, %v4117
        %v4140 = vpack.c.b16 %v4120, %v4118
        %v4141 = vpack.c.b16 %v4123, %v4121
        %v4142 = vpack.c.b16 %v4124, %v4122
        %v4143 = vpack.c.b16 %v4127, %v4125
        %v4144 = vpack.c.b16 %v4128, %v4126
        %4161 = vmatprep.subr.bf16.mxu0 %v4130
        %4162 = vmatpush1.bf16.msra.mxu0 %v4129
        %4163 = vmatprep.subr.bf16.mxu0 %v4132
        %4164 = vmatpush1.bf16.msra.mxu0 %v4131
        %4165 = vmatprep.subr.bf16.mxu0 %v4134
        %4166 = vmatpush1.bf16.msra.mxu0 %v4133
        %4167 = vmatprep.subr.bf16.mxu0 %v4136
        %4168 = vmatpush1.bf16.msra.mxu0 %v4135
        %4169 = vmatprep.subr.bf16.mxu0 %v4138
        %4170 = vmatpush1.bf16.msra.mxu0 %v4137
        %4171 = vmatprep.subr.bf16.mxu0 %v4140
        %4172 = vmatpush1.bf16.msra.mxu0 %v4139
        %4173 = vmatprep.subr.bf16.mxu0 %v4142
        %4174 = vmatpush1.bf16.msra.mxu0 %v4141
        %4175 = vmatprep.subr.bf16.mxu0 %v4144
        %4176 = vmatpush1.bf16.msra.mxu0 %v4143
        %4177 = vmatprep.subr.bf16.mxu0 0
        %4178 = vmatpush1.bf16.msra.mxu0 0
        %4179 = vmatprep.subr.bf16.mxu0 0
        %4180 = vmatpush1.bf16.msra.mxu0 0
        %4181 = vmatprep.subr.bf16.mxu0 0
        %4182 = vmatpush1.bf16.msra.mxu0 0
        %4183 = vmatprep.subr.bf16.mxu0 0
        %4184 = vmatpush1.bf16.msra.mxu0 0
        %4185 = vmatprep.subr.bf16.mxu0 0
        %4186 = vmatpush1.bf16.msra.mxu0 0
        %4187 = vmatprep.subr.bf16.mxu0 0
        %4188 = vmatpush1.bf16.msra.mxu0 0
        %4189 = vmatprep.subr.bf16.mxu0 0
        %4190 = vmatpush1.bf16.msra.mxu0 0
        %4191 = vmatprep.subr.bf16.mxu0 0
        %4192 = vmatpush1.bf16.msra.mxu0 0
        %4193 = vmatprep.mubr.bf16.mxu0 0
        %4194 = vmatmul.mubr.bf16.gmra.mrb[0].mxu0 %v4033
        %v4195 = vpop.f32.mrb[0].mxu0
        %v4196 = vadd.f32 %v3795, %v4195
        %v4197 = vpop.f32.mrb[0].mxu0
        %v4198 = vadd.f32 %v3797, %v4197
        %v4199 = vpop.f32.mrb[0].mxu0
        %v4200 = vadd.f32 %v3799, %v4199
        %v4201 = vpop.f32.mrb[0].mxu0
        %v4202 = vadd.f32 %v3801, %v4201
        %4203 = vmatprep.mubr.bf16.mxu0 0
        %4204 = vmatmul.mubr.bf16.gmra.mrb[0].mxu0 %v4034
        %v4205 = vpop.f32.mrb[0].mxu0
        %v4206 = vadd.f32 %v3805, %v4205
        %v4207 = vpop.f32.mrb[0].mxu0
        %v4208 = vadd.f32 %v3807, %v4207
        %v4209 = vpop.f32.mrb[0].mxu0
        %v4210 = vadd.f32 %v3809, %v4209
        %v4211 = vpop.f32.mrb[0].mxu0
        %v4212 = vadd.f32 %v3811, %v4211
        %4213 = vmatprep.mubr.bf16.mxu0 0
        %4214 = vmatmul.mubr.bf16.gmra.mrb[0].mxu0 %v4035
        %v4215 = vpop.f32.mrb[0].mxu0
        %v4216 = vadd.f32 %v3815, %v4215
        %v4217 = vpop.f32.mrb[0].mxu0
        %v4218 = vadd.f32 %v3817, %v4217
        %v4219 = vpop.f32.mrb[0].mxu0
        %v4220 = vadd.f32 %v3819, %v4219
        %v4221 = vpop.f32.mrb[0].mxu0
        %v4222 = vadd.f32 %v3821, %v4221
        %4223 = vmatprep.mubr.bf16.mxu0 0
        %4224 = vmatmul.mubr.bf16.gmra.mrb[0].mxu0 %v4036
        %v4225 = vpop.f32.mrb[0].mxu0
        %v4226 = vadd.f32 %v3825, %v4225
        %v4227 = vpop.f32.mrb[0].mxu0
        %v4228 = vadd.f32 %v3827, %v4227
        %v4229 = vpop.f32.mrb[0].mxu0
        %v4230 = vadd.f32 %v3829, %v4229
        %v4231 = vpop.f32.mrb[0].mxu0
        %v4232 = vadd.f32 %v3831, %v4231
        %4233 = vmatprep.mubr.bf16.mxu0 0
        %4234 = vmatmul.mubr.bf16.gmra.mrb[0].mxu0 %v4037
        %v4235 = vpop.f32.mrb[0].mxu0
        %v4236 = vadd.f32 %v3835, %v4235
        %v4237 = vpop.f32.mrb[0].mxu0
        %v4238 = vadd.f32 %v3837, %v4237
        %v4239 = vpop.f32.mrb[0].mxu0
        %v4240 = vadd.f32 %v3839, %v4239
        %v4241 = vpop.f32.mrb[0].mxu0
        %v4242 = vadd.f32 %v3841, %v4241
        %4243 = vmatprep.mubr.bf16.mxu0 0
        %4244 = vmatmul.mubr.bf16.gmra.mrb[0].mxu0 %v4038
        %v4245 = vpop.f32.mrb[0].mxu0
        %v4246 = vadd.f32 %v3845, %v4245
        %v4247 = vpop.f32.mrb[0].mxu0
        %v4248 = vadd.f32 %v3847, %v4247
        %v4249 = vpop.f32.mrb[0].mxu0
        %v4250 = vadd.f32 %v3849, %v4249
        %v4251 = vpop.f32.mrb[0].mxu0
        %v4252 = vadd.f32 %v3851, %v4251
        %4253 = vmatprep.mubr.bf16.mxu0 0
        %4254 = vmatmul.mubr.bf16.gmra.mrb[0].mxu0 %v4039
        %v4255 = vpop.f32.mrb[0].mxu0
        %v4256 = vadd.f32 %v3855, %v4255
        %v4257 = vpop.f32.mrb[0].mxu0
        %v4258 = vadd.f32 %v3857, %v4257
        %v4259 = vpop.f32.mrb[0].mxu0
        %v4260 = vadd.f32 %v3859, %v4259
        %v4261 = vpop.f32.mrb[0].mxu0
        %v4262 = vadd.f32 %v3861, %v4261
        %4263 = vmatprep.mubr.bf16.mxu0 0
        %4264 = vmatmul.mubr.bf16.gmra.mrb[0].mxu0 %v4040
        %v4265 = vpop.f32.mrb[0].mxu0
        %v4266 = vadd.f32 %v3865, %v4265
        %v4267 = vpop.f32.mrb[0].mxu0
        %v4268 = vadd.f32 %v3867, %v4267
        %v4269 = vpop.f32.mrb[0].mxu0
        %v4270 = vadd.f32 %v3869, %v4269
        %v4271 = vpop.f32.mrb[0].mxu0
        %v4272 = vadd.f32 %v3871, %v4271
        %4273 = vmatprep.mubr.bf16.mxu0 0
        %4274 = vmatmul.mubr.bf16.gmra.mrb[0].mxu0 %v4041
        %v4275 = vpop.f32.mrb[0].mxu0
        %v4276 = vadd.f32 %v3875, %v4275
        %v4277 = vpop.f32.mrb[0].mxu0
        %v4278 = vadd.f32 %v3877, %v4277
        %v4279 = vpop.f32.mrb[0].mxu0
        %v4280 = vadd.f32 %v3879, %v4279
        %v4281 = vpop.f32.mrb[0].mxu0
        %v4282 = vadd.f32 %v3881, %v4281
        %4283 = vmatprep.mubr.bf16.mxu0 0
        %4284 = vmatmul.mubr.bf16.gmra.mrb[0].mxu0 %v4042
        %v4285 = vpop.f32.mrb[0].mxu0
        %v4286 = vadd.f32 %v3885, %v4285
        %v4287 = vpop.f32.mrb[0].mxu0
        %v4288 = vadd.f32 %v3887, %v4287
        %v4289 = vpop.f32.mrb[0].mxu0
        %v4290 = vadd.f32 %v3889, %v4289
        %v4291 = vpop.f32.mrb[0].mxu0
        %v4292 = vadd.f32 %v3891, %v4291
        %4293 = vmatprep.mubr.bf16.mxu0 0
        %4294 = vmatmul.mubr.bf16.gmra.mrb[0].mxu0 %v4043
        %v4295 = vpop.f32.mrb[0].mxu0
        %v4296 = vadd.f32 %v3895, %v4295
        %v4297 = vpop.f32.mrb[0].mxu0
        %v4298 = vadd.f32 %v3897, %v4297
        %v4299 = vpop.f32.mrb[0].mxu0
        %v4300 = vadd.f32 %v3899, %v4299
        %v4301 = vpop.f32.mrb[0].mxu0
        %v4302 = vadd.f32 %v3901, %v4301
        %4303 = vmatprep.mubr.bf16.mxu0 0
        %4304 = vmatmul.mubr.bf16.gmra.mrb[0].mxu0 %v4044
        %v4305 = vpop.f32.mrb[0].mxu0
        %v4306 = vadd.f32 %v3905, %v4305
        %v4307 = vpop.f32.mrb[0].mxu0
        %v4308 = vadd.f32 %v3907, %v4307
        %v4309 = vpop.f32.mrb[0].mxu0
        %v4310 = vadd.f32 %v3909, %v4309
        %v4311 = vpop.f32.mrb[0].mxu0
        %v4312 = vadd.f32 %v3911, %v4311
        %4313 = vmatprep.mubr.bf16.mxu0 0
        %4314 = vmatmul.mubr.bf16.gmra.mrb[0].mxu0 %v4045
        %v4315 = vpop.f32.mrb[0].mxu0
        %v4316 = vadd.f32 %v3915, %v4315
        %v4317 = vpop.f32.mrb[0].mxu0
        %v4318 = vadd.f32 %v3917, %v4317
        %v4319 = vpop.f32.mrb[0].mxu0
        %v4320 = vadd.f32 %v3919, %v4319
        %v4321 = vpop.f32.mrb[0].mxu0
        %v4322 = vadd.f32 %v3921, %v4321
        %4323 = vmatprep.mubr.bf16.mxu0 0
        %4324 = vmatmul.mubr.bf16.gmra.mrb[0].mxu0 %v4046
        %v4325 = vpop.f32.mrb[0].mxu0
        %v4326 = vadd.f32 %v3925, %v4325
        %v4327 = vpop.f32.mrb[0].mxu0
        %v4328 = vadd.f32 %v3927, %v4327
        %v4329 = vpop.f32.mrb[0].mxu0
        %v4330 = vadd.f32 %v3929, %v4329
        %v4331 = vpop.f32.mrb[0].mxu0
        %v4332 = vadd.f32 %v3931, %v4331
        %4333 = vmatprep.mubr.bf16.mxu0 0
        %4334 = vmatmul.mubr.bf16.gmra.mrb[0].mxu0 %v4047
        %v4335 = vpop.f32.mrb[0].mxu0
        %v4336 = vadd.f32 %v3935, %v4335
        %v4337 = vpop.f32.mrb[0].mxu0
        %v4338 = vadd.f32 %v3937, %v4337
        %v4339 = vpop.f32.mrb[0].mxu0
        %v4340 = vadd.f32 %v3939, %v4339
        %v4341 = vpop.f32.mrb[0].mxu0
        %v4342 = vadd.f32 %v3941, %v4341
        %4343 = vmatprep.mubr.bf16.mxu0 0
        %4344 = vmatmul.mubr.bf16.gmra.mrb[0].mxu0 %v4048
        %v4345 = vpop.f32.mrb[0].mxu0
        %v4346 = vadd.f32 %v3945, %v4345
        %v4347 = vpop.f32.mrb[0].mxu0
        %v4348 = vadd.f32 %v3947, %v4347
        %v4349 = vpop.f32.mrb[0].mxu0
        %v4350 = vadd.f32 %v3949, %v4349
        %v4351 = vpop.f32.mrb[0].mxu0
        %v4352 = vadd.f32 %v3951, %v4351
        %4353 = vmatprep.mubr.bf16.mxu0 0
        %4354 = vmatmul.mubr.bf16.gmra.mrb[0].mxu0 %v4049
        %v4355 = vpop.f32.mrb[0].mxu0
        %v4356 = vadd.f32 %v3955, %v4355
        %v4357 = vpop.f32.mrb[0].mxu0
        %v4358 = vadd.f32 %v3957, %v4357
        %v4359 = vpop.f32.mrb[0].mxu0
        %v4360 = vadd.f32 %v3959, %v4359
        %v4361 = vpop.f32.mrb[0].mxu0
        %v4362 = vadd.f32 %v3961, %v4361
        %4363 = vmatprep.mubr.bf16.mxu0 0
        %4364 = vmatmul.mubr.bf16.gmra.mrb[0].mxu0 %v4050
        %v4365 = vpop.f32.mrb[0].mxu0
        %v4366 = vadd.f32 %v3965, %v4365
        %v4367 = vpop.f32.mrb[0].mxu0
        %v4368 = vadd.f32 %v3967, %v4367
        %v4369 = vpop.f32.mrb[0].mxu0
        %v4370 = vadd.f32 %v3969, %v4369
        %v4371 = vpop.f32.mrb[0].mxu0
        %v4372 = vadd.f32 %v3971, %v4371
        %4373 = vmatprep.mubr.bf16.mxu0 0
        %4374 = vmatmul.mubr.bf16.gmra.mrb[0].mxu0 %v4051
        %v4375 = vpop.f32.mrb[0].mxu0
        %v4376 = vadd.f32 %v3975, %v4375
        %v4377 = vpop.f32.mrb[0].mxu0
        %v4378 = vadd.f32 %v3977, %v4377
        %v4379 = vpop.f32.mrb[0].mxu0
        %v4380 = vadd.f32 %v3979, %v4379
        %v4381 = vpop.f32.mrb[0].mxu0
        %v4382 = vadd.f32 %v3981, %v4381
        %4383 = vmatprep.mubr.bf16.mxu0 0
        %4384 = vmatmul.mubr.bf16.gmra.mrb[0].mxu0 %v4052
        %v4385 = vpop.f32.mrb[0].mxu0
        %v4386 = vadd.f32 %v3985, %v4385
        %v4387 = vpop.f32.mrb[0].mxu0
        %v4388 = vadd.f32 %v3987, %v4387
        %v4389 = vpop.f32.mrb[0].mxu0
        %v4390 = vadd.f32 %v3989, %v4389
        %v4391 = vpop.f32.mrb[0].mxu0
        %v4392 = vadd.f32 %v3991, %v4391
        %4393 = vmatprep.mubr.bf16.mxu0 0
        %4394 = vmatmul.mubr.bf16.gmra.mrb[0].mxu0 %v4053
        %v4395 = vpop.f32.mrb[0].mxu0
        %v4396 = vadd.f32 %v3995, %v4395
        %v4397 = vpop.f32.mrb[0].mxu0
        %v4398 = vadd.f32 %v3997, %v4397
        %v4399 = vpop.f32.mrb[0].mxu0
        %v4400 = vadd.f32 %v3999, %v4399
        %v4401 = vpop.f32.mrb[0].mxu0
        %v4402 = vadd.f32 %v4001, %v4401
        %4403 = vmatprep.mubr.bf16.mxu0 0
        %4404 = vmatmul.mubr.bf16.gmra.mrb[0].mxu0 %v4054
        %v4405 = vpop.f32.mrb[0].mxu0
        %v4406 = vadd.f32 %v4005, %v4405
        %v4407 = vpop.f32.mrb[0].mxu0
        %v4408 = vadd.f32 %v4007, %v4407
        %v4409 = vpop.f32.mrb[0].mxu0
        %v4410 = vadd.f32 %v4009, %v4409
        %v4411 = vpop.f32.mrb[0].mxu0
        %v4412 = vadd.f32 %v4011, %v4411
        %4413 = vmatprep.mubr.bf16.mxu0 0
        %4414 = vmatmul.mubr.bf16.gmra.mrb[0].mxu0 %v4055
        %v4415 = vpop.f32.mrb[0].mxu0
        %v4416 = vadd.f32 %v4015, %v4415
        %v4417 = vpop.f32.mrb[0].mxu0
        %v4418 = vadd.f32 %v4017, %v4417
        %v4419 = vpop.f32.mrb[0].mxu0
        %v4420 = vadd.f32 %v4019, %v4419
        %v4421 = vpop.f32.mrb[0].mxu0
        %v4422 = vadd.f32 %v4021, %v4421
        %4423 = vmatprep.mubr.bf16.mxu0 0
        %4424 = vmatmul.mubr.bf16.gmra.mrb[0].mxu0 %v4056
        %v4425 = vpop.f32.mrb[0].mxu0
        %v4426 = vadd.f32 %v4025, %v4425
        %v4427 = vpop.f32.mrb[0].mxu0
        %v4428 = vadd.f32 %v4027, %v4427
        %v4429 = vpop.f32.mrb[0].mxu0
        %v4430 = vadd.f32 %v4029, %v4429
        %v4431 = vpop.f32.mrb[0].mxu0
        %v4432 = vadd.f32 %v4031, %v4431
        %4433 = vdwg.mxu0
        %vm4434 = vcmask 1042432
        %vm4435 = vcmask 1046532
        %vm4436 = vmor %vm4434, %vm4435
        %v4437 = vrot.slane %v2956, 5
        %v4438 = vrot.slane %v4437, 4
        %v4439 = vrot.slane %v2957, 5
        %v4440 = vsel %vm4436, %v4438, %v4439
        %v4441 = vrot.slane %v4439, 4
        %v4442 = vrot.slane %v2958, 5
        %v4443 = vsel %vm4436, %v4441, %v4442
        %v4444 = vrot.slane %v4442, 4
        %v4445 = vrot.slane %v2959, 5
        %v4446 = vsel %vm4436, %v4444, %v4445
        %v4447 = vrot.slane %v2960, 5
        %v4448 = vrot.slane %v4447, 4
        %v4449 = vrot.slane %v2961, 5
        %v4450 = vsel %vm4436, %v4448, %v4449
        %v4451 = vrot.slane %v4449, 4
        %v4452 = vrot.slane %v2962, 5
        %v4453 = vsel %vm4436, %v4451, %v4452
        %v4454 = vrot.slane %v4452, 4
        %v4455 = vrot.slane %v2963, 5
        %v4456 = vsel %vm4436, %v4454, %v4455
        %v4457 = vrot.slane %v2964, 5
        %v4458 = vrot.slane %v4457, 4
        %v4459 = vrot.slane %v2965, 5
        %v4460 = vsel %vm4436, %v4458, %v4459
        %v4461 = vrot.slane %v4459, 4
        %v4462 = vrot.slane %v2966, 5
        %v4463 = vsel %vm4436, %v4461, %v4462
        %v4464 = vrot.slane %v4462, 4
        %v4465 = vrot.slane %v2967, 5
        %v4466 = vsel %vm4436, %v4464, %v4465
        %v4467 = vrot.slane %v2968, 5
        %v4468 = vrot.slane %v4467, 4
        %v4469 = vrot.slane %v2969, 5
        %v4470 = vsel %vm4436, %v4468, %v4469
        %v4471 = vrot.slane %v4469, 4
        %v4472 = vrot.slane %v2970, 5
        %v4473 = vsel %vm4436, %v4471, %v4472
        %v4474 = vrot.slane %v4472, 4
        %v4475 = vrot.slane %v2971, 5
        %v4476 = vsel %vm4436, %v4474, %v4475
        %v4477 = vrot.slane %v2972, 5
        %v4478 = vrot.slane %v4477, 4
        %v4479 = vrot.slane %v2973, 5
        %v4480 = vsel %vm4436, %v4478, %v4479
        %v4481 = vrot.slane %v4479, 4
        %v4482 = vrot.slane %v2974, 5
        %v4483 = vsel %vm4436, %v4481, %v4482
        %v4484 = vrot.slane %v4482, 4
        %v4485 = vrot.slane %v2975, 5
        %v4486 = vsel %vm4436, %v4484, %v4485
        %v4487 = vrot.slane %v2976, 5
        %v4488 = vrot.slane %v4487, 4
        %v4489 = vrot.slane %v2977, 5
        %v4490 = vsel %vm4436, %v4488, %v4489
        %v4491 = vrot.slane %v4489, 4
        %v4492 = vrot.slane %v2978, 5
        %v4493 = vsel %vm4436, %v4491, %v4492
        %v4494 = vrot.slane %v4492, 4
        %v4495 = vrot.slane %v2979, 5
        %v4496 = vsel %vm4436, %v4494, %v4495
        %v4497 = vrot.slane %v2980, 5
        %v4498 = vrot.slane %v4497, 4
        %v4499 = vrot.slane %v2981, 5
        %v4500 = vsel %vm4436, %v4498, %v4499
        %v4501 = vrot.slane %v4499, 4
        %v4502 = vrot.slane %v2982, 5
        %v4503 = vsel %vm4436, %v4501, %v4502
        %v4504 = vrot.slane %v4502, 4
        %v4505 = vrot.slane %v2983, 5
        %v4506 = vsel %vm4436, %v4504, %v4505
        %v4507 = vrot.slane %v2984, 5
        %v4508 = vrot.slane %v4507, 4
        %v4509 = vrot.slane %v2985, 5
        %v4510 = vsel %vm4436, %v4508, %v4509
        %v4511 = vrot.slane %v4509, 4
        %v4512 = vrot.slane %v2986, 5
        %v4513 = vsel %vm4436, %v4511, %v4512
        %v4514 = vrot.slane %v4512, 4
        %v4515 = vrot.slane %v2987, 5
        %v4516 = vsel %vm4436, %v4514, %v4515
        %v4517 = vrot.slane %v2988, 5
        %v4518 = vrot.slane %v4517, 4
        %v4519 = vrot.slane %v2989, 5
        %v4520 = vsel %vm4436, %v4518, %v4519
        %v4521 = vrot.slane %v4519, 4
        %v4522 = vrot.slane %v2990, 5
        %v4523 = vsel %vm4436, %v4521, %v4522
        %v4524 = vrot.slane %v4522, 4
        %v4525 = vrot.slane %v2991, 5
        %v4526 = vsel %vm4436, %v4524, %v4525
        %v4527 = vrot.slane %v2992, 5
        %v4528 = vrot.slane %v4527, 4
        %v4529 = vrot.slane %v2993, 5
        %v4530 = vsel %vm4436, %v4528, %v4529
        %v4531 = vrot.slane %v4529, 4
        %v4532 = vrot.slane %v2994, 5
        %v4533 = vsel %vm4436, %v4531, %v4532
        %v4534 = vrot.slane %v4532, 4
        %v4535 = vrot.slane %v2995, 5
        %v4536 = vsel %vm4436, %v4534, %v4535
        %v4537 = vrot.slane %v2996, 5
        %v4538 = vrot.slane %v4537, 4
        %v4539 = vrot.slane %v2997, 5
        %v4540 = vsel %vm4436, %v4538, %v4539
        %v4541 = vrot.slane %v4539, 4
        %v4542 = vrot.slane %v2998, 5
        %v4543 = vsel %vm4436, %v4541, %v4542
        %v4544 = vrot.slane %v4542, 4
        %v4545 = vrot.slane %v2999, 5
        %v4546 = vsel %vm4436, %v4544, %v4545
        %v4547 = vrot.slane %v3000, 5
        %v4548 = vrot.slane %v4547, 4
        %v4549 = vrot.slane %v3001, 5
        %v4550 = vsel %vm4436, %v4548, %v4549
        %v4551 = vrot.slane %v4549, 4
        %v4552 = vrot.slane %v3002, 5
        %v4553 = vsel %vm4436, %v4551, %v4552
        %v4554 = vrot.slane %v4552, 4
        %v4555 = vrot.slane %v3003, 5
        %v4556 = vsel %vm4436, %v4554, %v4555
        %v4557 = vrot.slane %v3004, 5
        %v4558 = vrot.slane %v4557, 4
        %v4559 = vrot.slane %v3005, 5
        %v4560 = vsel %vm4436, %v4558, %v4559
        %v4561 = vrot.slane %v4559, 4
        %v4562 = vrot.slane %v3006, 5
        %v4563 = vsel %vm4436, %v4561, %v4562
        %v4564 = vrot.slane %v4562, 4
        %v4565 = vrot.slane %v3007, 5
        %v4566 = vsel %vm4436, %v4564, %v4565
        %v4567 = vrot.slane %v3008, 5
        %v4568 = vrot.slane %v4567, 4
        %v4569 = vrot.slane %v3009, 5
        %v4570 = vsel %vm4436, %v4568, %v4569
        %v4571 = vrot.slane %v4569, 4
        %v4572 = vrot.slane %v3010, 5
        %v4573 = vsel %vm4436, %v4571, %v4572
        %v4574 = vrot.slane %v4572, 4
        %v4575 = vrot.slane %v3011, 5
        %v4576 = vsel %vm4436, %v4574, %v4575
        %v4577 = vrot.slane %v3012, 5
        %v4578 = vrot.slane %v4577, 4
        %v4579 = vrot.slane %v3013, 5
        %v4580 = vsel %vm4436, %v4578, %v4579
        %v4581 = vrot.slane %v4579, 4
        %v4582 = vrot.slane %v3014, 5
        %v4583 = vsel %vm4436, %v4581, %v4582
        %v4584 = vrot.slane %v4582, 4
        %v4585 = vrot.slane %v3015, 5
        %v4586 = vsel %vm4436, %v4584, %v4585
        %v4587 = vrot.slane %v3016, 5
        %v4588 = vrot.slane %v4587, 4
        %v4589 = vrot.slane %v3017, 5
        %v4590 = vsel %vm4436, %v4588, %v4589
        %v4591 = vrot.slane %v4589, 4
        %v4592 = vrot.slane %v3018, 5
        %v4593 = vsel %vm4436, %v4591, %v4592
        %v4594 = vrot.slane %v4592, 4
        %v4595 = vrot.slane %v3019, 5
        %v4596 = vsel %vm4436, %v4594, %v4595
        %s4597 = scalar_lea.vmem [#allocation10], 256
        %v4598 = vld [vmem:[%s4597] sm:$0xff]
        %v4599 = vld [vmem:[%s4597 + $0x8] sm:$0xff]
        %v4600 = vld [vmem:[%s4597 + $0x10] sm:$0xff]
        %v4601 = vld [vmem:[%s4597 + $0x18] sm:$0xff]
        %v4602 = vld [vmem:[%s4597 + $0x20] sm:$0xff]
        %v4603 = vld [vmem:[%s4597 + $0x28] sm:$0xff]
        %v4604 = vld [vmem:[%s4597 + $0x30] sm:$0xff]
        %v4605 = vld [vmem:[%s4597 + $0x38] sm:$0xff]
        %v4606 = vld [vmem:[%s4597 + $0x40] sm:$0xff]
        %v4607 = vld [vmem:[%s4597 + $0x48] sm:$0xff]
        %v4608 = vld [vmem:[%s4597 + $0x50] sm:$0xff]
        %v4609 = vld [vmem:[%s4597 + $0x58] sm:$0xff]
        %v4610 = vld [vmem:[%s4597 + $0x60] sm:$0xff]
        %v4611 = vld [vmem:[%s4597 + $0x68] sm:$0xff]
        %v4612 = vld [vmem:[%s4597 + $0x70] sm:$0xff]
        %v4613 = vld [vmem:[%s4597 + $0x78] sm:$0xff]
        %v4614 = vunpack.c.l.b16 %v4440
        %v4615 = vunpack.c.l.b16 %v4443
        %v4616 = vunpack.c.l.b16 %v4446
        %v4617 = vunpack.c.l.b16 %v4450
        %v4618 = vunpack.c.l.b16 %v4453
        %v4619 = vunpack.c.l.b16 %v4456
        %v4620 = vunpack.c.l.b16 %v4460
        %v4621 = vunpack.c.l.b16 %v4463
        %v4622 = vunpack.c.l.b16 %v4466
        %v4623 = vunpack.c.l.b16 %v4470
        %v4624 = vunpack.c.l.b16 %v4473
        %v4625 = vunpack.c.l.b16 %v4476
        %v4626 = vunpack.c.l.b16 %v4480
        %v4627 = vunpack.c.l.b16 %v4483
        %v4628 = vunpack.c.l.b16 %v4486
        %v4629 = vunpack.c.l.b16 %v4490
        %v4630 = vunpack.c.l.b16 %v4493
        %v4631 = vunpack.c.l.b16 %v4496
        %v4632 = vunpack.c.l.b16 %v4500
        %v4633 = vunpack.c.l.b16 %v4503
        %v4634 = vunpack.c.l.b16 %v4506
        %v4635 = vunpack.c.l.b16 %v4510
        %v4636 = vunpack.c.l.b16 %v4513
        %v4637 = vunpack.c.l.b16 %v4516
        %v4638 = vunpack.c.l.b16 %v4520
        %v4639 = vunpack.c.l.b16 %v4523
        %v4640 = vunpack.c.l.b16 %v4526
        %v4641 = vunpack.c.l.b16 %v4530
        %v4642 = vunpack.c.l.b16 %v4533
        %v4643 = vunpack.c.l.b16 %v4536
        %v4644 = vunpack.c.l.b16 %v4540
        %v4645 = vunpack.c.l.b16 %v4543
        %v4646 = vunpack.c.l.b16 %v4546
        %v4647 = vunpack.c.l.b16 %v4550
        %v4648 = vunpack.c.l.b16 %v4553
        %v4649 = vunpack.c.l.b16 %v4556
        %v4650 = vunpack.c.l.b16 %v4560
        %v4651 = vunpack.c.l.b16 %v4563
        %v4652 = vunpack.c.l.b16 %v4566
        %v4653 = vunpack.c.l.b16 %v4570
        %v4654 = vunpack.c.l.b16 %v4573
        %v4655 = vunpack.c.l.b16 %v4576
        %v4656 = vunpack.c.l.b16 %v4580
        %v4657 = vunpack.c.l.b16 %v4583
        %v4658 = vunpack.c.l.b16 %v4586
        %v4659 = vunpack.c.l.b16 %v4590
        %v4660 = vunpack.c.l.b16 %v4593
        %v4661 = vunpack.c.l.b16 %v4596
        %v4662 = vpack.c.b16 %v4615, %v4614
        %v4663 = vpack.c.b16 %v4617, %v4616
        %v4664 = vpack.c.b16 %v4619, %v4618
        %v4665 = vpack.c.b16 %v4621, %v4620
        %v4666 = vpack.c.b16 %v4623, %v4622
        %v4667 = vpack.c.b16 %v4625, %v4624
        %v4668 = vpack.c.b16 %v4627, %v4626
        %v4669 = vpack.c.b16 %v4629, %v4628
        %v4670 = vpack.c.b16 %v4631, %v4630
        %v4671 = vpack.c.b16 %v4633, %v4632
        %v4672 = vpack.c.b16 %v4635, %v4634
        %v4673 = vpack.c.b16 %v4637, %v4636
        %v4674 = vpack.c.b16 %v4639, %v4638
        %v4675 = vpack.c.b16 %v4641, %v4640
        %v4676 = vpack.c.b16 %v4643, %v4642
        %v4677 = vpack.c.b16 %v4645, %v4644
        %v4678 = vpack.c.b16 %v4647, %v4646
        %v4679 = vpack.c.b16 %v4649, %v4648
        %v4680 = vpack.c.b16 %v4651, %v4650
        %v4681 = vpack.c.b16 %v4653, %v4652
        %v4682 = vpack.c.b16 %v4655, %v4654
        %v4683 = vpack.c.b16 %v4657, %v4656
        %v4684 = vpack.c.b16 %v4659, %v4658
        %v4685 = vpack.c.b16 %v4661, %v4660
        %v4726 = vunpack.c.l.b16 %v4598
        %v4727 = vunpack.c.h.b16 %v4598
        %v4728 = vunpack.c.l.b16 %v4599
        %v4729 = vunpack.c.h.b16 %v4599
        %v4730 = vunpack.c.l.b16 %v4600
        %v4731 = vunpack.c.h.b16 %v4600
        %v4732 = vunpack.c.l.b16 %v4601
        %v4733 = vunpack.c.h.b16 %v4601
        %v4734 = vunpack.c.l.b16 %v4602
        %v4735 = vunpack.c.h.b16 %v4602
        %v4736 = vunpack.c.l.b16 %v4603
        %v4737 = vunpack.c.h.b16 %v4603
        %v4738 = vunpack.c.l.b16 %v4604
        %v4739 = vunpack.c.h.b16 %v4604
        %v4740 = vunpack.c.l.b16 %v4605
        %v4741 = vunpack.c.h.b16 %v4605
        %v4742 = vunpack.c.l.b16 %v4606
        %v4743 = vunpack.c.h.b16 %v4606
        %v4744 = vunpack.c.l.b16 %v4607
        %v4745 = vunpack.c.h.b16 %v4607
        %v4746 = vunpack.c.l.b16 %v4608
        %v4747 = vunpack.c.h.b16 %v4608
        %v4748 = vunpack.c.l.b16 %v4609
        %v4749 = vunpack.c.h.b16 %v4609
        %v4750 = vunpack.c.l.b16 %v4610
        %v4751 = vunpack.c.h.b16 %v4610
        %v4752 = vunpack.c.l.b16 %v4611
        %v4753 = vunpack.c.h.b16 %v4611
        %v4754 = vunpack.c.l.b16 %v4612
        %v4755 = vunpack.c.h.b16 %v4612
        %v4756 = vunpack.c.l.b16 %v4613
        %v4757 = vunpack.c.h.b16 %v4613
        %v4758 = vpack.c.b16 %v4728, %v4726
        %v4759 = vpack.c.b16 %v4729, %v4727
        %v4760 = vpack.c.b16 %v4732, %v4730
        %v4761 = vpack.c.b16 %v4733, %v4731
        %v4762 = vpack.c.b16 %v4736, %v4734
        %v4763 = vpack.c.b16 %v4737, %v4735
        %v4764 = vpack.c.b16 %v4740, %v4738
        %v4765 = vpack.c.b16 %v4741, %v4739
        %v4766 = vpack.c.b16 %v4744, %v4742
        %v4767 = vpack.c.b16 %v4745, %v4743
        %v4768 = vpack.c.b16 %v4748, %v4746
        %v4769 = vpack.c.b16 %v4749, %v4747
        %v4770 = vpack.c.b16 %v4752, %v4750
        %v4771 = vpack.c.b16 %v4753, %v4751
        %v4772 = vpack.c.b16 %v4756, %v4754
        %v4773 = vpack.c.b16 %v4757, %v4755
        %4790 = vmatprep.subr.bf16.mxu0 %v4759
        %4791 = vmatpush1.bf16.msra.mxu0 %v4758
        %4792 = vmatprep.subr.bf16.mxu0 %v4761
        %4793 = vmatpush1.bf16.msra.mxu0 %v4760
        %4794 = vmatprep.subr.bf16.mxu0 %v4763
        %4795 = vmatpush1.bf16.msra.mxu0 %v4762
        %4796 = vmatprep.subr.bf16.mxu0 %v4765
        %4797 = vmatpush1.bf16.msra.mxu0 %v4764
        %4798 = vmatprep.subr.bf16.mxu0 %v4767
        %4799 = vmatpush1.bf16.msra.mxu0 %v4766
        %4800 = vmatprep.subr.bf16.mxu0 %v4769
        %4801 = vmatpush1.bf16.msra.mxu0 %v4768
        %4802 = vmatprep.subr.bf16.mxu0 %v4771
        %4803 = vmatpush1.bf16.msra.mxu0 %v4770
        %4804 = vmatprep.subr.bf16.mxu0 %v4773
        %4805 = vmatpush1.bf16.msra.mxu0 %v4772
        %4806 = vmatprep.subr.bf16.mxu0 0
        %4807 = vmatpush1.bf16.msra.mxu0 0
        %4808 = vmatprep.subr.bf16.mxu0 0
        %4809 = vmatpush1.bf16.msra.mxu0 0
        %4810 = vmatprep.subr.bf16.mxu0 0
        %4811 = vmatpush1.bf16.msra.mxu0 0
        %4812 = vmatprep.subr.bf16.mxu0 0
        %4813 = vmatpush1.bf16.msra.mxu0 0
        %4814 = vmatprep.subr.bf16.mxu0 0
        %4815 = vmatpush1.bf16.msra.mxu0 0
        %4816 = vmatprep.subr.bf16.mxu0 0
        %4817 = vmatpush1.bf16.msra.mxu0 0
        %4818 = vmatprep.subr.bf16.mxu0 0
        %4819 = vmatpush1.bf16.msra.mxu0 0
        %4820 = vmatprep.subr.bf16.mxu0 0
        %4821 = vmatpush1.bf16.msra.mxu0 0
        %4822 = vmatprep.mubr.bf16.mxu0 0
        %4823 = vmatmul.mubr.bf16.gmra.mrb[0].mxu0 %v4662
        %v4824 = vpop.f32.mrb[0].mxu0
        %v4825 = vadd.f32 0.0, %v4824
        %v4826 = vpop.f32.mrb[0].mxu0
        %v4827 = vadd.f32 0.0, %v4826
        %v4828 = vpop.f32.mrb[0].mxu0
        %v4829 = vadd.f32 0.0, %v4828
        %v4830 = vpop.f32.mrb[0].mxu0
        %v4831 = vadd.f32 0.0, %v4830
        %4832 = vmatprep.mubr.bf16.mxu0 0
        %4833 = vmatmul.mubr.bf16.gmra.mrb[0].mxu0 %v4663
        %v4834 = vpop.f32.mrb[0].mxu0
        %v4835 = vadd.f32 0.0, %v4834
        %v4836 = vpop.f32.mrb[0].mxu0
        %v4837 = vadd.f32 0.0, %v4836
        %v4838 = vpop.f32.mrb[0].mxu0
        %v4839 = vadd.f32 0.0, %v4838
        %v4840 = vpop.f32.mrb[0].mxu0
        %v4841 = vadd.f32 0.0, %v4840
        %4842 = vmatprep.mubr.bf16.mxu0 0
        %4843 = vmatmul.mubr.bf16.gmra.mrb[0].mxu0 %v4664
        %v4844 = vpop.f32.mrb[0].mxu0
        %v4845 = vadd.f32 0.0, %v4844
        %v4846 = vpop.f32.mrb[0].mxu0
        %v4847 = vadd.f32 0.0, %v4846
        %v4848 = vpop.f32.mrb[0].mxu0
        %v4849 = vadd.f32 0.0, %v4848
        %v4850 = vpop.f32.mrb[0].mxu0
        %v4851 = vadd.f32 0.0, %v4850
        %4852 = vmatprep.mubr.bf16.mxu0 0
        %4853 = vmatmul.mubr.bf16.gmra.mrb[0].mxu0 %v4665
        %v4854 = vpop.f32.mrb[0].mxu0
        %v4855 = vadd.f32 0.0, %v4854
        %v4856 = vpop.f32.mrb[0].mxu0
        %v4857 = vadd.f32 0.0, %v4856
        %v4858 = vpop.f32.mrb[0].mxu0
        %v4859 = vadd.f32 0.0, %v4858
        %v4860 = vpop.f32.mrb[0].mxu0
        %v4861 = vadd.f32 0.0, %v4860
        %4862 = vmatprep.mubr.bf16.mxu0 0
        %4863 = vmatmul.mubr.bf16.gmra.mrb[0].mxu0 %v4666
        %v4864 = vpop.f32.mrb[0].mxu0
        %v4865 = vadd.f32 0.0, %v4864
        %v4866 = vpop.f32.mrb[0].mxu0
        %v4867 = vadd.f32 0.0, %v4866
        %v4868 = vpop.f32.mrb[0].mxu0
        %v4869 = vadd.f32 0.0, %v4868
        %v4870 = vpop.f32.mrb[0].mxu0
        %v4871 = vadd.f32 0.0, %v4870
        %4872 = vmatprep.mubr.bf16.mxu0 0
        %4873 = vmatmul.mubr.bf16.gmra.mrb[0].mxu0 %v4667
        %v4874 = vpop.f32.mrb[0].mxu0
        %v4875 = vadd.f32 0.0, %v4874
        %v4876 = vpop.f32.mrb[0].mxu0
        %v4877 = vadd.f32 0.0, %v4876
        %v4878 = vpop.f32.mrb[0].mxu0
        %v4879 = vadd.f32 0.0, %v4878
        %v4880 = vpop.f32.mrb[0].mxu0
        %v4881 = vadd.f32 0.0, %v4880
        %4882 = vmatprep.mubr.bf16.mxu0 0
        %4883 = vmatmul.mubr.bf16.gmra.mrb[0].mxu0 %v4668
        %v4884 = vpop.f32.mrb[0].mxu0
        %v4885 = vadd.f32 0.0, %v4884
        %v4886 = vpop.f32.mrb[0].mxu0
        %v4887 = vadd.f32 0.0, %v4886
        %v4888 = vpop.f32.mrb[0].mxu0
        %v4889 = vadd.f32 0.0, %v4888
        %v4890 = vpop.f32.mrb[0].mxu0
        %v4891 = vadd.f32 0.0, %v4890
        %4892 = vmatprep.mubr.bf16.mxu0 0
        %4893 = vmatmul.mubr.bf16.gmra.mrb[0].mxu0 %v4669
        %v4894 = vpop.f32.mrb[0].mxu0
        %v4895 = vadd.f32 0.0, %v4894
        %v4896 = vpop.f32.mrb[0].mxu0
        %v4897 = vadd.f32 0.0, %v4896
        %v4898 = vpop.f32.mrb[0].mxu0
        %v4899 = vadd.f32 0.0, %v4898
        %v4900 = vpop.f32.mrb[0].mxu0
        %v4901 = vadd.f32 0.0, %v4900
        %4902 = vmatprep.mubr.bf16.mxu0 0
        %4903 = vmatmul.mubr.bf16.gmra.mrb[0].mxu0 %v4670
        %v4904 = vpop.f32.mrb[0].mxu0
        %v4905 = vadd.f32 0.0, %v4904
        %v4906 = vpop.f32.mrb[0].mxu0
        %v4907 = vadd.f32 0.0, %v4906
        %v4908 = vpop.f32.mrb[0].mxu0
        %v4909 = vadd.f32 0.0, %v4908
        %v4910 = vpop.f32.mrb[0].mxu0
        %v4911 = vadd.f32 0.0, %v4910
        %4912 = vmatprep.mubr.bf16.mxu0 0
        %4913 = vmatmul.mubr.bf16.gmra.mrb[0].mxu0 %v4671
        %v4914 = vpop.f32.mrb[0].mxu0
        %v4915 = vadd.f32 0.0, %v4914
        %v4916 = vpop.f32.mrb[0].mxu0
        %v4917 = vadd.f32 0.0, %v4916
        %v4918 = vpop.f32.mrb[0].mxu0
        %v4919 = vadd.f32 0.0, %v4918
        %v4920 = vpop.f32.mrb[0].mxu0
        %v4921 = vadd.f32 0.0, %v4920
        %4922 = vmatprep.mubr.bf16.mxu0 0
        %4923 = vmatmul.mubr.bf16.gmra.mrb[0].mxu0 %v4672
        %v4924 = vpop.f32.mrb[0].mxu0
        %v4925 = vadd.f32 0.0, %v4924
        %v4926 = vpop.f32.mrb[0].mxu0
        %v4927 = vadd.f32 0.0, %v4926
        %v4928 = vpop.f32.mrb[0].mxu0
        %v4929 = vadd.f32 0.0, %v4928
        %v4930 = vpop.f32.mrb[0].mxu0
        %v4931 = vadd.f32 0.0, %v4930
        %4932 = vmatprep.mubr.bf16.mxu0 0
        %4933 = vmatmul.mubr.bf16.gmra.mrb[0].mxu0 %v4673
        %v4934 = vpop.f32.mrb[0].mxu0
        %v4935 = vadd.f32 0.0, %v4934
        %v4936 = vpop.f32.mrb[0].mxu0
        %v4937 = vadd.f32 0.0, %v4936
        %v4938 = vpop.f32.mrb[0].mxu0
        %v4939 = vadd.f32 0.0, %v4938
        %v4940 = vpop.f32.mrb[0].mxu0
        %v4941 = vadd.f32 0.0, %v4940
        %4942 = vmatprep.mubr.bf16.mxu0 0
        %4943 = vmatmul.mubr.bf16.gmra.mrb[0].mxu0 %v4674
        %v4944 = vpop.f32.mrb[0].mxu0
        %v4945 = vadd.f32 0.0, %v4944
        %v4946 = vpop.f32.mrb[0].mxu0
        %v4947 = vadd.f32 0.0, %v4946
        %v4948 = vpop.f32.mrb[0].mxu0
        %v4949 = vadd.f32 0.0, %v4948
        %v4950 = vpop.f32.mrb[0].mxu0
        %v4951 = vadd.f32 0.0, %v4950
        %4952 = vmatprep.mubr.bf16.mxu0 0
        %4953 = vmatmul.mubr.bf16.gmra.mrb[0].mxu0 %v4675
        %v4954 = vpop.f32.mrb[0].mxu0
        %v4955 = vadd.f32 0.0, %v4954
        %v4956 = vpop.f32.mrb[0].mxu0
        %v4957 = vadd.f32 0.0, %v4956
        %v4958 = vpop.f32.mrb[0].mxu0
        %v4959 = vadd.f32 0.0, %v4958
        %v4960 = vpop.f32.mrb[0].mxu0
        %v4961 = vadd.f32 0.0, %v4960
        %4962 = vmatprep.mubr.bf16.mxu0 0
        %4963 = vmatmul.mubr.bf16.gmra.mrb[0].mxu0 %v4676
        %v4964 = vpop.f32.mrb[0].mxu0
        %v4965 = vadd.f32 0.0, %v4964
        %v4966 = vpop.f32.mrb[0].mxu0
        %v4967 = vadd.f32 0.0, %v4966
        %v4968 = vpop.f32.mrb[0].mxu0
        %v4969 = vadd.f32 0.0, %v4968
        %v4970 = vpop.f32.mrb[0].mxu0
        %v4971 = vadd.f32 0.0, %v4970
        %4972 = vmatprep.mubr.bf16.mxu0 0
        %4973 = vmatmul.mubr.bf16.gmra.mrb[0].mxu0 %v4677
        %v4974 = vpop.f32.mrb[0].mxu0
        %v4975 = vadd.f32 0.0, %v4974
        %v4976 = vpop.f32.mrb[0].mxu0
        %v4977 = vadd.f32 0.0, %v4976
        %v4978 = vpop.f32.mrb[0].mxu0
        %v4979 = vadd.f32 0.0, %v4978
        %v4980 = vpop.f32.mrb[0].mxu0
        %v4981 = vadd.f32 0.0, %v4980
        %4982 = vmatprep.mubr.bf16.mxu0 0
        %4983 = vmatmul.mubr.bf16.gmra.mrb[0].mxu0 %v4678
        %v4984 = vpop.f32.mrb[0].mxu0
        %v4985 = vadd.f32 0.0, %v4984
        %v4986 = vpop.f32.mrb[0].mxu0
        %v4987 = vadd.f32 0.0, %v4986
        %v4988 = vpop.f32.mrb[0].mxu0
        %v4989 = vadd.f32 0.0, %v4988
        %v4990 = vpop.f32.mrb[0].mxu0
        %v4991 = vadd.f32 0.0, %v4990
        %4992 = vmatprep.mubr.bf16.mxu0 0
        %4993 = vmatmul.mubr.bf16.gmra.mrb[0].mxu0 %v4679
        %v4994 = vpop.f32.mrb[0].mxu0
        %v4995 = vadd.f32 0.0, %v4994
        %v4996 = vpop.f32.mrb[0].mxu0
        %v4997 = vadd.f32 0.0, %v4996
        %v4998 = vpop.f32.mrb[0].mxu0
        %v4999 = vadd.f32 0.0, %v4998
        %v5000 = vpop.f32.mrb[0].mxu0
        %v5001 = vadd.f32 0.0, %v5000
        %5002 = vmatprep.mubr.bf16.mxu0 0
        %5003 = vmatmul.mubr.bf16.gmra.mrb[0].mxu0 %v4680
        %v5004 = vpop.f32.mrb[0].mxu0
        %v5005 = vadd.f32 0.0, %v5004
        %v5006 = vpop.f32.mrb[0].mxu0
        %v5007 = vadd.f32 0.0, %v5006
        %v5008 = vpop.f32.mrb[0].mxu0
        %v5009 = vadd.f32 0.0, %v5008
        %v5010 = vpop.f32.mrb[0].mxu0
        %v5011 = vadd.f32 0.0, %v5010
        %5012 = vmatprep.mubr.bf16.mxu0 0
        %5013 = vmatmul.mubr.bf16.gmra.mrb[0].mxu0 %v4681
        %v5014 = vpop.f32.mrb[0].mxu0
        %v5015 = vadd.f32 0.0, %v5014
        %v5016 = vpop.f32.mrb[0].mxu0
        %v5017 = vadd.f32 0.0, %v5016
        %v5018 = vpop.f32.mrb[0].mxu0
        %v5019 = vadd.f32 0.0, %v5018
        %v5020 = vpop.f32.mrb[0].mxu0
        %v5021 = vadd.f32 0.0, %v5020
        %5022 = vmatprep.mubr.bf16.mxu0 0
        %5023 = vmatmul.mubr.bf16.gmra.mrb[0].mxu0 %v4682
        %v5024 = vpop.f32.mrb[0].mxu0
        %v5025 = vadd.f32 0.0, %v5024
        %v5026 = vpop.f32.mrb[0].mxu0
        %v5027 = vadd.f32 0.0, %v5026
        %v5028 = vpop.f32.mrb[0].mxu0
        %v5029 = vadd.f32 0.0, %v5028
        %v5030 = vpop.f32.mrb[0].mxu0
        %v5031 = vadd.f32 0.0, %v5030
        %5032 = vmatprep.mubr.bf16.mxu0 0
        %5033 = vmatmul.mubr.bf16.gmra.mrb[0].mxu0 %v4683
        %v5034 = vpop.f32.mrb[0].mxu0
        %v5035 = vadd.f32 0.0, %v5034
        %v5036 = vpop.f32.mrb[0].mxu0
        %v5037 = vadd.f32 0.0, %v5036
        %v5038 = vpop.f32.mrb[0].mxu0
        %v5039 = vadd.f32 0.0, %v5038
        %v5040 = vpop.f32.mrb[0].mxu0
        %v5041 = vadd.f32 0.0, %v5040
        %5042 = vmatprep.mubr.bf16.mxu0 0
        %5043 = vmatmul.mubr.bf16.gmra.mrb[0].mxu0 %v4684
        %v5044 = vpop.f32.mrb[0].mxu0
        %v5045 = vadd.f32 0.0, %v5044
        %v5046 = vpop.f32.mrb[0].mxu0
        %v5047 = vadd.f32 0.0, %v5046
        %v5048 = vpop.f32.mrb[0].mxu0
        %v5049 = vadd.f32 0.0, %v5048
        %v5050 = vpop.f32.mrb[0].mxu0
        %v5051 = vadd.f32 0.0, %v5050
        %5052 = vmatprep.mubr.bf16.mxu0 0
        %5053 = vmatmul.mubr.bf16.gmra.mrb[0].mxu0 %v4685
        %v5054 = vpop.f32.mrb[0].mxu0
        %v5055 = vadd.f32 0.0, %v5054
        %v5056 = vpop.f32.mrb[0].mxu0
        %v5057 = vadd.f32 0.0, %v5056
        %v5058 = vpop.f32.mrb[0].mxu0
        %v5059 = vadd.f32 0.0, %v5058
        %v5060 = vpop.f32.mrb[0].mxu0
        %v5061 = vadd.f32 0.0, %v5060
        %5062 = vdwg.mxu0
        %v5063 = vadd.f32 %v4196, %v4825
        %v5064 = vadd.f32 %v4198, %v4827
        %v5065 = vadd.f32 %v4200, %v4829
        %v5066 = vadd.f32 %v4202, %v4831
        %v5067 = vadd.f32 %v4206, %v4835
        %v5068 = vadd.f32 %v4208, %v4837
        %v5069 = vadd.f32 %v4210, %v4839
        %v5070 = vadd.f32 %v4212, %v4841
        %v5071 = vadd.f32 %v4216, %v4845
        %v5072 = vadd.f32 %v4218, %v4847
        %v5073 = vadd.f32 %v4220, %v4849
        %v5074 = vadd.f32 %v4222, %v4851
        %v5075 = vadd.f32 %v4226, %v4855
        %v5076 = vadd.f32 %v4228, %v4857
        %v5077 = vadd.f32 %v4230, %v4859
        %v5078 = vadd.f32 %v4232, %v4861
        %v5079 = vadd.f32 %v4236, %v4865
        %v5080 = vadd.f32 %v4238, %v4867
        %v5081 = vadd.f32 %v4240, %v4869
        %v5082 = vadd.f32 %v4242, %v4871
        %v5083 = vadd.f32 %v4246, %v4875
        %v5084 = vadd.f32 %v4248, %v4877
        %v5085 = vadd.f32 %v4250, %v4879
        %v5086 = vadd.f32 %v4252, %v4881
        %v5087 = vadd.f32 %v4256, %v4885
        %v5088 = vadd.f32 %v4258, %v4887
        %v5089 = vadd.f32 %v4260, %v4889
        %v5090 = vadd.f32 %v4262, %v4891
        %v5091 = vadd.f32 %v4266, %v4895
        %v5092 = vadd.f32 %v4268, %v4897
        %v5093 = vadd.f32 %v4270, %v4899
        %v5094 = vadd.f32 %v4272, %v4901
        %v5095 = vadd.f32 %v4276, %v4905
        %v5096 = vadd.f32 %v4278, %v4907
        %v5097 = vadd.f32 %v4280, %v4909
        %v5098 = vadd.f32 %v4282, %v4911
        %v5099 = vadd.f32 %v4286, %v4915
        %v5100 = vadd.f32 %v4288, %v4917
        %v5101 = vadd.f32 %v4290, %v4919
        %v5102 = vadd.f32 %v4292, %v4921
        %v5103 = vadd.f32 %v4296, %v4925
        %v5104 = vadd.f32 %v4298, %v4927
        %v5105 = vadd.f32 %v4300, %v4929
        %v5106 = vadd.f32 %v4302, %v4931
        %v5107 = vadd.f32 %v4306, %v4935
        %v5108 = vadd.f32 %v4308, %v4937
        %v5109 = vadd.f32 %v4310, %v4939
        %v5110 = vadd.f32 %v4312, %v4941
        %v5111 = vadd.f32 %v4316, %v4945
        %v5112 = vadd.f32 %v4318, %v4947
        %v5113 = vadd.f32 %v4320, %v4949
        %v5114 = vadd.f32 %v4322, %v4951
        %v5115 = vadd.f32 %v4326, %v4955
        %v5116 = vadd.f32 %v4328, %v4957
        %v5117 = vadd.f32 %v4330, %v4959
        %v5118 = vadd.f32 %v4332, %v4961
        %v5119 = vadd.f32 %v4336, %v4965
        %v5120 = vadd.f32 %v4338, %v4967
        %v5121 = vadd.f32 %v4340, %v4969
        %v5122 = vadd.f32 %v4342, %v4971
        %v5123 = vadd.f32 %v4346, %v4975
        %v5124 = vadd.f32 %v4348, %v4977
        %v5125 = vadd.f32 %v4350, %v4979
        %v5126 = vadd.f32 %v4352, %v4981
        %v5127 = vadd.f32 %v4356, %v4985
        %v5128 = vadd.f32 %v4358, %v4987
        %v5129 = vadd.f32 %v4360, %v4989
        %v5130 = vadd.f32 %v4362, %v4991
        %v5131 = vadd.f32 %v4366, %v4995
        %v5132 = vadd.f32 %v4368, %v4997
        %v5133 = vadd.f32 %v4370, %v4999
        %v5134 = vadd.f32 %v4372, %v5001
        %v5135 = vadd.f32 %v4376, %v5005
        %v5136 = vadd.f32 %v4378, %v5007
        %v5137 = vadd.f32 %v4380, %v5009
        %v5138 = vadd.f32 %v4382, %v5011
        %v5139 = vadd.f32 %v4386, %v5015
        %v5140 = vadd.f32 %v4388, %v5017
        %v5141 = vadd.f32 %v4390, %v5019
        %v5142 = vadd.f32 %v4392, %v5021
        %v5143 = vadd.f32 %v4396, %v5025
        %v5144 = vadd.f32 %v4398, %v5027
        %v5145 = vadd.f32 %v4400, %v5029
        %v5146 = vadd.f32 %v4402, %v5031
        %v5147 = vadd.f32 %v4406, %v5035
        %v5148 = vadd.f32 %v4408, %v5037
        %v5149 = vadd.f32 %v4410, %v5039
        %v5150 = vadd.f32 %v4412, %v5041
        %v5151 = vadd.f32 %v4416, %v5045
        %v5152 = vadd.f32 %v4418, %v5047
        %v5153 = vadd.f32 %v4420, %v5049
        %v5154 = vadd.f32 %v4422, %v5051
        %v5155 = vadd.f32 %v4426, %v5055
        %v5156 = vadd.f32 %v4428, %v5057
        %v5157 = vadd.f32 %v4430, %v5059
        %v5158 = vadd.f32 %v4432, %v5061
        %vm5159 = vsmask.f32 2304
        %vm5160 = vsmask.f32 6416
        %vm5161 = vmor %vm5159, %vm5160
        %v5162 = vrot.slane %v3024, 5
        %v5163 = vrot.slane %v3027, 6
        %v5164 = vor.u32 %v5162, %v5163
        %v5165 = vrot.slane %v5164, 4
        %v5166 = vrot.slane %v3037, 5
        %v5167 = vrot.slane %v3033, 6
        %v5168 = vor.u32 %v5166, %v5167
        %v5169 = vsel %vm5161, %v5165, %v5168
        %v5170 = vrot.slane %v5168, 4
        %v5171 = vrot.slane %v3047, 5
        %v5172 = vrot.slane %v3043, 6
        %v5173 = vor.u32 %v5171, %v5172
        %v5174 = vsel %vm5161, %v5170, %v5173
        %v5175 = vrot.slane %v5173, 4
        %v5176 = vshrl.u32 %v2959, 16
        %v5178 = vrot.slane %v5176, 5
        %v5179 = vrot.slane %v3053, 6
        %v5180 = vor.u32 %v5178, %v5179
        %v5181 = vsel %vm5161, %v5175, %v5180
        %v5182 = vrot.slane %v3058, 5
        %v5183 = vrot.slane %v3061, 6
        %v5184 = vor.u32 %v5182, %v5183
        %v5185 = vrot.slane %v5184, 4
        %v5186 = vrot.slane %v3071, 5
        %v5187 = vrot.slane %v3067, 6
        %v5188 = vor.u32 %v5186, %v5187
        %v5189 = vsel %vm5161, %v5185, %v5188
        %v5190 = vrot.slane %v5188, 4
        %v5191 = vrot.slane %v3081, 5
        %v5192 = vrot.slane %v3077, 6
        %v5193 = vor.u32 %v5191, %v5192
        %v5194 = vsel %vm5161, %v5190, %v5193
        %v5195 = vrot.slane %v5193, 4
        %v5196 = vshrl.u32 %v2963, 16
        %v5198 = vrot.slane %v5196, 5
        %v5199 = vrot.slane %v3087, 6
        %v5200 = vor.u32 %v5198, %v5199
        %v5201 = vsel %vm5161, %v5195, %v5200
        %v5202 = vrot.slane %v3092, 5
        %v5203 = vrot.slane %v3095, 6
        %v5204 = vor.u32 %v5202, %v5203
        %v5205 = vrot.slane %v5204, 4
        %v5206 = vrot.slane %v3105, 5
        %v5207 = vrot.slane %v3101, 6
        %v5208 = vor.u32 %v5206, %v5207
        %v5209 = vsel %vm5161, %v5205, %v5208
        %v5210 = vrot.slane %v5208, 4
        %v5211 = vrot.slane %v3115, 5
        %v5212 = vrot.slane %v3111, 6
        %v5213 = vor.u32 %v5211, %v5212
        %v5214 = vsel %vm5161, %v5210, %v5213
        %v5215 = vrot.slane %v5213, 4
        %v5216 = vshrl.u32 %v2967, 16
        %v5218 = vrot.slane %v5216, 5
        %v5219 = vrot.slane %v3121, 6
        %v5220 = vor.u32 %v5218, %v5219
        %v5221 = vsel %vm5161, %v5215, %v5220
        %v5222 = vrot.slane %v3126, 5
        %v5223 = vrot.slane %v3129, 6
        %v5224 = vor.u32 %v5222, %v5223
        %v5225 = vrot.slane %v5224, 4
        %v5226 = vrot.slane %v3139, 5
        %v5227 = vrot.slane %v3135, 6
        %v5228 = vor.u32 %v5226, %v5227
        %v5229 = vsel %vm5161, %v5225, %v5228
        %v5230 = vrot.slane %v5228, 4
        %v5231 = vrot.slane %v3149, 5
        %v5232 = vrot.slane %v3145, 6
        %v5233 = vor.u32 %v5231, %v5232
        %v5234 = vsel %vm5161, %v5230, %v5233
        %v5235 = vrot.slane %v5233, 4
        %v5236 = vshrl.u32 %v2971, 16
        %v5238 = vrot.slane %v5236, 5
        %v5239 = vrot.slane %v3155, 6
        %v5240 = vor.u32 %v5238, %v5239
        %v5241 = vsel %vm5161, %v5235, %v5240
        %v5242 = vrot.slane %v3160, 5
        %v5243 = vrot.slane %v3163, 6
        %v5244 = vor.u32 %v5242, %v5243
        %v5245 = vrot.slane %v5244, 4
        %v5246 = vrot.slane %v3173, 5
        %v5247 = vrot.slane %v3169, 6
        %v5248 = vor.u32 %v5246, %v5247
        %v5249 = vsel %vm5161, %v5245, %v5248
        %v5250 = vrot.slane %v5248, 4
        %v5251 = vrot.slane %v3183, 5
        %v5252 = vrot.slane %v3179, 6
        %v5253 = vor.u32 %v5251, %v5252
        %v5254 = vsel %vm5161, %v5250, %v5253
        %v5255 = vrot.slane %v5253, 4
        %v5256 = vshrl.u32 %v2975, 16
        %v5258 = vrot.slane %v5256, 5
        %v5259 = vrot.slane %v3189, 6
        %v5260 = vor.u32 %v5258, %v5259
        %v5261 = vsel %vm5161, %v5255, %v5260
        %v5262 = vrot.slane %v3194, 5
        %v5263 = vrot.slane %v3197, 6
        %v5264 = vor.u32 %v5262, %v5263
        %v5265 = vrot.slane %v5264, 4
        %v5266 = vrot.slane %v3207, 5
        %v5267 = vrot.slane %v3203, 6
        %v5268 = vor.u32 %v5266, %v5267
        %v5269 = vsel %vm5161, %v5265, %v5268
        %v5270 = vrot.slane %v5268, 4
        %v5271 = vrot.slane %v3217, 5
        %v5272 = vrot.slane %v3213, 6
        %v5273 = vor.u32 %v5271, %v5272
        %v5274 = vsel %vm5161, %v5270, %v5273
        %v5275 = vrot.slane %v5273, 4
        %v5276 = vshrl.u32 %v2979, 16
        %v5278 = vrot.slane %v5276, 5
        %v5279 = vrot.slane %v3223, 6
        %v5280 = vor.u32 %v5278, %v5279
        %v5281 = vsel %vm5161, %v5275, %v5280
        %v5282 = vrot.slane %v3228, 5
        %v5283 = vrot.slane %v3231, 6
        %v5284 = vor.u32 %v5282, %v5283
        %v5285 = vrot.slane %v5284, 4
        %v5286 = vrot.slane %v3241, 5
        %v5287 = vrot.slane %v3237, 6
        %v5288 = vor.u32 %v5286, %v5287
        %v5289 = vsel %vm5161, %v5285, %v5288
        %v5290 = vrot.slane %v5288, 4
        %v5291 = vrot.slane %v3251, 5
        %v5292 = vrot.slane %v3247, 6
        %v5293 = vor.u32 %v5291, %v5292
        %v5294 = vsel %vm5161, %v5290, %v5293
        %v5295 = vrot.slane %v5293, 4
        %v5296 = vshrl.u32 %v2983, 16
        %v5298 = vrot.slane %v5296, 5
        %v5299 = vrot.slane %v3257, 6
        %v5300 = vor.u32 %v5298, %v5299
        %v5301 = vsel %vm5161, %v5295, %v5300
        %v5302 = vrot.slane %v3262, 5
        %v5303 = vrot.slane %v3265, 6
        %v5304 = vor.u32 %v5302, %v5303
        %v5305 = vrot.slane %v5304, 4
        %v5306 = vrot.slane %v3275, 5
        %v5307 = vrot.slane %v3271, 6
        %v5308 = vor.u32 %v5306, %v5307
        %v5309 = vsel %vm5161, %v5305, %v5308
        %v5310 = vrot.slane %v5308, 4
        %v5311 = vrot.slane %v3285, 5
        %v5312 = vrot.slane %v3281, 6
        %v5313 = vor.u32 %v5311, %v5312
        %v5314 = vsel %vm5161, %v5310, %v5313
        %v5315 = vrot.slane %v5313, 4
        %v5316 = vshrl.u32 %v2987, 16
        %v5318 = vrot.slane %v5316, 5
        %v5319 = vrot.slane %v3291, 6
        %v5320 = vor.u32 %v5318, %v5319
        %v5321 = vsel %vm5161, %v5315, %v5320
        %v5322 = vrot.slane %v3296, 5
        %v5323 = vrot.slane %v3299, 6
        %v5324 = vor.u32 %v5322, %v5323
        %v5325 = vrot.slane %v5324, 4
        %v5326 = vrot.slane %v3309, 5
        %v5327 = vrot.slane %v3305, 6
        %v5328 = vor.u32 %v5326, %v5327
        %v5329 = vsel %vm5161, %v5325, %v5328
        %v5330 = vrot.slane %v5328, 4
        %v5331 = vrot.slane %v3319, 5
        %v5332 = vrot.slane %v3315, 6
        %v5333 = vor.u32 %v5331, %v5332
        %v5334 = vsel %vm5161, %v5330, %v5333
        %v5335 = vrot.slane %v5333, 4
        %v5336 = vshrl.u32 %v2991, 16
        %v5338 = vrot.slane %v5336, 5
        %v5339 = vrot.slane %v3325, 6
        %v5340 = vor.u32 %v5338, %v5339
        %v5341 = vsel %vm5161, %v5335, %v5340
        %v5342 = vrot.slane %v3330, 5
        %v5343 = vrot.slane %v3333, 6
        %v5344 = vor.u32 %v5342, %v5343
        %v5345 = vrot.slane %v5344, 4
        %v5346 = vrot.slane %v3343, 5
        %v5347 = vrot.slane %v3339, 6
        %v5348 = vor.u32 %v5346, %v5347
        %v5349 = vsel %vm5161, %v5345, %v5348
        %v5350 = vrot.slane %v5348, 4
        %v5351 = vrot.slane %v3353, 5
        %v5352 = vrot.slane %v3349, 6
        %v5353 = vor.u32 %v5351, %v5352
        %v5354 = vsel %vm5161, %v5350, %v5353
        %v5355 = vrot.slane %v5353, 4
        %v5356 = vshrl.u32 %v2995, 16
        %v5358 = vrot.slane %v5356, 5
        %v5359 = vrot.slane %v3359, 6
        %v5360 = vor.u32 %v5358, %v5359
        %v5361 = vsel %vm5161, %v5355, %v5360
        %v5362 = vrot.slane %v3364, 5
        %v5363 = vrot.slane %v3367, 6
        %v5364 = vor.u32 %v5362, %v5363
        %v5365 = vrot.slane %v5364, 4
        %v5366 = vrot.slane %v3377, 5
        %v5367 = vrot.slane %v3373, 6
        %v5368 = vor.u32 %v5366, %v5367
        %v5369 = vsel %vm5161, %v5365, %v5368
        %v5370 = vrot.slane %v5368, 4
        %v5371 = vrot.slane %v3387, 5
        %v5372 = vrot.slane %v3383, 6
        %v5373 = vor.u32 %v5371, %v5372
        %v5374 = vsel %vm5161, %v5370, %v5373
        %v5375 = vrot.slane %v5373, 4
        %v5376 = vshrl.u32 %v2999, 16
        %v5378 = vrot.slane %v5376, 5
        %v5379 = vrot.slane %v3393, 6
        %v5380 = vor.u32 %v5378, %v5379
        %v5381 = vsel %vm5161, %v5375, %v5380
        %v5382 = vrot.slane %v3398, 5
        %v5383 = vrot.slane %v3401, 6
        %v5384 = vor.u32 %v5382, %v5383
        %v5385 = vrot.slane %v5384, 4
        %v5386 = vrot.slane %v3411, 5
        %v5387 = vrot.slane %v3407, 6
        %v5388 = vor.u32 %v5386, %v5387
        %v5389 = vsel %vm5161, %v5385, %v5388
        %v5390 = vrot.slane %v5388, 4
        %v5391 = vrot.slane %v3421, 5
        %v5392 = vrot.slane %v3417, 6
        %v5393 = vor.u32 %v5391, %v5392
        %v5394 = vsel %vm5161, %v5390, %v5393
        %v5395 = vrot.slane %v5393, 4
        %v5396 = vshrl.u32 %v3003, 16
        %v5398 = vrot.slane %v5396, 5
        %v5399 = vrot.slane %v3427, 6
        %v5400 = vor.u32 %v5398, %v5399
        %v5401 = vsel %vm5161, %v5395, %v5400
        %v5402 = vrot.slane %v3432, 5
        %v5403 = vrot.slane %v3435, 6
        %v5404 = vor.u32 %v5402, %v5403
        %v5405 = vrot.slane %v5404, 4
        %v5406 = vrot.slane %v3445, 5
        %v5407 = vrot.slane %v3441, 6
        %v5408 = vor.u32 %v5406, %v5407
        %v5409 = vsel %vm5161, %v5405, %v5408
        %v5410 = vrot.slane %v5408, 4
        %v5411 = vrot.slane %v3455, 5
        %v5412 = vrot.slane %v3451, 6
        %v5413 = vor.u32 %v5411, %v5412
        %v5414 = vsel %vm5161, %v5410, %v5413
        %v5415 = vrot.slane %v5413, 4
        %v5416 = vshrl.u32 %v3007, 16
        %v5418 = vrot.slane %v5416, 5
        %v5419 = vrot.slane %v3461, 6
        %v5420 = vor.u32 %v5418, %v5419
        %v5421 = vsel %vm5161, %v5415, %v5420
        %v5422 = vrot.slane %v3466, 5
        %v5423 = vrot.slane %v3469, 6
        %v5424 = vor.u32 %v5422, %v5423
        %v5425 = vrot.slane %v5424, 4
        %v5426 = vrot.slane %v3479, 5
        %v5427 = vrot.slane %v3475, 6
        %v5428 = vor.u32 %v5426, %v5427
        %v5429 = vsel %vm5161, %v5425, %v5428
        %v5430 = vrot.slane %v5428, 4
        %v5431 = vrot.slane %v3489, 5
        %v5432 = vrot.slane %v3485, 6
        %v5433 = vor.u32 %v5431, %v5432
        %v5434 = vsel %vm5161, %v5430, %v5433
        %v5435 = vrot.slane %v5433, 4
        %v5436 = vshrl.u32 %v3011, 16
        %v5438 = vrot.slane %v5436, 5
        %v5439 = vrot.slane %v3495, 6
        %v5440 = vor.u32 %v5438, %v5439
        %v5441 = vsel %vm5161, %v5435, %v5440
        %v5442 = vrot.slane %v3500, 5
        %v5443 = vrot.slane %v3503, 6
        %v5444 = vor.u32 %v5442, %v5443
        %v5445 = vrot.slane %v5444, 4
        %v5446 = vrot.slane %v3513, 5
        %v5447 = vrot.slane %v3509, 6
        %v5448 = vor.u32 %v5446, %v5447
        %v5449 = vsel %vm5161, %v5445, %v5448
        %v5450 = vrot.slane %v5448, 4
        %v5451 = vrot.slane %v3523, 5
        %v5452 = vrot.slane %v3519, 6
        %v5453 = vor.u32 %v5451, %v5452
        %v5454 = vsel %vm5161, %v5450, %v5453
        %v5455 = vrot.slane %v5453, 4
        %v5456 = vshrl.u32 %v3015, 16
        %v5458 = vrot.slane %v5456, 5
        %v5459 = vrot.slane %v3529, 6
        %v5460 = vor.u32 %v5458, %v5459
        %v5461 = vsel %vm5161, %v5455, %v5460
        %v5462 = vrot.slane %v3534, 5
        %v5463 = vrot.slane %v3537, 6
        %v5464 = vor.u32 %v5462, %v5463
        %v5465 = vrot.slane %v5464, 4
        %v5466 = vrot.slane %v3547, 5
        %v5467 = vrot.slane %v3543, 6
        %v5468 = vor.u32 %v5466, %v5467
        %v5469 = vsel %vm5161, %v5465, %v5468
        %v5470 = vrot.slane %v5468, 4
        %v5471 = vrot.slane %v3557, 5
        %v5472 = vrot.slane %v3553, 6
        %v5473 = vor.u32 %v5471, %v5472
        %v5474 = vsel %vm5161, %v5470, %v5473
        %v5475 = vrot.slane %v5473, 4
        %v5476 = vshrl.u32 %v3019, 16
        %v5478 = vrot.slane %v5476, 5
        %v5479 = vrot.slane %v3563, 6
        %v5480 = vor.u32 %v5478, %v5479
        %v5481 = vsel %vm5161, %v5475, %v5480
        %s5482 = scalar_lea.vmem [#allocation10], 384
        %v5483 = vld [vmem:[%s5482] sm:$0xff]
        %v5484 = vld [vmem:[%s5482 + $0x8] sm:$0xff]
        %v5485 = vld [vmem:[%s5482 + $0x10] sm:$0xff]
        %v5486 = vld [vmem:[%s5482 + $0x18] sm:$0xff]
        %v5487 = vld [vmem:[%s5482 + $0x20] sm:$0xff]
        %v5488 = vld [vmem:[%s5482 + $0x28] sm:$0xff]
        %v5489 = vld [vmem:[%s5482 + $0x30] sm:$0xff]
        %v5490 = vld [vmem:[%s5482 + $0x38] sm:$0xff]
        %v5491 = vld [vmem:[%s5482 + $0x40] sm:$0xff]
        %v5492 = vld [vmem:[%s5482 + $0x48] sm:$0xff]
        %v5493 = vld [vmem:[%s5482 + $0x50] sm:$0xff]
        %v5494 = vld [vmem:[%s5482 + $0x58] sm:$0xff]
        %v5495 = vld [vmem:[%s5482 + $0x60] sm:$0xff]
        %v5496 = vld [vmem:[%s5482 + $0x68] sm:$0xff]
        %v5497 = vld [vmem:[%s5482 + $0x70] sm:$0xff]
        %v5498 = vld [vmem:[%s5482 + $0x78] sm:$0xff]
        %v5499 = vunpack.c.l.b16 %v5169
        %v5500 = vunpack.c.l.b16 %v5174
        %v5501 = vunpack.c.l.b16 %v5181
        %v5502 = vunpack.c.l.b16 %v5189
        %v5503 = vunpack.c.l.b16 %v5194
        %v5504 = vunpack.c.l.b16 %v5201
        %v5505 = vunpack.c.l.b16 %v5209
        %v5506 = vunpack.c.l.b16 %v5214
        %v5507 = vunpack.c.l.b16 %v5221
        %v5508 = vunpack.c.l.b16 %v5229
        %v5509 = vunpack.c.l.b16 %v5234
        %v5510 = vunpack.c.l.b16 %v5241
        %v5511 = vunpack.c.l.b16 %v5249
        %v5512 = vunpack.c.l.b16 %v5254
        %v5513 = vunpack.c.l.b16 %v5261
        %v5514 = vunpack.c.l.b16 %v5269
        %v5515 = vunpack.c.l.b16 %v5274
        %v5516 = vunpack.c.l.b16 %v5281
        %v5517 = vunpack.c.l.b16 %v5289
        %v5518 = vunpack.c.l.b16 %v5294
        %v5519 = vunpack.c.l.b16 %v5301
        %v5520 = vunpack.c.l.b16 %v5309
        %v5521 = vunpack.c.l.b16 %v5314
        %v5522 = vunpack.c.l.b16 %v5321
        %v5523 = vunpack.c.l.b16 %v5329
        %v5524 = vunpack.c.l.b16 %v5334
        %v5525 = vunpack.c.l.b16 %v5341
        %v5526 = vunpack.c.l.b16 %v5349
        %v5527 = vunpack.c.l.b16 %v5354
        %v5528 = vunpack.c.l.b16 %v5361
        %v5529 = vunpack.c.l.b16 %v5369
        %v5530 = vunpack.c.l.b16 %v5374
        %v5531 = vunpack.c.l.b16 %v5381
        %v5532 = vunpack.c.l.b16 %v5389
        %v5533 = vunpack.c.l.b16 %v5394
        %v5534 = vunpack.c.l.b16 %v5401
        %v5535 = vunpack.c.l.b16 %v5409
        %v5536 = vunpack.c.l.b16 %v5414
        %v5537 = vunpack.c.l.b16 %v5421
        %v5538 = vunpack.c.l.b16 %v5429
        %v5539 = vunpack.c.l.b16 %v5434
        %v5540 = vunpack.c.l.b16 %v5441
        %v5541 = vunpack.c.l.b16 %v5449
        %v5542 = vunpack.c.l.b16 %v5454
        %v5543 = vunpack.c.l.b16 %v5461
        %v5544 = vunpack.c.l.b16 %v5469
        %v5545 = vunpack.c.l.b16 %v5474
        %v5546 = vunpack.c.l.b16 %v5481
        %v5547 = vpack.c.b16 %v5500, %v5499
        %v5548 = vpack.c.b16 %v5502, %v5501
        %v5549 = vpack.c.b16 %v5504, %v5503
        %v5550 = vpack.c.b16 %v5506, %v5505
        %v5551 = vpack.c.b16 %v5508, %v5507
        %v5552 = vpack.c.b16 %v5510, %v5509
        %v5553 = vpack.c.b16 %v5512, %v5511
        %v5554 = vpack.c.b16 %v5514, %v5513
        %v5555 = vpack.c.b16 %v5516, %v5515
        %v5556 = vpack.c.b16 %v5518, %v5517
        %v5557 = vpack.c.b16 %v5520, %v5519
        %v5558 = vpack.c.b16 %v5522, %v5521
        %v5559 = vpack.c.b16 %v5524, %v5523
        %v5560 = vpack.c.b16 %v5526, %v5525
        %v5561 = vpack.c.b16 %v5528, %v5527
        %v5562 = vpack.c.b16 %v5530, %v5529
        %v5563 = vpack.c.b16 %v5532, %v5531
        %v5564 = vpack.c.b16 %v5534, %v5533
        %v5565 = vpack.c.b16 %v5536, %v5535
        %v5566 = vpack.c.b16 %v5538, %v5537
        %v5567 = vpack.c.b16 %v5540, %v5539
        %v5568 = vpack.c.b16 %v5542, %v5541
        %v5569 = vpack.c.b16 %v5544, %v5543
        %v5570 = vpack.c.b16 %v5546, %v5545
        %v5611 = vunpack.c.l.b16 %v5483
        %v5612 = vunpack.c.h.b16 %v5483
        %v5613 = vunpack.c.l.b16 %v5484
        %v5614 = vunpack.c.h.b16 %v5484
        %v5615 = vunpack.c.l.b16 %v5485
        %v5616 = vunpack.c.h.b16 %v5485
        %v5617 = vunpack.c.l.b16 %v5486
        %v5618 = vunpack.c.h.b16 %v5486
        %v5619 = vunpack.c.l.b16 %v5487
        %v5620 = vunpack.c.h.b16 %v5487
        %v5621 = vunpack.c.l.b16 %v5488
        %v5622 = vunpack.c.h.b16 %v5488
        %v5623 = vunpack.c.l.b16 %v5489
        %v5624 = vunpack.c.h.b16 %v5489
        %v5625 = vunpack.c.l.b16 %v5490
        %v5626 = vunpack.c.h.b16 %v5490
        %v5627 = vunpack.c.l.b16 %v5491
        %v5628 = vunpack.c.h.b16 %v5491
        %v5629 = vunpack.c.l.b16 %v5492
        %v5630 = vunpack.c.h.b16 %v5492
        %v5631 = vunpack.c.l.b16 %v5493
        %v5632 = vunpack.c.h.b16 %v5493
        %v5633 = vunpack.c.l.b16 %v5494
        %v5634 = vunpack.c.h.b16 %v5494
        %v5635 = vunpack.c.l.b16 %v5495
        %v5636 = vunpack.c.h.b16 %v5495
        %v5637 = vunpack.c.l.b16 %v5496
        %v5638 = vunpack.c.h.b16 %v5496
        %v5639 = vunpack.c.l.b16 %v5497
        %v5640 = vunpack.c.h.b16 %v5497
        %v5641 = vunpack.c.l.b16 %v5498
        %v5642 = vunpack.c.h.b16 %v5498
        %v5643 = vpack.c.b16 %v5613, %v5611
        %v5644 = vpack.c.b16 %v5614, %v5612
        %v5645 = vpack.c.b16 %v5617, %v5615
        %v5646 = vpack.c.b16 %v5618, %v5616
        %v5647 = vpack.c.b16 %v5621, %v5619
        %v5648 = vpack.c.b16 %v5622, %v5620
        %v5649 = vpack.c.b16 %v5625, %v5623
        %v5650 = vpack.c.b16 %v5626, %v5624
        %v5651 = vpack.c.b16 %v5629, %v5627
        %v5652 = vpack.c.b16 %v5630, %v5628
        %v5653 = vpack.c.b16 %v5633, %v5631
        %v5654 = vpack.c.b16 %v5634, %v5632
        %v5655 = vpack.c.b16 %v5637, %v5635
        %v5656 = vpack.c.b16 %v5638, %v5636
        %v5657 = vpack.c.b16 %v5641, %v5639
        %v5658 = vpack.c.b16 %v5642, %v5640
        %5675 = vmatprep.subr.bf16.mxu0 %v5644
        %5676 = vmatpush1.bf16.msra.mxu0 %v5643
        %5677 = vmatprep.subr.bf16.mxu0 %v5646
        %5678 = vmatpush1.bf16.msra.mxu0 %v5645
        %5679 = vmatprep.subr.bf16.mxu0 %v5648
        %5680 = vmatpush1.bf16.msra.mxu0 %v5647
        %5681 = vmatprep.subr.bf16.mxu0 %v5650
        %5682 = vmatpush1.bf16.msra.mxu0 %v5649
        %5683 = vmatprep.subr.bf16.mxu0 %v5652
        %5684 = vmatpush1.bf16.msra.mxu0 %v5651
        %5685 = vmatprep.subr.bf16.mxu0 %v5654
        %5686 = vmatpush1.bf16.msra.mxu0 %v5653
        %5687 = vmatprep.subr.bf16.mxu0 %v5656
        %5688 = vmatpush1.bf16.msra.mxu0 %v5655
        %5689 = vmatprep.subr.bf16.mxu0 %v5658
        %5690 = vmatpush1.bf16.msra.mxu0 %v5657
        %5691 = vmatprep.subr.bf16.mxu0 0
        %5692 = vmatpush1.bf16.msra.mxu0 0
        %5693 = vmatprep.subr.bf16.mxu0 0
        %5694 = vmatpush1.bf16.msra.mxu0 0
        %5695 = vmatprep.subr.bf16.mxu0 0
        %5696 = vmatpush1.bf16.msra.mxu0 0
        %5697 = vmatprep.subr.bf16.mxu0 0
        %5698 = vmatpush1.bf16.msra.mxu0 0
        %5699 = vmatprep.subr.bf16.mxu0 0
        %5700 = vmatpush1.bf16.msra.mxu0 0
        %5701 = vmatprep.subr.bf16.mxu0 0
        %5702 = vmatpush1.bf16.msra.mxu0 0
        %5703 = vmatprep.subr.bf16.mxu0 0
        %5704 = vmatpush1.bf16.msra.mxu0 0
        %5705 = vmatprep.subr.bf16.mxu0 0
        %5706 = vmatpush1.bf16.msra.mxu0 0
        %5707 = vmatprep.mubr.bf16.mxu0 0
        %5708 = vmatmul.mubr.bf16.gmra.mrb[0].mxu0 %v5547
        %v5709 = vpop.f32.mrb[0].mxu0
        %v5710 = vadd.f32 0.0, %v5709
        %v5711 = vpop.f32.mrb[0].mxu0
        %v5712 = vadd.f32 0.0, %v5711
        %v5713 = vpop.f32.mrb[0].mxu0
        %v5714 = vadd.f32 0.0, %v5713
        %v5715 = vpop.f32.mrb[0].mxu0
        %v5716 = vadd.f32 0.0, %v5715
        %5717 = vmatprep.mubr.bf16.mxu0 0
        %5718 = vmatmul.mubr.bf16.gmra.mrb[0].mxu0 %v5548
        %v5719 = vpop.f32.mrb[0].mxu0
        %v5720 = vadd.f32 0.0, %v5719
        %v5721 = vpop.f32.mrb[0].mxu0
        %v5722 = vadd.f32 0.0, %v5721
        %v5723 = vpop.f32.mrb[0].mxu0
        %v5724 = vadd.f32 0.0, %v5723
        %v5725 = vpop.f32.mrb[0].mxu0
        %v5726 = vadd.f32 0.0, %v5725
        %5727 = vmatprep.mubr.bf16.mxu0 0
        %5728 = vmatmul.mubr.bf16.gmra.mrb[0].mxu0 %v5549
        %v5729 = vpop.f32.mrb[0].mxu0
        %v5730 = vadd.f32 0.0, %v5729
        %v5731 = vpop.f32.mrb[0].mxu0
        %v5732 = vadd.f32 0.0, %v5731
        %v5733 = vpop.f32.mrb[0].mxu0
        %v5734 = vadd.f32 0.0, %v5733
        %v5735 = vpop.f32.mrb[0].mxu0
        %v5736 = vadd.f32 0.0, %v5735
        %5737 = vmatprep.mubr.bf16.mxu0 0
        %5738 = vmatmul.mubr.bf16.gmra.mrb[0].mxu0 %v5550
        %v5739 = vpop.f32.mrb[0].mxu0
        %v5740 = vadd.f32 0.0, %v5739
        %v5741 = vpop.f32.mrb[0].mxu0
        %v5742 = vadd.f32 0.0, %v5741
        %v5743 = vpop.f32.mrb[0].mxu0
        %v5744 = vadd.f32 0.0, %v5743
        %v5745 = vpop.f32.mrb[0].mxu0
        %v5746 = vadd.f32 0.0, %v5745
        %5747 = vmatprep.mubr.bf16.mxu0 0
        %5748 = vmatmul.mubr.bf16.gmra.mrb[0].mxu0 %v5551
        %v5749 = vpop.f32.mrb[0].mxu0
        %v5750 = vadd.f32 0.0, %v5749
        %v5751 = vpop.f32.mrb[0].mxu0
        %v5752 = vadd.f32 0.0, %v5751
        %v5753 = vpop.f32.mrb[0].mxu0
        %v5754 = vadd.f32 0.0, %v5753
        %v5755 = vpop.f32.mrb[0].mxu0
        %v5756 = vadd.f32 0.0, %v5755
        %5757 = vmatprep.mubr.bf16.mxu0 0
        %5758 = vmatmul.mubr.bf16.gmra.mrb[0].mxu0 %v5552
        %v5759 = vpop.f32.mrb[0].mxu0
        %v5760 = vadd.f32 0.0, %v5759
        %v5761 = vpop.f32.mrb[0].mxu0
        %v5762 = vadd.f32 0.0, %v5761
        %v5763 = vpop.f32.mrb[0].mxu0
        %v5764 = vadd.f32 0.0, %v5763
        %v5765 = vpop.f32.mrb[0].mxu0
        %v5766 = vadd.f32 0.0, %v5765
        %5767 = vmatprep.mubr.bf16.mxu0 0
        %5768 = vmatmul.mubr.bf16.gmra.mrb[0].mxu0 %v5553
        %v5769 = vpop.f32.mrb[0].mxu0
        %v5770 = vadd.f32 0.0, %v5769
        %v5771 = vpop.f32.mrb[0].mxu0
        %v5772 = vadd.f32 0.0, %v5771
        %v5773 = vpop.f32.mrb[0].mxu0
        %v5774 = vadd.f32 0.0, %v5773
        %v5775 = vpop.f32.mrb[0].mxu0
        %v5776 = vadd.f32 0.0, %v5775
        %5777 = vmatprep.mubr.bf16.mxu0 0
        %5778 = vmatmul.mubr.bf16.gmra.mrb[0].mxu0 %v5554
        %v5779 = vpop.f32.mrb[0].mxu0
        %v5780 = vadd.f32 0.0, %v5779
        %v5781 = vpop.f32.mrb[0].mxu0
        %v5782 = vadd.f32 0.0, %v5781
        %v5783 = vpop.f32.mrb[0].mxu0
        %v5784 = vadd.f32 0.0, %v5783
        %v5785 = vpop.f32.mrb[0].mxu0
        %v5786 = vadd.f32 0.0, %v5785
        %5787 = vmatprep.mubr.bf16.mxu0 0
        %5788 = vmatmul.mubr.bf16.gmra.mrb[0].mxu0 %v5555
        %v5789 = vpop.f32.mrb[0].mxu0
        %v5790 = vadd.f32 0.0, %v5789
        %v5791 = vpop.f32.mrb[0].mxu0
        %v5792 = vadd.f32 0.0, %v5791
        %v5793 = vpop.f32.mrb[0].mxu0
        %v5794 = vadd.f32 0.0, %v5793
        %v5795 = vpop.f32.mrb[0].mxu0
        %v5796 = vadd.f32 0.0, %v5795
        %5797 = vmatprep.mubr.bf16.mxu0 0
        %5798 = vmatmul.mubr.bf16.gmra.mrb[0].mxu0 %v5556
        %v5799 = vpop.f32.mrb[0].mxu0
        %v5800 = vadd.f32 0.0, %v5799
        %v5801 = vpop.f32.mrb[0].mxu0
        %v5802 = vadd.f32 0.0, %v5801
        %v5803 = vpop.f32.mrb[0].mxu0
        %v5804 = vadd.f32 0.0, %v5803
        %v5805 = vpop.f32.mrb[0].mxu0
        %v5806 = vadd.f32 0.0, %v5805
        %5807 = vmatprep.mubr.bf16.mxu0 0
        %5808 = vmatmul.mubr.bf16.gmra.mrb[0].mxu0 %v5557
        %v5809 = vpop.f32.mrb[0].mxu0
        %v5810 = vadd.f32 0.0, %v5809
        %v5811 = vpop.f32.mrb[0].mxu0
        %v5812 = vadd.f32 0.0, %v5811
        %v5813 = vpop.f32.mrb[0].mxu0
        %v5814 = vadd.f32 0.0, %v5813
        %v5815 = vpop.f32.mrb[0].mxu0
        %v5816 = vadd.f32 0.0, %v5815
        %5817 = vmatprep.mubr.bf16.mxu0 0
        %5818 = vmatmul.mubr.bf16.gmra.mrb[0].mxu0 %v5558
        %v5819 = vpop.f32.mrb[0].mxu0
        %v5820 = vadd.f32 0.0, %v5819
        %v5821 = vpop.f32.mrb[0].mxu0
        %v5822 = vadd.f32 0.0, %v5821
        %v5823 = vpop.f32.mrb[0].mxu0
        %v5824 = vadd.f32 0.0, %v5823
        %v5825 = vpop.f32.mrb[0].mxu0
        %v5826 = vadd.f32 0.0, %v5825
        %5827 = vmatprep.mubr.bf16.mxu0 0
        %5828 = vmatmul.mubr.bf16.gmra.mrb[0].mxu0 %v5559
        %v5829 = vpop.f32.mrb[0].mxu0
        %v5830 = vadd.f32 0.0, %v5829
        %v5831 = vpop.f32.mrb[0].mxu0
        %v5832 = vadd.f32 0.0, %v5831
        %v5833 = vpop.f32.mrb[0].mxu0
        %v5834 = vadd.f32 0.0, %v5833
        %v5835 = vpop.f32.mrb[0].mxu0
        %v5836 = vadd.f32 0.0, %v5835
        %5837 = vmatprep.mubr.bf16.mxu0 0
        %5838 = vmatmul.mubr.bf16.gmra.mrb[0].mxu0 %v5560
        %v5839 = vpop.f32.mrb[0].mxu0
        %v5840 = vadd.f32 0.0, %v5839
        %v5841 = vpop.f32.mrb[0].mxu0
        %v5842 = vadd.f32 0.0, %v5841
        %v5843 = vpop.f32.mrb[0].mxu0
        %v5844 = vadd.f32 0.0, %v5843
        %v5845 = vpop.f32.mrb[0].mxu0
        %v5846 = vadd.f32 0.0, %v5845
        %5847 = vmatprep.mubr.bf16.mxu0 0
        %5848 = vmatmul.mubr.bf16.gmra.mrb[0].mxu0 %v5561
        %v5849 = vpop.f32.mrb[0].mxu0
        %v5850 = vadd.f32 0.0, %v5849
        %v5851 = vpop.f32.mrb[0].mxu0
        %v5852 = vadd.f32 0.0, %v5851
        %v5853 = vpop.f32.mrb[0].mxu0
        %v5854 = vadd.f32 0.0, %v5853
        %v5855 = vpop.f32.mrb[0].mxu0
        %v5856 = vadd.f32 0.0, %v5855
        %5857 = vmatprep.mubr.bf16.mxu0 0
        %5858 = vmatmul.mubr.bf16.gmra.mrb[0].mxu0 %v5562
        %v5859 = vpop.f32.mrb[0].mxu0
        %v5860 = vadd.f32 0.0, %v5859
        %v5861 = vpop.f32.mrb[0].mxu0
        %v5862 = vadd.f32 0.0, %v5861
        %v5863 = vpop.f32.mrb[0].mxu0
        %v5864 = vadd.f32 0.0, %v5863
        %v5865 = vpop.f32.mrb[0].mxu0
        %v5866 = vadd.f32 0.0, %v5865
        %5867 = vmatprep.mubr.bf16.mxu0 0
        %5868 = vmatmul.mubr.bf16.gmra.mrb[0].mxu0 %v5563
        %v5869 = vpop.f32.mrb[0].mxu0
        %v5870 = vadd.f32 0.0, %v5869
        %v5871 = vpop.f32.mrb[0].mxu0
        %v5872 = vadd.f32 0.0, %v5871
        %v5873 = vpop.f32.mrb[0].mxu0
        %v5874 = vadd.f32 0.0, %v5873
        %v5875 = vpop.f32.mrb[0].mxu0
        %v5876 = vadd.f32 0.0, %v5875
        %5877 = vmatprep.mubr.bf16.mxu0 0
        %5878 = vmatmul.mubr.bf16.gmra.mrb[0].mxu0 %v5564
        %v5879 = vpop.f32.mrb[0].mxu0
        %v5880 = vadd.f32 0.0, %v5879
        %v5881 = vpop.f32.mrb[0].mxu0
        %v5882 = vadd.f32 0.0, %v5881
        %v5883 = vpop.f32.mrb[0].mxu0
        %v5884 = vadd.f32 0.0, %v5883
        %v5885 = vpop.f32.mrb[0].mxu0
        %v5886 = vadd.f32 0.0, %v5885
        %5887 = vmatprep.mubr.bf16.mxu0 0
        %5888 = vmatmul.mubr.bf16.gmra.mrb[0].mxu0 %v5565
        %v5889 = vpop.f32.mrb[0].mxu0
        %v5890 = vadd.f32 0.0, %v5889
        %v5891 = vpop.f32.mrb[0].mxu0
        %v5892 = vadd.f32 0.0, %v5891
        %v5893 = vpop.f32.mrb[0].mxu0
        %v5894 = vadd.f32 0.0, %v5893
        %v5895 = vpop.f32.mrb[0].mxu0
        %v5896 = vadd.f32 0.0, %v5895
        %5897 = vmatprep.mubr.bf16.mxu0 0
        %5898 = vmatmul.mubr.bf16.gmra.mrb[0].mxu0 %v5566
        %v5899 = vpop.f32.mrb[0].mxu0
        %v5900 = vadd.f32 0.0, %v5899
        %v5901 = vpop.f32.mrb[0].mxu0
        %v5902 = vadd.f32 0.0, %v5901
        %v5903 = vpop.f32.mrb[0].mxu0
        %v5904 = vadd.f32 0.0, %v5903
        %v5905 = vpop.f32.mrb[0].mxu0
        %v5906 = vadd.f32 0.0, %v5905
        %5907 = vmatprep.mubr.bf16.mxu0 0
        %5908 = vmatmul.mubr.bf16.gmra.mrb[0].mxu0 %v5567
        %v5909 = vpop.f32.mrb[0].mxu0
        %v5910 = vadd.f32 0.0, %v5909
        %v5911 = vpop.f32.mrb[0].mxu0
        %v5912 = vadd.f32 0.0, %v5911
        %v5913 = vpop.f32.mrb[0].mxu0
        %v5914 = vadd.f32 0.0, %v5913
        %v5915 = vpop.f32.mrb[0].mxu0
        %v5916 = vadd.f32 0.0, %v5915
        %5917 = vmatprep.mubr.bf16.mxu0 0
        %5918 = vmatmul.mubr.bf16.gmra.mrb[0].mxu0 %v5568
        %v5919 = vpop.f32.mrb[0].mxu0
        %v5920 = vadd.f32 0.0, %v5919
        %v5921 = vpop.f32.mrb[0].mxu0
        %v5922 = vadd.f32 0.0, %v5921
        %v5923 = vpop.f32.mrb[0].mxu0
        %v5924 = vadd.f32 0.0, %v5923
        %v5925 = vpop.f32.mrb[0].mxu0
        %v5926 = vadd.f32 0.0, %v5925
        %5927 = vmatprep.mubr.bf16.mxu0 0
        %5928 = vmatmul.mubr.bf16.gmra.mrb[0].mxu0 %v5569
        %v5929 = vpop.f32.mrb[0].mxu0
        %v5930 = vadd.f32 0.0, %v5929
        %v5931 = vpop.f32.mrb[0].mxu0
        %v5932 = vadd.f32 0.0, %v5931
        %v5933 = vpop.f32.mrb[0].mxu0
        %v5934 = vadd.f32 0.0, %v5933
        %v5935 = vpop.f32.mrb[0].mxu0
        %v5936 = vadd.f32 0.0, %v5935
        %5937 = vmatprep.mubr.bf16.mxu0 0
        %5938 = vmatmul.mubr.bf16.gmra.mrb[0].mxu0 %v5570
        %v5939 = vpop.f32.mrb[0].mxu0
        %v5940 = vadd.f32 0.0, %v5939
        %v5941 = vpop.f32.mrb[0].mxu0
        %v5942 = vadd.f32 0.0, %v5941
        %v5943 = vpop.f32.mrb[0].mxu0
        %v5944 = vadd.f32 0.0, %v5943
        %v5945 = vpop.f32.mrb[0].mxu0
        %v5946 = vadd.f32 0.0, %v5945
        %5947 = vdwg.mxu0
        %v5948 = vadd.f32 %v5063, %v5710
        %v5949 = vadd.f32 %v5064, %v5712
        %v5950 = vadd.f32 %v5065, %v5714
        %v5951 = vadd.f32 %v5066, %v5716
        %v5952 = vadd.f32 %v5067, %v5720
        %v5953 = vadd.f32 %v5068, %v5722
        %v5954 = vadd.f32 %v5069, %v5724
        %v5955 = vadd.f32 %v5070, %v5726
        %v5956 = vadd.f32 %v5071, %v5730
        %v5957 = vadd.f32 %v5072, %v5732
        %v5958 = vadd.f32 %v5073, %v5734
        %v5959 = vadd.f32 %v5074, %v5736
        %v5960 = vadd.f32 %v5075, %v5740
        %v5961 = vadd.f32 %v5076, %v5742
        %v5962 = vadd.f32 %v5077, %v5744
        %v5963 = vadd.f32 %v5078, %v5746
        %v5964 = vadd.f32 %v5079, %v5750
        %v5965 = vadd.f32 %v5080, %v5752
        %v5966 = vadd.f32 %v5081, %v5754
        %v5967 = vadd.f32 %v5082, %v5756
        %v5968 = vadd.f32 %v5083, %v5760
        %v5969 = vadd.f32 %v5084, %v5762
        %v5970 = vadd.f32 %v5085, %v5764
        %v5971 = vadd.f32 %v5086, %v5766
        %v5972 = vadd.f32 %v5087, %v5770
        %v5973 = vadd.f32 %v5088, %v5772
        %v5974 = vadd.f32 %v5089, %v5774
        %v5975 = vadd.f32 %v5090, %v5776
        %v5976 = vadd.f32 %v5091, %v5780
        %v5977 = vadd.f32 %v5092, %v5782
        %v5978 = vadd.f32 %v5093, %v5784
        %v5979 = vadd.f32 %v5094, %v5786
        %v5980 = vadd.f32 %v5095, %v5790
        %v5981 = vadd.f32 %v5096, %v5792
        %v5982 = vadd.f32 %v5097, %v5794
        %v5983 = vadd.f32 %v5098, %v5796
        %v5984 = vadd.f32 %v5099, %v5800
        %v5985 = vadd.f32 %v5100, %v5802
        %v5986 = vadd.f32 %v5101, %v5804
        %v5987 = vadd.f32 %v5102, %v5806
        %v5988 = vadd.f32 %v5103, %v5810
        %v5989 = vadd.f32 %v5104, %v5812
        %v5990 = vadd.f32 %v5105, %v5814
        %v5991 = vadd.f32 %v5106, %v5816
        %v5992 = vadd.f32 %v5107, %v5820
        %v5993 = vadd.f32 %v5108, %v5822
        %v5994 = vadd.f32 %v5109, %v5824
        %v5995 = vadd.f32 %v5110, %v5826
        %v5996 = vadd.f32 %v5111, %v5830
        %v5997 = vadd.f32 %v5112, %v5832
        %v5998 = vadd.f32 %v5113, %v5834
        %v5999 = vadd.f32 %v5114, %v5836
        %v6000 = vadd.f32 %v5115, %v5840
        %v6001 = vadd.f32 %v5116, %v5842
        %v6002 = vadd.f32 %v5117, %v5844
        %v6003 = vadd.f32 %v5118, %v5846
        %v6004 = vadd.f32 %v5119, %v5850
        %v6005 = vadd.f32 %v5120, %v5852
        %v6006 = vadd.f32 %v5121, %v5854
        %v6007 = vadd.f32 %v5122, %v5856
        %v6008 = vadd.f32 %v5123, %v5860
        %v6009 = vadd.f32 %v5124, %v5862
        %v6010 = vadd.f32 %v5125, %v5864
        %v6011 = vadd.f32 %v5126, %v5866
        %v6012 = vadd.f32 %v5127, %v5870
        %v6013 = vadd.f32 %v5128, %v5872
        %v6014 = vadd.f32 %v5129, %v5874
        %v6015 = vadd.f32 %v5130, %v5876
        %v6016 = vadd.f32 %v5131, %v5880
        %v6017 = vadd.f32 %v5132, %v5882
        %v6018 = vadd.f32 %v5133, %v5884
        %v6019 = vadd.f32 %v5134, %v5886
        %v6020 = vadd.f32 %v5135, %v5890
        %v6021 = vadd.f32 %v5136, %v5892
        %v6022 = vadd.f32 %v5137, %v5894
        %v6023 = vadd.f32 %v5138, %v5896
        %v6024 = vadd.f32 %v5139, %v5900
        %v6025 = vadd.f32 %v5140, %v5902
        %v6026 = vadd.f32 %v5141, %v5904
        %v6027 = vadd.f32 %v5142, %v5906
        %v6028 = vadd.f32 %v5143, %v5910
        %v6029 = vadd.f32 %v5144, %v5912
        %v6030 = vadd.f32 %v5145, %v5914
        %v6031 = vadd.f32 %v5146, %v5916
        %v6032 = vadd.f32 %v5147, %v5920
        %v6033 = vadd.f32 %v5148, %v5922
        %v6034 = vadd.f32 %v5149, %v5924
        %v6035 = vadd.f32 %v5150, %v5926
        %v6036 = vadd.f32 %v5151, %v5930
        %v6037 = vadd.f32 %v5152, %v5932
        %v6038 = vadd.f32 %v5153, %v5934
        %v6039 = vadd.f32 %v5154, %v5936
        %v6040 = vadd.f32 %v5155, %v5940
        %v6041 = vadd.f32 %v5156, %v5942
        %v6042 = vadd.f32 %v5157, %v5944
        %v6043 = vadd.f32 %v5158, %v5946
        %vm6044 = vcmask 1041408
        %vm6045 = vcmask 1045508
        %vm6046 = vmor %vm6044, %vm6045
        %v6047 = vrot.slane %v2956, 6
        %v6048 = vrot.slane %v6047, 4
        %v6049 = vrot.slane %v2957, 6
        %v6050 = vsel %vm6046, %v6048, %v6049
        %v6051 = vrot.slane %v6049, 4
        %v6052 = vrot.slane %v2958, 6
        %v6053 = vsel %vm6046, %v6051, %v6052
        %v6054 = vrot.slane %v6052, 4
        %v6055 = vrot.slane %v2959, 6
        %v6056 = vsel %vm6046, %v6054, %v6055
        %v6057 = vrot.slane %v2960, 6
        %v6058 = vrot.slane %v6057, 4
        %v6059 = vrot.slane %v2961, 6
        %v6060 = vsel %vm6046, %v6058, %v6059
        %v6061 = vrot.slane %v6059, 4
        %v6062 = vrot.slane %v2962, 6
        %v6063 = vsel %vm6046, %v6061, %v6062
        %v6064 = vrot.slane %v6062, 4
        %v6065 = vrot.slane %v2963, 6
        %v6066 = vsel %vm6046, %v6064, %v6065
        %v6067 = vrot.slane %v2964, 6
        %v6068 = vrot.slane %v6067, 4
        %v6069 = vrot.slane %v2965, 6
        %v6070 = vsel %vm6046, %v6068, %v6069
        %v6071 = vrot.slane %v6069, 4
        %v6072 = vrot.slane %v2966, 6
        %v6073 = vsel %vm6046, %v6071, %v6072
        %v6074 = vrot.slane %v6072, 4
        %v6075 = vrot.slane %v2967, 6
        %v6076 = vsel %vm6046, %v6074, %v6075
        %v6077 = vrot.slane %v2968, 6
        %v6078 = vrot.slane %v6077, 4
        %v6079 = vrot.slane %v2969, 6
        %v6080 = vsel %vm6046, %v6078, %v6079
        %v6081 = vrot.slane %v6079, 4
        %v6082 = vrot.slane %v2970, 6
        %v6083 = vsel %vm6046, %v6081, %v6082
        %v6084 = vrot.slane %v6082, 4
        %v6085 = vrot.slane %v2971, 6
        %v6086 = vsel %vm6046, %v6084, %v6085
        %v6087 = vrot.slane %v2972, 6
        %v6088 = vrot.slane %v6087, 4
        %v6089 = vrot.slane %v2973, 6
        %v6090 = vsel %vm6046, %v6088, %v6089
        %v6091 = vrot.slane %v6089, 4
        %v6092 = vrot.slane %v2974, 6
        %v6093 = vsel %vm6046, %v6091, %v6092
        %v6094 = vrot.slane %v6092, 4
        %v6095 = vrot.slane %v2975, 6
        %v6096 = vsel %vm6046, %v6094, %v6095
        %v6097 = vrot.slane %v2976, 6
        %v6098 = vrot.slane %v6097, 4
        %v6099 = vrot.slane %v2977, 6
        %v6100 = vsel %vm6046, %v6098, %v6099
        %v6101 = vrot.slane %v6099, 4
        %v6102 = vrot.slane %v2978, 6
        %v6103 = vsel %vm6046, %v6101, %v6102
        %v6104 = vrot.slane %v6102, 4
        %v6105 = vrot.slane %v2979, 6
        %v6106 = vsel %vm6046, %v6104, %v6105
        %v6107 = vrot.slane %v2980, 6
        %v6108 = vrot.slane %v6107, 4
        %v6109 = vrot.slane %v2981, 6
        %v6110 = vsel %vm6046, %v6108, %v6109
        %v6111 = vrot.slane %v6109, 4
        %v6112 = vrot.slane %v2982, 6
        %v6113 = vsel %vm6046, %v6111, %v6112
        %v6114 = vrot.slane %v6112, 4
        %v6115 = vrot.slane %v2983, 6
        %v6116 = vsel %vm6046, %v6114, %v6115
        %v6117 = vrot.slane %v2984, 6
        %v6118 = vrot.slane %v6117, 4
        %v6119 = vrot.slane %v2985, 6
        %v6120 = vsel %vm6046, %v6118, %v6119
        %v6121 = vrot.slane %v6119, 4
        %v6122 = vrot.slane %v2986, 6
        %v6123 = vsel %vm6046, %v6121, %v6122
        %v6124 = vrot.slane %v6122, 4
        %v6125 = vrot.slane %v2987, 6
        %v6126 = vsel %vm6046, %v6124, %v6125
        %v6127 = vrot.slane %v2988, 6
        %v6128 = vrot.slane %v6127, 4
        %v6129 = vrot.slane %v2989, 6
        %v6130 = vsel %vm6046, %v6128, %v6129
        %v6131 = vrot.slane %v6129, 4
        %v6132 = vrot.slane %v2990, 6
        %v6133 = vsel %vm6046, %v6131, %v6132
        %v6134 = vrot.slane %v6132, 4
        %v6135 = vrot.slane %v2991, 6
        %v6136 = vsel %vm6046, %v6134, %v6135
        %v6137 = vrot.slane %v2992, 6
        %v6138 = vrot.slane %v6137, 4
        %v6139 = vrot.slane %v2993, 6
        %v6140 = vsel %vm6046, %v6138, %v6139
        %v6141 = vrot.slane %v6139, 4
        %v6142 = vrot.slane %v2994, 6
        %v6143 = vsel %vm6046, %v6141, %v6142
        %v6144 = vrot.slane %v6142, 4
        %v6145 = vrot.slane %v2995, 6
        %v6146 = vsel %vm6046, %v6144, %v6145
        %v6147 = vrot.slane %v2996, 6
        %v6148 = vrot.slane %v6147, 4
        %v6149 = vrot.slane %v2997, 6
        %v6150 = vsel %vm6046, %v6148, %v6149
        %v6151 = vrot.slane %v6149, 4
        %v6152 = vrot.slane %v2998, 6
        %v6153 = vsel %vm6046, %v6151, %v6152
        %v6154 = vrot.slane %v6152, 4
        %v6155 = vrot.slane %v2999, 6
        %v6156 = vsel %vm6046, %v6154, %v6155
        %v6157 = vrot.slane %v3000, 6
        %v6158 = vrot.slane %v6157, 4
        %v6159 = vrot.slane %v3001, 6
        %v6160 = vsel %vm6046, %v6158, %v6159
        %v6161 = vrot.slane %v6159, 4
        %v6162 = vrot.slane %v3002, 6
        %v6163 = vsel %vm6046, %v6161, %v6162
        %v6164 = vrot.slane %v6162, 4
        %v6165 = vrot.slane %v3003, 6
        %v6166 = vsel %vm6046, %v6164, %v6165
        %v6167 = vrot.slane %v3004, 6
        %v6168 = vrot.slane %v6167, 4
        %v6169 = vrot.slane %v3005, 6
        %v6170 = vsel %vm6046, %v6168, %v6169
        %v6171 = vrot.slane %v6169, 4
        %v6172 = vrot.slane %v3006, 6
        %v6173 = vsel %vm6046, %v6171, %v6172
        %v6174 = vrot.slane %v6172, 4
        %v6175 = vrot.slane %v3007, 6
        %v6176 = vsel %vm6046, %v6174, %v6175
        %v6177 = vrot.slane %v3008, 6
        %v6178 = vrot.slane %v6177, 4
        %v6179 = vrot.slane %v3009, 6
        %v6180 = vsel %vm6046, %v6178, %v6179
        %v6181 = vrot.slane %v6179, 4
        %v6182 = vrot.slane %v3010, 6
        %v6183 = vsel %vm6046, %v6181, %v6182
        %v6184 = vrot.slane %v6182, 4
        %v6185 = vrot.slane %v3011, 6
        %v6186 = vsel %vm6046, %v6184, %v6185
        %v6187 = vrot.slane %v3012, 6
        %v6188 = vrot.slane %v6187, 4
        %v6189 = vrot.slane %v3013, 6
        %v6190 = vsel %vm6046, %v6188, %v6189
        %v6191 = vrot.slane %v6189, 4
        %v6192 = vrot.slane %v3014, 6
        %v6193 = vsel %vm6046, %v6191, %v6192
        %v6194 = vrot.slane %v6192, 4
        %v6195 = vrot.slane %v3015, 6
        %v6196 = vsel %vm6046, %v6194, %v6195
        %v6197 = vrot.slane %v3016, 6
        %v6198 = vrot.slane %v6197, 4
        %v6199 = vrot.slane %v3017, 6
        %v6200 = vsel %vm6046, %v6198, %v6199
        %v6201 = vrot.slane %v6199, 4
        %v6202 = vrot.slane %v3018, 6
        %v6203 = vsel %vm6046, %v6201, %v6202
        %v6204 = vrot.slane %v6202, 4
        %v6205 = vrot.slane %v3019, 6
        %v6206 = vsel %vm6046, %v6204, %v6205
        %s6207 = scalar_lea.vmem [#allocation10], 512
        %v6208 = vld [vmem:[%s6207] sm:$0xff]
        %v6209 = vld [vmem:[%s6207 + $0x8] sm:$0xff]
        %v6210 = vld [vmem:[%s6207 + $0x10] sm:$0xff]
        %v6211 = vld [vmem:[%s6207 + $0x18] sm:$0xff]
        %v6212 = vld [vmem:[%s6207 + $0x20] sm:$0xff]
        %v6213 = vld [vmem:[%s6207 + $0x28] sm:$0xff]
        %v6214 = vld [vmem:[%s6207 + $0x30] sm:$0xff]
        %v6215 = vld [vmem:[%s6207 + $0x38] sm:$0xff]
        %v6216 = vld [vmem:[%s6207 + $0x40] sm:$0xff]
        %v6217 = vld [vmem:[%s6207 + $0x48] sm:$0xff]
        %v6218 = vld [vmem:[%s6207 + $0x50] sm:$0xff]
        %v6219 = vld [vmem:[%s6207 + $0x58] sm:$0xff]
        %v6220 = vld [vmem:[%s6207 + $0x60] sm:$0xff]
        %v6221 = vld [vmem:[%s6207 + $0x68] sm:$0xff]
        %v6222 = vld [vmem:[%s6207 + $0x70] sm:$0xff]
        %v6223 = vld [vmem:[%s6207 + $0x78] sm:$0xff]
        %v6224 = vunpack.c.l.b16 %v6050
        %v6225 = vunpack.c.l.b16 %v6053
        %v6226 = vunpack.c.l.b16 %v6056
        %v6227 = vunpack.c.l.b16 %v6060
        %v6228 = vunpack.c.l.b16 %v6063
        %v6229 = vunpack.c.l.b16 %v6066
        %v6230 = vunpack.c.l.b16 %v6070
        %v6231 = vunpack.c.l.b16 %v6073
        %v6232 = vunpack.c.l.b16 %v6076
        %v6233 = vunpack.c.l.b16 %v6080
        %v6234 = vunpack.c.l.b16 %v6083
        %v6235 = vunpack.c.l.b16 %v6086
        %v6236 = vunpack.c.l.b16 %v6090
        %v6237 = vunpack.c.l.b16 %v6093
        %v6238 = vunpack.c.l.b16 %v6096
        %v6239 = vunpack.c.l.b16 %v6100
        %v6240 = vunpack.c.l.b16 %v6103
        %v6241 = vunpack.c.l.b16 %v6106
        %v6242 = vunpack.c.l.b16 %v6110
        %v6243 = vunpack.c.l.b16 %v6113
        %v6244 = vunpack.c.l.b16 %v6116
        %v6245 = vunpack.c.l.b16 %v6120
        %v6246 = vunpack.c.l.b16 %v6123
        %v6247 = vunpack.c.l.b16 %v6126
        %v6248 = vunpack.c.l.b16 %v6130
        %v6249 = vunpack.c.l.b16 %v6133
        %v6250 = vunpack.c.l.b16 %v6136
        %v6251 = vunpack.c.l.b16 %v6140
        %v6252 = vunpack.c.l.b16 %v6143
        %v6253 = vunpack.c.l.b16 %v6146
        %v6254 = vunpack.c.l.b16 %v6150
        %v6255 = vunpack.c.l.b16 %v6153
        %v6256 = vunpack.c.l.b16 %v6156
        %v6257 = vunpack.c.l.b16 %v6160
        %v6258 = vunpack.c.l.b16 %v6163
        %v6259 = vunpack.c.l.b16 %v6166
        %v6260 = vunpack.c.l.b16 %v6170
        %v6261 = vunpack.c.l.b16 %v6173
        %v6262 = vunpack.c.l.b16 %v6176
        %v6263 = vunpack.c.l.b16 %v6180
        %v6264 = vunpack.c.l.b16 %v6183
        %v6265 = vunpack.c.l.b16 %v6186
        %v6266 = vunpack.c.l.b16 %v6190
        %v6267 = vunpack.c.l.b16 %v6193
        %v6268 = vunpack.c.l.b16 %v6196
        %v6269 = vunpack.c.l.b16 %v6200
        %v6270 = vunpack.c.l.b16 %v6203
        %v6271 = vunpack.c.l.b16 %v6206
        %v6272 = vpack.c.b16 %v6225, %v6224
        %v6273 = vpack.c.b16 %v6227, %v6226
        %v6274 = vpack.c.b16 %v6229, %v6228
        %v6275 = vpack.c.b16 %v6231, %v6230
        %v6276 = vpack.c.b16 %v6233, %v6232
        %v6277 = vpack.c.b16 %v6235, %v6234
        %v6278 = vpack.c.b16 %v6237, %v6236
        %v6279 = vpack.c.b16 %v6239, %v6238
        %v6280 = vpack.c.b16 %v6241, %v6240
        %v6281 = vpack.c.b16 %v6243, %v6242
        %v6282 = vpack.c.b16 %v6245, %v6244
        %v6283 = vpack.c.b16 %v6247, %v6246
        %v6284 = vpack.c.b16 %v6249, %v6248
        %v6285 = vpack.c.b16 %v6251, %v6250
        %v6286 = vpack.c.b16 %v6253, %v6252
        %v6287 = vpack.c.b16 %v6255, %v6254
        %v6288 = vpack.c.b16 %v6257, %v6256
        %v6289 = vpack.c.b16 %v6259, %v6258
        %v6290 = vpack.c.b16 %v6261, %v6260
        %v6291 = vpack.c.b16 %v6263, %v6262
        %v6292 = vpack.c.b16 %v6265, %v6264
        %v6293 = vpack.c.b16 %v6267, %v6266
        %v6294 = vpack.c.b16 %v6269, %v6268
        %v6295 = vpack.c.b16 %v6271, %v6270
        %v6336 = vunpack.c.l.b16 %v6208
        %v6337 = vunpack.c.h.b16 %v6208
        %v6338 = vunpack.c.l.b16 %v6209
        %v6339 = vunpack.c.h.b16 %v6209
        %v6340 = vunpack.c.l.b16 %v6210
        %v6341 = vunpack.c.h.b16 %v6210
        %v6342 = vunpack.c.l.b16 %v6211
        %v6343 = vunpack.c.h.b16 %v6211
        %v6344 = vunpack.c.l.b16 %v6212
        %v6345 = vunpack.c.h.b16 %v6212
        %v6346 = vunpack.c.l.b16 %v6213
        %v6347 = vunpack.c.h.b16 %v6213
        %v6348 = vunpack.c.l.b16 %v6214
        %v6349 = vunpack.c.h.b16 %v6214
        %v6350 = vunpack.c.l.b16 %v6215
        %v6351 = vunpack.c.h.b16 %v6215
        %v6352 = vunpack.c.l.b16 %v6216
        %v6353 = vunpack.c.h.b16 %v6216
        %v6354 = vunpack.c.l.b16 %v6217
        %v6355 = vunpack.c.h.b16 %v6217
        %v6356 = vunpack.c.l.b16 %v6218
        %v6357 = vunpack.c.h.b16 %v6218
        %v6358 = vunpack.c.l.b16 %v6219
        %v6359 = vunpack.c.h.b16 %v6219
        %v6360 = vunpack.c.l.b16 %v6220
        %v6361 = vunpack.c.h.b16 %v6220
        %v6362 = vunpack.c.l.b16 %v6221
        %v6363 = vunpack.c.h.b16 %v6221
        %v6364 = vunpack.c.l.b16 %v6222
        %v6365 = vunpack.c.h.b16 %v6222
        %v6366 = vunpack.c.l.b16 %v6223
        %v6367 = vunpack.c.h.b16 %v6223
        %v6368 = vpack.c.b16 %v6338, %v6336
        %v6369 = vpack.c.b16 %v6339, %v6337
        %v6370 = vpack.c.b16 %v6342, %v6340
        %v6371 = vpack.c.b16 %v6343, %v6341
        %v6372 = vpack.c.b16 %v6346, %v6344
        %v6373 = vpack.c.b16 %v6347, %v6345
        %v6374 = vpack.c.b16 %v6350, %v6348
        %v6375 = vpack.c.b16 %v6351, %v6349
        %v6376 = vpack.c.b16 %v6354, %v6352
        %v6377 = vpack.c.b16 %v6355, %v6353
        %v6378 = vpack.c.b16 %v6358, %v6356
        %v6379 = vpack.c.b16 %v6359, %v6357
        %v6380 = vpack.c.b16 %v6362, %v6360
        %v6381 = vpack.c.b16 %v6363, %v6361
        %v6382 = vpack.c.b16 %v6366, %v6364
        %v6383 = vpack.c.b16 %v6367, %v6365
        %6400 = vmatprep.subr.bf16.mxu0 %v6369
        %6401 = vmatpush1.bf16.msra.mxu0 %v6368
        %6402 = vmatprep.subr.bf16.mxu0 %v6371
        %6403 = vmatpush1.bf16.msra.mxu0 %v6370
        %6404 = vmatprep.subr.bf16.mxu0 %v6373
        %6405 = vmatpush1.bf16.msra.mxu0 %v6372
        %6406 = vmatprep.subr.bf16.mxu0 %v6375
        %6407 = vmatpush1.bf16.msra.mxu0 %v6374
        %6408 = vmatprep.subr.bf16.mxu0 %v6377
        %6409 = vmatpush1.bf16.msra.mxu0 %v6376
        %6410 = vmatprep.subr.bf16.mxu0 %v6379
        %6411 = vmatpush1.bf16.msra.mxu0 %v6378
        %6412 = vmatprep.subr.bf16.mxu0 %v6381
        %6413 = vmatpush1.bf16.msra.mxu0 %v6380
        %6414 = vmatprep.subr.bf16.mxu0 %v6383
        %6415 = vmatpush1.bf16.msra.mxu0 %v6382
        %6416 = vmatprep.subr.bf16.mxu0 0
        %6417 = vmatpush1.bf16.msra.mxu0 0
        %6418 = vmatprep.subr.bf16.mxu0 0
        %6419 = vmatpush1.bf16.msra.mxu0 0
        %6420 = vmatprep.subr.bf16.mxu0 0
        %6421 = vmatpush1.bf16.msra.mxu0 0
        %6422 = vmatprep.subr.bf16.mxu0 0
        %6423 = vmatpush1.bf16.msra.mxu0 0
        %6424 = vmatprep.subr.bf16.mxu0 0
        %6425 = vmatpush1.bf16.msra.mxu0 0
        %6426 = vmatprep.subr.bf16.mxu0 0
        %6427 = vmatpush1.bf16.msra.mxu0 0
        %6428 = vmatprep.subr.bf16.mxu0 0
        %6429 = vmatpush1.bf16.msra.mxu0 0
        %6430 = vmatprep.subr.bf16.mxu0 0
        %6431 = vmatpush1.bf16.msra.mxu0 0
        %6432 = vmatprep.mubr.bf16.mxu0 0
        %6433 = vmatmul.mubr.bf16.gmra.mrb[0].mxu0 %v6272
        %v6434 = vpop.f32.mrb[0].mxu0
        %v6435 = vadd.f32 0.0, %v6434
        %v6436 = vpop.f32.mrb[0].mxu0
        %v6437 = vadd.f32 0.0, %v6436
        %v6438 = vpop.f32.mrb[0].mxu0
        %v6439 = vadd.f32 0.0, %v6438
        %v6440 = vpop.f32.mrb[0].mxu0
        %v6441 = vadd.f32 0.0, %v6440
        %6442 = vmatprep.mubr.bf16.mxu0 0
        %6443 = vmatmul.mubr.bf16.gmra.mrb[0].mxu0 %v6273
        %v6444 = vpop.f32.mrb[0].mxu0
        %v6445 = vadd.f32 0.0, %v6444
        %v6446 = vpop.f32.mrb[0].mxu0
        %v6447 = vadd.f32 0.0, %v6446
        %v6448 = vpop.f32.mrb[0].mxu0
        %v6449 = vadd.f32 0.0, %v6448
        %v6450 = vpop.f32.mrb[0].mxu0
        %v6451 = vadd.f32 0.0, %v6450
        %6452 = vmatprep.mubr.bf16.mxu0 0
        %6453 = vmatmul.mubr.bf16.gmra.mrb[0].mxu0 %v6274
        %v6454 = vpop.f32.mrb[0].mxu0
        %v6455 = vadd.f32 0.0, %v6454
        %v6456 = vpop.f32.mrb[0].mxu0
        %v6457 = vadd.f32 0.0, %v6456
        %v6458 = vpop.f32.mrb[0].mxu0
        %v6459 = vadd.f32 0.0, %v6458
        %v6460 = vpop.f32.mrb[0].mxu0
        %v6461 = vadd.f32 0.0, %v6460
        %6462 = vmatprep.mubr.bf16.mxu0 0
        %6463 = vmatmul.mubr.bf16.gmra.mrb[0].mxu0 %v6275
        %v6464 = vpop.f32.mrb[0].mxu0
        %v6465 = vadd.f32 0.0, %v6464
        %v6466 = vpop.f32.mrb[0].mxu0
        %v6467 = vadd.f32 0.0, %v6466
        %v6468 = vpop.f32.mrb[0].mxu0
        %v6469 = vadd.f32 0.0, %v6468
        %v6470 = vpop.f32.mrb[0].mxu0
        %v6471 = vadd.f32 0.0, %v6470
        %6472 = vmatprep.mubr.bf16.mxu0 0
        %6473 = vmatmul.mubr.bf16.gmra.mrb[0].mxu0 %v6276
        %v6474 = vpop.f32.mrb[0].mxu0
        %v6475 = vadd.f32 0.0, %v6474
        %v6476 = vpop.f32.mrb[0].mxu0
        %v6477 = vadd.f32 0.0, %v6476
        %v6478 = vpop.f32.mrb[0].mxu0
        %v6479 = vadd.f32 0.0, %v6478
        %v6480 = vpop.f32.mrb[0].mxu0
        %v6481 = vadd.f32 0.0, %v6480
        %6482 = vmatprep.mubr.bf16.mxu0 0
        %6483 = vmatmul.mubr.bf16.gmra.mrb[0].mxu0 %v6277
        %v6484 = vpop.f32.mrb[0].mxu0
        %v6485 = vadd.f32 0.0, %v6484
        %v6486 = vpop.f32.mrb[0].mxu0
        %v6487 = vadd.f32 0.0, %v6486
        %v6488 = vpop.f32.mrb[0].mxu0
        %v6489 = vadd.f32 0.0, %v6488
        %v6490 = vpop.f32.mrb[0].mxu0
        %v6491 = vadd.f32 0.0, %v6490
        %6492 = vmatprep.mubr.bf16.mxu0 0
        %6493 = vmatmul.mubr.bf16.gmra.mrb[0].mxu0 %v6278
        %v6494 = vpop.f32.mrb[0].mxu0
        %v6495 = vadd.f32 0.0, %v6494
        %v6496 = vpop.f32.mrb[0].mxu0
        %v6497 = vadd.f32 0.0, %v6496
        %v6498 = vpop.f32.mrb[0].mxu0
        %v6499 = vadd.f32 0.0, %v6498
        %v6500 = vpop.f32.mrb[0].mxu0
        %v6501 = vadd.f32 0.0, %v6500
        %6502 = vmatprep.mubr.bf16.mxu0 0
        %6503 = vmatmul.mubr.bf16.gmra.mrb[0].mxu0 %v6279
        %v6504 = vpop.f32.mrb[0].mxu0
        %v6505 = vadd.f32 0.0, %v6504
        %v6506 = vpop.f32.mrb[0].mxu0
        %v6507 = vadd.f32 0.0, %v6506
        %v6508 = vpop.f32.mrb[0].mxu0
        %v6509 = vadd.f32 0.0, %v6508
        %v6510 = vpop.f32.mrb[0].mxu0
        %v6511 = vadd.f32 0.0, %v6510
        %6512 = vmatprep.mubr.bf16.mxu0 0
        %6513 = vmatmul.mubr.bf16.gmra.mrb[0].mxu0 %v6280
        %v6514 = vpop.f32.mrb[0].mxu0
        %v6515 = vadd.f32 0.0, %v6514
        %v6516 = vpop.f32.mrb[0].mxu0
        %v6517 = vadd.f32 0.0, %v6516
        %v6518 = vpop.f32.mrb[0].mxu0
        %v6519 = vadd.f32 0.0, %v6518
        %v6520 = vpop.f32.mrb[0].mxu0
        %v6521 = vadd.f32 0.0, %v6520
        %6522 = vmatprep.mubr.bf16.mxu0 0
        %6523 = vmatmul.mubr.bf16.gmra.mrb[0].mxu0 %v6281
        %v6524 = vpop.f32.mrb[0].mxu0
        %v6525 = vadd.f32 0.0, %v6524
        %v6526 = vpop.f32.mrb[0].mxu0
        %v6527 = vadd.f32 0.0, %v6526
        %v6528 = vpop.f32.mrb[0].mxu0
        %v6529 = vadd.f32 0.0, %v6528
        %v6530 = vpop.f32.mrb[0].mxu0
        %v6531 = vadd.f32 0.0, %v6530
        %6532 = vmatprep.mubr.bf16.mxu0 0
        %6533 = vmatmul.mubr.bf16.gmra.mrb[0].mxu0 %v6282
        %v6534 = vpop.f32.mrb[0].mxu0
        %v6535 = vadd.f32 0.0, %v6534
        %v6536 = vpop.f32.mrb[0].mxu0
        %v6537 = vadd.f32 0.0, %v6536
        %v6538 = vpop.f32.mrb[0].mxu0
        %v6539 = vadd.f32 0.0, %v6538
        %v6540 = vpop.f32.mrb[0].mxu0
        %v6541 = vadd.f32 0.0, %v6540
        %6542 = vmatprep.mubr.bf16.mxu0 0
        %6543 = vmatmul.mubr.bf16.gmra.mrb[0].mxu0 %v6283
        %v6544 = vpop.f32.mrb[0].mxu0
        %v6545 = vadd.f32 0.0, %v6544
        %v6546 = vpop.f32.mrb[0].mxu0
        %v6547 = vadd.f32 0.0, %v6546
        %v6548 = vpop.f32.mrb[0].mxu0
        %v6549 = vadd.f32 0.0, %v6548
        %v6550 = vpop.f32.mrb[0].mxu0
        %v6551 = vadd.f32 0.0, %v6550
        %6552 = vmatprep.mubr.bf16.mxu0 0
        %6553 = vmatmul.mubr.bf16.gmra.mrb[0].mxu0 %v6284
        %v6554 = vpop.f32.mrb[0].mxu0
        %v6555 = vadd.f32 0.0, %v6554
        %v6556 = vpop.f32.mrb[0].mxu0
        %v6557 = vadd.f32 0.0, %v6556
        %v6558 = vpop.f32.mrb[0].mxu0
        %v6559 = vadd.f32 0.0, %v6558
        %v6560 = vpop.f32.mrb[0].mxu0
        %v6561 = vadd.f32 0.0, %v6560
        %6562 = vmatprep.mubr.bf16.mxu0 0
        %6563 = vmatmul.mubr.bf16.gmra.mrb[0].mxu0 %v6285
        %v6564 = vpop.f32.mrb[0].mxu0
        %v6565 = vadd.f32 0.0, %v6564
        %v6566 = vpop.f32.mrb[0].mxu0
        %v6567 = vadd.f32 0.0, %v6566
        %v6568 = vpop.f32.mrb[0].mxu0
        %v6569 = vadd.f32 0.0, %v6568
        %v6570 = vpop.f32.mrb[0].mxu0
        %v6571 = vadd.f32 0.0, %v6570
        %6572 = vmatprep.mubr.bf16.mxu0 0
        %6573 = vmatmul.mubr.bf16.gmra.mrb[0].mxu0 %v6286
        %v6574 = vpop.f32.mrb[0].mxu0
        %v6575 = vadd.f32 0.0, %v6574
        %v6576 = vpop.f32.mrb[0].mxu0
        %v6577 = vadd.f32 0.0, %v6576
        %v6578 = vpop.f32.mrb[0].mxu0
        %v6579 = vadd.f32 0.0, %v6578
        %v6580 = vpop.f32.mrb[0].mxu0
        %v6581 = vadd.f32 0.0, %v6580
        %6582 = vmatprep.mubr.bf16.mxu0 0
        %6583 = vmatmul.mubr.bf16.gmra.mrb[0].mxu0 %v6287
        %v6584 = vpop.f32.mrb[0].mxu0
        %v6585 = vadd.f32 0.0, %v6584
        %v6586 = vpop.f32.mrb[0].mxu0
        %v6587 = vadd.f32 0.0, %v6586
        %v6588 = vpop.f32.mrb[0].mxu0
        %v6589 = vadd.f32 0.0, %v6588
        %v6590 = vpop.f32.mrb[0].mxu0
        %v6591 = vadd.f32 0.0, %v6590
        %6592 = vmatprep.mubr.bf16.mxu0 0
        %6593 = vmatmul.mubr.bf16.gmra.mrb[0].mxu0 %v6288
        %v6594 = vpop.f32.mrb[0].mxu0
        %v6595 = vadd.f32 0.0, %v6594
        %v6596 = vpop.f32.mrb[0].mxu0
        %v6597 = vadd.f32 0.0, %v6596
        %v6598 = vpop.f32.mrb[0].mxu0
        %v6599 = vadd.f32 0.0, %v6598
        %v6600 = vpop.f32.mrb[0].mxu0
        %v6601 = vadd.f32 0.0, %v6600
        %6602 = vmatprep.mubr.bf16.mxu0 0
        %6603 = vmatmul.mubr.bf16.gmra.mrb[0].mxu0 %v6289
        %v6604 = vpop.f32.mrb[0].mxu0
        %v6605 = vadd.f32 0.0, %v6604
        %v6606 = vpop.f32.mrb[0].mxu0
        %v6607 = vadd.f32 0.0, %v6606
        %v6608 = vpop.f32.mrb[0].mxu0
        %v6609 = vadd.f32 0.0, %v6608
        %v6610 = vpop.f32.mrb[0].mxu0
        %v6611 = vadd.f32 0.0, %v6610
        %6612 = vmatprep.mubr.bf16.mxu0 0
        %6613 = vmatmul.mubr.bf16.gmra.mrb[0].mxu0 %v6290
        %v6614 = vpop.f32.mrb[0].mxu0
        %v6615 = vadd.f32 0.0, %v6614
        %v6616 = vpop.f32.mrb[0].mxu0
        %v6617 = vadd.f32 0.0, %v6616
        %v6618 = vpop.f32.mrb[0].mxu0
        %v6619 = vadd.f32 0.0, %v6618
        %v6620 = vpop.f32.mrb[0].mxu0
        %v6621 = vadd.f32 0.0, %v6620
        %6622 = vmatprep.mubr.bf16.mxu0 0
        %6623 = vmatmul.mubr.bf16.gmra.mrb[0].mxu0 %v6291
        %v6624 = vpop.f32.mrb[0].mxu0
        %v6625 = vadd.f32 0.0, %v6624
        %v6626 = vpop.f32.mrb[0].mxu0
        %v6627 = vadd.f32 0.0, %v6626
        %v6628 = vpop.f32.mrb[0].mxu0
        %v6629 = vadd.f32 0.0, %v6628
        %v6630 = vpop.f32.mrb[0].mxu0
        %v6631 = vadd.f32 0.0, %v6630
        %6632 = vmatprep.mubr.bf16.mxu0 0
        %6633 = vmatmul.mubr.bf16.gmra.mrb[0].mxu0 %v6292
        %v6634 = vpop.f32.mrb[0].mxu0
        %v6635 = vadd.f32 0.0, %v6634
        %v6636 = vpop.f32.mrb[0].mxu0
        %v6637 = vadd.f32 0.0, %v6636
        %v6638 = vpop.f32.mrb[0].mxu0
        %v6639 = vadd.f32 0.0, %v6638
        %v6640 = vpop.f32.mrb[0].mxu0
        %v6641 = vadd.f32 0.0, %v6640
        %6642 = vmatprep.mubr.bf16.mxu0 0
        %6643 = vmatmul.mubr.bf16.gmra.mrb[0].mxu0 %v6293
        %v6644 = vpop.f32.mrb[0].mxu0
        %v6645 = vadd.f32 0.0, %v6644
        %v6646 = vpop.f32.mrb[0].mxu0
        %v6647 = vadd.f32 0.0, %v6646
        %v6648 = vpop.f32.mrb[0].mxu0
        %v6649 = vadd.f32 0.0, %v6648
        %v6650 = vpop.f32.mrb[0].mxu0
        %v6651 = vadd.f32 0.0, %v6650
        %6652 = vmatprep.mubr.bf16.mxu0 0
        %6653 = vmatmul.mubr.bf16.gmra.mrb[0].mxu0 %v6294
        %v6654 = vpop.f32.mrb[0].mxu0
        %v6655 = vadd.f32 0.0, %v6654
        %v6656 = vpop.f32.mrb[0].mxu0
        %v6657 = vadd.f32 0.0, %v6656
        %v6658 = vpop.f32.mrb[0].mxu0
        %v6659 = vadd.f32 0.0, %v6658
        %v6660 = vpop.f32.mrb[0].mxu0
        %v6661 = vadd.f32 0.0, %v6660
        %6662 = vmatprep.mubr.bf16.mxu0 0
        %6663 = vmatmul.mubr.bf16.gmra.mrb[0].mxu0 %v6295
        %v6664 = vpop.f32.mrb[0].mxu0
        %v6665 = vadd.f32 0.0, %v6664
        %v6666 = vpop.f32.mrb[0].mxu0
        %v6667 = vadd.f32 0.0, %v6666
        %v6668 = vpop.f32.mrb[0].mxu0
        %v6669 = vadd.f32 0.0, %v6668
        %v6670 = vpop.f32.mrb[0].mxu0
        %v6671 = vadd.f32 0.0, %v6670
        %6672 = vdwg.mxu0
        %v6673 = vadd.f32 %v5948, %v6435
        %v6674 = vadd.f32 %v5949, %v6437
        %v6675 = vadd.f32 %v5950, %v6439
        %v6676 = vadd.f32 %v5951, %v6441
        %v6677 = vadd.f32 %v5952, %v6445
        %v6678 = vadd.f32 %v5953, %v6447
        %v6679 = vadd.f32 %v5954, %v6449
        %v6680 = vadd.f32 %v5955, %v6451
        %v6681 = vadd.f32 %v5956, %v6455
        %v6682 = vadd.f32 %v5957, %v6457
        %v6683 = vadd.f32 %v5958, %v6459
        %v6684 = vadd.f32 %v5959, %v6461
        %v6685 = vadd.f32 %v5960, %v6465
        %v6686 = vadd.f32 %v5961, %v6467
        %v6687 = vadd.f32 %v5962, %v6469
        %v6688 = vadd.f32 %v5963, %v6471
        %v6689 = vadd.f32 %v5964, %v6475
        %v6690 = vadd.f32 %v5965, %v6477
        %v6691 = vadd.f32 %v5966, %v6479
        %v6692 = vadd.f32 %v5967, %v6481
        %v6693 = vadd.f32 %v5968, %v6485
        %v6694 = vadd.f32 %v5969, %v6487
        %v6695 = vadd.f32 %v5970, %v6489
        %v6696 = vadd.f32 %v5971, %v6491
        %v6697 = vadd.f32 %v5972, %v6495
        %v6698 = vadd.f32 %v5973, %v6497
        %v6699 = vadd.f32 %v5974, %v6499
        %v6700 = vadd.f32 %v5975, %v6501
        %v6701 = vadd.f32 %v5976, %v6505
        %v6702 = vadd.f32 %v5977, %v6507
        %v6703 = vadd.f32 %v5978, %v6509
        %v6704 = vadd.f32 %v5979, %v6511
        %v6705 = vadd.f32 %v5980, %v6515
        %v6706 = vadd.f32 %v5981, %v6517
        %v6707 = vadd.f32 %v5982, %v6519
        %v6708 = vadd.f32 %v5983, %v6521
        %v6709 = vadd.f32 %v5984, %v6525
        %v6710 = vadd.f32 %v5985, %v6527
        %v6711 = vadd.f32 %v5986, %v6529
        %v6712 = vadd.f32 %v5987, %v6531
        %v6713 = vadd.f32 %v5988, %v6535
        %v6714 = vadd.f32 %v5989, %v6537
        %v6715 = vadd.f32 %v5990, %v6539
        %v6716 = vadd.f32 %v5991, %v6541
        %v6717 = vadd.f32 %v5992, %v6545
        %v6718 = vadd.f32 %v5993, %v6547
        %v6719 = vadd.f32 %v5994, %v6549
        %v6720 = vadd.f32 %v5995, %v6551
        %v6721 = vadd.f32 %v5996, %v6555
        %v6722 = vadd.f32 %v5997, %v6557
        %v6723 = vadd.f32 %v5998, %v6559
        %v6724 = vadd.f32 %v5999, %v6561
        %v6725 = vadd.f32 %v6000, %v6565
        %v6726 = vadd.f32 %v6001, %v6567
        %v6727 = vadd.f32 %v6002, %v6569
        %v6728 = vadd.f32 %v6003, %v6571
        %v6729 = vadd.f32 %v6004, %v6575
        %v6730 = vadd.f32 %v6005, %v6577
        %v6731 = vadd.f32 %v6006, %v6579
        %v6732 = vadd.f32 %v6007, %v6581
        %v6733 = vadd.f32 %v6008, %v6585
        %v6734 = vadd.f32 %v6009, %v6587
        %v6735 = vadd.f32 %v6010, %v6589
        %v6736 = vadd.f32 %v6011, %v6591
        %v6737 = vadd.f32 %v6012, %v6595
        %v6738 = vadd.f32 %v6013, %v6597
        %v6739 = vadd.f32 %v6014, %v6599
        %v6740 = vadd.f32 %v6015, %v6601
        %v6741 = vadd.f32 %v6016, %v6605
        %v6742 = vadd.f32 %v6017, %v6607
        %v6743 = vadd.f32 %v6018, %v6609
        %v6744 = vadd.f32 %v6019, %v6611
        %v6745 = vadd.f32 %v6020, %v6615
        %v6746 = vadd.f32 %v6021, %v6617
        %v6747 = vadd.f32 %v6022, %v6619
        %v6748 = vadd.f32 %v6023, %v6621
        %v6749 = vadd.f32 %v6024, %v6625
        %v6750 = vadd.f32 %v6025, %v6627
        %v6751 = vadd.f32 %v6026, %v6629
        %v6752 = vadd.f32 %v6027, %v6631
        %v6753 = vadd.f32 %v6028, %v6635
        %v6754 = vadd.f32 %v6029, %v6637
        %v6755 = vadd.f32 %v6030, %v6639
        %v6756 = vadd.f32 %v6031, %v6641
        %v6757 = vadd.f32 %v6032, %v6645
        %v6758 = vadd.f32 %v6033, %v6647
        %v6759 = vadd.f32 %v6034, %v6649
        %v6760 = vadd.f32 %v6035, %v6651
        %v6761 = vadd.f32 %v6036, %v6655
        %v6762 = vadd.f32 %v6037, %v6657
        %v6763 = vadd.f32 %v6038, %v6659
        %v6764 = vadd.f32 %v6039, %v6661
        %v6765 = vadd.f32 %v6040, %v6665
        %v6766 = vadd.f32 %v6041, %v6667
        %v6767 = vadd.f32 %v6042, %v6669
        %v6768 = vadd.f32 %v6043, %v6671
        %vm6769 = vsmask.f32 1280
        %vm6770 = vsmask.f32 5392
        %vm6771 = vmor %vm6769, %vm6770
        %v6772 = vrot.slane %v3024, 6
        %v6773 = vrot.slane %v3027, 7
        %v6774 = vor.u32 %v6772, %v6773
        %v6775 = vrot.slane %v6774, 4
        %v6776 = vrot.slane %v3037, 6
        %v6777 = vrot.slane %v3033, 7
        %v6778 = vor.u32 %v6776, %v6777
        %v6779 = vsel %vm6771, %v6775, %v6778
        %v6780 = vrot.slane %v6778, 4
        %v6781 = vrot.slane %v3047, 6
        %v6782 = vrot.slane %v3043, 7
        %v6783 = vor.u32 %v6781, %v6782
        %v6784 = vsel %vm6771, %v6780, %v6783
        %v6785 = vrot.slane %v6783, 4
        %v6786 = vrot.slane %v5176, 6
        %v6787 = vrot.slane %v3053, 7
        %v6788 = vor.u32 %v6786, %v6787
        %v6789 = vsel %vm6771, %v6785, %v6788
        %v6790 = vrot.slane %v3058, 6
        %v6791 = vrot.slane %v3061, 7
        %v6792 = vor.u32 %v6790, %v6791
        %v6793 = vrot.slane %v6792, 4
        %v6794 = vrot.slane %v3071, 6
        %v6795 = vrot.slane %v3067, 7
        %v6796 = vor.u32 %v6794, %v6795
        %v6797 = vsel %vm6771, %v6793, %v6796
        %v6798 = vrot.slane %v6796, 4
        %v6799 = vrot.slane %v3081, 6
        %v6800 = vrot.slane %v3077, 7
        %v6801 = vor.u32 %v6799, %v6800
        %v6802 = vsel %vm6771, %v6798, %v6801
        %v6803 = vrot.slane %v6801, 4
        %v6804 = vrot.slane %v5196, 6
        %v6805 = vrot.slane %v3087, 7
        %v6806 = vor.u32 %v6804, %v6805
        %v6807 = vsel %vm6771, %v6803, %v6806
        %v6808 = vrot.slane %v3092, 6
        %v6809 = vrot.slane %v3095, 7
        %v6810 = vor.u32 %v6808, %v6809
        %v6811 = vrot.slane %v6810, 4
        %v6812 = vrot.slane %v3105, 6
        %v6813 = vrot.slane %v3101, 7
        %v6814 = vor.u32 %v6812, %v6813
        %v6815 = vsel %vm6771, %v6811, %v6814
        %v6816 = vrot.slane %v6814, 4
        %v6817 = vrot.slane %v3115, 6
        %v6818 = vrot.slane %v3111, 7
        %v6819 = vor.u32 %v6817, %v6818
        %v6820 = vsel %vm6771, %v6816, %v6819
        %v6821 = vrot.slane %v6819, 4
        %v6822 = vrot.slane %v5216, 6
        %v6823 = vrot.slane %v3121, 7
        %v6824 = vor.u32 %v6822, %v6823
        %v6825 = vsel %vm6771, %v6821, %v6824
        %v6826 = vrot.slane %v3126, 6
        %v6827 = vrot.slane %v3129, 7
        %v6828 = vor.u32 %v6826, %v6827
        %v6829 = vrot.slane %v6828, 4
        %v6830 = vrot.slane %v3139, 6
        %v6831 = vrot.slane %v3135, 7
        %v6832 = vor.u32 %v6830, %v6831
        %v6833 = vsel %vm6771, %v6829, %v6832
        %v6834 = vrot.slane %v6832, 4
        %v6835 = vrot.slane %v3149, 6
        %v6836 = vrot.slane %v3145, 7
        %v6837 = vor.u32 %v6835, %v6836
        %v6838 = vsel %vm6771, %v6834, %v6837
        %v6839 = vrot.slane %v6837, 4
        %v6840 = vrot.slane %v5236, 6
        %v6841 = vrot.slane %v3155, 7
        %v6842 = vor.u32 %v6840, %v6841
        %v6843 = vsel %vm6771, %v6839, %v6842
        %v6844 = vrot.slane %v3160, 6
        %v6845 = vrot.slane %v3163, 7
        %v6846 = vor.u32 %v6844, %v6845
        %v6847 = vrot.slane %v6846, 4
        %v6848 = vrot.slane %v3173, 6
        %v6849 = vrot.slane %v3169, 7
        %v6850 = vor.u32 %v6848, %v6849
        %v6851 = vsel %vm6771, %v6847, %v6850
        %v6852 = vrot.slane %v6850, 4
        %v6853 = vrot.slane %v3183, 6
        %v6854 = vrot.slane %v3179, 7
        %v6855 = vor.u32 %v6853, %v6854
        %v6856 = vsel %vm6771, %v6852, %v6855
        %v6857 = vrot.slane %v6855, 4
        %v6858 = vrot.slane %v5256, 6
        %v6859 = vrot.slane %v3189, 7
        %v6860 = vor.u32 %v6858, %v6859
        %v6861 = vsel %vm6771, %v6857, %v6860
        %v6862 = vrot.slane %v3194, 6
        %v6863 = vrot.slane %v3197, 7
        %v6864 = vor.u32 %v6862, %v6863
        %v6865 = vrot.slane %v6864, 4
        %v6866 = vrot.slane %v3207, 6
        %v6867 = vrot.slane %v3203, 7
        %v6868 = vor.u32 %v6866, %v6867
        %v6869 = vsel %vm6771, %v6865, %v6868
        %v6870 = vrot.slane %v6868, 4
        %v6871 = vrot.slane %v3217, 6
        %v6872 = vrot.slane %v3213, 7
        %v6873 = vor.u32 %v6871, %v6872
        %v6874 = vsel %vm6771, %v6870, %v6873
        %v6875 = vrot.slane %v6873, 4
        %v6876 = vrot.slane %v5276, 6
        %v6877 = vrot.slane %v3223, 7
        %v6878 = vor.u32 %v6876, %v6877
        %v6879 = vsel %vm6771, %v6875, %v6878
        %v6880 = vrot.slane %v3228, 6
        %v6881 = vrot.slane %v3231, 7
        %v6882 = vor.u32 %v6880, %v6881
        %v6883 = vrot.slane %v6882, 4
        %v6884 = vrot.slane %v3241, 6
        %v6885 = vrot.slane %v3237, 7
        %v6886 = vor.u32 %v6884, %v6885
        %v6887 = vsel %vm6771, %v6883, %v6886
        %v6888 = vrot.slane %v6886, 4
        %v6889 = vrot.slane %v3251, 6
        %v6890 = vrot.slane %v3247, 7
        %v6891 = vor.u32 %v6889, %v6890
        %v6892 = vsel %vm6771, %v6888, %v6891
        %v6893 = vrot.slane %v6891, 4
        %v6894 = vrot.slane %v5296, 6
        %v6895 = vrot.slane %v3257, 7
        %v6896 = vor.u32 %v6894, %v6895
        %v6897 = vsel %vm6771, %v6893, %v6896
        %v6898 = vrot.slane %v3262, 6
        %v6899 = vrot.slane %v3265, 7
        %v6900 = vor.u32 %v6898, %v6899
        %v6901 = vrot.slane %v6900, 4
        %v6902 = vrot.slane %v3275, 6
        %v6903 = vrot.slane %v3271, 7
        %v6904 = vor.u32 %v6902, %v6903
        %v6905 = vsel %vm6771, %v6901, %v6904
        %v6906 = vrot.slane %v6904, 4
        %v6907 = vrot.slane %v3285, 6
        %v6908 = vrot.slane %v3281, 7
        %v6909 = vor.u32 %v6907, %v6908
        %v6910 = vsel %vm6771, %v6906, %v6909
        %v6911 = vrot.slane %v6909, 4
        %v6912 = vrot.slane %v5316, 6
        %v6913 = vrot.slane %v3291, 7
        %v6914 = vor.u32 %v6912, %v6913
        %v6915 = vsel %vm6771, %v6911, %v6914
        %v6916 = vrot.slane %v3296, 6
        %v6917 = vrot.slane %v3299, 7
        %v6918 = vor.u32 %v6916, %v6917
        %v6919 = vrot.slane %v6918, 4
        %v6920 = vrot.slane %v3309, 6
        %v6921 = vrot.slane %v3305, 7
        %v6922 = vor.u32 %v6920, %v6921
        %v6923 = vsel %vm6771, %v6919, %v6922
        %v6924 = vrot.slane %v6922, 4
        %v6925 = vrot.slane %v3319, 6
        %v6926 = vrot.slane %v3315, 7
        %v6927 = vor.u32 %v6925, %v6926
        %v6928 = vsel %vm6771, %v6924, %v6927
        %v6929 = vrot.slane %v6927, 4
        %v6930 = vrot.slane %v5336, 6
        %v6931 = vrot.slane %v3325, 7
        %v6932 = vor.u32 %v6930, %v6931
        %v6933 = vsel %vm6771, %v6929, %v6932
        %v6934 = vrot.slane %v3330, 6
        %v6935 = vrot.slane %v3333, 7
        %v6936 = vor.u32 %v6934, %v6935
        %v6937 = vrot.slane %v6936, 4
        %v6938 = vrot.slane %v3343, 6
        %v6939 = vrot.slane %v3339, 7
        %v6940 = vor.u32 %v6938, %v6939
        %v6941 = vsel %vm6771, %v6937, %v6940
        %v6942 = vrot.slane %v6940, 4
        %v6943 = vrot.slane %v3353, 6
        %v6944 = vrot.slane %v3349, 7
        %v6945 = vor.u32 %v6943, %v6944
        %v6946 = vsel %vm6771, %v6942, %v6945
        %v6947 = vrot.slane %v6945, 4
        %v6948 = vrot.slane %v5356, 6
        %v6949 = vrot.slane %v3359, 7
        %v6950 = vor.u32 %v6948, %v6949
        %v6951 = vsel %vm6771, %v6947, %v6950
        %v6952 = vrot.slane %v3364, 6
        %v6953 = vrot.slane %v3367, 7
        %v6954 = vor.u32 %v6952, %v6953
        %v6955 = vrot.slane %v6954, 4
        %v6956 = vrot.slane %v3377, 6
        %v6957 = vrot.slane %v3373, 7
        %v6958 = vor.u32 %v6956, %v6957
        %v6959 = vsel %vm6771, %v6955, %v6958
        %v6960 = vrot.slane %v6958, 4
        %v6961 = vrot.slane %v3387, 6
        %v6962 = vrot.slane %v3383, 7
        %v6963 = vor.u32 %v6961, %v6962
        %v6964 = vsel %vm6771, %v6960, %v6963
        %v6965 = vrot.slane %v6963, 4
        %v6966 = vrot.slane %v5376, 6
        %v6967 = vrot.slane %v3393, 7
        %v6968 = vor.u32 %v6966, %v6967
        %v6969 = vsel %vm6771, %v6965, %v6968
        %v6970 = vrot.slane %v3398, 6
        %v6971 = vrot.slane %v3401, 7
        %v6972 = vor.u32 %v6970, %v6971
        %v6973 = vrot.slane %v6972, 4
        %v6974 = vrot.slane %v3411, 6
        %v6975 = vrot.slane %v3407, 7
        %v6976 = vor.u32 %v6974, %v6975
        %v6977 = vsel %vm6771, %v6973, %v6976
        %v6978 = vrot.slane %v6976, 4
        %v6979 = vrot.slane %v3421, 6
        %v6980 = vrot.slane %v3417, 7
        %v6981 = vor.u32 %v6979, %v6980
        %v6982 = vsel %vm6771, %v6978, %v6981
        %v6983 = vrot.slane %v6981, 4
        %v6984 = vrot.slane %v5396, 6
        %v6985 = vrot.slane %v3427, 7
        %v6986 = vor.u32 %v6984, %v6985
        %v6987 = vsel %vm6771, %v6983, %v6986
        %v6988 = vrot.slane %v3432, 6
        %v6989 = vrot.slane %v3435, 7
        %v6990 = vor.u32 %v6988, %v6989
        %v6991 = vrot.slane %v6990, 4
        %v6992 = vrot.slane %v3445, 6
        %v6993 = vrot.slane %v3441, 7
        %v6994 = vor.u32 %v6992, %v6993
        %v6995 = vsel %vm6771, %v6991, %v6994
        %v6996 = vrot.slane %v6994, 4
        %v6997 = vrot.slane %v3455, 6
        %v6998 = vrot.slane %v3451, 7
        %v6999 = vor.u32 %v6997, %v6998
        %v7000 = vsel %vm6771, %v6996, %v6999
        %v7001 = vrot.slane %v6999, 4
        %v7002 = vrot.slane %v5416, 6
        %v7003 = vrot.slane %v3461, 7
        %v7004 = vor.u32 %v7002, %v7003
        %v7005 = vsel %vm6771, %v7001, %v7004
        %v7006 = vrot.slane %v3466, 6
        %v7007 = vrot.slane %v3469, 7
        %v7008 = vor.u32 %v7006, %v7007
        %v7009 = vrot.slane %v7008, 4
        %v7010 = vrot.slane %v3479, 6
        %v7011 = vrot.slane %v3475, 7
        %v7012 = vor.u32 %v7010, %v7011
        %v7013 = vsel %vm6771, %v7009, %v7012
        %v7014 = vrot.slane %v7012, 4
        %v7015 = vrot.slane %v3489, 6
        %v7016 = vrot.slane %v3485, 7
        %v7017 = vor.u32 %v7015, %v7016
        %v7018 = vsel %vm6771, %v7014, %v7017
        %v7019 = vrot.slane %v7017, 4
        %v7020 = vrot.slane %v5436, 6
        %v7021 = vrot.slane %v3495, 7
        %v7022 = vor.u32 %v7020, %v7021
        %v7023 = vsel %vm6771, %v7019, %v7022
        %v7024 = vrot.slane %v3500, 6
        %v7025 = vrot.slane %v3503, 7
        %v7026 = vor.u32 %v7024, %v7025
        %v7027 = vrot.slane %v7026, 4
        %v7028 = vrot.slane %v3513, 6
        %v7029 = vrot.slane %v3509, 7
        %v7030 = vor.u32 %v7028, %v7029
        %v7031 = vsel %vm6771, %v7027, %v7030
        %v7032 = vrot.slane %v7030, 4
        %v7033 = vrot.slane %v3523, 6
        %v7034 = vrot.slane %v3519, 7
        %v7035 = vor.u32 %v7033, %v7034
        %v7036 = vsel %vm6771, %v7032, %v7035
        %v7037 = vrot.slane %v7035, 4
        %v7038 = vrot.slane %v5456, 6
        %v7039 = vrot.slane %v3529, 7
        %v7040 = vor.u32 %v7038, %v7039
        %v7041 = vsel %vm6771, %v7037, %v7040
        %v7042 = vrot.slane %v3534, 6
        %v7043 = vrot.slane %v3537, 7
        %v7044 = vor.u32 %v7042, %v7043
        %v7045 = vrot.slane %v7044, 4
        %v7046 = vrot.slane %v3547, 6
        %v7047 = vrot.slane %v3543, 7
        %v7048 = vor.u32 %v7046, %v7047
        %v7049 = vsel %vm6771, %v7045, %v7048
        %v7050 = vrot.slane %v7048, 4
        %v7051 = vrot.slane %v3557, 6
        %v7052 = vrot.slane %v3553, 7
        %v7053 = vor.u32 %v7051, %v7052
        %v7054 = vsel %vm6771, %v7050, %v7053
        %v7055 = vrot.slane %v7053, 4
        %v7056 = vrot.slane %v5476, 6
        %v7057 = vrot.slane %v3563, 7
        %v7058 = vor.u32 %v7056, %v7057
        %v7059 = vsel %vm6771, %v7055, %v7058
        %s7060 = scalar_lea.vmem [#allocation10], 640
        %v7061 = vld [vmem:[%s7060] sm:$0xff]
        %v7062 = vld [vmem:[%s7060 + $0x8] sm:$0xff]
        %v7063 = vld [vmem:[%s7060 + $0x10] sm:$0xff]
        %v7064 = vld [vmem:[%s7060 + $0x18] sm:$0xff]
        %v7065 = vld [vmem:[%s7060 + $0x20] sm:$0xff]
        %v7066 = vld [vmem:[%s7060 + $0x28] sm:$0xff]
        %v7067 = vld [vmem:[%s7060 + $0x30] sm:$0xff]
        %v7068 = vld [vmem:[%s7060 + $0x38] sm:$0xff]
        %v7069 = vld [vmem:[%s7060 + $0x40] sm:$0xff]
        %v7070 = vld [vmem:[%s7060 + $0x48] sm:$0xff]
        %v7071 = vld [vmem:[%s7060 + $0x50] sm:$0xff]
        %v7072 = vld [vmem:[%s7060 + $0x58] sm:$0xff]
        %v7073 = vld [vmem:[%s7060 + $0x60] sm:$0xff]
        %v7074 = vld [vmem:[%s7060 + $0x68] sm:$0xff]
        %v7075 = vld [vmem:[%s7060 + $0x70] sm:$0xff]
        %v7076 = vld [vmem:[%s7060 + $0x78] sm:$0xff]
        %v7077 = vunpack.c.l.b16 %v6779
        %v7078 = vunpack.c.l.b16 %v6784
        %v7079 = vunpack.c.l.b16 %v6789
        %v7080 = vunpack.c.l.b16 %v6797
        %v7081 = vunpack.c.l.b16 %v6802
        %v7082 = vunpack.c.l.b16 %v6807
        %v7083 = vunpack.c.l.b16 %v6815
        %v7084 = vunpack.c.l.b16 %v6820
        %v7085 = vunpack.c.l.b16 %v6825
        %v7086 = vunpack.c.l.b16 %v6833
        %v7087 = vunpack.c.l.b16 %v6838
        %v7088 = vunpack.c.l.b16 %v6843
        %v7089 = vunpack.c.l.b16 %v6851
        %v7090 = vunpack.c.l.b16 %v6856
        %v7091 = vunpack.c.l.b16 %v6861
        %v7092 = vunpack.c.l.b16 %v6869
        %v7093 = vunpack.c.l.b16 %v6874
        %v7094 = vunpack.c.l.b16 %v6879
        %v7095 = vunpack.c.l.b16 %v6887
        %v7096 = vunpack.c.l.b16 %v6892
        %v7097 = vunpack.c.l.b16 %v6897
        %v7098 = vunpack.c.l.b16 %v6905
        %v7099 = vunpack.c.l.b16 %v6910
        %v7100 = vunpack.c.l.b16 %v6915
        %v7101 = vunpack.c.l.b16 %v6923
        %v7102 = vunpack.c.l.b16 %v6928
        %v7103 = vunpack.c.l.b16 %v6933
        %v7104 = vunpack.c.l.b16 %v6941
        %v7105 = vunpack.c.l.b16 %v6946
        %v7106 = vunpack.c.l.b16 %v6951
        %v7107 = vunpack.c.l.b16 %v6959
        %v7108 = vunpack.c.l.b16 %v6964
        %v7109 = vunpack.c.l.b16 %v6969
        %v7110 = vunpack.c.l.b16 %v6977
        %v7111 = vunpack.c.l.b16 %v6982
        %v7112 = vunpack.c.l.b16 %v6987
        %v7113 = vunpack.c.l.b16 %v6995
        %v7114 = vunpack.c.l.b16 %v7000
        %v7115 = vunpack.c.l.b16 %v7005
        %v7116 = vunpack.c.l.b16 %v7013
        %v7117 = vunpack.c.l.b16 %v7018
        %v7118 = vunpack.c.l.b16 %v7023
        %v7119 = vunpack.c.l.b16 %v7031
        %v7120 = vunpack.c.l.b16 %v7036
        %v7121 = vunpack.c.l.b16 %v7041
        %v7122 = vunpack.c.l.b16 %v7049
        %v7123 = vunpack.c.l.b16 %v7054
        %v7124 = vunpack.c.l.b16 %v7059
        %v7125 = vpack.c.b16 %v7078, %v7077
        %v7126 = vpack.c.b16 %v7080, %v7079
        %v7127 = vpack.c.b16 %v7082, %v7081
        %v7128 = vpack.c.b16 %v7084, %v7083
        %v7129 = vpack.c.b16 %v7086, %v7085
        %v7130 = vpack.c.b16 %v7088, %v7087
        %v7131 = vpack.c.b16 %v7090, %v7089
        %v7132 = vpack.c.b16 %v7092, %v7091
        %v7133 = vpack.c.b16 %v7094, %v7093
        %v7134 = vpack.c.b16 %v7096, %v7095
        %v7135 = vpack.c.b16 %v7098, %v7097
        %v7136 = vpack.c.b16 %v7100, %v7099
        %v7137 = vpack.c.b16 %v7102, %v7101
        %v7138 = vpack.c.b16 %v7104, %v7103
        %v7139 = vpack.c.b16 %v7106, %v7105
        %v7140 = vpack.c.b16 %v7108, %v7107
        %v7141 = vpack.c.b16 %v7110, %v7109
        %v7142 = vpack.c.b16 %v7112, %v7111
        %v7143 = vpack.c.b16 %v7114, %v7113
        %v7144 = vpack.c.b16 %v7116, %v7115
        %v7145 = vpack.c.b16 %v7118, %v7117
        %v7146 = vpack.c.b16 %v7120, %v7119
        %v7147 = vpack.c.b16 %v7122, %v7121
        %v7148 = vpack.c.b16 %v7124, %v7123
        %v7189 = vunpack.c.l.b16 %v7061
        %v7190 = vunpack.c.h.b16 %v7061
        %v7191 = vunpack.c.l.b16 %v7062
        %v7192 = vunpack.c.h.b16 %v7062
        %v7193 = vunpack.c.l.b16 %v7063
        %v7194 = vunpack.c.h.b16 %v7063
        %v7195 = vunpack.c.l.b16 %v7064
        %v7196 = vunpack.c.h.b16 %v7064
        %v7197 = vunpack.c.l.b16 %v7065
        %v7198 = vunpack.c.h.b16 %v7065
        %v7199 = vunpack.c.l.b16 %v7066
        %v7200 = vunpack.c.h.b16 %v7066
        %v7201 = vunpack.c.l.b16 %v7067
        %v7202 = vunpack.c.h.b16 %v7067
        %v7203 = vunpack.c.l.b16 %v7068
        %v7204 = vunpack.c.h.b16 %v7068
        %v7205 = vunpack.c.l.b16 %v7069
        %v7206 = vunpack.c.h.b16 %v7069
        %v7207 = vunpack.c.l.b16 %v7070
        %v7208 = vunpack.c.h.b16 %v7070
        %v7209 = vunpack.c.l.b16 %v7071
        %v7210 = vunpack.c.h.b16 %v7071
        %v7211 = vunpack.c.l.b16 %v7072
        %v7212 = vunpack.c.h.b16 %v7072
        %v7213 = vunpack.c.l.b16 %v7073
        %v7214 = vunpack.c.h.b16 %v7073
        %v7215 = vunpack.c.l.b16 %v7074
        %v7216 = vunpack.c.h.b16 %v7074
        %v7217 = vunpack.c.l.b16 %v7075
        %v7218 = vunpack.c.h.b16 %v7075
        %v7219 = vunpack.c.l.b16 %v7076
        %v7220 = vunpack.c.h.b16 %v7076
        %v7221 = vpack.c.b16 %v7191, %v7189
        %v7222 = vpack.c.b16 %v7192, %v7190
        %v7223 = vpack.c.b16 %v7195, %v7193
        %v7224 = vpack.c.b16 %v7196, %v7194
        %v7225 = vpack.c.b16 %v7199, %v7197
        %v7226 = vpack.c.b16 %v7200, %v7198
        %v7227 = vpack.c.b16 %v7203, %v7201
        %v7228 = vpack.c.b16 %v7204, %v7202
        %v7229 = vpack.c.b16 %v7207, %v7205
        %v7230 = vpack.c.b16 %v7208, %v7206
        %v7231 = vpack.c.b16 %v7211, %v7209
        %v7232 = vpack.c.b16 %v7212, %v7210
        %v7233 = vpack.c.b16 %v7215, %v7213
        %v7234 = vpack.c.b16 %v7216, %v7214
        %v7235 = vpack.c.b16 %v7219, %v7217
        %v7236 = vpack.c.b16 %v7220, %v7218
        %7253 = vmatprep.subr.bf16.mxu0 %v7222
        %7254 = vmatpush1.bf16.msra.mxu0 %v7221
        %7255 = vmatprep.subr.bf16.mxu0 %v7224
        %7256 = vmatpush1.bf16.msra.mxu0 %v7223
        %7257 = vmatprep.subr.bf16.mxu0 %v7226
        %7258 = vmatpush1.bf16.msra.mxu0 %v7225
        %7259 = vmatprep.subr.bf16.mxu0 %v7228
        %7260 = vmatpush1.bf16.msra.mxu0 %v7227
        %7261 = vmatprep.subr.bf16.mxu0 %v7230
        %7262 = vmatpush1.bf16.msra.mxu0 %v7229
        %7263 = vmatprep.subr.bf16.mxu0 %v7232
        %7264 = vmatpush1.bf16.msra.mxu0 %v7231
        %7265 = vmatprep.subr.bf16.mxu0 %v7234
        %7266 = vmatpush1.bf16.msra.mxu0 %v7233
        %7267 = vmatprep.subr.bf16.mxu0 %v7236
        %7268 = vmatpush1.bf16.msra.mxu0 %v7235
        %7269 = vmatprep.subr.bf16.mxu0 0
        %7270 = vmatpush1.bf16.msra.mxu0 0
        %7271 = vmatprep.subr.bf16.mxu0 0
        %7272 = vmatpush1.bf16.msra.mxu0 0
        %7273 = vmatprep.subr.bf16.mxu0 0
        %7274 = vmatpush1.bf16.msra.mxu0 0
        %7275 = vmatprep.subr.bf16.mxu0 0
        %7276 = vmatpush1.bf16.msra.mxu0 0
        %7277 = vmatprep.subr.bf16.mxu0 0
        %7278 = vmatpush1.bf16.msra.mxu0 0
        %7279 = vmatprep.subr.bf16.mxu0 0
        %7280 = vmatpush1.bf16.msra.mxu0 0
        %7281 = vmatprep.subr.bf16.mxu0 0
        %7282 = vmatpush1.bf16.msra.mxu0 0
        %7283 = vmatprep.subr.bf16.mxu0 0
        %7284 = vmatpush1.bf16.msra.mxu0 0
        %7285 = vmatprep.mubr.bf16.mxu0 0
        %7286 = vmatmul.mubr.bf16.gmra.mrb[0].mxu0 %v7125
        %v7287 = vpop.f32.mrb[0].mxu0
        %v7288 = vadd.f32 0.0, %v7287
        %v7289 = vpop.f32.mrb[0].mxu0
        %v7290 = vadd.f32 0.0, %v7289
        %v7291 = vpop.f32.mrb[0].mxu0
        %v7292 = vadd.f32 0.0, %v7291
        %v7293 = vpop.f32.mrb[0].mxu0
        %v7294 = vadd.f32 0.0, %v7293
        %7295 = vmatprep.mubr.bf16.mxu0 0
        %7296 = vmatmul.mubr.bf16.gmra.mrb[0].mxu0 %v7126
        %v7297 = vpop.f32.mrb[0].mxu0
        %v7298 = vadd.f32 0.0, %v7297
        %v7299 = vpop.f32.mrb[0].mxu0
        %v7300 = vadd.f32 0.0, %v7299
        %v7301 = vpop.f32.mrb[0].mxu0
        %v7302 = vadd.f32 0.0, %v7301
        %v7303 = vpop.f32.mrb[0].mxu0
        %v7304 = vadd.f32 0.0, %v7303
        %7305 = vmatprep.mubr.bf16.mxu0 0
        %7306 = vmatmul.mubr.bf16.gmra.mrb[0].mxu0 %v7127
        %v7307 = vpop.f32.mrb[0].mxu0
        %v7308 = vadd.f32 0.0, %v7307
        %v7309 = vpop.f32.mrb[0].mxu0
        %v7310 = vadd.f32 0.0, %v7309
        %v7311 = vpop.f32.mrb[0].mxu0
        %v7312 = vadd.f32 0.0, %v7311
        %v7313 = vpop.f32.mrb[0].mxu0
        %v7314 = vadd.f32 0.0, %v7313
        %7315 = vmatprep.mubr.bf16.mxu0 0
        %7316 = vmatmul.mubr.bf16.gmra.mrb[0].mxu0 %v7128
        %v7317 = vpop.f32.mrb[0].mxu0
        %v7318 = vadd.f32 0.0, %v7317
        %v7319 = vpop.f32.mrb[0].mxu0
        %v7320 = vadd.f32 0.0, %v7319
        %v7321 = vpop.f32.mrb[0].mxu0
        %v7322 = vadd.f32 0.0, %v7321
        %v7323 = vpop.f32.mrb[0].mxu0
        %v7324 = vadd.f32 0.0, %v7323
        %7325 = vmatprep.mubr.bf16.mxu0 0
        %7326 = vmatmul.mubr.bf16.gmra.mrb[0].mxu0 %v7129
        %v7327 = vpop.f32.mrb[0].mxu0
        %v7328 = vadd.f32 0.0, %v7327
        %v7329 = vpop.f32.mrb[0].mxu0
        %v7330 = vadd.f32 0.0, %v7329
        %v7331 = vpop.f32.mrb[0].mxu0
        %v7332 = vadd.f32 0.0, %v7331
        %v7333 = vpop.f32.mrb[0].mxu0
        %v7334 = vadd.f32 0.0, %v7333
        %7335 = vmatprep.mubr.bf16.mxu0 0
        %7336 = vmatmul.mubr.bf16.gmra.mrb[0].mxu0 %v7130
        %v7337 = vpop.f32.mrb[0].mxu0
        %v7338 = vadd.f32 0.0, %v7337
        %v7339 = vpop.f32.mrb[0].mxu0
        %v7340 = vadd.f32 0.0, %v7339
        %v7341 = vpop.f32.mrb[0].mxu0
        %v7342 = vadd.f32 0.0, %v7341
        %v7343 = vpop.f32.mrb[0].mxu0
        %v7344 = vadd.f32 0.0, %v7343
        %7345 = vmatprep.mubr.bf16.mxu0 0
        %7346 = vmatmul.mubr.bf16.gmra.mrb[0].mxu0 %v7131
        %v7347 = vpop.f32.mrb[0].mxu0
        %v7348 = vadd.f32 0.0, %v7347
        %v7349 = vpop.f32.mrb[0].mxu0
        %v7350 = vadd.f32 0.0, %v7349
        %v7351 = vpop.f32.mrb[0].mxu0
        %v7352 = vadd.f32 0.0, %v7351
        %v7353 = vpop.f32.mrb[0].mxu0
        %v7354 = vadd.f32 0.0, %v7353
        %7355 = vmatprep.mubr.bf16.mxu0 0
        %7356 = vmatmul.mubr.bf16.gmra.mrb[0].mxu0 %v7132
        %v7357 = vpop.f32.mrb[0].mxu0
        %v7358 = vadd.f32 0.0, %v7357
        %v7359 = vpop.f32.mrb[0].mxu0
        %v7360 = vadd.f32 0.0, %v7359
        %v7361 = vpop.f32.mrb[0].mxu0
        %v7362 = vadd.f32 0.0, %v7361
        %v7363 = vpop.f32.mrb[0].mxu0
        %v7364 = vadd.f32 0.0, %v7363
        %7365 = vmatprep.mubr.bf16.mxu0 0
        %7366 = vmatmul.mubr.bf16.gmra.mrb[0].mxu0 %v7133
        %v7367 = vpop.f32.mrb[0].mxu0
        %v7368 = vadd.f32 0.0, %v7367
        %v7369 = vpop.f32.mrb[0].mxu0
        %v7370 = vadd.f32 0.0, %v7369
        %v7371 = vpop.f32.mrb[0].mxu0
        %v7372 = vadd.f32 0.0, %v7371
        %v7373 = vpop.f32.mrb[0].mxu0
        %v7374 = vadd.f32 0.0, %v7373
        %7375 = vmatprep.mubr.bf16.mxu0 0
        %7376 = vmatmul.mubr.bf16.gmra.mrb[0].mxu0 %v7134
        %v7377 = vpop.f32.mrb[0].mxu0
        %v7378 = vadd.f32 0.0, %v7377
        %v7379 = vpop.f32.mrb[0].mxu0
        %v7380 = vadd.f32 0.0, %v7379
        %v7381 = vpop.f32.mrb[0].mxu0
        %v7382 = vadd.f32 0.0, %v7381
        %v7383 = vpop.f32.mrb[0].mxu0
        %v7384 = vadd.f32 0.0, %v7383
        %7385 = vmatprep.mubr.bf16.mxu0 0
        %7386 = vmatmul.mubr.bf16.gmra.mrb[0].mxu0 %v7135
        %v7387 = vpop.f32.mrb[0].mxu0
        %v7388 = vadd.f32 0.0, %v7387
        %v7389 = vpop.f32.mrb[0].mxu0
        %v7390 = vadd.f32 0.0, %v7389
        %v7391 = vpop.f32.mrb[0].mxu0
        %v7392 = vadd.f32 0.0, %v7391
        %v7393 = vpop.f32.mrb[0].mxu0
        %v7394 = vadd.f32 0.0, %v7393
        %7395 = vmatprep.mubr.bf16.mxu0 0
        %7396 = vmatmul.mubr.bf16.gmra.mrb[0].mxu0 %v7136
        %v7397 = vpop.f32.mrb[0].mxu0
        %v7398 = vadd.f32 0.0, %v7397
        %v7399 = vpop.f32.mrb[0].mxu0
        %v7400 = vadd.f32 0.0, %v7399
        %v7401 = vpop.f32.mrb[0].mxu0
        %v7402 = vadd.f32 0.0, %v7401
        %v7403 = vpop.f32.mrb[0].mxu0
        %v7404 = vadd.f32 0.0, %v7403
        %7405 = vmatprep.mubr.bf16.mxu0 0
        %7406 = vmatmul.mubr.bf16.gmra.mrb[0].mxu0 %v7137
        %v7407 = vpop.f32.mrb[0].mxu0
        %v7408 = vadd.f32 0.0, %v7407
        %v7409 = vpop.f32.mrb[0].mxu0
        %v7410 = vadd.f32 0.0, %v7409
        %v7411 = vpop.f32.mrb[0].mxu0
        %v7412 = vadd.f32 0.0, %v7411
        %v7413 = vpop.f32.mrb[0].mxu0
        %v7414 = vadd.f32 0.0, %v7413
        %7415 = vmatprep.mubr.bf16.mxu0 0
        %7416 = vmatmul.mubr.bf16.gmra.mrb[0].mxu0 %v7138
        %v7417 = vpop.f32.mrb[0].mxu0
        %v7418 = vadd.f32 0.0, %v7417
        %v7419 = vpop.f32.mrb[0].mxu0
        %v7420 = vadd.f32 0.0, %v7419
        %v7421 = vpop.f32.mrb[0].mxu0
        %v7422 = vadd.f32 0.0, %v7421
        %v7423 = vpop.f32.mrb[0].mxu0
        %v7424 = vadd.f32 0.0, %v7423
        %7425 = vmatprep.mubr.bf16.mxu0 0
        %7426 = vmatmul.mubr.bf16.gmra.mrb[0].mxu0 %v7139
        %v7427 = vpop.f32.mrb[0].mxu0
        %v7428 = vadd.f32 0.0, %v7427
        %v7429 = vpop.f32.mrb[0].mxu0
        %v7430 = vadd.f32 0.0, %v7429
        %v7431 = vpop.f32.mrb[0].mxu0
        %v7432 = vadd.f32 0.0, %v7431
        %v7433 = vpop.f32.mrb[0].mxu0
        %v7434 = vadd.f32 0.0, %v7433
        %7435 = vmatprep.mubr.bf16.mxu0 0
        %7436 = vmatmul.mubr.bf16.gmra.mrb[0].mxu0 %v7140
        %v7437 = vpop.f32.mrb[0].mxu0
        %v7438 = vadd.f32 0.0, %v7437
        %v7439 = vpop.f32.mrb[0].mxu0
        %v7440 = vadd.f32 0.0, %v7439
        %v7441 = vpop.f32.mrb[0].mxu0
        %v7442 = vadd.f32 0.0, %v7441
        %v7443 = vpop.f32.mrb[0].mxu0
        %v7444 = vadd.f32 0.0, %v7443
        %7445 = vmatprep.mubr.bf16.mxu0 0
        %7446 = vmatmul.mubr.bf16.gmra.mrb[0].mxu0 %v7141
        %v7447 = vpop.f32.mrb[0].mxu0
        %v7448 = vadd.f32 0.0, %v7447
        %v7449 = vpop.f32.mrb[0].mxu0
        %v7450 = vadd.f32 0.0, %v7449
        %v7451 = vpop.f32.mrb[0].mxu0
        %v7452 = vadd.f32 0.0, %v7451
        %v7453 = vpop.f32.mrb[0].mxu0
        %v7454 = vadd.f32 0.0, %v7453
        %7455 = vmatprep.mubr.bf16.mxu0 0
        %7456 = vmatmul.mubr.bf16.gmra.mrb[0].mxu0 %v7142
        %v7457 = vpop.f32.mrb[0].mxu0
        %v7458 = vadd.f32 0.0, %v7457
        %v7459 = vpop.f32.mrb[0].mxu0
        %v7460 = vadd.f32 0.0, %v7459
        %v7461 = vpop.f32.mrb[0].mxu0
        %v7462 = vadd.f32 0.0, %v7461
        %v7463 = vpop.f32.mrb[0].mxu0
        %v7464 = vadd.f32 0.0, %v7463
        %7465 = vmatprep.mubr.bf16.mxu0 0
        %7466 = vmatmul.mubr.bf16.gmra.mrb[0].mxu0 %v7143
        %v7467 = vpop.f32.mrb[0].mxu0
        %v7468 = vadd.f32 0.0, %v7467
        %v7469 = vpop.f32.mrb[0].mxu0
        %v7470 = vadd.f32 0.0, %v7469
        %v7471 = vpop.f32.mrb[0].mxu0
        %v7472 = vadd.f32 0.0, %v7471
        %v7473 = vpop.f32.mrb[0].mxu0
        %v7474 = vadd.f32 0.0, %v7473
        %7475 = vmatprep.mubr.bf16.mxu0 0
        %7476 = vmatmul.mubr.bf16.gmra.mrb[0].mxu0 %v7144
        %v7477 = vpop.f32.mrb[0].mxu0
        %v7478 = vadd.f32 0.0, %v7477
        %v7479 = vpop.f32.mrb[0].mxu0
        %v7480 = vadd.f32 0.0, %v7479
        %v7481 = vpop.f32.mrb[0].mxu0
        %v7482 = vadd.f32 0.0, %v7481
        %v7483 = vpop.f32.mrb[0].mxu0
        %v7484 = vadd.f32 0.0, %v7483
        %7485 = vmatprep.mubr.bf16.mxu0 0
        %7486 = vmatmul.mubr.bf16.gmra.mrb[0].mxu0 %v7145
        %v7487 = vpop.f32.mrb[0].mxu0
        %v7488 = vadd.f32 0.0, %v7487
        %v7489 = vpop.f32.mrb[0].mxu0
        %v7490 = vadd.f32 0.0, %v7489
        %v7491 = vpop.f32.mrb[0].mxu0
        %v7492 = vadd.f32 0.0, %v7491
        %v7493 = vpop.f32.mrb[0].mxu0
        %v7494 = vadd.f32 0.0, %v7493
        %7495 = vmatprep.mubr.bf16.mxu0 0
        %7496 = vmatmul.mubr.bf16.gmra.mrb[0].mxu0 %v7146
        %v7497 = vpop.f32.mrb[0].mxu0
        %v7498 = vadd.f32 0.0, %v7497
        %v7499 = vpop.f32.mrb[0].mxu0
        %v7500 = vadd.f32 0.0, %v7499
        %v7501 = vpop.f32.mrb[0].mxu0
        %v7502 = vadd.f32 0.0, %v7501
        %v7503 = vpop.f32.mrb[0].mxu0
        %v7504 = vadd.f32 0.0, %v7503
        %7505 = vmatprep.mubr.bf16.mxu0 0
        %7506 = vmatmul.mubr.bf16.gmra.mrb[0].mxu0 %v7147
        %v7507 = vpop.f32.mrb[0].mxu0
        %v7508 = vadd.f32 0.0, %v7507
        %v7509 = vpop.f32.mrb[0].mxu0
        %v7510 = vadd.f32 0.0, %v7509
        %v7511 = vpop.f32.mrb[0].mxu0
        %v7512 = vadd.f32 0.0, %v7511
        %v7513 = vpop.f32.mrb[0].mxu0
        %v7514 = vadd.f32 0.0, %v7513
        %7515 = vmatprep.mubr.bf16.mxu0 0
        %7516 = vmatmul.mubr.bf16.gmra.mrb[0].mxu0 %v7148
        %v7517 = vpop.f32.mrb[0].mxu0
        %v7518 = vadd.f32 0.0, %v7517
        %v7519 = vpop.f32.mrb[0].mxu0
        %v7520 = vadd.f32 0.0, %v7519
        %v7521 = vpop.f32.mrb[0].mxu0
        %v7522 = vadd.f32 0.0, %v7521
        %v7523 = vpop.f32.mrb[0].mxu0
        %v7524 = vadd.f32 0.0, %v7523
        %7525 = vdwg.mxu0
        %v7526 = vadd.f32 %v6673, %v7288
        %v7527 = vadd.f32 %v6674, %v7290
        %v7528 = vadd.f32 %v6675, %v7292
        %v7529 = vadd.f32 %v6676, %v7294
        %v7530 = vadd.f32 %v6677, %v7298
        %v7531 = vadd.f32 %v6678, %v7300
        %v7532 = vadd.f32 %v6679, %v7302
        %v7533 = vadd.f32 %v6680, %v7304
        %v7534 = vadd.f32 %v6681, %v7308
        %v7535 = vadd.f32 %v6682, %v7310
        %v7536 = vadd.f32 %v6683, %v7312
        %v7537 = vadd.f32 %v6684, %v7314
        %v7538 = vadd.f32 %v6685, %v7318
        %v7539 = vadd.f32 %v6686, %v7320
        %v7540 = vadd.f32 %v6687, %v7322
        %v7541 = vadd.f32 %v6688, %v7324
        %v7542 = vadd.f32 %v6689, %v7328
        %v7543 = vadd.f32 %v6690, %v7330
        %v7544 = vadd.f32 %v6691, %v7332
        %v7545 = vadd.f32 %v6692, %v7334
        %v7546 = vadd.f32 %v6693, %v7338
        %v7547 = vadd.f32 %v6694, %v7340
        %v7548 = vadd.f32 %v6695, %v7342
        %v7549 = vadd.f32 %v6696, %v7344
        %v7550 = vadd.f32 %v6697, %v7348
        %v7551 = vadd.f32 %v6698, %v7350
        %v7552 = vadd.f32 %v6699, %v7352
        %v7553 = vadd.f32 %v6700, %v7354
        %v7554 = vadd.f32 %v6701, %v7358
        %v7555 = vadd.f32 %v6702, %v7360
        %v7556 = vadd.f32 %v6703, %v7362
        %v7557 = vadd.f32 %v6704, %v7364
        %v7558 = vadd.f32 %v6705, %v7368
        %v7559 = vadd.f32 %v6706, %v7370
        %v7560 = vadd.f32 %v6707, %v7372
        %v7561 = vadd.f32 %v6708, %v7374
        %v7562 = vadd.f32 %v6709, %v7378
        %v7563 = vadd.f32 %v6710, %v7380
        %v7564 = vadd.f32 %v6711, %v7382
        %v7565 = vadd.f32 %v6712, %v7384
        %v7566 = vadd.f32 %v6713, %v7388
        %v7567 = vadd.f32 %v6714, %v7390
        %v7568 = vadd.f32 %v6715, %v7392
        %v7569 = vadd.f32 %v6716, %v7394
        %v7570 = vadd.f32 %v6717, %v7398
        %v7571 = vadd.f32 %v6718, %v7400
        %v7572 = vadd.f32 %v6719, %v7402
        %v7573 = vadd.f32 %v6720, %v7404
        %v7574 = vadd.f32 %v6721, %v7408
        %v7575 = vadd.f32 %v6722, %v7410
        %v7576 = vadd.f32 %v6723, %v7412
        %v7577 = vadd.f32 %v6724, %v7414
        %v7578 = vadd.f32 %v6725, %v7418
        %v7579 = vadd.f32 %v6726, %v7420
        %v7580 = vadd.f32 %v6727, %v7422
        %v7581 = vadd.f32 %v6728, %v7424
        %v7582 = vadd.f32 %v6729, %v7428
        %v7583 = vadd.f32 %v6730, %v7430
        %v7584 = vadd.f32 %v6731, %v7432
        %v7585 = vadd.f32 %v6732, %v7434
        %v7586 = vadd.f32 %v6733, %v7438
        %v7587 = vadd.f32 %v6734, %v7440
        %v7588 = vadd.f32 %v6735, %v7442
        %v7589 = vadd.f32 %v6736, %v7444
        %v7590 = vadd.f32 %v6737, %v7448
        %v7591 = vadd.f32 %v6738, %v7450
        %v7592 = vadd.f32 %v6739, %v7452
        %v7593 = vadd.f32 %v6740, %v7454
        %v7594 = vadd.f32 %v6741, %v7458
        %v7595 = vadd.f32 %v6742, %v7460
        %v7596 = vadd.f32 %v6743, %v7462
        %v7597 = vadd.f32 %v6744, %v7464
        %v7598 = vadd.f32 %v6745, %v7468
        %v7599 = vadd.f32 %v6746, %v7470
        %v7600 = vadd.f32 %v6747, %v7472
        %v7601 = vadd.f32 %v6748, %v7474
        %v7602 = vadd.f32 %v6749, %v7478
        %v7603 = vadd.f32 %v6750, %v7480
        %v7604 = vadd.f32 %v6751, %v7482
        %v7605 = vadd.f32 %v6752, %v7484
        %v7606 = vadd.f32 %v6753, %v7488
        %v7607 = vadd.f32 %v6754, %v7490
        %v7608 = vadd.f32 %v6755, %v7492
        %v7609 = vadd.f32 %v6756, %v7494
        %v7610 = vadd.f32 %v6757, %v7498
        %v7611 = vadd.f32 %v6758, %v7500
        %v7612 = vadd.f32 %v6759, %v7502
        %v7613 = vadd.f32 %v6760, %v7504
        %v7614 = vadd.f32 %v6761, %v7508
        %v7615 = vadd.f32 %v6762, %v7510
        %v7616 = vadd.f32 %v6763, %v7512
        %v7617 = vadd.f32 %v6764, %v7514
        %v7618 = vadd.f32 %v6765, %v7518
        %v7619 = vadd.f32 %v6766, %v7520
        %v7620 = vadd.f32 %v6767, %v7522
        %v7621 = vadd.f32 %v6768, %v7524
        %vm7622 = vcmask 1040384
        %vm7623 = vcmask 1044484
        %vm7624 = vmor %vm7622, %vm7623
        %v7625 = vrot.slane %v2956, 7
        %v7626 = vrot.slane %v7625, 4
        %v7627 = vrot.slane %v2957, 7
        %v7628 = vsel %vm7624, %v7626, %v7627
        %v7629 = vrot.slane %v7627, 4
        %v7630 = vrot.slane %v2958, 7
        %v7631 = vsel %vm7624, %v7629, %v7630
        %v7632 = vrot.slane %v7630, 4
        %v7633 = vrot.slane %v2959, 7
        %v7634 = vsel %vm7624, %v7632, %v7633
        %v7635 = vrot.slane %v2960, 7
        %v7636 = vrot.slane %v7635, 4
        %v7637 = vrot.slane %v2961, 7
        %v7638 = vsel %vm7624, %v7636, %v7637
        %v7639 = vrot.slane %v7637, 4
        %v7640 = vrot.slane %v2962, 7
        %v7641 = vsel %vm7624, %v7639, %v7640
        %v7642 = vrot.slane %v7640, 4
        %v7643 = vrot.slane %v2963, 7
        %v7644 = vsel %vm7624, %v7642, %v7643
        %v7645 = vrot.slane %v2964, 7
        %v7646 = vrot.slane %v7645, 4
        %v7647 = vrot.slane %v2965, 7
        %v7648 = vsel %vm7624, %v7646, %v7647
        %v7649 = vrot.slane %v7647, 4
        %v7650 = vrot.slane %v2966, 7
        %v7651 = vsel %vm7624, %v7649, %v7650
        %v7652 = vrot.slane %v7650, 4
        %v7653 = vrot.slane %v2967, 7
        %v7654 = vsel %vm7624, %v7652, %v7653
        %v7655 = vrot.slane %v2968, 7
        %v7656 = vrot.slane %v7655, 4
        %v7657 = vrot.slane %v2969, 7
        %v7658 = vsel %vm7624, %v7656, %v7657
        %v7659 = vrot.slane %v7657, 4
        %v7660 = vrot.slane %v2970, 7
        %v7661 = vsel %vm7624, %v7659, %v7660
        %v7662 = vrot.slane %v7660, 4
        %v7663 = vrot.slane %v2971, 7
        %v7664 = vsel %vm7624, %v7662, %v7663
        %v7665 = vrot.slane %v2972, 7
        %v7666 = vrot.slane %v7665, 4
        %v7667 = vrot.slane %v2973, 7
        %v7668 = vsel %vm7624, %v7666, %v7667
        %v7669 = vrot.slane %v7667, 4
        %v7670 = vrot.slane %v2974, 7
        %v7671 = vsel %vm7624, %v7669, %v7670
        %v7672 = vrot.slane %v7670, 4
        %v7673 = vrot.slane %v2975, 7
        %v7674 = vsel %vm7624, %v7672, %v7673
        %v7675 = vrot.slane %v2976, 7
        %v7676 = vrot.slane %v7675, 4
        %v7677 = vrot.slane %v2977, 7
        %v7678 = vsel %vm7624, %v7676, %v7677
        %v7679 = vrot.slane %v7677, 4
        %v7680 = vrot.slane %v2978, 7
        %v7681 = vsel %vm7624, %v7679, %v7680
        %v7682 = vrot.slane %v7680, 4
        %v7683 = vrot.slane %v2979, 7
        %v7684 = vsel %vm7624, %v7682, %v7683
        %v7685 = vrot.slane %v2980, 7
        %v7686 = vrot.slane %v7685, 4
        %v7687 = vrot.slane %v2981, 7
        %v7688 = vsel %vm7624, %v7686, %v7687
        %v7689 = vrot.slane %v7687, 4
        %v7690 = vrot.slane %v2982, 7
        %v7691 = vsel %vm7624, %v7689, %v7690
        %v7692 = vrot.slane %v7690, 4
        %v7693 = vrot.slane %v2983, 7
        %v7694 = vsel %vm7624, %v7692, %v7693
        %v7695 = vrot.slane %v2984, 7
        %v7696 = vrot.slane %v7695, 4
        %v7697 = vrot.slane %v2985, 7
        %v7698 = vsel %vm7624, %v7696, %v7697
        %v7699 = vrot.slane %v7697, 4
        %v7700 = vrot.slane %v2986, 7
        %v7701 = vsel %vm7624, %v7699, %v7700
        %v7702 = vrot.slane %v7700, 4
        %v7703 = vrot.slane %v2987, 7
        %v7704 = vsel %vm7624, %v7702, %v7703
        %v7705 = vrot.slane %v2988, 7
        %v7706 = vrot.slane %v7705, 4
        %v7707 = vrot.slane %v2989, 7
        %v7708 = vsel %vm7624, %v7706, %v7707
        %v7709 = vrot.slane %v7707, 4
        %v7710 = vrot.slane %v2990, 7
        %v7711 = vsel %vm7624, %v7709, %v7710
        %v7712 = vrot.slane %v7710, 4
        %v7713 = vrot.slane %v2991, 7
        %v7714 = vsel %vm7624, %v7712, %v7713
        %v7715 = vrot.slane %v2992, 7
        %v7716 = vrot.slane %v7715, 4
        %v7717 = vrot.slane %v2993, 7
        %v7718 = vsel %vm7624, %v7716, %v7717
        %v7719 = vrot.slane %v7717, 4
        %v7720 = vrot.slane %v2994, 7
        %v7721 = vsel %vm7624, %v7719, %v7720
        %v7722 = vrot.slane %v7720, 4
        %v7723 = vrot.slane %v2995, 7
        %v7724 = vsel %vm7624, %v7722, %v7723
        %v7725 = vrot.slane %v2996, 7
        %v7726 = vrot.slane %v7725, 4
        %v7727 = vrot.slane %v2997, 7
        %v7728 = vsel %vm7624, %v7726, %v7727
        %v7729 = vrot.slane %v7727, 4
        %v7730 = vrot.slane %v2998, 7
        %v7731 = vsel %vm7624, %v7729, %v7730
        %v7732 = vrot.slane %v7730, 4
        %v7733 = vrot.slane %v2999, 7
        %v7734 = vsel %vm7624, %v7732, %v7733
        %v7735 = vrot.slane %v3000, 7
        %v7736 = vrot.slane %v7735, 4
        %v7737 = vrot.slane %v3001, 7
        %v7738 = vsel %vm7624, %v7736, %v7737
        %v7739 = vrot.slane %v7737, 4
        %v7740 = vrot.slane %v3002, 7
        %v7741 = vsel %vm7624, %v7739, %v7740
        %v7742 = vrot.slane %v7740, 4
        %v7743 = vrot.slane %v3003, 7
        %v7744 = vsel %vm7624, %v7742, %v7743
        %v7745 = vrot.slane %v3004, 7
        %v7746 = vrot.slane %v7745, 4
        %v7747 = vrot.slane %v3005, 7
        %v7748 = vsel %vm7624, %v7746, %v7747
        %v7749 = vrot.slane %v7747, 4
        %v7750 = vrot.slane %v3006, 7
        %v7751 = vsel %vm7624, %v7749, %v7750
        %v7752 = vrot.slane %v7750, 4
        %v7753 = vrot.slane %v3007, 7
        %v7754 = vsel %vm7624, %v7752, %v7753
        %v7755 = vrot.slane %v3008, 7
        %v7756 = vrot.slane %v7755, 4
        %v7757 = vrot.slane %v3009, 7
        %v7758 = vsel %vm7624, %v7756, %v7757
        %v7759 = vrot.slane %v7757, 4
        %v7760 = vrot.slane %v3010, 7
        %v7761 = vsel %vm7624, %v7759, %v7760
        %v7762 = vrot.slane %v7760, 4
        %v7763 = vrot.slane %v3011, 7
        %v7764 = vsel %vm7624, %v7762, %v7763
        %v7765 = vrot.slane %v3012, 7
        %v7766 = vrot.slane %v7765, 4
        %v7767 = vrot.slane %v3013, 7
        %v7768 = vsel %vm7624, %v7766, %v7767
        %v7769 = vrot.slane %v7767, 4
        %v7770 = vrot.slane %v3014, 7
        %v7771 = vsel %vm7624, %v7769, %v7770
        %v7772 = vrot.slane %v7770, 4
        %v7773 = vrot.slane %v3015, 7
        %v7774 = vsel %vm7624, %v7772, %v7773
        %v7775 = vrot.slane %v3016, 7
        %v7776 = vrot.slane %v7775, 4
        %v7777 = vrot.slane %v3017, 7
        %v7778 = vsel %vm7624, %v7776, %v7777
        %v7779 = vrot.slane %v7777, 4
        %v7780 = vrot.slane %v3018, 7
        %v7781 = vsel %vm7624, %v7779, %v7780
        %v7782 = vrot.slane %v7780, 4
        %v7783 = vrot.slane %v3019, 7
        %v7784 = vsel %vm7624, %v7782, %v7783
        %s7785 = scalar_lea.vmem [#allocation10], 768
        %v7786 = vld [vmem:[%s7785] sm:$0xff]
        %v7787 = vld [vmem:[%s7785 + $0x8] sm:$0xff]
        %v7788 = vld [vmem:[%s7785 + $0x10] sm:$0xff]
        %v7789 = vld [vmem:[%s7785 + $0x18] sm:$0xff]
        %v7790 = vld [vmem:[%s7785 + $0x20] sm:$0xff]
        %v7791 = vld [vmem:[%s7785 + $0x28] sm:$0xff]
        %v7792 = vld [vmem:[%s7785 + $0x30] sm:$0xff]
        %v7793 = vld [vmem:[%s7785 + $0x38] sm:$0xff]
        %v7794 = vld [vmem:[%s7785 + $0x40] sm:$0xff]
        %v7795 = vld [vmem:[%s7785 + $0x48] sm:$0xff]
        %v7796 = vld [vmem:[%s7785 + $0x50] sm:$0xff]
        %v7797 = vld [vmem:[%s7785 + $0x58] sm:$0xff]
        %v7798 = vld [vmem:[%s7785 + $0x60] sm:$0xff]
        %v7799 = vld [vmem:[%s7785 + $0x68] sm:$0xff]
        %v7800 = vld [vmem:[%s7785 + $0x70] sm:$0xff]
        %v7801 = vld [vmem:[%s7785 + $0x78] sm:$0xff]
        %v7802 = vunpack.c.l.b16 %v7628
        %v7803 = vunpack.c.l.b16 %v7631
        %v7804 = vunpack.c.l.b16 %v7634
        %v7805 = vunpack.c.l.b16 %v7638
        %v7806 = vunpack.c.l.b16 %v7641
        %v7807 = vunpack.c.l.b16 %v7644
        %v7808 = vunpack.c.l.b16 %v7648
        %v7809 = vunpack.c.l.b16 %v7651
        %v7810 = vunpack.c.l.b16 %v7654
        %v7811 = vunpack.c.l.b16 %v7658
        %v7812 = vunpack.c.l.b16 %v7661
        %v7813 = vunpack.c.l.b16 %v7664
        %v7814 = vunpack.c.l.b16 %v7668
        %v7815 = vunpack.c.l.b16 %v7671
        %v7816 = vunpack.c.l.b16 %v7674
        %v7817 = vunpack.c.l.b16 %v7678
        %v7818 = vunpack.c.l.b16 %v7681
        %v7819 = vunpack.c.l.b16 %v7684
        %v7820 = vunpack.c.l.b16 %v7688
        %v7821 = vunpack.c.l.b16 %v7691
        %v7822 = vunpack.c.l.b16 %v7694
        %v7823 = vunpack.c.l.b16 %v7698
        %v7824 = vunpack.c.l.b16 %v7701
        %v7825 = vunpack.c.l.b16 %v7704
        %v7826 = vunpack.c.l.b16 %v7708
        %v7827 = vunpack.c.l.b16 %v7711
        %v7828 = vunpack.c.l.b16 %v7714
        %v7829 = vunpack.c.l.b16 %v7718
        %v7830 = vunpack.c.l.b16 %v7721
        %v7831 = vunpack.c.l.b16 %v7724
        %v7832 = vunpack.c.l.b16 %v7728
        %v7833 = vunpack.c.l.b16 %v7731
        %v7834 = vunpack.c.l.b16 %v7734
        %v7835 = vunpack.c.l.b16 %v7738
        %v7836 = vunpack.c.l.b16 %v7741
        %v7837 = vunpack.c.l.b16 %v7744
        %v7838 = vunpack.c.l.b16 %v7748
        %v7839 = vunpack.c.l.b16 %v7751
        %v7840 = vunpack.c.l.b16 %v7754
        %v7841 = vunpack.c.l.b16 %v7758
        %v7842 = vunpack.c.l.b16 %v7761
        %v7843 = vunpack.c.l.b16 %v7764
        %v7844 = vunpack.c.l.b16 %v7768
        %v7845 = vunpack.c.l.b16 %v7771
        %v7846 = vunpack.c.l.b16 %v7774
        %v7847 = vunpack.c.l.b16 %v7778
        %v7848 = vunpack.c.l.b16 %v7781
        %v7849 = vunpack.c.l.b16 %v7784
        %v7850 = vpack.c.b16 %v7803, %v7802
        %v7851 = vpack.c.b16 %v7805, %v7804
        %v7852 = vpack.c.b16 %v7807, %v7806
        %v7853 = vpack.c.b16 %v7809, %v7808
        %v7854 = vpack.c.b16 %v7811, %v7810
        %v7855 = vpack.c.b16 %v7813, %v7812
        %v7856 = vpack.c.b16 %v7815, %v7814
        %v7857 = vpack.c.b16 %v7817, %v7816
        %v7858 = vpack.c.b16 %v7819, %v7818
        %v7859 = vpack.c.b16 %v7821, %v7820
        %v7860 = vpack.c.b16 %v7823, %v7822
        %v7861 = vpack.c.b16 %v7825, %v7824
        %v7862 = vpack.c.b16 %v7827, %v7826
        %v7863 = vpack.c.b16 %v7829, %v7828
        %v7864 = vpack.c.b16 %v7831, %v7830
        %v7865 = vpack.c.b16 %v7833, %v7832
        %v7866 = vpack.c.b16 %v7835, %v7834
        %v7867 = vpack.c.b16 %v7837, %v7836
        %v7868 = vpack.c.b16 %v7839, %v7838
        %v7869 = vpack.c.b16 %v7841, %v7840
        %v7870 = vpack.c.b16 %v7843, %v7842
        %v7871 = vpack.c.b16 %v7845, %v7844
        %v7872 = vpack.c.b16 %v7847, %v7846
        %v7873 = vpack.c.b16 %v7849, %v7848
        %v7914 = vunpack.c.l.b16 %v7786
        %v7915 = vunpack.c.h.b16 %v7786
        %v7916 = vunpack.c.l.b16 %v7787
        %v7917 = vunpack.c.h.b16 %v7787
        %v7918 = vunpack.c.l.b16 %v7788
        %v7919 = vunpack.c.h.b16 %v7788
        %v7920 = vunpack.c.l.b16 %v7789
        %v7921 = vunpack.c.h.b16 %v7789
        %v7922 = vunpack.c.l.b16 %v7790
        %v7923 = vunpack.c.h.b16 %v7790
        %v7924 = vunpack.c.l.b16 %v7791
        %v7925 = vunpack.c.h.b16 %v7791
        %v7926 = vunpack.c.l.b16 %v7792
        %v7927 = vunpack.c.h.b16 %v7792
        %v7928 = vunpack.c.l.b16 %v7793
        %v7929 = vunpack.c.h.b16 %v7793
        %v7930 = vunpack.c.l.b16 %v7794
        %v7931 = vunpack.c.h.b16 %v7794
        %v7932 = vunpack.c.l.b16 %v7795
        %v7933 = vunpack.c.h.b16 %v7795
        %v7934 = vunpack.c.l.b16 %v7796
        %v7935 = vunpack.c.h.b16 %v7796
        %v7936 = vunpack.c.l.b16 %v7797
        %v7937 = vunpack.c.h.b16 %v7797
        %v7938 = vunpack.c.l.b16 %v7798
        %v7939 = vunpack.c.h.b16 %v7798
        %v7940 = vunpack.c.l.b16 %v7799
        %v7941 = vunpack.c.h.b16 %v7799
        %v7942 = vunpack.c.l.b16 %v7800
        %v7943 = vunpack.c.h.b16 %v7800
        %v7944 = vunpack.c.l.b16 %v7801
        %v7945 = vunpack.c.h.b16 %v7801
        %v7946 = vpack.c.b16 %v7916, %v7914
        %v7947 = vpack.c.b16 %v7917, %v7915
        %v7948 = vpack.c.b16 %v7920, %v7918
        %v7949 = vpack.c.b16 %v7921, %v7919
        %v7950 = vpack.c.b16 %v7924, %v7922
        %v7951 = vpack.c.b16 %v7925, %v7923
        %v7952 = vpack.c.b16 %v7928, %v7926
        %v7953 = vpack.c.b16 %v7929, %v7927
        %v7954 = vpack.c.b16 %v7932, %v7930
        %v7955 = vpack.c.b16 %v7933, %v7931
        %v7956 = vpack.c.b16 %v7936, %v7934
        %v7957 = vpack.c.b16 %v7937, %v7935
        %v7958 = vpack.c.b16 %v7940, %v7938
        %v7959 = vpack.c.b16 %v7941, %v7939
        %v7960 = vpack.c.b16 %v7944, %v7942
        %v7961 = vpack.c.b16 %v7945, %v7943
        %7978 = vmatprep.subr.bf16.mxu0 %v7947
        %7979 = vmatpush1.bf16.msra.mxu0 %v7946
        %7980 = vmatprep.subr.bf16.mxu0 %v7949
        %7981 = vmatpush1.bf16.msra.mxu0 %v7948
        %7982 = vmatprep.subr.bf16.mxu0 %v7951
        %7983 = vmatpush1.bf16.msra.mxu0 %v7950
        %7984 = vmatprep.subr.bf16.mxu0 %v7953
        %7985 = vmatpush1.bf16.msra.mxu0 %v7952
        %7986 = vmatprep.subr.bf16.mxu0 %v7955
        %7987 = vmatpush1.bf16.msra.mxu0 %v7954
        %7988 = vmatprep.subr.bf16.mxu0 %v7957
        %7989 = vmatpush1.bf16.msra.mxu0 %v7956
        %7990 = vmatprep.subr.bf16.mxu0 %v7959
        %7991 = vmatpush1.bf16.msra.mxu0 %v7958
        %7992 = vmatprep.subr.bf16.mxu0 %v7961
        %7993 = vmatpush1.bf16.msra.mxu0 %v7960
        %7994 = vmatprep.subr.bf16.mxu0 0
        %7995 = vmatpush1.bf16.msra.mxu0 0
        %7996 = vmatprep.subr.bf16.mxu0 0
        %7997 = vmatpush1.bf16.msra.mxu0 0
        %7998 = vmatprep.subr.bf16.mxu0 0
        %7999 = vmatpush1.bf16.msra.mxu0 0
        %8000 = vmatprep.subr.bf16.mxu0 0
        %8001 = vmatpush1.bf16.msra.mxu0 0
        %8002 = vmatprep.subr.bf16.mxu0 0
        %8003 = vmatpush1.bf16.msra.mxu0 0
        %8004 = vmatprep.subr.bf16.mxu0 0
        %8005 = vmatpush1.bf16.msra.mxu0 0
        %8006 = vmatprep.subr.bf16.mxu0 0
        %8007 = vmatpush1.bf16.msra.mxu0 0
        %8008 = vmatprep.subr.bf16.mxu0 0
        %8009 = vmatpush1.bf16.msra.mxu0 0
        %8010 = vmatprep.mubr.bf16.mxu0 0
        %8011 = vmatmul.mubr.bf16.gmra.mrb[0].mxu0 %v7850
        %v8012 = vpop.f32.mrb[0].mxu0
        %v8013 = vadd.f32 0.0, %v8012
        %v8014 = vpop.f32.mrb[0].mxu0
        %v8015 = vadd.f32 0.0, %v8014
        %v8016 = vpop.f32.mrb[0].mxu0
        %v8017 = vadd.f32 0.0, %v8016
        %v8018 = vpop.f32.mrb[0].mxu0
        %v8019 = vadd.f32 0.0, %v8018
        %8020 = vmatprep.mubr.bf16.mxu0 0
        %8021 = vmatmul.mubr.bf16.gmra.mrb[0].mxu0 %v7851
        %v8022 = vpop.f32.mrb[0].mxu0
        %v8023 = vadd.f32 0.0, %v8022
        %v8024 = vpop.f32.mrb[0].mxu0
        %v8025 = vadd.f32 0.0, %v8024
        %v8026 = vpop.f32.mrb[0].mxu0
        %v8027 = vadd.f32 0.0, %v8026
        %v8028 = vpop.f32.mrb[0].mxu0
        %v8029 = vadd.f32 0.0, %v8028
        %8030 = vmatprep.mubr.bf16.mxu0 0
        %8031 = vmatmul.mubr.bf16.gmra.mrb[0].mxu0 %v7852
        %v8032 = vpop.f32.mrb[0].mxu0
        %v8033 = vadd.f32 0.0, %v8032
        %v8034 = vpop.f32.mrb[0].mxu0
        %v8035 = vadd.f32 0.0, %v8034
        %v8036 = vpop.f32.mrb[0].mxu0
        %v8037 = vadd.f32 0.0, %v8036
        %v8038 = vpop.f32.mrb[0].mxu0
        %v8039 = vadd.f32 0.0, %v8038
        %8040 = vmatprep.mubr.bf16.mxu0 0
        %8041 = vmatmul.mubr.bf16.gmra.mrb[0].mxu0 %v7853
        %v8042 = vpop.f32.mrb[0].mxu0
        %v8043 = vadd.f32 0.0, %v8042
        %v8044 = vpop.f32.mrb[0].mxu0
        %v8045 = vadd.f32 0.0, %v8044
        %v8046 = vpop.f32.mrb[0].mxu0
        %v8047 = vadd.f32 0.0, %v8046
        %v8048 = vpop.f32.mrb[0].mxu0
        %v8049 = vadd.f32 0.0, %v8048
        %8050 = vmatprep.mubr.bf16.mxu0 0
        %8051 = vmatmul.mubr.bf16.gmra.mrb[0].mxu0 %v7854
        %v8052 = vpop.f32.mrb[0].mxu0
        %v8053 = vadd.f32 0.0, %v8052
        %v8054 = vpop.f32.mrb[0].mxu0
        %v8055 = vadd.f32 0.0, %v8054
        %v8056 = vpop.f32.mrb[0].mxu0
        %v8057 = vadd.f32 0.0, %v8056
        %v8058 = vpop.f32.mrb[0].mxu0
        %v8059 = vadd.f32 0.0, %v8058
        %8060 = vmatprep.mubr.bf16.mxu0 0
        %8061 = vmatmul.mubr.bf16.gmra.mrb[0].mxu0 %v7855
        %v8062 = vpop.f32.mrb[0].mxu0
        %v8063 = vadd.f32 0.0, %v8062
        %v8064 = vpop.f32.mrb[0].mxu0
        %v8065 = vadd.f32 0.0, %v8064
        %v8066 = vpop.f32.mrb[0].mxu0
        %v8067 = vadd.f32 0.0, %v8066
        %v8068 = vpop.f32.mrb[0].mxu0
        %v8069 = vadd.f32 0.0, %v8068
        %8070 = vmatprep.mubr.bf16.mxu0 0
        %8071 = vmatmul.mubr.bf16.gmra.mrb[0].mxu0 %v7856
        %v8072 = vpop.f32.mrb[0].mxu0
        %v8073 = vadd.f32 0.0, %v8072
        %v8074 = vpop.f32.mrb[0].mxu0
        %v8075 = vadd.f32 0.0, %v8074
        %v8076 = vpop.f32.mrb[0].mxu0
        %v8077 = vadd.f32 0.0, %v8076
        %v8078 = vpop.f32.mrb[0].mxu0
        %v8079 = vadd.f32 0.0, %v8078
        %8080 = vmatprep.mubr.bf16.mxu0 0
        %8081 = vmatmul.mubr.bf16.gmra.mrb[0].mxu0 %v7857
        %v8082 = vpop.f32.mrb[0].mxu0
        %v8083 = vadd.f32 0.0, %v8082
        %v8084 = vpop.f32.mrb[0].mxu0
        %v8085 = vadd.f32 0.0, %v8084
        %v8086 = vpop.f32.mrb[0].mxu0
        %v8087 = vadd.f32 0.0, %v8086
        %v8088 = vpop.f32.mrb[0].mxu0
        %v8089 = vadd.f32 0.0, %v8088
        %8090 = vmatprep.mubr.bf16.mxu0 0
        %8091 = vmatmul.mubr.bf16.gmra.mrb[0].mxu0 %v7858
        %v8092 = vpop.f32.mrb[0].mxu0
        %v8093 = vadd.f32 0.0, %v8092
        %v8094 = vpop.f32.mrb[0].mxu0
        %v8095 = vadd.f32 0.0, %v8094
        %v8096 = vpop.f32.mrb[0].mxu0
        %v8097 = vadd.f32 0.0, %v8096
        %v8098 = vpop.f32.mrb[0].mxu0
        %v8099 = vadd.f32 0.0, %v8098
        %8100 = vmatprep.mubr.bf16.mxu0 0
        %8101 = vmatmul.mubr.bf16.gmra.mrb[0].mxu0 %v7859
        %v8102 = vpop.f32.mrb[0].mxu0
        %v8103 = vadd.f32 0.0, %v8102
        %v8104 = vpop.f32.mrb[0].mxu0
        %v8105 = vadd.f32 0.0, %v8104
        %v8106 = vpop.f32.mrb[0].mxu0
        %v8107 = vadd.f32 0.0, %v8106
        %v8108 = vpop.f32.mrb[0].mxu0
        %v8109 = vadd.f32 0.0, %v8108
        %8110 = vmatprep.mubr.bf16.mxu0 0
        %8111 = vmatmul.mubr.bf16.gmra.mrb[0].mxu0 %v7860
        %v8112 = vpop.f32.mrb[0].mxu0
        %v8113 = vadd.f32 0.0, %v8112
        %v8114 = vpop.f32.mrb[0].mxu0
        %v8115 = vadd.f32 0.0, %v8114
        %v8116 = vpop.f32.mrb[0].mxu0
        %v8117 = vadd.f32 0.0, %v8116
        %v8118 = vpop.f32.mrb[0].mxu0
        %v8119 = vadd.f32 0.0, %v8118
        %8120 = vmatprep.mubr.bf16.mxu0 0
        %8121 = vmatmul.mubr.bf16.gmra.mrb[0].mxu0 %v7861
        %v8122 = vpop.f32.mrb[0].mxu0
        %v8123 = vadd.f32 0.0, %v8122
        %v8124 = vpop.f32.mrb[0].mxu0
        %v8125 = vadd.f32 0.0, %v8124
        %v8126 = vpop.f32.mrb[0].mxu0
        %v8127 = vadd.f32 0.0, %v8126
        %v8128 = vpop.f32.mrb[0].mxu0
        %v8129 = vadd.f32 0.0, %v8128
        %8130 = vmatprep.mubr.bf16.mxu0 0
        %8131 = vmatmul.mubr.bf16.gmra.mrb[0].mxu0 %v7862
        %v8132 = vpop.f32.mrb[0].mxu0
        %v8133 = vadd.f32 0.0, %v8132
        %v8134 = vpop.f32.mrb[0].mxu0
        %v8135 = vadd.f32 0.0, %v8134
        %v8136 = vpop.f32.mrb[0].mxu0
        %v8137 = vadd.f32 0.0, %v8136
        %v8138 = vpop.f32.mrb[0].mxu0
        %v8139 = vadd.f32 0.0, %v8138
        %8140 = vmatprep.mubr.bf16.mxu0 0
        %8141 = vmatmul.mubr.bf16.gmra.mrb[0].mxu0 %v7863
        %v8142 = vpop.f32.mrb[0].mxu0
        %v8143 = vadd.f32 0.0, %v8142
        %v8144 = vpop.f32.mrb[0].mxu0
        %v8145 = vadd.f32 0.0, %v8144
        %v8146 = vpop.f32.mrb[0].mxu0
        %v8147 = vadd.f32 0.0, %v8146
        %v8148 = vpop.f32.mrb[0].mxu0
        %v8149 = vadd.f32 0.0, %v8148
        %8150 = vmatprep.mubr.bf16.mxu0 0
        %8151 = vmatmul.mubr.bf16.gmra.mrb[0].mxu0 %v7864
        %v8152 = vpop.f32.mrb[0].mxu0
        %v8153 = vadd.f32 0.0, %v8152
        %v8154 = vpop.f32.mrb[0].mxu0
        %v8155 = vadd.f32 0.0, %v8154
        %v8156 = vpop.f32.mrb[0].mxu0
        %v8157 = vadd.f32 0.0, %v8156
        %v8158 = vpop.f32.mrb[0].mxu0
        %v8159 = vadd.f32 0.0, %v8158
        %8160 = vmatprep.mubr.bf16.mxu0 0
        %8161 = vmatmul.mubr.bf16.gmra.mrb[0].mxu0 %v7865
        %v8162 = vpop.f32.mrb[0].mxu0
        %v8163 = vadd.f32 0.0, %v8162
        %v8164 = vpop.f32.mrb[0].mxu0
        %v8165 = vadd.f32 0.0, %v8164
        %v8166 = vpop.f32.mrb[0].mxu0
        %v8167 = vadd.f32 0.0, %v8166
        %v8168 = vpop.f32.mrb[0].mxu0
        %v8169 = vadd.f32 0.0, %v8168
        %8170 = vmatprep.mubr.bf16.mxu0 0
        %8171 = vmatmul.mubr.bf16.gmra.mrb[0].mxu0 %v7866
        %v8172 = vpop.f32.mrb[0].mxu0
        %v8173 = vadd.f32 0.0, %v8172
        %v8174 = vpop.f32.mrb[0].mxu0
        %v8175 = vadd.f32 0.0, %v8174
        %v8176 = vpop.f32.mrb[0].mxu0
        %v8177 = vadd.f32 0.0, %v8176
        %v8178 = vpop.f32.mrb[0].mxu0
        %v8179 = vadd.f32 0.0, %v8178
        %8180 = vmatprep.mubr.bf16.mxu0 0
        %8181 = vmatmul.mubr.bf16.gmra.mrb[0].mxu0 %v7867
        %v8182 = vpop.f32.mrb[0].mxu0
        %v8183 = vadd.f32 0.0, %v8182
        %v8184 = vpop.f32.mrb[0].mxu0
        %v8185 = vadd.f32 0.0, %v8184
        %v8186 = vpop.f32.mrb[0].mxu0
        %v8187 = vadd.f32 0.0, %v8186
        %v8188 = vpop.f32.mrb[0].mxu0
        %v8189 = vadd.f32 0.0, %v8188
        %8190 = vmatprep.mubr.bf16.mxu0 0
        %8191 = vmatmul.mubr.bf16.gmra.mrb[0].mxu0 %v7868
        %v8192 = vpop.f32.mrb[0].mxu0
        %v8193 = vadd.f32 0.0, %v8192
        %v8194 = vpop.f32.mrb[0].mxu0
        %v8195 = vadd.f32 0.0, %v8194
        %v8196 = vpop.f32.mrb[0].mxu0
        %v8197 = vadd.f32 0.0, %v8196
        %v8198 = vpop.f32.mrb[0].mxu0
        %v8199 = vadd.f32 0.0, %v8198
        %8200 = vmatprep.mubr.bf16.mxu0 0
        %8201 = vmatmul.mubr.bf16.gmra.mrb[0].mxu0 %v7869
        %v8202 = vpop.f32.mrb[0].mxu0
        %v8203 = vadd.f32 0.0, %v8202
        %v8204 = vpop.f32.mrb[0].mxu0
        %v8205 = vadd.f32 0.0, %v8204
        %v8206 = vpop.f32.mrb[0].mxu0
        %v8207 = vadd.f32 0.0, %v8206
        %v8208 = vpop.f32.mrb[0].mxu0
        %v8209 = vadd.f32 0.0, %v8208
        %8210 = vmatprep.mubr.bf16.mxu0 0
        %8211 = vmatmul.mubr.bf16.gmra.mrb[0].mxu0 %v7870
        %v8212 = vpop.f32.mrb[0].mxu0
        %v8213 = vadd.f32 0.0, %v8212
        %v8214 = vpop.f32.mrb[0].mxu0
        %v8215 = vadd.f32 0.0, %v8214
        %v8216 = vpop.f32.mrb[0].mxu0
        %v8217 = vadd.f32 0.0, %v8216
        %v8218 = vpop.f32.mrb[0].mxu0
        %v8219 = vadd.f32 0.0, %v8218
        %8220 = vmatprep.mubr.bf16.mxu0 0
        %8221 = vmatmul.mubr.bf16.gmra.mrb[0].mxu0 %v7871
        %v8222 = vpop.f32.mrb[0].mxu0
        %v8223 = vadd.f32 0.0, %v8222
        %v8224 = vpop.f32.mrb[0].mxu0
        %v8225 = vadd.f32 0.0, %v8224
        %v8226 = vpop.f32.mrb[0].mxu0
        %v8227 = vadd.f32 0.0, %v8226
        %v8228 = vpop.f32.mrb[0].mxu0
        %v8229 = vadd.f32 0.0, %v8228
        %8230 = vmatprep.mubr.bf16.mxu0 0
        %8231 = vmatmul.mubr.bf16.gmra.mrb[0].mxu0 %v7872
        %v8232 = vpop.f32.mrb[0].mxu0
        %v8233 = vadd.f32 0.0, %v8232
        %v8234 = vpop.f32.mrb[0].mxu0
        %v8235 = vadd.f32 0.0, %v8234
        %v8236 = vpop.f32.mrb[0].mxu0
        %v8237 = vadd.f32 0.0, %v8236
        %v8238 = vpop.f32.mrb[0].mxu0
        %v8239 = vadd.f32 0.0, %v8238
        %8240 = vmatprep.mubr.bf16.mxu0 0
        %8241 = vmatmul.mubr.bf16.gmra.mrb[0].mxu0 %v7873
        %v8242 = vpop.f32.mrb[0].mxu0
        %v8243 = vadd.f32 0.0, %v8242
        %v8244 = vpop.f32.mrb[0].mxu0
        %v8245 = vadd.f32 0.0, %v8244
        %v8246 = vpop.f32.mrb[0].mxu0
        %v8247 = vadd.f32 0.0, %v8246
        %v8248 = vpop.f32.mrb[0].mxu0
        %v8249 = vadd.f32 0.0, %v8248
        %8250 = vdwg.mxu0
        %v8251 = vadd.f32 %v7526, %v8013
        %v8252 = vadd.f32 %v7527, %v8015
        %v8253 = vadd.f32 %v7528, %v8017
        %v8254 = vadd.f32 %v7529, %v8019
        %v8255 = vadd.f32 %v7530, %v8023
        %v8256 = vadd.f32 %v7531, %v8025
        %v8257 = vadd.f32 %v7532, %v8027
        %v8258 = vadd.f32 %v7533, %v8029
        %v8259 = vadd.f32 %v7534, %v8033
        %v8260 = vadd.f32 %v7535, %v8035
        %v8261 = vadd.f32 %v7536, %v8037
        %v8262 = vadd.f32 %v7537, %v8039
        %v8263 = vadd.f32 %v7538, %v8043
        %v8264 = vadd.f32 %v7539, %v8045
        %v8265 = vadd.f32 %v7540, %v8047
        %v8266 = vadd.f32 %v7541, %v8049
        %v8267 = vadd.f32 %v7542, %v8053
        %v8268 = vadd.f32 %v7543, %v8055
        %v8269 = vadd.f32 %v7544, %v8057
        %v8270 = vadd.f32 %v7545, %v8059
        %v8271 = vadd.f32 %v7546, %v8063
        %v8272 = vadd.f32 %v7547, %v8065
        %v8273 = vadd.f32 %v7548, %v8067
        %v8274 = vadd.f32 %v7549, %v8069
        %v8275 = vadd.f32 %v7550, %v8073
        %v8276 = vadd.f32 %v7551, %v8075
        %v8277 = vadd.f32 %v7552, %v8077
        %v8278 = vadd.f32 %v7553, %v8079
        %v8279 = vadd.f32 %v7554, %v8083
        %v8280 = vadd.f32 %v7555, %v8085
        %v8281 = vadd.f32 %v7556, %v8087
        %v8282 = vadd.f32 %v7557, %v8089
        %v8283 = vadd.f32 %v7558, %v8093
        %v8284 = vadd.f32 %v7559, %v8095
        %v8285 = vadd.f32 %v7560, %v8097
        %v8286 = vadd.f32 %v7561, %v8099
        %v8287 = vadd.f32 %v7562, %v8103
        %v8288 = vadd.f32 %v7563, %v8105
        %v8289 = vadd.f32 %v7564, %v8107
        %v8290 = vadd.f32 %v7565, %v8109
        %v8291 = vadd.f32 %v7566, %v8113
        %v8292 = vadd.f32 %v7567, %v8115
        %v8293 = vadd.f32 %v7568, %v8117
        %v8294 = vadd.f32 %v7569, %v8119
        %v8295 = vadd.f32 %v7570, %v8123
        %v8296 = vadd.f32 %v7571, %v8125
        %v8297 = vadd.f32 %v7572, %v8127
        %v8298 = vadd.f32 %v7573, %v8129
        %v8299 = vadd.f32 %v7574, %v8133
        %v8300 = vadd.f32 %v7575, %v8135
        %v8301 = vadd.f32 %v7576, %v8137
        %v8302 = vadd.f32 %v7577, %v8139
        %v8303 = vadd.f32 %v7578, %v8143
        %v8304 = vadd.f32 %v7579, %v8145
        %v8305 = vadd.f32 %v7580, %v8147
        %v8306 = vadd.f32 %v7581, %v8149
        %v8307 = vadd.f32 %v7582, %v8153
        %v8308 = vadd.f32 %v7583, %v8155
        %v8309 = vadd.f32 %v7584, %v8157
        %v8310 = vadd.f32 %v7585, %v8159
        %v8311 = vadd.f32 %v7586, %v8163
        %v8312 = vadd.f32 %v7587, %v8165
        %v8313 = vadd.f32 %v7588, %v8167
        %v8314 = vadd.f32 %v7589, %v8169
        %v8315 = vadd.f32 %v7590, %v8173
        %v8316 = vadd.f32 %v7591, %v8175
        %v8317 = vadd.f32 %v7592, %v8177
        %v8318 = vadd.f32 %v7593, %v8179
        %v8319 = vadd.f32 %v7594, %v8183
        %v8320 = vadd.f32 %v7595, %v8185
        %v8321 = vadd.f32 %v7596, %v8187
        %v8322 = vadd.f32 %v7597, %v8189
        %v8323 = vadd.f32 %v7598, %v8193
        %v8324 = vadd.f32 %v7599, %v8195
        %v8325 = vadd.f32 %v7600, %v8197
        %v8326 = vadd.f32 %v7601, %v8199
        %v8327 = vadd.f32 %v7602, %v8203
        %v8328 = vadd.f32 %v7603, %v8205
        %v8329 = vadd.f32 %v7604, %v8207
        %v8330 = vadd.f32 %v7605, %v8209
        %v8331 = vadd.f32 %v7606, %v8213
        %v8332 = vadd.f32 %v7607, %v8215
        %v8333 = vadd.f32 %v7608, %v8217
        %v8334 = vadd.f32 %v7609, %v8219
        %v8335 = vadd.f32 %v7610, %v8223
        %v8336 = vadd.f32 %v7611, %v8225
        %v8337 = vadd.f32 %v7612, %v8227
        %v8338 = vadd.f32 %v7613, %v8229
        %v8339 = vadd.f32 %v7614, %v8233
        %v8340 = vadd.f32 %v7615, %v8235
        %v8341 = vadd.f32 %v7616, %v8237
        %v8342 = vadd.f32 %v7617, %v8239
        %v8343 = vadd.f32 %v7618, %v8243
        %v8344 = vadd.f32 %v7619, %v8245
        %v8345 = vadd.f32 %v7620, %v8247
        %v8346 = vadd.f32 %v7621, %v8249
        %vm8347 = vsmask.f32 256
        %vm8348 = vsmask.f32 4368
        %vm8349 = vmor %vm8347, %vm8348
        %v8350 = vrot.slane %v3024, 7
        %v8351 = vrot.slane %v8350, 4
        %v8352 = vrot.slane %v3037, 7
        %v8353 = vor.u32 %v8352, %v3033
        %v8354 = vsel %vm8349, %v8351, %v8353
        %v8355 = vrot.slane %v8352, 4
        %v8356 = vrot.slane %v3047, 7
        %v8357 = vor.u32 %v8356, %v3043
        %v8358 = vsel %vm8349, %v8355, %v8357
        %v8359 = vrot.slane %v8356, 4
        %v8360 = vrot.slane %v5176, 7
        %v8361 = vor.u32 %v8360, %v3053
        %v8362 = vsel %vm8349, %v8359, %v8361
        %v8363 = vrot.slane %v3058, 7
        %v8364 = vrot.slane %v8363, 4
        %v8365 = vrot.slane %v3071, 7
        %v8366 = vor.u32 %v8365, %v3067
        %v8367 = vsel %vm8349, %v8364, %v8366
        %v8368 = vrot.slane %v8365, 4
        %v8369 = vrot.slane %v3081, 7
        %v8370 = vor.u32 %v8369, %v3077
        %v8371 = vsel %vm8349, %v8368, %v8370
        %v8372 = vrot.slane %v8369, 4
        %v8373 = vrot.slane %v5196, 7
        %v8374 = vor.u32 %v8373, %v3087
        %v8375 = vsel %vm8349, %v8372, %v8374
        %v8376 = vrot.slane %v3092, 7
        %v8377 = vrot.slane %v8376, 4
        %v8378 = vrot.slane %v3105, 7
        %v8379 = vor.u32 %v8378, %v3101
        %v8380 = vsel %vm8349, %v8377, %v8379
        %v8381 = vrot.slane %v8378, 4
        %v8382 = vrot.slane %v3115, 7
        %v8383 = vor.u32 %v8382, %v3111
        %v8384 = vsel %vm8349, %v8381, %v8383
        %v8385 = vrot.slane %v8382, 4
        %v8386 = vrot.slane %v5216, 7
        %v8387 = vor.u32 %v8386, %v3121
        %v8388 = vsel %vm8349, %v8385, %v8387
        %v8389 = vrot.slane %v3126, 7
        %v8390 = vrot.slane %v8389, 4
        %v8391 = vrot.slane %v3139, 7
        %v8392 = vor.u32 %v8391, %v3135
        %v8393 = vsel %vm8349, %v8390, %v8392
        %v8394 = vrot.slane %v8391, 4
        %v8395 = vrot.slane %v3149, 7
        %v8396 = vor.u32 %v8395, %v3145
        %v8397 = vsel %vm8349, %v8394, %v8396
        %v8398 = vrot.slane %v8395, 4
        %v8399 = vrot.slane %v5236, 7
        %v8400 = vor.u32 %v8399, %v3155
        %v8401 = vsel %vm8349, %v8398, %v8400
        %v8402 = vrot.slane %v3160, 7
        %v8403 = vrot.slane %v8402, 4
        %v8404 = vrot.slane %v3173, 7
        %v8405 = vor.u32 %v8404, %v3169
        %v8406 = vsel %vm8349, %v8403, %v8405
        %v8407 = vrot.slane %v8404, 4
        %v8408 = vrot.slane %v3183, 7
        %v8409 = vor.u32 %v8408, %v3179
        %v8410 = vsel %vm8349, %v8407, %v8409
        %v8411 = vrot.slane %v8408, 4
        %v8412 = vrot.slane %v5256, 7
        %v8413 = vor.u32 %v8412, %v3189
        %v8414 = vsel %vm8349, %v8411, %v8413
        %v8415 = vrot.slane %v3194, 7
        %v8416 = vrot.slane %v8415, 4
        %v8417 = vrot.slane %v3207, 7
        %v8418 = vor.u32 %v8417, %v3203
        %v8419 = vsel %vm8349, %v8416, %v8418
        %v8420 = vrot.slane %v8417, 4
        %v8421 = vrot.slane %v3217, 7
        %v8422 = vor.u32 %v8421, %v3213
        %v8423 = vsel %vm8349, %v8420, %v8422
        %v8424 = vrot.slane %v8421, 4
        %v8425 = vrot.slane %v5276, 7
        %v8426 = vor.u32 %v8425, %v3223
        %v8427 = vsel %vm8349, %v8424, %v8426
        %v8428 = vrot.slane %v3228, 7
        %v8429 = vrot.slane %v8428, 4
        %v8430 = vrot.slane %v3241, 7
        %v8431 = vor.u32 %v8430, %v3237
        %v8432 = vsel %vm8349, %v8429, %v8431
        %v8433 = vrot.slane %v8430, 4
        %v8434 = vrot.slane %v3251, 7
        %v8435 = vor.u32 %v8434, %v3247
        %v8436 = vsel %vm8349, %v8433, %v8435
        %v8437 = vrot.slane %v8434, 4
        %v8438 = vrot.slane %v5296, 7
        %v8439 = vor.u32 %v8438, %v3257
        %v8440 = vsel %vm8349, %v8437, %v8439
        %v8441 = vrot.slane %v3262, 7
        %v8442 = vrot.slane %v8441, 4
        %v8443 = vrot.slane %v3275, 7
        %v8444 = vor.u32 %v8443, %v3271
        %v8445 = vsel %vm8349, %v8442, %v8444
        %v8446 = vrot.slane %v8443, 4
        %v8447 = vrot.slane %v3285, 7
        %v8448 = vor.u32 %v8447, %v3281
        %v8449 = vsel %vm8349, %v8446, %v8448
        %v8450 = vrot.slane %v8447, 4
        %v8451 = vrot.slane %v5316, 7
        %v8452 = vor.u32 %v8451, %v3291
        %v8453 = vsel %vm8349, %v8450, %v8452
        %v8454 = vrot.slane %v3296, 7
        %v8455 = vrot.slane %v8454, 4
        %v8456 = vrot.slane %v3309, 7
        %v8457 = vor.u32 %v8456, %v3305
        %v8458 = vsel %vm8349, %v8455, %v8457
        %v8459 = vrot.slane %v8456, 4
        %v8460 = vrot.slane %v3319, 7
        %v8461 = vor.u32 %v8460, %v3315
        %v8462 = vsel %vm8349, %v8459, %v8461
        %v8463 = vrot.slane %v8460, 4
        %v8464 = vrot.slane %v5336, 7
        %v8465 = vor.u32 %v8464, %v3325
        %v8466 = vsel %vm8349, %v8463, %v8465
        %v8467 = vrot.slane %v3330, 7
        %v8468 = vrot.slane %v8467, 4
        %v8469 = vrot.slane %v3343, 7
        %v8470 = vor.u32 %v8469, %v3339
        %v8471 = vsel %vm8349, %v8468, %v8470
        %v8472 = vrot.slane %v8469, 4
        %v8473 = vrot.slane %v3353, 7
        %v8474 = vor.u32 %v8473, %v3349
        %v8475 = vsel %vm8349, %v8472, %v8474
        %v8476 = vrot.slane %v8473, 4
        %v8477 = vrot.slane %v5356, 7
        %v8478 = vor.u32 %v8477, %v3359
        %v8479 = vsel %vm8349, %v8476, %v8478
        %v8480 = vrot.slane %v3364, 7
        %v8481 = vrot.slane %v8480, 4
        %v8482 = vrot.slane %v3377, 7
        %v8483 = vor.u32 %v8482, %v3373
        %v8484 = vsel %vm8349, %v8481, %v8483
        %v8485 = vrot.slane %v8482, 4
        %v8486 = vrot.slane %v3387, 7
        %v8487 = vor.u32 %v8486, %v3383
        %v8488 = vsel %vm8349, %v8485, %v8487
        %v8489 = vrot.slane %v8486, 4
        %v8490 = vrot.slane %v5376, 7
        %v8491 = vor.u32 %v8490, %v3393
        %v8492 = vsel %vm8349, %v8489, %v8491
        %v8493 = vrot.slane %v3398, 7
        %v8494 = vrot.slane %v8493, 4
        %v8495 = vrot.slane %v3411, 7
        %v8496 = vor.u32 %v8495, %v3407
        %v8497 = vsel %vm8349, %v8494, %v8496
        %v8498 = vrot.slane %v8495, 4
        %v8499 = vrot.slane %v3421, 7
        %v8500 = vor.u32 %v8499, %v3417
        %v8501 = vsel %vm8349, %v8498, %v8500
        %v8502 = vrot.slane %v8499, 4
        %v8503 = vrot.slane %v5396, 7
        %v8504 = vor.u32 %v8503, %v3427
        %v8505 = vsel %vm8349, %v8502, %v8504
        %v8506 = vrot.slane %v3432, 7
        %v8507 = vrot.slane %v8506, 4
        %v8508 = vrot.slane %v3445, 7
        %v8509 = vor.u32 %v8508, %v3441
        %v8510 = vsel %vm8349, %v8507, %v8509
        %v8511 = vrot.slane %v8508, 4
        %v8512 = vrot.slane %v3455, 7
        %v8513 = vor.u32 %v8512, %v3451
        %v8514 = vsel %vm8349, %v8511, %v8513
        %v8515 = vrot.slane %v8512, 4
        %v8516 = vrot.slane %v5416, 7
        %v8517 = vor.u32 %v8516, %v3461
        %v8518 = vsel %vm8349, %v8515, %v8517
        %v8519 = vrot.slane %v3466, 7
        %v8520 = vrot.slane %v8519, 4
        %v8521 = vrot.slane %v3479, 7
        %v8522 = vor.u32 %v8521, %v3475
        %v8523 = vsel %vm8349, %v8520, %v8522
        %v8524 = vrot.slane %v8521, 4
        %v8525 = vrot.slane %v3489, 7
        %v8526 = vor.u32 %v8525, %v3485
        %v8527 = vsel %vm8349, %v8524, %v8526
        %v8528 = vrot.slane %v8525, 4
        %v8529 = vrot.slane %v5436, 7
        %v8530 = vor.u32 %v8529, %v3495
        %v8531 = vsel %vm8349, %v8528, %v8530
        %v8532 = vrot.slane %v3500, 7
        %v8533 = vrot.slane %v8532, 4
        %v8534 = vrot.slane %v3513, 7
        %v8535 = vor.u32 %v8534, %v3509
        %v8536 = vsel %vm8349, %v8533, %v8535
        %v8537 = vrot.slane %v8534, 4
        %v8538 = vrot.slane %v3523, 7
        %v8539 = vor.u32 %v8538, %v3519
        %v8540 = vsel %vm8349, %v8537, %v8539
        %v8541 = vrot.slane %v8538, 4
        %v8542 = vrot.slane %v5456, 7
        %v8543 = vor.u32 %v8542, %v3529
        %v8544 = vsel %vm8349, %v8541, %v8543
        %v8545 = vrot.slane %v3534, 7
        %v8546 = vrot.slane %v8545, 4
        %v8547 = vrot.slane %v3547, 7
        %v8548 = vor.u32 %v8547, %v3543
        %v8549 = vsel %vm8349, %v8546, %v8548
        %v8550 = vrot.slane %v8547, 4
        %v8551 = vrot.slane %v3557, 7
        %v8552 = vor.u32 %v8551, %v3553
        %v8553 = vsel %vm8349, %v8550, %v8552
        %v8554 = vrot.slane %v8551, 4
        %v8555 = vrot.slane %v5476, 7
        %v8556 = vor.u32 %v8555, %v3563
        %v8557 = vsel %vm8349, %v8554, %v8556
        %s8558 = scalar_lea.vmem [#allocation10], 896
        %v8559 = vld [vmem:[%s8558] sm:$0xff]
        %v8560 = vld [vmem:[%s8558 + $0x8] sm:$0xff]
        %v8561 = vld [vmem:[%s8558 + $0x10] sm:$0xff]
        %v8562 = vld [vmem:[%s8558 + $0x18] sm:$0xff]
        %v8563 = vld [vmem:[%s8558 + $0x20] sm:$0xff]
        %v8564 = vld [vmem:[%s8558 + $0x28] sm:$0xff]
        %v8565 = vld [vmem:[%s8558 + $0x30] sm:$0xff]
        %v8566 = vld [vmem:[%s8558 + $0x38] sm:$0xff]
        %v8567 = vld [vmem:[%s8558 + $0x40] sm:$0xff]
        %v8568 = vld [vmem:[%s8558 + $0x48] sm:$0xff]
        %v8569 = vld [vmem:[%s8558 + $0x50] sm:$0xff]
        %v8570 = vld [vmem:[%s8558 + $0x58] sm:$0xff]
        %v8571 = vld [vmem:[%s8558 + $0x60] sm:$0xff]
        %v8572 = vld [vmem:[%s8558 + $0x68] sm:$0xff]
        %v8573 = vld [vmem:[%s8558 + $0x70] sm:$0xff]
        %v8574 = vld [vmem:[%s8558 + $0x78] sm:$0xff]
        %v8575 = vunpack.c.l.b16 %v8354
        %v8576 = vunpack.c.l.b16 %v8358
        %v8577 = vunpack.c.l.b16 %v8362
        %v8578 = vunpack.c.l.b16 %v8367
        %v8579 = vunpack.c.l.b16 %v8371
        %v8580 = vunpack.c.l.b16 %v8375
        %v8581 = vunpack.c.l.b16 %v8380
        %v8582 = vunpack.c.l.b16 %v8384
        %v8583 = vunpack.c.l.b16 %v8388
        %v8584 = vunpack.c.l.b16 %v8393
        %v8585 = vunpack.c.l.b16 %v8397
        %v8586 = vunpack.c.l.b16 %v8401
        %v8587 = vunpack.c.l.b16 %v8406
        %v8588 = vunpack.c.l.b16 %v8410
        %v8589 = vunpack.c.l.b16 %v8414
        %v8590 = vunpack.c.l.b16 %v8419
        %v8591 = vunpack.c.l.b16 %v8423
        %v8592 = vunpack.c.l.b16 %v8427
        %v8593 = vunpack.c.l.b16 %v8432
        %v8594 = vunpack.c.l.b16 %v8436
        %v8595 = vunpack.c.l.b16 %v8440
        %v8596 = vunpack.c.l.b16 %v8445
        %v8597 = vunpack.c.l.b16 %v8449
        %v8598 = vunpack.c.l.b16 %v8453
        %v8599 = vunpack.c.l.b16 %v8458
        %v8600 = vunpack.c.l.b16 %v8462
        %v8601 = vunpack.c.l.b16 %v8466
        %v8602 = vunpack.c.l.b16 %v8471
        %v8603 = vunpack.c.l.b16 %v8475
        %v8604 = vunpack.c.l.b16 %v8479
        %v8605 = vunpack.c.l.b16 %v8484
        %v8606 = vunpack.c.l.b16 %v8488
        %v8607 = vunpack.c.l.b16 %v8492
        %v8608 = vunpack.c.l.b16 %v8497
        %v8609 = vunpack.c.l.b16 %v8501
        %v8610 = vunpack.c.l.b16 %v8505
        %v8611 = vunpack.c.l.b16 %v8510
        %v8612 = vunpack.c.l.b16 %v8514
        %v8613 = vunpack.c.l.b16 %v8518
        %v8614 = vunpack.c.l.b16 %v8523
        %v8615 = vunpack.c.l.b16 %v8527
        %v8616 = vunpack.c.l.b16 %v8531
        %v8617 = vunpack.c.l.b16 %v8536
        %v8618 = vunpack.c.l.b16 %v8540
        %v8619 = vunpack.c.l.b16 %v8544
        %v8620 = vunpack.c.l.b16 %v8549
        %v8621 = vunpack.c.l.b16 %v8553
        %v8622 = vunpack.c.l.b16 %v8557
        %v8623 = vpack.c.b16 %v8576, %v8575
        %v8624 = vpack.c.b16 %v8578, %v8577
        %v8625 = vpack.c.b16 %v8580, %v8579
        %v8626 = vpack.c.b16 %v8582, %v8581
        %v8627 = vpack.c.b16 %v8584, %v8583
        %v8628 = vpack.c.b16 %v8586, %v8585
        %v8629 = vpack.c.b16 %v8588, %v8587
        %v8630 = vpack.c.b16 %v8590, %v8589
        %v8631 = vpack.c.b16 %v8592, %v8591
        %v8632 = vpack.c.b16 %v8594, %v8593
        %v8633 = vpack.c.b16 %v8596, %v8595
        %v8634 = vpack.c.b16 %v8598, %v8597
        %v8635 = vpack.c.b16 %v8600, %v8599
        %v8636 = vpack.c.b16 %v8602, %v8601
        %v8637 = vpack.c.b16 %v8604, %v8603
        %v8638 = vpack.c.b16 %v8606, %v8605
        %v8639 = vpack.c.b16 %v8608, %v8607
        %v8640 = vpack.c.b16 %v8610, %v8609
        %v8641 = vpack.c.b16 %v8612, %v8611
        %v8642 = vpack.c.b16 %v8614, %v8613
        %v8643 = vpack.c.b16 %v8616, %v8615
        %v8644 = vpack.c.b16 %v8618, %v8617
        %v8645 = vpack.c.b16 %v8620, %v8619
        %v8646 = vpack.c.b16 %v8622, %v8621
        %v8687 = vunpack.c.l.b16 %v8559
        %v8688 = vunpack.c.h.b16 %v8559
        %v8689 = vunpack.c.l.b16 %v8560
        %v8690 = vunpack.c.h.b16 %v8560
        %v8691 = vunpack.c.l.b16 %v8561
        %v8692 = vunpack.c.h.b16 %v8561
        %v8693 = vunpack.c.l.b16 %v8562
        %v8694 = vunpack.c.h.b16 %v8562
        %v8695 = vunpack.c.l.b16 %v8563
        %v8696 = vunpack.c.h.b16 %v8563
        %v8697 = vunpack.c.l.b16 %v8564
        %v8698 = vunpack.c.h.b16 %v8564
        %v8699 = vunpack.c.l.b16 %v8565
        %v8700 = vunpack.c.h.b16 %v8565
        %v8701 = vunpack.c.l.b16 %v8566
        %v8702 = vunpack.c.h.b16 %v8566
        %v8703 = vunpack.c.l.b16 %v8567
        %v8704 = vunpack.c.h.b16 %v8567
        %v8705 = vunpack.c.l.b16 %v8568
        %v8706 = vunpack.c.h.b16 %v8568
        %v8707 = vunpack.c.l.b16 %v8569
        %v8708 = vunpack.c.h.b16 %v8569
        %v8709 = vunpack.c.l.b16 %v8570
        %v8710 = vunpack.c.h.b16 %v8570
        %v8711 = vunpack.c.l.b16 %v8571
        %v8712 = vunpack.c.h.b16 %v8571
        %v8713 = vunpack.c.l.b16 %v8572
        %v8714 = vunpack.c.h.b16 %v8572
        %v8715 = vunpack.c.l.b16 %v8573
        %v8716 = vunpack.c.h.b16 %v8573
        %v8717 = vunpack.c.l.b16 %v8574
        %v8718 = vunpack.c.h.b16 %v8574
        %v8719 = vpack.c.b16 %v8689, %v8687
        %v8720 = vpack.c.b16 %v8690, %v8688
        %v8721 = vpack.c.b16 %v8693, %v8691
        %v8722 = vpack.c.b16 %v8694, %v8692
        %v8723 = vpack.c.b16 %v8697, %v8695
        %v8724 = vpack.c.b16 %v8698, %v8696
        %v8725 = vpack.c.b16 %v8701, %v8699
        %v8726 = vpack.c.b16 %v8702, %v8700
        %v8727 = vpack.c.b16 %v8705, %v8703
        %v8728 = vpack.c.b16 %v8706, %v8704
        %v8729 = vpack.c.b16 %v8709, %v8707
        %v8730 = vpack.c.b16 %v8710, %v8708
        %v8731 = vpack.c.b16 %v8713, %v8711
        %v8732 = vpack.c.b16 %v8714, %v8712
        %v8733 = vpack.c.b16 %v8717, %v8715
        %v8734 = vpack.c.b16 %v8718, %v8716
        %8751 = vmatprep.subr.bf16.mxu0 %v8720
        %8752 = vmatpush1.bf16.msra.mxu0 %v8719
        %8753 = vmatprep.subr.bf16.mxu0 %v8722
        %8754 = vmatpush1.bf16.msra.mxu0 %v8721
        %8755 = vmatprep.subr.bf16.mxu0 %v8724
        %8756 = vmatpush1.bf16.msra.mxu0 %v8723
        %8757 = vmatprep.subr.bf16.mxu0 %v8726
        %8758 = vmatpush1.bf16.msra.mxu0 %v8725
        %8759 = vmatprep.subr.bf16.mxu0 %v8728
        %8760 = vmatpush1.bf16.msra.mxu0 %v8727
        %8761 = vmatprep.subr.bf16.mxu0 %v8730
        %8762 = vmatpush1.bf16.msra.mxu0 %v8729
        %8763 = vmatprep.subr.bf16.mxu0 %v8732
        %8764 = vmatpush1.bf16.msra.mxu0 %v8731
        %8765 = vmatprep.subr.bf16.mxu0 %v8734
        %8766 = vmatpush1.bf16.msra.mxu0 %v8733
        %8767 = vmatprep.subr.bf16.mxu0 0
        %8768 = vmatpush1.bf16.msra.mxu0 0
        %8769 = vmatprep.subr.bf16.mxu0 0
        %8770 = vmatpush1.bf16.msra.mxu0 0
        %8771 = vmatprep.subr.bf16.mxu0 0
        %8772 = vmatpush1.bf16.msra.mxu0 0
        %8773 = vmatprep.subr.bf16.mxu0 0
        %8774 = vmatpush1.bf16.msra.mxu0 0
        %8775 = vmatprep.subr.bf16.mxu0 0
        %8776 = vmatpush1.bf16.msra.mxu0 0
        %8777 = vmatprep.subr.bf16.mxu0 0
        %8778 = vmatpush1.bf16.msra.mxu0 0
        %8779 = vmatprep.subr.bf16.mxu0 0
        %8780 = vmatpush1.bf16.msra.mxu0 0
        %8781 = vmatprep.subr.bf16.mxu0 0
        %8782 = vmatpush1.bf16.msra.mxu0 0
        %8783 = vmatprep.mubr.bf16.mxu0 0
        %8784 = vmatmul.mubr.bf16.gmra.mrb[0].mxu0 %v8623
        %v8785 = vpop.f32.mrb[0].mxu0
        %v8786 = vadd.f32 0.0, %v8785
        %v8787 = vpop.f32.mrb[0].mxu0
        %v8788 = vadd.f32 0.0, %v8787
        %v8789 = vpop.f32.mrb[0].mxu0
        %v8790 = vadd.f32 0.0, %v8789
        %v8791 = vpop.f32.mrb[0].mxu0
        %v8792 = vadd.f32 0.0, %v8791
        %8793 = vmatprep.mubr.bf16.mxu0 0
        %8794 = vmatmul.mubr.bf16.gmra.mrb[0].mxu0 %v8624
        %v8795 = vpop.f32.mrb[0].mxu0
        %v8796 = vadd.f32 0.0, %v8795
        %v8797 = vpop.f32.mrb[0].mxu0
        %v8798 = vadd.f32 0.0, %v8797
        %v8799 = vpop.f32.mrb[0].mxu0
        %v8800 = vadd.f32 0.0, %v8799
        %v8801 = vpop.f32.mrb[0].mxu0
        %v8802 = vadd.f32 0.0, %v8801
        %8803 = vmatprep.mubr.bf16.mxu0 0
        %8804 = vmatmul.mubr.bf16.gmra.mrb[0].mxu0 %v8625
        %v8805 = vpop.f32.mrb[0].mxu0
        %v8806 = vadd.f32 0.0, %v8805
        %v8807 = vpop.f32.mrb[0].mxu0
        %v8808 = vadd.f32 0.0, %v8807
        %v8809 = vpop.f32.mrb[0].mxu0
        %v8810 = vadd.f32 0.0, %v8809
        %v8811 = vpop.f32.mrb[0].mxu0
        %v8812 = vadd.f32 0.0, %v8811
        %8813 = vmatprep.mubr.bf16.mxu0 0
        %8814 = vmatmul.mubr.bf16.gmra.mrb[0].mxu0 %v8626
        %v8815 = vpop.f32.mrb[0].mxu0
        %v8816 = vadd.f32 0.0, %v8815
        %v8817 = vpop.f32.mrb[0].mxu0
        %v8818 = vadd.f32 0.0, %v8817
        %v8819 = vpop.f32.mrb[0].mxu0
        %v8820 = vadd.f32 0.0, %v8819
        %v8821 = vpop.f32.mrb[0].mxu0
        %v8822 = vadd.f32 0.0, %v8821
        %8823 = vmatprep.mubr.bf16.mxu0 0
        %8824 = vmatmul.mubr.bf16.gmra.mrb[0].mxu0 %v8627
        %v8825 = vpop.f32.mrb[0].mxu0
        %v8826 = vadd.f32 0.0, %v8825
        %v8827 = vpop.f32.mrb[0].mxu0
        %v8828 = vadd.f32 0.0, %v8827
        %v8829 = vpop.f32.mrb[0].mxu0
        %v8830 = vadd.f32 0.0, %v8829
        %v8831 = vpop.f32.mrb[0].mxu0
        %v8832 = vadd.f32 0.0, %v8831
        %8833 = vmatprep.mubr.bf16.mxu0 0
        %8834 = vmatmul.mubr.bf16.gmra.mrb[0].mxu0 %v8628
        %v8835 = vpop.f32.mrb[0].mxu0
        %v8836 = vadd.f32 0.0, %v8835
        %v8837 = vpop.f32.mrb[0].mxu0
        %v8838 = vadd.f32 0.0, %v8837
        %v8839 = vpop.f32.mrb[0].mxu0
        %v8840 = vadd.f32 0.0, %v8839
        %v8841 = vpop.f32.mrb[0].mxu0
        %v8842 = vadd.f32 0.0, %v8841
        %8843 = vmatprep.mubr.bf16.mxu0 0
        %8844 = vmatmul.mubr.bf16.gmra.mrb[0].mxu0 %v8629
        %v8845 = vpop.f32.mrb[0].mxu0
        %v8846 = vadd.f32 0.0, %v8845
        %v8847 = vpop.f32.mrb[0].mxu0
        %v8848 = vadd.f32 0.0, %v8847
        %v8849 = vpop.f32.mrb[0].mxu0
        %v8850 = vadd.f32 0.0, %v8849
        %v8851 = vpop.f32.mrb[0].mxu0
        %v8852 = vadd.f32 0.0, %v8851
        %8853 = vmatprep.mubr.bf16.mxu0 0
        %8854 = vmatmul.mubr.bf16.gmra.mrb[0].mxu0 %v8630
        %v8855 = vpop.f32.mrb[0].mxu0
        %v8856 = vadd.f32 0.0, %v8855
        %v8857 = vpop.f32.mrb[0].mxu0
        %v8858 = vadd.f32 0.0, %v8857
        %v8859 = vpop.f32.mrb[0].mxu0
        %v8860 = vadd.f32 0.0, %v8859
        %v8861 = vpop.f32.mrb[0].mxu0
        %v8862 = vadd.f32 0.0, %v8861
        %8863 = vmatprep.mubr.bf16.mxu0 0
        %8864 = vmatmul.mubr.bf16.gmra.mrb[0].mxu0 %v8631
        %v8865 = vpop.f32.mrb[0].mxu0
        %v8866 = vadd.f32 0.0, %v8865
        %v8867 = vpop.f32.mrb[0].mxu0
        %v8868 = vadd.f32 0.0, %v8867
        %v8869 = vpop.f32.mrb[0].mxu0
        %v8870 = vadd.f32 0.0, %v8869
        %v8871 = vpop.f32.mrb[0].mxu0
        %v8872 = vadd.f32 0.0, %v8871
        %8873 = vmatprep.mubr.bf16.mxu0 0
        %8874 = vmatmul.mubr.bf16.gmra.mrb[0].mxu0 %v8632
        %v8875 = vpop.f32.mrb[0].mxu0
        %v8876 = vadd.f32 0.0, %v8875
        %v8877 = vpop.f32.mrb[0].mxu0
        %v8878 = vadd.f32 0.0, %v8877
        %v8879 = vpop.f32.mrb[0].mxu0
        %v8880 = vadd.f32 0.0, %v8879
        %v8881 = vpop.f32.mrb[0].mxu0
        %v8882 = vadd.f32 0.0, %v8881
        %8883 = vmatprep.mubr.bf16.mxu0 0
        %8884 = vmatmul.mubr.bf16.gmra.mrb[0].mxu0 %v8633
        %v8885 = vpop.f32.mrb[0].mxu0
        %v8886 = vadd.f32 0.0, %v8885
        %v8887 = vpop.f32.mrb[0].mxu0
        %v8888 = vadd.f32 0.0, %v8887
        %v8889 = vpop.f32.mrb[0].mxu0
        %v8890 = vadd.f32 0.0, %v8889
        %v8891 = vpop.f32.mrb[0].mxu0
        %v8892 = vadd.f32 0.0, %v8891
        %8893 = vmatprep.mubr.bf16.mxu0 0
        %8894 = vmatmul.mubr.bf16.gmra.mrb[0].mxu0 %v8634
        %v8895 = vpop.f32.mrb[0].mxu0
        %v8896 = vadd.f32 0.0, %v8895
        %v8897 = vpop.f32.mrb[0].mxu0
        %v8898 = vadd.f32 0.0, %v8897
        %v8899 = vpop.f32.mrb[0].mxu0
        %v8900 = vadd.f32 0.0, %v8899
        %v8901 = vpop.f32.mrb[0].mxu0
        %v8902 = vadd.f32 0.0, %v8901
        %8903 = vmatprep.mubr.bf16.mxu0 0
        %8904 = vmatmul.mubr.bf16.gmra.mrb[0].mxu0 %v8635
        %v8905 = vpop.f32.mrb[0].mxu0
        %v8906 = vadd.f32 0.0, %v8905
        %v8907 = vpop.f32.mrb[0].mxu0
        %v8908 = vadd.f32 0.0, %v8907
        %v8909 = vpop.f32.mrb[0].mxu0
        %v8910 = vadd.f32 0.0, %v8909
        %v8911 = vpop.f32.mrb[0].mxu0
        %v8912 = vadd.f32 0.0, %v8911
        %8913 = vmatprep.mubr.bf16.mxu0 0
        %8914 = vmatmul.mubr.bf16.gmra.mrb[0].mxu0 %v8636
        %v8915 = vpop.f32.mrb[0].mxu0
        %v8916 = vadd.f32 0.0, %v8915
        %v8917 = vpop.f32.mrb[0].mxu0
        %v8918 = vadd.f32 0.0, %v8917
        %v8919 = vpop.f32.mrb[0].mxu0
        %v8920 = vadd.f32 0.0, %v8919
        %v8921 = vpop.f32.mrb[0].mxu0
        %v8922 = vadd.f32 0.0, %v8921
        %8923 = vmatprep.mubr.bf16.mxu0 0
        %8924 = vmatmul.mubr.bf16.gmra.mrb[0].mxu0 %v8637
        %v8925 = vpop.f32.mrb[0].mxu0
        %v8926 = vadd.f32 0.0, %v8925
        %v8927 = vpop.f32.mrb[0].mxu0
        %v8928 = vadd.f32 0.0, %v8927
        %v8929 = vpop.f32.mrb[0].mxu0
        %v8930 = vadd.f32 0.0, %v8929
        %v8931 = vpop.f32.mrb[0].mxu0
        %v8932 = vadd.f32 0.0, %v8931
        %8933 = vmatprep.mubr.bf16.mxu0 0
        %8934 = vmatmul.mubr.bf16.gmra.mrb[0].mxu0 %v8638
        %v8935 = vpop.f32.mrb[0].mxu0
        %v8936 = vadd.f32 0.0, %v8935
        %v8937 = vpop.f32.mrb[0].mxu0
        %v8938 = vadd.f32 0.0, %v8937
        %v8939 = vpop.f32.mrb[0].mxu0
        %v8940 = vadd.f32 0.0, %v8939
        %v8941 = vpop.f32.mrb[0].mxu0
        %v8942 = vadd.f32 0.0, %v8941
        %8943 = vmatprep.mubr.bf16.mxu0 0
        %8944 = vmatmul.mubr.bf16.gmra.mrb[0].mxu0 %v8639
        %v8945 = vpop.f32.mrb[0].mxu0
        %v8946 = vadd.f32 0.0, %v8945
        %v8947 = vpop.f32.mrb[0].mxu0
        %v8948 = vadd.f32 0.0, %v8947
        %v8949 = vpop.f32.mrb[0].mxu0
        %v8950 = vadd.f32 0.0, %v8949
        %v8951 = vpop.f32.mrb[0].mxu0
        %v8952 = vadd.f32 0.0, %v8951
        %8953 = vmatprep.mubr.bf16.mxu0 0
        %8954 = vmatmul.mubr.bf16.gmra.mrb[0].mxu0 %v8640
        %v8955 = vpop.f32.mrb[0].mxu0
        %v8956 = vadd.f32 0.0, %v8955
        %v8957 = vpop.f32.mrb[0].mxu0
        %v8958 = vadd.f32 0.0, %v8957
        %v8959 = vpop.f32.mrb[0].mxu0
        %v8960 = vadd.f32 0.0, %v8959
        %v8961 = vpop.f32.mrb[0].mxu0
        %v8962 = vadd.f32 0.0, %v8961
        %8963 = vmatprep.mubr.bf16.mxu0 0
        %8964 = vmatmul.mubr.bf16.gmra.mrb[0].mxu0 %v8641
        %v8965 = vpop.f32.mrb[0].mxu0
        %v8966 = vadd.f32 0.0, %v8965
        %v8967 = vpop.f32.mrb[0].mxu0
        %v8968 = vadd.f32 0.0, %v8967
        %v8969 = vpop.f32.mrb[0].mxu0
        %v8970 = vadd.f32 0.0, %v8969
        %v8971 = vpop.f32.mrb[0].mxu0
        %v8972 = vadd.f32 0.0, %v8971
        %8973 = vmatprep.mubr.bf16.mxu0 0
        %8974 = vmatmul.mubr.bf16.gmra.mrb[0].mxu0 %v8642
        %v8975 = vpop.f32.mrb[0].mxu0
        %v8976 = vadd.f32 0.0, %v8975
        %v8977 = vpop.f32.mrb[0].mxu0
        %v8978 = vadd.f32 0.0, %v8977
        %v8979 = vpop.f32.mrb[0].mxu0
        %v8980 = vadd.f32 0.0, %v8979
        %v8981 = vpop.f32.mrb[0].mxu0
        %v8982 = vadd.f32 0.0, %v8981
        %8983 = vmatprep.mubr.bf16.mxu0 0
        %8984 = vmatmul.mubr.bf16.gmra.mrb[0].mxu0 %v8643
        %v8985 = vpop.f32.mrb[0].mxu0
        %v8986 = vadd.f32 0.0, %v8985
        %v8987 = vpop.f32.mrb[0].mxu0
        %v8988 = vadd.f32 0.0, %v8987
        %v8989 = vpop.f32.mrb[0].mxu0
        %v8990 = vadd.f32 0.0, %v8989
        %v8991 = vpop.f32.mrb[0].mxu0
        %v8992 = vadd.f32 0.0, %v8991
        %8993 = vmatprep.mubr.bf16.mxu0 0
        %8994 = vmatmul.mubr.bf16.gmra.mrb[0].mxu0 %v8644
        %v8995 = vpop.f32.mrb[0].mxu0
        %v8996 = vadd.f32 0.0, %v8995
        %v8997 = vpop.f32.mrb[0].mxu0
        %v8998 = vadd.f32 0.0, %v8997
        %v8999 = vpop.f32.mrb[0].mxu0
        %v9000 = vadd.f32 0.0, %v8999
        %v9001 = vpop.f32.mrb[0].mxu0
        %v9002 = vadd.f32 0.0, %v9001
        %9003 = vmatprep.mubr.bf16.mxu0 0
        %9004 = vmatmul.mubr.bf16.gmra.mrb[0].mxu0 %v8645
        %v9005 = vpop.f32.mrb[0].mxu0
        %v9006 = vadd.f32 0.0, %v9005
        %v9007 = vpop.f32.mrb[0].mxu0
        %v9008 = vadd.f32 0.0, %v9007
        %v9009 = vpop.f32.mrb[0].mxu0
        %v9010 = vadd.f32 0.0, %v9009
        %v9011 = vpop.f32.mrb[0].mxu0
        %v9012 = vadd.f32 0.0, %v9011
        %9013 = vmatprep.mubr.bf16.mxu0 0
        %9014 = vmatmul.mubr.bf16.gmra.mrb[0].mxu0 %v8646
        %v9015 = vpop.f32.mrb[0].mxu0
        %v9016 = vadd.f32 0.0, %v9015
        %v9017 = vpop.f32.mrb[0].mxu0
        %v9018 = vadd.f32 0.0, %v9017
        %v9019 = vpop.f32.mrb[0].mxu0
        %v9020 = vadd.f32 0.0, %v9019
        %v9021 = vpop.f32.mrb[0].mxu0
        %v9022 = vadd.f32 0.0, %v9021
        %9023 = vdwg.mxu0
        %v9024 = vadd.f32 %v8251, %v8786
        %v9025 = vadd.f32 %v8252, %v8788
        %v9026 = vadd.f32 %v8253, %v8790
        %v9027 = vadd.f32 %v8254, %v8792
        %v9028 = vadd.f32 %v8255, %v8796
        %v9029 = vadd.f32 %v8256, %v8798
        %v9030 = vadd.f32 %v8257, %v8800
        %v9031 = vadd.f32 %v8258, %v8802
        %v9032 = vadd.f32 %v8259, %v8806
        %v9033 = vadd.f32 %v8260, %v8808
        %v9034 = vadd.f32 %v8261, %v8810
        %v9035 = vadd.f32 %v8262, %v8812
        %v9036 = vadd.f32 %v8263, %v8816
        %v9037 = vadd.f32 %v8264, %v8818
        %v9038 = vadd.f32 %v8265, %v8820
        %v9039 = vadd.f32 %v8266, %v8822
        %v9040 = vadd.f32 %v8267, %v8826
        %v9041 = vadd.f32 %v8268, %v8828
        %v9042 = vadd.f32 %v8269, %v8830
        %v9043 = vadd.f32 %v8270, %v8832
        %v9044 = vadd.f32 %v8271, %v8836
        %v9045 = vadd.f32 %v8272, %v8838
        %v9046 = vadd.f32 %v8273, %v8840
        %v9047 = vadd.f32 %v8274, %v8842
        %v9048 = vadd.f32 %v8275, %v8846
        %v9049 = vadd.f32 %v8276, %v8848
        %v9050 = vadd.f32 %v8277, %v8850
        %v9051 = vadd.f32 %v8278, %v8852
        %v9052 = vadd.f32 %v8279, %v8856
        %v9053 = vadd.f32 %v8280, %v8858
        %v9054 = vadd.f32 %v8281, %v8860
        %v9055 = vadd.f32 %v8282, %v8862
        %v9056 = vadd.f32 %v8283, %v8866
        %v9057 = vadd.f32 %v8284, %v8868
        %v9058 = vadd.f32 %v8285, %v8870
        %v9059 = vadd.f32 %v8286, %v8872
        %v9060 = vadd.f32 %v8287, %v8876
        %v9061 = vadd.f32 %v8288, %v8878
        %v9062 = vadd.f32 %v8289, %v8880
        %v9063 = vadd.f32 %v8290, %v8882
        %v9064 = vadd.f32 %v8291, %v8886
        %v9065 = vadd.f32 %v8292, %v8888
        %v9066 = vadd.f32 %v8293, %v8890
        %v9067 = vadd.f32 %v8294, %v8892
        %v9068 = vadd.f32 %v8295, %v8896
        %v9069 = vadd.f32 %v8296, %v8898
        %v9070 = vadd.f32 %v8297, %v8900
        %v9071 = vadd.f32 %v8298, %v8902
        %v9072 = vadd.f32 %v8299, %v8906
        %v9073 = vadd.f32 %v8300, %v8908
        %v9074 = vadd.f32 %v8301, %v8910
        %v9075 = vadd.f32 %v8302, %v8912
        %v9076 = vadd.f32 %v8303, %v8916
        %v9077 = vadd.f32 %v8304, %v8918
        %v9078 = vadd.f32 %v8305, %v8920
        %v9079 = vadd.f32 %v8306, %v8922
        %v9080 = vadd.f32 %v8307, %v8926
        %v9081 = vadd.f32 %v8308, %v8928
        %v9082 = vadd.f32 %v8309, %v8930
        %v9083 = vadd.f32 %v8310, %v8932
        %v9084 = vadd.f32 %v8311, %v8936
        %v9085 = vadd.f32 %v8312, %v8938
        %v9086 = vadd.f32 %v8313, %v8940
        %v9087 = vadd.f32 %v8314, %v8942
        %v9088 = vadd.f32 %v8315, %v8946
        %v9089 = vadd.f32 %v8316, %v8948
        %v9090 = vadd.f32 %v8317, %v8950
        %v9091 = vadd.f32 %v8318, %v8952
        %v9092 = vadd.f32 %v8319, %v8956
        %v9093 = vadd.f32 %v8320, %v8958
        %v9094 = vadd.f32 %v8321, %v8960
        %v9095 = vadd.f32 %v8322, %v8962
        %v9096 = vadd.f32 %v8323, %v8966
        %v9097 = vadd.f32 %v8324, %v8968
        %v9098 = vadd.f32 %v8325, %v8970
        %v9099 = vadd.f32 %v8326, %v8972
        %v9100 = vadd.f32 %v8327, %v8976
        %v9101 = vadd.f32 %v8328, %v8978
        %v9102 = vadd.f32 %v8329, %v8980
        %v9103 = vadd.f32 %v8330, %v8982
        %v9104 = vadd.f32 %v8331, %v8986
        %v9105 = vadd.f32 %v8332, %v8988
        %v9106 = vadd.f32 %v8333, %v8990
        %v9107 = vadd.f32 %v8334, %v8992
        %v9108 = vadd.f32 %v8335, %v8996
        %v9109 = vadd.f32 %v8336, %v8998
        %v9110 = vadd.f32 %v8337, %v9000
        %v9111 = vadd.f32 %v8338, %v9002
        %v9112 = vadd.f32 %v8339, %v9006
        %v9113 = vadd.f32 %v8340, %v9008
        %v9114 = vadd.f32 %v8341, %v9010
        %v9115 = vadd.f32 %v8342, %v9012
        %v9116 = vadd.f32 %v8343, %v9016
        %v9117 = vadd.f32 %v8344, %v9018
        %v9118 = vadd.f32 %v8345, %v9020
        %v9119 = vadd.f32 %v8346, %v9022
        %s9120 = scalar_lea.vmem [#allocation10], 1024
        %v9121 = vld [vmem:[%s9120] sm:$0xff]
        %v9122 = vld [vmem:[%s9120 + $0x8] sm:$0xff]
        %v9123 = vld [vmem:[%s9120 + $0x10] sm:$0xff]
        %v9124 = vld [vmem:[%s9120 + $0x18] sm:$0xff]
        %v9125 = vld [vmem:[%s9120 + $0x20] sm:$0xff]
        %v9126 = vld [vmem:[%s9120 + $0x28] sm:$0xff]
        %v9127 = vld [vmem:[%s9120 + $0x30] sm:$0xff]
        %v9128 = vld [vmem:[%s9120 + $0x38] sm:$0xff]
        %v9129 = vld [vmem:[%s9120 + $0x40] sm:$0xff]
        %v9130 = vld [vmem:[%s9120 + $0x48] sm:$0xff]
        %v9131 = vld [vmem:[%s9120 + $0x50] sm:$0xff]
        %v9132 = vld [vmem:[%s9120 + $0x58] sm:$0xff]
        %v9133 = vld [vmem:[%s9120 + $0x60] sm:$0xff]
        %v9134 = vld [vmem:[%s9120 + $0x68] sm:$0xff]
        %v9135 = vld [vmem:[%s9120 + $0x70] sm:$0xff]
        %v9136 = vld [vmem:[%s9120 + $0x78] sm:$0xff]
        %v9137 = vpack.c.b16 %v2878, %v2877
        %v9138 = vpack.c.b16 %v2880, %v2940
        %v9139 = vpack.c.b16 %v2941, %v2881
        %v9140 = vpack.c.b16 %v2884, %v2883
        %v9141 = vpack.c.b16 %v2886, %v2942
        %v9142 = vpack.c.b16 %v2943, %v2887
        %v9143 = vpack.c.b16 %v2890, %v2889
        %v9144 = vpack.c.b16 %v2892, %v2944
        %v9145 = vpack.c.b16 %v2945, %v2893
        %v9146 = vpack.c.b16 %v2896, %v2895
        %v9147 = vpack.c.b16 %v2898, %v2946
        %v9148 = vpack.c.b16 %v2947, %v2899
        %v9149 = vpack.c.b16 %v2902, %v2901
        %v9150 = vpack.c.b16 %v2904, %v2948
        %v9151 = vpack.c.b16 %v2949, %v2905
        %v9152 = vpack.c.b16 %v2908, %v2907
        %v9153 = vpack.c.b16 %v2910, %v2950
        %v9154 = vpack.c.b16 %v2951, %v2911
        %v9155 = vpack.c.b16 %v2914, %v2913
        %v9156 = vpack.c.b16 %v2916, %v2952
        %v9157 = vpack.c.b16 %v2953, %v2917
        %v9158 = vpack.c.b16 %v2920, %v2919
        %v9159 = vpack.c.b16 %v2922, %v2954
        %v9160 = vpack.c.b16 %v2955, %v2923
        %v9201 = vunpack.c.l.b16 %v9121
        %v9202 = vunpack.c.h.b16 %v9121
        %v9203 = vunpack.c.l.b16 %v9122
        %v9204 = vunpack.c.h.b16 %v9122
        %v9205 = vunpack.c.l.b16 %v9123
        %v9206 = vunpack.c.h.b16 %v9123
        %v9207 = vunpack.c.l.b16 %v9124
        %v9208 = vunpack.c.h.b16 %v9124
        %v9209 = vunpack.c.l.b16 %v9125
        %v9210 = vunpack.c.h.b16 %v9125
        %v9211 = vunpack.c.l.b16 %v9126
        %v9212 = vunpack.c.h.b16 %v9126
        %v9213 = vunpack.c.l.b16 %v9127
        %v9214 = vunpack.c.h.b16 %v9127
        %v9215 = vunpack.c.l.b16 %v9128
        %v9216 = vunpack.c.h.b16 %v9128
        %v9217 = vunpack.c.l.b16 %v9129
        %v9218 = vunpack.c.h.b16 %v9129
        %v9219 = vunpack.c.l.b16 %v9130
        %v9220 = vunpack.c.h.b16 %v9130
        %v9221 = vunpack.c.l.b16 %v9131
        %v9222 = vunpack.c.h.b16 %v9131
        %v9223 = vunpack.c.l.b16 %v9132
        %v9224 = vunpack.c.h.b16 %v9132
        %v9225 = vunpack.c.l.b16 %v9133
        %v9226 = vunpack.c.h.b16 %v9133
        %v9227 = vunpack.c.l.b16 %v9134
        %v9228 = vunpack.c.h.b16 %v9134
        %v9229 = vunpack.c.l.b16 %v9135
        %v9230 = vunpack.c.h.b16 %v9135
        %v9231 = vunpack.c.l.b16 %v9136
        %v9232 = vunpack.c.h.b16 %v9136
        %v9233 = vpack.c.b16 %v9203, %v9201
        %v9234 = vpack.c.b16 %v9204, %v9202
        %v9235 = vpack.c.b16 %v9207, %v9205
        %v9236 = vpack.c.b16 %v9208, %v9206
        %v9237 = vpack.c.b16 %v9211, %v9209
        %v9238 = vpack.c.b16 %v9212, %v9210
        %v9239 = vpack.c.b16 %v9215, %v9213
        %v9240 = vpack.c.b16 %v9216, %v9214
        %v9241 = vpack.c.b16 %v9219, %v9217
        %v9242 = vpack.c.b16 %v9220, %v9218
        %v9243 = vpack.c.b16 %v9223, %v9221
        %v9244 = vpack.c.b16 %v9224, %v9222
        %v9245 = vpack.c.b16 %v9227, %v9225
        %v9246 = vpack.c.b16 %v9228, %v9226
        %v9247 = vpack.c.b16 %v9231, %v9229
        %v9248 = vpack.c.b16 %v9232, %v9230
        %9265 = vmatprep.subr.bf16.mxu0 %v9234
        %9266 = vmatpush1.bf16.msra.mxu0 %v9233
        %9267 = vmatprep.subr.bf16.mxu0 %v9236
        %9268 = vmatpush1.bf16.msra.mxu0 %v9235
        %9269 = vmatprep.subr.bf16.mxu0 %v9238
        %9270 = vmatpush1.bf16.msra.mxu0 %v9237
        %9271 = vmatprep.subr.bf16.mxu0 %v9240
        %9272 = vmatpush1.bf16.msra.mxu0 %v9239
        %9273 = vmatprep.subr.bf16.mxu0 %v9242
        %9274 = vmatpush1.bf16.msra.mxu0 %v9241
        %9275 = vmatprep.subr.bf16.mxu0 %v9244
        %9276 = vmatpush1.bf16.msra.mxu0 %v9243
        %9277 = vmatprep.subr.bf16.mxu0 %v9246
        %9278 = vmatpush1.bf16.msra.mxu0 %v9245
        %9279 = vmatprep.subr.bf16.mxu0 %v9248
        %9280 = vmatpush1.bf16.msra.mxu0 %v9247
        %9281 = vmatprep.subr.bf16.mxu0 0
        %9282 = vmatpush1.bf16.msra.mxu0 0
        %9283 = vmatprep.subr.bf16.mxu0 0
        %9284 = vmatpush1.bf16.msra.mxu0 0
        %9285 = vmatprep.subr.bf16.mxu0 0
        %9286 = vmatpush1.bf16.msra.mxu0 0
        %9287 = vmatprep.subr.bf16.mxu0 0
        %9288 = vmatpush1.bf16.msra.mxu0 0
        %9289 = vmatprep.subr.bf16.mxu0 0
        %9290 = vmatpush1.bf16.msra.mxu0 0
        %9291 = vmatprep.subr.bf16.mxu0 0
        %9292 = vmatpush1.bf16.msra.mxu0 0
        %9293 = vmatprep.subr.bf16.mxu0 0
        %9294 = vmatpush1.bf16.msra.mxu0 0
        %9295 = vmatprep.subr.bf16.mxu0 0
        %9296 = vmatpush1.bf16.msra.mxu0 0
        %9297 = vmatprep.mubr.bf16.mxu0 0
        %9298 = vmatmul.mubr.bf16.gmra.mrb[0].mxu0 %v9137
        %v9299 = vpop.f32.mrb[0].mxu0
        %v9300 = vadd.f32 0.0, %v9299
        %v9301 = vpop.f32.mrb[0].mxu0
        %v9302 = vadd.f32 0.0, %v9301
        %v9303 = vpop.f32.mrb[0].mxu0
        %v9304 = vadd.f32 0.0, %v9303
        %v9305 = vpop.f32.mrb[0].mxu0
        %v9306 = vadd.f32 0.0, %v9305
        %9307 = vmatprep.mubr.bf16.mxu0 0
        %9308 = vmatmul.mubr.bf16.gmra.mrb[0].mxu0 %v9138
        %v9309 = vpop.f32.mrb[0].mxu0
        %v9310 = vadd.f32 0.0, %v9309
        %v9311 = vpop.f32.mrb[0].mxu0
        %v9312 = vadd.f32 0.0, %v9311
        %v9313 = vpop.f32.mrb[0].mxu0
        %v9314 = vadd.f32 0.0, %v9313
        %v9315 = vpop.f32.mrb[0].mxu0
        %v9316 = vadd.f32 0.0, %v9315
        %9317 = vmatprep.mubr.bf16.mxu0 0
        %9318 = vmatmul.mubr.bf16.gmra.mrb[0].mxu0 %v9139
        %v9319 = vpop.f32.mrb[0].mxu0
        %v9320 = vadd.f32 0.0, %v9319
        %v9321 = vpop.f32.mrb[0].mxu0
        %v9322 = vadd.f32 0.0, %v9321
        %v9323 = vpop.f32.mrb[0].mxu0
        %v9324 = vadd.f32 0.0, %v9323
        %v9325 = vpop.f32.mrb[0].mxu0
        %v9326 = vadd.f32 0.0, %v9325
        %9327 = vmatprep.mubr.bf16.mxu0 0
        %9328 = vmatmul.mubr.bf16.gmra.mrb[0].mxu0 %v9140
        %v9329 = vpop.f32.mrb[0].mxu0
        %v9330 = vadd.f32 0.0, %v9329
        %v9331 = vpop.f32.mrb[0].mxu0
        %v9332 = vadd.f32 0.0, %v9331
        %v9333 = vpop.f32.mrb[0].mxu0
        %v9334 = vadd.f32 0.0, %v9333
        %v9335 = vpop.f32.mrb[0].mxu0
        %v9336 = vadd.f32 0.0, %v9335
        %9337 = vmatprep.mubr.bf16.mxu0 0
        %9338 = vmatmul.mubr.bf16.gmra.mrb[0].mxu0 %v9141
        %v9339 = vpop.f32.mrb[0].mxu0
        %v9340 = vadd.f32 0.0, %v9339
        %v9341 = vpop.f32.mrb[0].mxu0
        %v9342 = vadd.f32 0.0, %v9341
        %v9343 = vpop.f32.mrb[0].mxu0
        %v9344 = vadd.f32 0.0, %v9343
        %v9345 = vpop.f32.mrb[0].mxu0
        %v9346 = vadd.f32 0.0, %v9345
        %9347 = vmatprep.mubr.bf16.mxu0 0
        %9348 = vmatmul.mubr.bf16.gmra.mrb[0].mxu0 %v9142
        %v9349 = vpop.f32.mrb[0].mxu0
        %v9350 = vadd.f32 0.0, %v9349
        %v9351 = vpop.f32.mrb[0].mxu0
        %v9352 = vadd.f32 0.0, %v9351
        %v9353 = vpop.f32.mrb[0].mxu0
        %v9354 = vadd.f32 0.0, %v9353
        %v9355 = vpop.f32.mrb[0].mxu0
        %v9356 = vadd.f32 0.0, %v9355
        %9357 = vmatprep.mubr.bf16.mxu0 0
        %9358 = vmatmul.mubr.bf16.gmra.mrb[0].mxu0 %v9143
        %v9359 = vpop.f32.mrb[0].mxu0
        %v9360 = vadd.f32 0.0, %v9359
        %v9361 = vpop.f32.mrb[0].mxu0
        %v9362 = vadd.f32 0.0, %v9361
        %v9363 = vpop.f32.mrb[0].mxu0
        %v9364 = vadd.f32 0.0, %v9363
        %v9365 = vpop.f32.mrb[0].mxu0
        %v9366 = vadd.f32 0.0, %v9365
        %9367 = vmatprep.mubr.bf16.mxu0 0
        %9368 = vmatmul.mubr.bf16.gmra.mrb[0].mxu0 %v9144
        %v9369 = vpop.f32.mrb[0].mxu0
        %v9370 = vadd.f32 0.0, %v9369
        %v9371 = vpop.f32.mrb[0].mxu0
        %v9372 = vadd.f32 0.0, %v9371
        %v9373 = vpop.f32.mrb[0].mxu0
        %v9374 = vadd.f32 0.0, %v9373
        %v9375 = vpop.f32.mrb[0].mxu0
        %v9376 = vadd.f32 0.0, %v9375
        %9377 = vmatprep.mubr.bf16.mxu0 0
        %9378 = vmatmul.mubr.bf16.gmra.mrb[0].mxu0 %v9145
        %v9379 = vpop.f32.mrb[0].mxu0
        %v9380 = vadd.f32 0.0, %v9379
        %v9381 = vpop.f32.mrb[0].mxu0
        %v9382 = vadd.f32 0.0, %v9381
        %v9383 = vpop.f32.mrb[0].mxu0
        %v9384 = vadd.f32 0.0, %v9383
        %v9385 = vpop.f32.mrb[0].mxu0
        %v9386 = vadd.f32 0.0, %v9385
        %9387 = vmatprep.mubr.bf16.mxu0 0
        %9388 = vmatmul.mubr.bf16.gmra.mrb[0].mxu0 %v9146
        %v9389 = vpop.f32.mrb[0].mxu0
        %v9390 = vadd.f32 0.0, %v9389
        %v9391 = vpop.f32.mrb[0].mxu0
        %v9392 = vadd.f32 0.0, %v9391
        %v9393 = vpop.f32.mrb[0].mxu0
        %v9394 = vadd.f32 0.0, %v9393
        %v9395 = vpop.f32.mrb[0].mxu0
        %v9396 = vadd.f32 0.0, %v9395
        %9397 = vmatprep.mubr.bf16.mxu0 0
        %9398 = vmatmul.mubr.bf16.gmra.mrb[0].mxu0 %v9147
        %v9399 = vpop.f32.mrb[0].mxu0
        %v9400 = vadd.f32 0.0, %v9399
        %v9401 = vpop.f32.mrb[0].mxu0
        %v9402 = vadd.f32 0.0, %v9401
        %v9403 = vpop.f32.mrb[0].mxu0
        %v9404 = vadd.f32 0.0, %v9403
        %v9405 = vpop.f32.mrb[0].mxu0
        %v9406 = vadd.f32 0.0, %v9405
        %9407 = vmatprep.mubr.bf16.mxu0 0
        %9408 = vmatmul.mubr.bf16.gmra.mrb[0].mxu0 %v9148
        %v9409 = vpop.f32.mrb[0].mxu0
        %v9410 = vadd.f32 0.0, %v9409
        %v9411 = vpop.f32.mrb[0].mxu0
        %v9412 = vadd.f32 0.0, %v9411
        %v9413 = vpop.f32.mrb[0].mxu0
        %v9414 = vadd.f32 0.0, %v9413
        %v9415 = vpop.f32.mrb[0].mxu0
        %v9416 = vadd.f32 0.0, %v9415
        %9417 = vmatprep.mubr.bf16.mxu0 0
        %9418 = vmatmul.mubr.bf16.gmra.mrb[0].mxu0 %v9149
        %v9419 = vpop.f32.mrb[0].mxu0
        %v9420 = vadd.f32 0.0, %v9419
        %v9421 = vpop.f32.mrb[0].mxu0
        %v9422 = vadd.f32 0.0, %v9421
        %v9423 = vpop.f32.mrb[0].mxu0
        %v9424 = vadd.f32 0.0, %v9423
        %v9425 = vpop.f32.mrb[0].mxu0
        %v9426 = vadd.f32 0.0, %v9425
        %9427 = vmatprep.mubr.bf16.mxu0 0
        %9428 = vmatmul.mubr.bf16.gmra.mrb[0].mxu0 %v9150
        %v9429 = vpop.f32.mrb[0].mxu0
        %v9430 = vadd.f32 0.0, %v9429
        %v9431 = vpop.f32.mrb[0].mxu0
        %v9432 = vadd.f32 0.0, %v9431
        %v9433 = vpop.f32.mrb[0].mxu0
        %v9434 = vadd.f32 0.0, %v9433
        %v9435 = vpop.f32.mrb[0].mxu0
        %v9436 = vadd.f32 0.0, %v9435
        %9437 = vmatprep.mubr.bf16.mxu0 0
        %9438 = vmatmul.mubr.bf16.gmra.mrb[0].mxu0 %v9151
        %v9439 = vpop.f32.mrb[0].mxu0
        %v9440 = vadd.f32 0.0, %v9439
        %v9441 = vpop.f32.mrb[0].mxu0
        %v9442 = vadd.f32 0.0, %v9441
        %v9443 = vpop.f32.mrb[0].mxu0
        %v9444 = vadd.f32 0.0, %v9443
        %v9445 = vpop.f32.mrb[0].mxu0
        %v9446 = vadd.f32 0.0, %v9445
        %9447 = vmatprep.mubr.bf16.mxu0 0
        %9448 = vmatmul.mubr.bf16.gmra.mrb[0].mxu0 %v9152
        %v9449 = vpop.f32.mrb[0].mxu0
        %v9450 = vadd.f32 0.0, %v9449
        %v9451 = vpop.f32.mrb[0].mxu0
        %v9452 = vadd.f32 0.0, %v9451
        %v9453 = vpop.f32.mrb[0].mxu0
        %v9454 = vadd.f32 0.0, %v9453
        %v9455 = vpop.f32.mrb[0].mxu0
        %v9456 = vadd.f32 0.0, %v9455
        %9457 = vmatprep.mubr.bf16.mxu0 0
        %9458 = vmatmul.mubr.bf16.gmra.mrb[0].mxu0 %v9153
        %v9459 = vpop.f32.mrb[0].mxu0
        %v9460 = vadd.f32 0.0, %v9459
        %v9461 = vpop.f32.mrb[0].mxu0
        %v9462 = vadd.f32 0.0, %v9461
        %v9463 = vpop.f32.mrb[0].mxu0
        %v9464 = vadd.f32 0.0, %v9463
        %v9465 = vpop.f32.mrb[0].mxu0
        %v9466 = vadd.f32 0.0, %v9465
        %9467 = vmatprep.mubr.bf16.mxu0 0
        %9468 = vmatmul.mubr.bf16.gmra.mrb[0].mxu0 %v9154
        %v9469 = vpop.f32.mrb[0].mxu0
        %v9470 = vadd.f32 0.0, %v9469
        %v9471 = vpop.f32.mrb[0].mxu0
        %v9472 = vadd.f32 0.0, %v9471
        %v9473 = vpop.f32.mrb[0].mxu0
        %v9474 = vadd.f32 0.0, %v9473
        %v9475 = vpop.f32.mrb[0].mxu0
        %v9476 = vadd.f32 0.0, %v9475
        %9477 = vmatprep.mubr.bf16.mxu0 0
        %9478 = vmatmul.mubr.bf16.gmra.mrb[0].mxu0 %v9155
        %v9479 = vpop.f32.mrb[0].mxu0
        %v9480 = vadd.f32 0.0, %v9479
        %v9481 = vpop.f32.mrb[0].mxu0
        %v9482 = vadd.f32 0.0, %v9481
        %v9483 = vpop.f32.mrb[0].mxu0
        %v9484 = vadd.f32 0.0, %v9483
        %v9485 = vpop.f32.mrb[0].mxu0
        %v9486 = vadd.f32 0.0, %v9485
        %9487 = vmatprep.mubr.bf16.mxu0 0
        %9488 = vmatmul.mubr.bf16.gmra.mrb[0].mxu0 %v9156
        %v9489 = vpop.f32.mrb[0].mxu0
        %v9490 = vadd.f32 0.0, %v9489
        %v9491 = vpop.f32.mrb[0].mxu0
        %v9492 = vadd.f32 0.0, %v9491
        %v9493 = vpop.f32.mrb[0].mxu0
        %v9494 = vadd.f32 0.0, %v9493
        %v9495 = vpop.f32.mrb[0].mxu0
        %v9496 = vadd.f32 0.0, %v9495
        %9497 = vmatprep.mubr.bf16.mxu0 0
        %9498 = vmatmul.mubr.bf16.gmra.mrb[0].mxu0 %v9157
        %v9499 = vpop.f32.mrb[0].mxu0
        %v9500 = vadd.f32 0.0, %v9499
        %v9501 = vpop.f32.mrb[0].mxu0
        %v9502 = vadd.f32 0.0, %v9501
        %v9503 = vpop.f32.mrb[0].mxu0
        %v9504 = vadd.f32 0.0, %v9503
        %v9505 = vpop.f32.mrb[0].mxu0
        %v9506 = vadd.f32 0.0, %v9505
        %9507 = vmatprep.mubr.bf16.mxu0 0
        %9508 = vmatmul.mubr.bf16.gmra.mrb[0].mxu0 %v9158
        %v9509 = vpop.f32.mrb[0].mxu0
        %v9510 = vadd.f32 0.0, %v9509
        %v9511 = vpop.f32.mrb[0].mxu0
        %v9512 = vadd.f32 0.0, %v9511
        %v9513 = vpop.f32.mrb[0].mxu0
        %v9514 = vadd.f32 0.0, %v9513
        %v9515 = vpop.f32.mrb[0].mxu0
        %v9516 = vadd.f32 0.0, %v9515
        %9517 = vmatprep.mubr.bf16.mxu0 0
        %9518 = vmatmul.mubr.bf16.gmra.mrb[0].mxu0 %v9159
        %v9519 = vpop.f32.mrb[0].mxu0
        %v9520 = vadd.f32 0.0, %v9519
        %v9521 = vpop.f32.mrb[0].mxu0
        %v9522 = vadd.f32 0.0, %v9521
        %v9523 = vpop.f32.mrb[0].mxu0
        %v9524 = vadd.f32 0.0, %v9523
        %v9525 = vpop.f32.mrb[0].mxu0
        %v9526 = vadd.f32 0.0, %v9525
        %9527 = vmatprep.mubr.bf16.mxu0 0
        %9528 = vmatmul.mubr.bf16.gmra.mrb[0].mxu0 %v9160
        %v9529 = vpop.f32.mrb[0].mxu0
        %v9530 = vadd.f32 0.0, %v9529
        %v9531 = vpop.f32.mrb[0].mxu0
        %v9532 = vadd.f32 0.0, %v9531
        %v9533 = vpop.f32.mrb[0].mxu0
        %v9534 = vadd.f32 0.0, %v9533
        %v9535 = vpop.f32.mrb[0].mxu0
        %v9536 = vadd.f32 0.0, %v9535
        %9537 = vdwg.mxu0
        %v9538 = vadd.f32 %v9024, %v9300
        %v9539 = vadd.f32 %v9025, %v9302
        %v9540 = vadd.f32 %v9026, %v9304
        %v9541 = vadd.f32 %v9027, %v9306
        %v9542 = vadd.f32 %v9028, %v9310
        %v9543 = vadd.f32 %v9029, %v9312
        %v9544 = vadd.f32 %v9030, %v9314
        %v9545 = vadd.f32 %v9031, %v9316
        %v9546 = vadd.f32 %v9032, %v9320
        %v9547 = vadd.f32 %v9033, %v9322
        %v9548 = vadd.f32 %v9034, %v9324
        %v9549 = vadd.f32 %v9035, %v9326
        %v9550 = vadd.f32 %v9036, %v9330
        %v9551 = vadd.f32 %v9037, %v9332
        %v9552 = vadd.f32 %v9038, %v9334
        %v9553 = vadd.f32 %v9039, %v9336
        %v9554 = vadd.f32 %v9040, %v9340
        %v9555 = vadd.f32 %v9041, %v9342
        %v9556 = vadd.f32 %v9042, %v9344
        %v9557 = vadd.f32 %v9043, %v9346
        %v9558 = vadd.f32 %v9044, %v9350
        %v9559 = vadd.f32 %v9045, %v9352
        %v9560 = vadd.f32 %v9046, %v9354
        %v9561 = vadd.f32 %v9047, %v9356
        %v9562 = vadd.f32 %v9048, %v9360
        %v9563 = vadd.f32 %v9049, %v9362
        %v9564 = vadd.f32 %v9050, %v9364
        %v9565 = vadd.f32 %v9051, %v9366
        %v9566 = vadd.f32 %v9052, %v9370
        %v9567 = vadd.f32 %v9053, %v9372
        %v9568 = vadd.f32 %v9054, %v9374
        %v9569 = vadd.f32 %v9055, %v9376
        %v9570 = vadd.f32 %v9056, %v9380
        %v9571 = vadd.f32 %v9057, %v9382
        %v9572 = vadd.f32 %v9058, %v9384
        %v9573 = vadd.f32 %v9059, %v9386
        %v9574 = vadd.f32 %v9060, %v9390
        %v9575 = vadd.f32 %v9061, %v9392
        %v9576 = vadd.f32 %v9062, %v9394
        %v9577 = vadd.f32 %v9063, %v9396
        %v9578 = vadd.f32 %v9064, %v9400
        %v9579 = vadd.f32 %v9065, %v9402
        %v9580 = vadd.f32 %v9066, %v9404
        %v9581 = vadd.f32 %v9067, %v9406
        %v9582 = vadd.f32 %v9068, %v9410
        %v9583 = vadd.f32 %v9069, %v9412
        %v9584 = vadd.f32 %v9070, %v9414
        %v9585 = vadd.f32 %v9071, %v9416
        %v9586 = vadd.f32 %v9072, %v9420
        %v9587 = vadd.f32 %v9073, %v9422
        %v9588 = vadd.f32 %v9074, %v9424
        %v9589 = vadd.f32 %v9075, %v9426
        %v9590 = vadd.f32 %v9076, %v9430
        %v9591 = vadd.f32 %v9077, %v9432
        %v9592 = vadd.f32 %v9078, %v9434
        %v9593 = vadd.f32 %v9079, %v9436
        %v9594 = vadd.f32 %v9080, %v9440
        %v9595 = vadd.f32 %v9081, %v9442
        %v9596 = vadd.f32 %v9082, %v9444
        %v9597 = vadd.f32 %v9083, %v9446
        %v9598 = vadd.f32 %v9084, %v9450
        %v9599 = vadd.f32 %v9085, %v9452
        %v9600 = vadd.f32 %v9086, %v9454
        %v9601 = vadd.f32 %v9087, %v9456
        %v9602 = vadd.f32 %v9088, %v9460
        %v9603 = vadd.f32 %v9089, %v9462
        %v9604 = vadd.f32 %v9090, %v9464
        %v9605 = vadd.f32 %v9091, %v9466
        %v9606 = vadd.f32 %v9092, %v9470
        %v9607 = vadd.f32 %v9093, %v9472
        %v9608 = vadd.f32 %v9094, %v9474
        %v9609 = vadd.f32 %v9095, %v9476
        %v9610 = vadd.f32 %v9096, %v9480
        %v9611 = vadd.f32 %v9097, %v9482
        %v9612 = vadd.f32 %v9098, %v9484
        %v9613 = vadd.f32 %v9099, %v9486
        %v9614 = vadd.f32 %v9100, %v9490
        %v9615 = vadd.f32 %v9101, %v9492
        %v9616 = vadd.f32 %v9102, %v9494
        %v9617 = vadd.f32 %v9103, %v9496
        %v9618 = vadd.f32 %v9104, %v9500
        %v9619 = vadd.f32 %v9105, %v9502
        %v9620 = vadd.f32 %v9106, %v9504
        %v9621 = vadd.f32 %v9107, %v9506
        %v9622 = vadd.f32 %v9108, %v9510
        %v9623 = vadd.f32 %v9109, %v9512
        %v9624 = vadd.f32 %v9110, %v9514
        %v9625 = vadd.f32 %v9111, %v9516
        %v9626 = vadd.f32 %v9112, %v9520
        %v9627 = vadd.f32 %v9113, %v9522
        %v9628 = vadd.f32 %v9114, %v9524
        %v9629 = vadd.f32 %v9115, %v9526
        %v9630 = vadd.f32 %v9116, %v9530
        %v9631 = vadd.f32 %v9117, %v9532
        %v9632 = vadd.f32 %v9118, %v9534
        %v9633 = vadd.f32 %v9119, %v9536
        %v9650 = vunpack.c.l.b16 %v2798
        %v9651 = vunpack.c.l.b16 %v2801
        %v9652 = vunpack.c.l.b16 %v2804
        %v9653 = vunpack.c.l.b16 %v2807
        %v9654 = vunpack.c.l.b16 %v2810
        %v9655 = vunpack.c.l.b16 %v2813
        %v9656 = vunpack.c.l.b16 %v2816
        %v9657 = vunpack.c.l.b16 %v2819
        %v9658 = vunpack.c.l.b16 %v2822
        %v9659 = vunpack.c.l.b16 %v2825
        %v9660 = vunpack.c.l.b16 %v2828
        %v9661 = vunpack.c.l.b16 %v2831
        %v9662 = vunpack.c.l.b16 %v2834
        %v9663 = vunpack.c.l.b16 %v2837
        %v9664 = vunpack.c.l.b16 %v2840
        %v9665 = vunpack.c.l.b16 %v2843
        %v9666 = vpack.c.b16 %v9650, %v9650
        %v9667 = vpack.c.b16 %v9651, %v9651
        %v9668 = vpack.c.b16 %v9652, %v9652
        %v9669 = vpack.c.b16 %v9653, %v9653
        %v9670 = vpack.c.b16 %v9654, %v9654
        %v9671 = vpack.c.b16 %v9655, %v9655
        %v9672 = vpack.c.b16 %v9656, %v9656
        %v9673 = vpack.c.b16 %v9657, %v9657
        %v9674 = vpack.c.b16 %v9658, %v9658
        %v9675 = vpack.c.b16 %v9659, %v9659
        %v9676 = vpack.c.b16 %v9660, %v9660
        %v9677 = vpack.c.b16 %v9661, %v9661
        %v9678 = vpack.c.b16 %v9662, %v9662
        %v9679 = vpack.c.b16 %v9663, %v9663
        %v9680 = vpack.c.b16 %v9664, %v9664
        %v9681 = vpack.c.b16 %v9665, %v9665
        %v9682 = vrot.slane %v5176, 4
        %v9683 = vor.u32 %v9682, %v3055
        %v9684 = vrot.slane %v9683, 4
        %v9686 = vshll.u32 %v9666, 16
        %v9688 = vrot.slane %v9686, 5
        %v9689 = vsel %vm3022, %v9684, %v9688
        %v9690 = vrot.slane %v5196, 4
        %v9691 = vor.u32 %v9690, %v3089
        %v9692 = vrot.slane %v9691, 4
        %v9694 = vshll.u32 %v9667, 16
        %v9696 = vrot.slane %v9694, 5
        %v9697 = vsel %vm3022, %v9692, %v9696
        %v9698 = vrot.slane %v5216, 4
        %v9699 = vor.u32 %v9698, %v3123
        %v9700 = vrot.slane %v9699, 4
        %v9702 = vshll.u32 %v9668, 16
        %v9704 = vrot.slane %v9702, 5
        %v9705 = vsel %vm3022, %v9700, %v9704
        %v9706 = vrot.slane %v5236, 4
        %v9707 = vor.u32 %v9706, %v3157
        %v9708 = vrot.slane %v9707, 4
        %v9710 = vshll.u32 %v9669, 16
        %v9712 = vrot.slane %v9710, 5
        %v9713 = vsel %vm3022, %v9708, %v9712
        %v9714 = vrot.slane %v5256, 4
        %v9715 = vor.u32 %v9714, %v3191
        %v9716 = vrot.slane %v9715, 4
        %v9718 = vshll.u32 %v9670, 16
        %v9720 = vrot.slane %v9718, 5
        %v9721 = vsel %vm3022, %v9716, %v9720
        %v9722 = vrot.slane %v5276, 4
        %v9723 = vor.u32 %v9722, %v3225
        %v9724 = vrot.slane %v9723, 4
        %v9726 = vshll.u32 %v9671, 16
        %v9728 = vrot.slane %v9726, 5
        %v9729 = vsel %vm3022, %v9724, %v9728
        %v9730 = vrot.slane %v5296, 4
        %v9731 = vor.u32 %v9730, %v3259
        %v9732 = vrot.slane %v9731, 4
        %v9734 = vshll.u32 %v9672, 16
        %v9736 = vrot.slane %v9734, 5
        %v9737 = vsel %vm3022, %v9732, %v9736
        %v9738 = vrot.slane %v5316, 4
        %v9739 = vor.u32 %v9738, %v3293
        %v9740 = vrot.slane %v9739, 4
        %v9742 = vshll.u32 %v9673, 16
        %v9744 = vrot.slane %v9742, 5
        %v9745 = vsel %vm3022, %v9740, %v9744
        %v9746 = vrot.slane %v5336, 4
        %v9747 = vor.u32 %v9746, %v3327
        %v9748 = vrot.slane %v9747, 4
        %v9750 = vshll.u32 %v9674, 16
        %v9752 = vrot.slane %v9750, 5
        %v9753 = vsel %vm3022, %v9748, %v9752
        %v9754 = vrot.slane %v5356, 4
        %v9755 = vor.u32 %v9754, %v3361
        %v9756 = vrot.slane %v9755, 4
        %v9758 = vshll.u32 %v9675, 16
        %v9760 = vrot.slane %v9758, 5
        %v9761 = vsel %vm3022, %v9756, %v9760
        %v9762 = vrot.slane %v5376, 4
        %v9763 = vor.u32 %v9762, %v3395
        %v9764 = vrot.slane %v9763, 4
        %v9766 = vshll.u32 %v9676, 16
        %v9768 = vrot.slane %v9766, 5
        %v9769 = vsel %vm3022, %v9764, %v9768
        %v9770 = vrot.slane %v5396, 4
        %v9771 = vor.u32 %v9770, %v3429
        %v9772 = vrot.slane %v9771, 4
        %v9774 = vshll.u32 %v9677, 16
        %v9776 = vrot.slane %v9774, 5
        %v9777 = vsel %vm3022, %v9772, %v9776
        %v9778 = vrot.slane %v5416, 4
        %v9779 = vor.u32 %v9778, %v3463
        %v9780 = vrot.slane %v9779, 4
        %v9782 = vshll.u32 %v9678, 16
        %v9784 = vrot.slane %v9782, 5
        %v9785 = vsel %vm3022, %v9780, %v9784
        %v9786 = vrot.slane %v5436, 4
        %v9787 = vor.u32 %v9786, %v3497
        %v9788 = vrot.slane %v9787, 4
        %v9790 = vshll.u32 %v9679, 16
        %v9792 = vrot.slane %v9790, 5
        %v9793 = vsel %vm3022, %v9788, %v9792
        %v9794 = vrot.slane %v5456, 4
        %v9795 = vor.u32 %v9794, %v3531
        %v9796 = vrot.slane %v9795, 4
        %v9798 = vshll.u32 %v9680, 16
        %v9800 = vrot.slane %v9798, 5
        %v9801 = vsel %vm3022, %v9796, %v9800
        %v9802 = vrot.slane %v5476, 4
        %v9803 = vor.u32 %v9802, %v3565
        %v9804 = vrot.slane %v9803, 4
        %v9806 = vshll.u32 %v9681, 16
        %v9808 = vrot.slane %v9806, 5
        %v9809 = vsel %vm3022, %v9804, %v9808
        %s9810 = scalar_lea.vmem [#allocation10], 1152
        %v9811 = vld [vmem:[%s9810] sm:$0xff]
        %v9812 = vld [vmem:[%s9810 + $0x8] sm:$0xff]
        %v9813 = vld [vmem:[%s9810 + $0x10] sm:$0xff]
        %v9814 = vld [vmem:[%s9810 + $0x18] sm:$0xff]
        %v9815 = vld [vmem:[%s9810 + $0x20] sm:$0xff]
        %v9816 = vld [vmem:[%s9810 + $0x28] sm:$0xff]
        %v9817 = vld [vmem:[%s9810 + $0x30] sm:$0xff]
        %v9818 = vld [vmem:[%s9810 + $0x38] sm:$0xff]
        %v9819 = vld [vmem:[%s9810 + $0x40] sm:$0xff]
        %v9820 = vld [vmem:[%s9810 + $0x48] sm:$0xff]
        %v9821 = vld [vmem:[%s9810 + $0x50] sm:$0xff]
        %v9822 = vld [vmem:[%s9810 + $0x58] sm:$0xff]
        %v9823 = vld [vmem:[%s9810 + $0x60] sm:$0xff]
        %v9824 = vld [vmem:[%s9810 + $0x68] sm:$0xff]
        %v9825 = vld [vmem:[%s9810 + $0x70] sm:$0xff]
        %v9826 = vld [vmem:[%s9810 + $0x78] sm:$0xff]
        %v9827 = vunpack.c.l.b16 %v9689
        %v9828 = vunpack.c.l.b16 %v9697
        %v9829 = vunpack.c.l.b16 %v9705
        %v9830 = vunpack.c.l.b16 %v9713
        %v9831 = vunpack.c.l.b16 %v9721
        %v9832 = vunpack.c.l.b16 %v9729
        %v9833 = vunpack.c.l.b16 %v9737
        %v9834 = vunpack.c.l.b16 %v9745
        %v9835 = vunpack.c.l.b16 %v9753
        %v9836 = vunpack.c.l.b16 %v9761
        %v9837 = vunpack.c.l.b16 %v9769
        %v9838 = vunpack.c.l.b16 %v9777
        %v9839 = vunpack.c.l.b16 %v9785
        %v9840 = vunpack.c.l.b16 %v9793
        %v9841 = vunpack.c.l.b16 %v9801
        %v9842 = vunpack.c.l.b16 %v9809
        %v9843 = vpack.c.b16 %v3586, %v3585
        %v9844 = vpack.c.b16 %v3588, %v9827
        %v9845 = vpack.c.b16 %v9828, %v3589
        %v9846 = vpack.c.b16 %v3592, %v3591
        %v9847 = vpack.c.b16 %v3594, %v9829
        %v9848 = vpack.c.b16 %v9830, %v3595
        %v9849 = vpack.c.b16 %v3598, %v3597
        %v9850 = vpack.c.b16 %v3600, %v9831
        %v9851 = vpack.c.b16 %v9832, %v3601
        %v9852 = vpack.c.b16 %v3604, %v3603
        %v9853 = vpack.c.b16 %v3606, %v9833
        %v9854 = vpack.c.b16 %v9834, %v3607
        %v9855 = vpack.c.b16 %v3610, %v3609
        %v9856 = vpack.c.b16 %v3612, %v9835
        %v9857 = vpack.c.b16 %v9836, %v3613
        %v9858 = vpack.c.b16 %v3616, %v3615
        %v9859 = vpack.c.b16 %v3618, %v9837
        %v9860 = vpack.c.b16 %v9838, %v3619
        %v9861 = vpack.c.b16 %v3622, %v3621
        %v9862 = vpack.c.b16 %v3624, %v9839
        %v9863 = vpack.c.b16 %v9840, %v3625
        %v9864 = vpack.c.b16 %v3628, %v3627
        %v9865 = vpack.c.b16 %v3630, %v9841
        %v9866 = vpack.c.b16 %v9842, %v3631
        %v9907 = vunpack.c.l.b16 %v9811
        %v9908 = vunpack.c.h.b16 %v9811
        %v9909 = vunpack.c.l.b16 %v9812
        %v9910 = vunpack.c.h.b16 %v9812
        %v9911 = vunpack.c.l.b16 %v9813
        %v9912 = vunpack.c.h.b16 %v9813
        %v9913 = vunpack.c.l.b16 %v9814
        %v9914 = vunpack.c.h.b16 %v9814
        %v9915 = vunpack.c.l.b16 %v9815
        %v9916 = vunpack.c.h.b16 %v9815
        %v9917 = vunpack.c.l.b16 %v9816
        %v9918 = vunpack.c.h.b16 %v9816
        %v9919 = vunpack.c.l.b16 %v9817
        %v9920 = vunpack.c.h.b16 %v9817
        %v9921 = vunpack.c.l.b16 %v9818
        %v9922 = vunpack.c.h.b16 %v9818
        %v9923 = vunpack.c.l.b16 %v9819
        %v9924 = vunpack.c.h.b16 %v9819
        %v9925 = vunpack.c.l.b16 %v9820
        %v9926 = vunpack.c.h.b16 %v9820
        %v9927 = vunpack.c.l.b16 %v9821
        %v9928 = vunpack.c.h.b16 %v9821
        %v9929 = vunpack.c.l.b16 %v9822
        %v9930 = vunpack.c.h.b16 %v9822
        %v9931 = vunpack.c.l.b16 %v9823
        %v9932 = vunpack.c.h.b16 %v9823
        %v9933 = vunpack.c.l.b16 %v9824
        %v9934 = vunpack.c.h.b16 %v9824
        %v9935 = vunpack.c.l.b16 %v9825
        %v9936 = vunpack.c.h.b16 %v9825
        %v9937 = vunpack.c.l.b16 %v9826
        %v9938 = vunpack.c.h.b16 %v9826
        %v9939 = vpack.c.b16 %v9909, %v9907
        %v9940 = vpack.c.b16 %v9910, %v9908
        %v9941 = vpack.c.b16 %v9913, %v9911
        %v9942 = vpack.c.b16 %v9914, %v9912
        %v9943 = vpack.c.b16 %v9917, %v9915
        %v9944 = vpack.c.b16 %v9918, %v9916
        %v9945 = vpack.c.b16 %v9921, %v9919
        %v9946 = vpack.c.b16 %v9922, %v9920
        %v9947 = vpack.c.b16 %v9925, %v9923
        %v9948 = vpack.c.b16 %v9926, %v9924
        %v9949 = vpack.c.b16 %v9929, %v9927
        %v9950 = vpack.c.b16 %v9930, %v9928
        %v9951 = vpack.c.b16 %v9933, %v9931
        %v9952 = vpack.c.b16 %v9934, %v9932
        %v9953 = vpack.c.b16 %v9937, %v9935
        %v9954 = vpack.c.b16 %v9938, %v9936
        %9971 = vmatprep.subr.bf16.mxu0 %v9940
        %9972 = vmatpush1.bf16.msra.mxu0 %v9939
        %9973 = vmatprep.subr.bf16.mxu0 %v9942
        %9974 = vmatpush1.bf16.msra.mxu0 %v9941
        %9975 = vmatprep.subr.bf16.mxu0 %v9944
        %9976 = vmatpush1.bf16.msra.mxu0 %v9943
        %9977 = vmatprep.subr.bf16.mxu0 %v9946
        %9978 = vmatpush1.bf16.msra.mxu0 %v9945
        %9979 = vmatprep.subr.bf16.mxu0 %v9948
        %9980 = vmatpush1.bf16.msra.mxu0 %v9947
        %9981 = vmatprep.subr.bf16.mxu0 %v9950
        %9982 = vmatpush1.bf16.msra.mxu0 %v9949
        %9983 = vmatprep.subr.bf16.mxu0 %v9952
        %9984 = vmatpush1.bf16.msra.mxu0 %v9951
        %9985 = vmatprep.subr.bf16.mxu0 %v9954
        %9986 = vmatpush1.bf16.msra.mxu0 %v9953
        %9987 = vmatprep.subr.bf16.mxu0 0
        %9988 = vmatpush1.bf16.msra.mxu0 0
        %9989 = vmatprep.subr.bf16.mxu0 0
        %9990 = vmatpush1.bf16.msra.mxu0 0
        %9991 = vmatprep.subr.bf16.mxu0 0
        %9992 = vmatpush1.bf16.msra.mxu0 0
        %9993 = vmatprep.subr.bf16.mxu0 0
        %9994 = vmatpush1.bf16.msra.mxu0 0
        %9995 = vmatprep.subr.bf16.mxu0 0
        %9996 = vmatpush1.bf16.msra.mxu0 0
        %9997 = vmatprep.subr.bf16.mxu0 0
        %9998 = vmatpush1.bf16.msra.mxu0 0
        %9999 = vmatprep.subr.bf16.mxu0 0
        %10000 = vmatpush1.bf16.msra.mxu0 0
        %10001 = vmatprep.subr.bf16.mxu0 0
        %10002 = vmatpush1.bf16.msra.mxu0 0
        %10003 = vmatprep.mubr.bf16.mxu0 0
        %10004 = vmatmul.mubr.bf16.gmra.mrb[0].mxu0 %v9843
        %v10005 = vpop.f32.mrb[0].mxu0
        %v10006 = vadd.f32 0.0, %v10005
        %v10007 = vpop.f32.mrb[0].mxu0
        %v10008 = vadd.f32 0.0, %v10007
        %v10009 = vpop.f32.mrb[0].mxu0
        %v10010 = vadd.f32 0.0, %v10009
        %v10011 = vpop.f32.mrb[0].mxu0
        %v10012 = vadd.f32 0.0, %v10011
        %10013 = vmatprep.mubr.bf16.mxu0 0
        %10014 = vmatmul.mubr.bf16.gmra.mrb[0].mxu0 %v9844
        %v10015 = vpop.f32.mrb[0].mxu0
        %v10016 = vadd.f32 0.0, %v10015
        %v10017 = vpop.f32.mrb[0].mxu0
        %v10018 = vadd.f32 0.0, %v10017
        %v10019 = vpop.f32.mrb[0].mxu0
        %v10020 = vadd.f32 0.0, %v10019
        %v10021 = vpop.f32.mrb[0].mxu0
        %v10022 = vadd.f32 0.0, %v10021
        %10023 = vmatprep.mubr.bf16.mxu0 0
        %10024 = vmatmul.mubr.bf16.gmra.mrb[0].mxu0 %v9845
        %v10025 = vpop.f32.mrb[0].mxu0
        %v10026 = vadd.f32 0.0, %v10025
        %v10027 = vpop.f32.mrb[0].mxu0
        %v10028 = vadd.f32 0.0, %v10027
        %v10029 = vpop.f32.mrb[0].mxu0
        %v10030 = vadd.f32 0.0, %v10029
        %v10031 = vpop.f32.mrb[0].mxu0
        %v10032 = vadd.f32 0.0, %v10031
        %10033 = vmatprep.mubr.bf16.mxu0 0
        %10034 = vmatmul.mubr.bf16.gmra.mrb[0].mxu0 %v9846
        %v10035 = vpop.f32.mrb[0].mxu0
        %v10036 = vadd.f32 0.0, %v10035
        %v10037 = vpop.f32.mrb[0].mxu0
        %v10038 = vadd.f32 0.0, %v10037
        %v10039 = vpop.f32.mrb[0].mxu0
        %v10040 = vadd.f32 0.0, %v10039
        %v10041 = vpop.f32.mrb[0].mxu0
        %v10042 = vadd.f32 0.0, %v10041
        %10043 = vmatprep.mubr.bf16.mxu0 0
        %10044 = vmatmul.mubr.bf16.gmra.mrb[0].mxu0 %v9847
        %v10045 = vpop.f32.mrb[0].mxu0
        %v10046 = vadd.f32 0.0, %v10045
        %v10047 = vpop.f32.mrb[0].mxu0
        %v10048 = vadd.f32 0.0, %v10047
        %v10049 = vpop.f32.mrb[0].mxu0
        %v10050 = vadd.f32 0.0, %v10049
        %v10051 = vpop.f32.mrb[0].mxu0
        %v10052 = vadd.f32 0.0, %v10051
        %10053 = vmatprep.mubr.bf16.mxu0 0
        %10054 = vmatmul.mubr.bf16.gmra.mrb[0].mxu0 %v9848
        %v10055 = vpop.f32.mrb[0].mxu0
        %v10056 = vadd.f32 0.0, %v10055
        %v10057 = vpop.f32.mrb[0].mxu0
        %v10058 = vadd.f32 0.0, %v10057
        %v10059 = vpop.f32.mrb[0].mxu0
        %v10060 = vadd.f32 0.0, %v10059
        %v10061 = vpop.f32.mrb[0].mxu0
        %v10062 = vadd.f32 0.0, %v10061
        %10063 = vmatprep.mubr.bf16.mxu0 0
        %10064 = vmatmul.mubr.bf16.gmra.mrb[0].mxu0 %v9849
        %v10065 = vpop.f32.mrb[0].mxu0
        %v10066 = vadd.f32 0.0, %v10065
        %v10067 = vpop.f32.mrb[0].mxu0
        %v10068 = vadd.f32 0.0, %v10067
        %v10069 = vpop.f32.mrb[0].mxu0
        %v10070 = vadd.f32 0.0, %v10069
        %v10071 = vpop.f32.mrb[0].mxu0
        %v10072 = vadd.f32 0.0, %v10071
        %10073 = vmatprep.mubr.bf16.mxu0 0
        %10074 = vmatmul.mubr.bf16.gmra.mrb[0].mxu0 %v9850
        %v10075 = vpop.f32.mrb[0].mxu0
        %v10076 = vadd.f32 0.0, %v10075
        %v10077 = vpop.f32.mrb[0].mxu0
        %v10078 = vadd.f32 0.0, %v10077
        %v10079 = vpop.f32.mrb[0].mxu0
        %v10080 = vadd.f32 0.0, %v10079
        %v10081 = vpop.f32.mrb[0].mxu0
        %v10082 = vadd.f32 0.0, %v10081
        %10083 = vmatprep.mubr.bf16.mxu0 0
        %10084 = vmatmul.mubr.bf16.gmra.mrb[0].mxu0 %v9851
        %v10085 = vpop.f32.mrb[0].mxu0
        %v10086 = vadd.f32 0.0, %v10085
        %v10087 = vpop.f32.mrb[0].mxu0
        %v10088 = vadd.f32 0.0, %v10087
        %v10089 = vpop.f32.mrb[0].mxu0
        %v10090 = vadd.f32 0.0, %v10089
        %v10091 = vpop.f32.mrb[0].mxu0
        %v10092 = vadd.f32 0.0, %v10091
        %10093 = vmatprep.mubr.bf16.mxu0 0
        %10094 = vmatmul.mubr.bf16.gmra.mrb[0].mxu0 %v9852
        %v10095 = vpop.f32.mrb[0].mxu0
        %v10096 = vadd.f32 0.0, %v10095
        %v10097 = vpop.f32.mrb[0].mxu0
        %v10098 = vadd.f32 0.0, %v10097
        %v10099 = vpop.f32.mrb[0].mxu0
        %v10100 = vadd.f32 0.0, %v10099
        %v10101 = vpop.f32.mrb[0].mxu0
        %v10102 = vadd.f32 0.0, %v10101
        %10103 = vmatprep.mubr.bf16.mxu0 0
        %10104 = vmatmul.mubr.bf16.gmra.mrb[0].mxu0 %v9853
        %v10105 = vpop.f32.mrb[0].mxu0
        %v10106 = vadd.f32 0.0, %v10105
        %v10107 = vpop.f32.mrb[0].mxu0
        %v10108 = vadd.f32 0.0, %v10107
        %v10109 = vpop.f32.mrb[0].mxu0
        %v10110 = vadd.f32 0.0, %v10109
        %v10111 = vpop.f32.mrb[0].mxu0
        %v10112 = vadd.f32 0.0, %v10111
        %10113 = vmatprep.mubr.bf16.mxu0 0
        %10114 = vmatmul.mubr.bf16.gmra.mrb[0].mxu0 %v9854
        %v10115 = vpop.f32.mrb[0].mxu0
        %v10116 = vadd.f32 0.0, %v10115
        %v10117 = vpop.f32.mrb[0].mxu0
        %v10118 = vadd.f32 0.0, %v10117
        %v10119 = vpop.f32.mrb[0].mxu0
        %v10120 = vadd.f32 0.0, %v10119
        %v10121 = vpop.f32.mrb[0].mxu0
        %v10122 = vadd.f32 0.0, %v10121
        %10123 = vmatprep.mubr.bf16.mxu0 0
        %10124 = vmatmul.mubr.bf16.gmra.mrb[0].mxu0 %v9855
        %v10125 = vpop.f32.mrb[0].mxu0
        %v10126 = vadd.f32 0.0, %v10125
        %v10127 = vpop.f32.mrb[0].mxu0
        %v10128 = vadd.f32 0.0, %v10127
        %v10129 = vpop.f32.mrb[0].mxu0
        %v10130 = vadd.f32 0.0, %v10129
        %v10131 = vpop.f32.mrb[0].mxu0
        %v10132 = vadd.f32 0.0, %v10131
        %10133 = vmatprep.mubr.bf16.mxu0 0
        %10134 = vmatmul.mubr.bf16.gmra.mrb[0].mxu0 %v9856
        %v10135 = vpop.f32.mrb[0].mxu0
        %v10136 = vadd.f32 0.0, %v10135
        %v10137 = vpop.f32.mrb[0].mxu0
        %v10138 = vadd.f32 0.0, %v10137
        %v10139 = vpop.f32.mrb[0].mxu0
        %v10140 = vadd.f32 0.0, %v10139
        %v10141 = vpop.f32.mrb[0].mxu0
        %v10142 = vadd.f32 0.0, %v10141
        %10143 = vmatprep.mubr.bf16.mxu0 0
        %10144 = vmatmul.mubr.bf16.gmra.mrb[0].mxu0 %v9857
        %v10145 = vpop.f32.mrb[0].mxu0
        %v10146 = vadd.f32 0.0, %v10145
        %v10147 = vpop.f32.mrb[0].mxu0
        %v10148 = vadd.f32 0.0, %v10147
        %v10149 = vpop.f32.mrb[0].mxu0
        %v10150 = vadd.f32 0.0, %v10149
        %v10151 = vpop.f32.mrb[0].mxu0
        %v10152 = vadd.f32 0.0, %v10151
        %10153 = vmatprep.mubr.bf16.mxu0 0
        %10154 = vmatmul.mubr.bf16.gmra.mrb[0].mxu0 %v9858
        %v10155 = vpop.f32.mrb[0].mxu0
        %v10156 = vadd.f32 0.0, %v10155
        %v10157 = vpop.f32.mrb[0].mxu0
        %v10158 = vadd.f32 0.0, %v10157
        %v10159 = vpop.f32.mrb[0].mxu0
        %v10160 = vadd.f32 0.0, %v10159
        %v10161 = vpop.f32.mrb[0].mxu0
        %v10162 = vadd.f32 0.0, %v10161
        %10163 = vmatprep.mubr.bf16.mxu0 0
        %10164 = vmatmul.mubr.bf16.gmra.mrb[0].mxu0 %v9859
        %v10165 = vpop.f32.mrb[0].mxu0
        %v10166 = vadd.f32 0.0, %v10165
        %v10167 = vpop.f32.mrb[0].mxu0
        %v10168 = vadd.f32 0.0, %v10167
        %v10169 = vpop.f32.mrb[0].mxu0
        %v10170 = vadd.f32 0.0, %v10169
        %v10171 = vpop.f32.mrb[0].mxu0
        %v10172 = vadd.f32 0.0, %v10171
        %10173 = vmatprep.mubr.bf16.mxu0 0
        %10174 = vmatmul.mubr.bf16.gmra.mrb[0].mxu0 %v9860
        %v10175 = vpop.f32.mrb[0].mxu0
        %v10176 = vadd.f32 0.0, %v10175
        %v10177 = vpop.f32.mrb[0].mxu0
        %v10178 = vadd.f32 0.0, %v10177
        %v10179 = vpop.f32.mrb[0].mxu0
        %v10180 = vadd.f32 0.0, %v10179
        %v10181 = vpop.f32.mrb[0].mxu0
        %v10182 = vadd.f32 0.0, %v10181
        %10183 = vmatprep.mubr.bf16.mxu0 0
        %10184 = vmatmul.mubr.bf16.gmra.mrb[0].mxu0 %v9861
        %v10185 = vpop.f32.mrb[0].mxu0
        %v10186 = vadd.f32 0.0, %v10185
        %v10187 = vpop.f32.mrb[0].mxu0
        %v10188 = vadd.f32 0.0, %v10187
        %v10189 = vpop.f32.mrb[0].mxu0
        %v10190 = vadd.f32 0.0, %v10189
        %v10191 = vpop.f32.mrb[0].mxu0
        %v10192 = vadd.f32 0.0, %v10191
        %10193 = vmatprep.mubr.bf16.mxu0 0
        %10194 = vmatmul.mubr.bf16.gmra.mrb[0].mxu0 %v9862
        %v10195 = vpop.f32.mrb[0].mxu0
        %v10196 = vadd.f32 0.0, %v10195
        %v10197 = vpop.f32.mrb[0].mxu0
        %v10198 = vadd.f32 0.0, %v10197
        %v10199 = vpop.f32.mrb[0].mxu0
        %v10200 = vadd.f32 0.0, %v10199
        %v10201 = vpop.f32.mrb[0].mxu0
        %v10202 = vadd.f32 0.0, %v10201
        %10203 = vmatprep.mubr.bf16.mxu0 0
        %10204 = vmatmul.mubr.bf16.gmra.mrb[0].mxu0 %v9863
        %v10205 = vpop.f32.mrb[0].mxu0
        %v10206 = vadd.f32 0.0, %v10205
        %v10207 = vpop.f32.mrb[0].mxu0
        %v10208 = vadd.f32 0.0, %v10207
        %v10209 = vpop.f32.mrb[0].mxu0
        %v10210 = vadd.f32 0.0, %v10209
        %v10211 = vpop.f32.mrb[0].mxu0
        %v10212 = vadd.f32 0.0, %v10211
        %10213 = vmatprep.mubr.bf16.mxu0 0
        %10214 = vmatmul.mubr.bf16.gmra.mrb[0].mxu0 %v9864
        %v10215 = vpop.f32.mrb[0].mxu0
        %v10216 = vadd.f32 0.0, %v10215
        %v10217 = vpop.f32.mrb[0].mxu0
        %v10218 = vadd.f32 0.0, %v10217
        %v10219 = vpop.f32.mrb[0].mxu0
        %v10220 = vadd.f32 0.0, %v10219
        %v10221 = vpop.f32.mrb[0].mxu0
        %v10222 = vadd.f32 0.0, %v10221
        %10223 = vmatprep.mubr.bf16.mxu0 0
        %10224 = vmatmul.mubr.bf16.gmra.mrb[0].mxu0 %v9865
        %v10225 = vpop.f32.mrb[0].mxu0
        %v10226 = vadd.f32 0.0, %v10225
        %v10227 = vpop.f32.mrb[0].mxu0
        %v10228 = vadd.f32 0.0, %v10227
        %v10229 = vpop.f32.mrb[0].mxu0
        %v10230 = vadd.f32 0.0, %v10229
        %v10231 = vpop.f32.mrb[0].mxu0
        %v10232 = vadd.f32 0.0, %v10231
        %10233 = vmatprep.mubr.bf16.mxu0 0
        %10234 = vmatmul.mubr.bf16.gmra.mrb[0].mxu0 %v9866
        %v10235 = vpop.f32.mrb[0].mxu0
        %v10236 = vadd.f32 0.0, %v10235
        %v10237 = vpop.f32.mrb[0].mxu0
        %v10238 = vadd.f32 0.0, %v10237
        %v10239 = vpop.f32.mrb[0].mxu0
        %v10240 = vadd.f32 0.0, %v10239
        %v10241 = vpop.f32.mrb[0].mxu0
        %v10242 = vadd.f32 0.0, %v10241
        %10243 = vdwg.mxu0
        %v10244 = vadd.f32 %v9538, %v10006
        %v10245 = vadd.f32 %v9539, %v10008
        %v10246 = vadd.f32 %v9540, %v10010
        %v10247 = vadd.f32 %v9541, %v10012
        %v10248 = vadd.f32 %v9542, %v10016
        %v10249 = vadd.f32 %v9543, %v10018
        %v10250 = vadd.f32 %v9544, %v10020
        %v10251 = vadd.f32 %v9545, %v10022
        %v10252 = vadd.f32 %v9546, %v10026
        %v10253 = vadd.f32 %v9547, %v10028
        %v10254 = vadd.f32 %v9548, %v10030
        %v10255 = vadd.f32 %v9549, %v10032
        %v10256 = vadd.f32 %v9550, %v10036
        %v10257 = vadd.f32 %v9551, %v10038
        %v10258 = vadd.f32 %v9552, %v10040
        %v10259 = vadd.f32 %v9553, %v10042
        %v10260 = vadd.f32 %v9554, %v10046
        %v10261 = vadd.f32 %v9555, %v10048
        %v10262 = vadd.f32 %v9556, %v10050
        %v10263 = vadd.f32 %v9557, %v10052
        %v10264 = vadd.f32 %v9558, %v10056
        %v10265 = vadd.f32 %v9559, %v10058
        %v10266 = vadd.f32 %v9560, %v10060
        %v10267 = vadd.f32 %v9561, %v10062
        %v10268 = vadd.f32 %v9562, %v10066
        %v10269 = vadd.f32 %v9563, %v10068
        %v10270 = vadd.f32 %v9564, %v10070
        %v10271 = vadd.f32 %v9565, %v10072
        %v10272 = vadd.f32 %v9566, %v10076
        %v10273 = vadd.f32 %v9567, %v10078
        %v10274 = vadd.f32 %v9568, %v10080
        %v10275 = vadd.f32 %v9569, %v10082
        %v10276 = vadd.f32 %v9570, %v10086
        %v10277 = vadd.f32 %v9571, %v10088
        %v10278 = vadd.f32 %v9572, %v10090
        %v10279 = vadd.f32 %v9573, %v10092
        %v10280 = vadd.f32 %v9574, %v10096
        %v10281 = vadd.f32 %v9575, %v10098
        %v10282 = vadd.f32 %v9576, %v10100
        %v10283 = vadd.f32 %v9577, %v10102
        %v10284 = vadd.f32 %v9578, %v10106
        %v10285 = vadd.f32 %v9579, %v10108
        %v10286 = vadd.f32 %v9580, %v10110
        %v10287 = vadd.f32 %v9581, %v10112
        %v10288 = vadd.f32 %v9582, %v10116
        %v10289 = vadd.f32 %v9583, %v10118
        %v10290 = vadd.f32 %v9584, %v10120
        %v10291 = vadd.f32 %v9585, %v10122
        %v10292 = vadd.f32 %v9586, %v10126
        %v10293 = vadd.f32 %v9587, %v10128
        %v10294 = vadd.f32 %v9588, %v10130
        %v10295 = vadd.f32 %v9589, %v10132
        %v10296 = vadd.f32 %v9590, %v10136
        %v10297 = vadd.f32 %v9591, %v10138
        %v10298 = vadd.f32 %v9592, %v10140
        %v10299 = vadd.f32 %v9593, %v10142
        %v10300 = vadd.f32 %v9594, %v10146
        %v10301 = vadd.f32 %v9595, %v10148
        %v10302 = vadd.f32 %v9596, %v10150
        %v10303 = vadd.f32 %v9597, %v10152
        %v10304 = vadd.f32 %v9598, %v10156
        %v10305 = vadd.f32 %v9599, %v10158
        %v10306 = vadd.f32 %v9600, %v10160
        %v10307 = vadd.f32 %v9601, %v10162
        %v10308 = vadd.f32 %v9602, %v10166
        %v10309 = vadd.f32 %v9603, %v10168
        %v10310 = vadd.f32 %v9604, %v10170
        %v10311 = vadd.f32 %v9605, %v10172
        %v10312 = vadd.f32 %v9606, %v10176
        %v10313 = vadd.f32 %v9607, %v10178
        %v10314 = vadd.f32 %v9608, %v10180
        %v10315 = vadd.f32 %v9609, %v10182
        %v10316 = vadd.f32 %v9610, %v10186
        %v10317 = vadd.f32 %v9611, %v10188
        %v10318 = vadd.f32 %v9612, %v10190
        %v10319 = vadd.f32 %v9613, %v10192
        %v10320 = vadd.f32 %v9614, %v10196
        %v10321 = vadd.f32 %v9615, %v10198
        %v10322 = vadd.f32 %v9616, %v10200
        %v10323 = vadd.f32 %v9617, %v10202
        %v10324 = vadd.f32 %v9618, %v10206
        %v10325 = vadd.f32 %v9619, %v10208
        %v10326 = vadd.f32 %v9620, %v10210
        %v10327 = vadd.f32 %v9621, %v10212
        %v10328 = vadd.f32 %v9622, %v10216
        %v10329 = vadd.f32 %v9623, %v10218
        %v10330 = vadd.f32 %v9624, %v10220
        %v10331 = vadd.f32 %v9625, %v10222
        %v10332 = vadd.f32 %v9626, %v10226
        %v10333 = vadd.f32 %v9627, %v10228
        %v10334 = vadd.f32 %v9628, %v10230
        %v10335 = vadd.f32 %v9629, %v10232
        %v10336 = vadd.f32 %v9630, %v10236
        %v10337 = vadd.f32 %v9631, %v10238
        %v10338 = vadd.f32 %v9632, %v10240
        %v10339 = vadd.f32 %v9633, %v10242
        %v10340 = vld [vmem:[#allocation11] sm:$0x3]
        %v10342 = vlaneseq
        %v10343 = vshrl.u32 %v10342, 7
        %v10344 = vsub.s32 0, %v10343
        %v10345 = vrot.slane %v10340, %v10344
        %v10346 = vlaneseq
        %v10347 = vshrl.u32 %v10346, 7
        %v10348 = vsub.s32 1, %v10347
        %v10349 = vrot.slane %v10340, %v10348
        %v10352 = vmul.f32 %v10244, %v10345
        %v10353 = vmul.f32 %v10245, %v10349
        %v10354 = vmul.f32 %v10246, %v10345
        %v10355 = vmul.f32 %v10247, %v10349
        %v10356 = vmul.f32 %v10248, %v10345
        %v10357 = vmul.f32 %v10249, %v10349
        %v10358 = vmul.f32 %v10250, %v10345
        %v10359 = vmul.f32 %v10251, %v10349
        %v10360 = vmul.f32 %v10252, %v10345
        %v10361 = vmul.f32 %v10253, %v10349
        %v10362 = vmul.f32 %v10254, %v10345
        %v10363 = vmul.f32 %v10255, %v10349
        %v10364 = vmul.f32 %v10256, %v10345
        %v10365 = vmul.f32 %v10257, %v10349
        %v10366 = vmul.f32 %v10258, %v10345
        %v10367 = vmul.f32 %v10259, %v10349
        %v10368 = vmul.f32 %v10260, %v10345
        %v10369 = vmul.f32 %v10261, %v10349
        %v10370 = vmul.f32 %v10262, %v10345
        %v10371 = vmul.f32 %v10263, %v10349
        %v10372 = vmul.f32 %v10264, %v10345
        %v10373 = vmul.f32 %v10265, %v10349
        %v10374 = vmul.f32 %v10266, %v10345
        %v10375 = vmul.f32 %v10267, %v10349
        %v10376 = vmul.f32 %v10268, %v10345
        %v10377 = vmul.f32 %v10269, %v10349
        %v10378 = vmul.f32 %v10270, %v10345
        %v10379 = vmul.f32 %v10271, %v10349
        %v10380 = vmul.f32 %v10272, %v10345
        %v10381 = vmul.f32 %v10273, %v10349
        %v10382 = vmul.f32 %v10274, %v10345
        %v10383 = vmul.f32 %v10275, %v10349
        %v10384 = vmul.f32 %v10276, %v10345
        %v10385 = vmul.f32 %v10277, %v10349
        %v10386 = vmul.f32 %v10278, %v10345
        %v10387 = vmul.f32 %v10279, %v10349
        %v10388 = vmul.f32 %v10280, %v10345
        %v10389 = vmul.f32 %v10281, %v10349
        %v10390 = vmul.f32 %v10282, %v10345
        %v10391 = vmul.f32 %v10283, %v10349
        %v10392 = vmul.f32 %v10284, %v10345
        %v10393 = vmul.f32 %v10285, %v10349
        %v10394 = vmul.f32 %v10286, %v10345
        %v10395 = vmul.f32 %v10287, %v10349
        %v10396 = vmul.f32 %v10288, %v10345
        %v10397 = vmul.f32 %v10289, %v10349
        %v10398 = vmul.f32 %v10290, %v10345
        %v10399 = vmul.f32 %v10291, %v10349
        %v10400 = vmul.f32 %v10292, %v10345
        %v10401 = vmul.f32 %v10293, %v10349
        %v10402 = vmul.f32 %v10294, %v10345
        %v10403 = vmul.f32 %v10295, %v10349
        %v10404 = vmul.f32 %v10296, %v10345
        %v10405 = vmul.f32 %v10297, %v10349
        %v10406 = vmul.f32 %v10298, %v10345
        %v10407 = vmul.f32 %v10299, %v10349
        %v10408 = vmul.f32 %v10300, %v10345
        %v10409 = vmul.f32 %v10301, %v10349
        %v10410 = vmul.f32 %v10302, %v10345
        %v10411 = vmul.f32 %v10303, %v10349
        %v10412 = vmul.f32 %v10304, %v10345
        %v10413 = vmul.f32 %v10305, %v10349
        %v10414 = vmul.f32 %v10306, %v10345
        %v10415 = vmul.f32 %v10307, %v10349
        %v10416 = vmul.f32 %v10308, %v10345
        %v10417 = vmul.f32 %v10309, %v10349
        %v10418 = vmul.f32 %v10310, %v10345
        %v10419 = vmul.f32 %v10311, %v10349
        %v10420 = vmul.f32 %v10312, %v10345
        %v10421 = vmul.f32 %v10313, %v10349
        %v10422 = vmul.f32 %v10314, %v10345
        %v10423 = vmul.f32 %v10315, %v10349
        %v10424 = vmul.f32 %v10316, %v10345
        %v10425 = vmul.f32 %v10317, %v10349
        %v10426 = vmul.f32 %v10318, %v10345
        %v10427 = vmul.f32 %v10319, %v10349
        %v10428 = vmul.f32 %v10320, %v10345
        %v10429 = vmul.f32 %v10321, %v10349
        %v10430 = vmul.f32 %v10322, %v10345
        %v10431 = vmul.f32 %v10323, %v10349
        %v10432 = vmul.f32 %v10324, %v10345
        %v10433 = vmul.f32 %v10325, %v10349
        %v10434 = vmul.f32 %v10326, %v10345
        %v10435 = vmul.f32 %v10327, %v10349
        %v10436 = vmul.f32 %v10328, %v10345
        %v10437 = vmul.f32 %v10329, %v10349
        %v10438 = vmul.f32 %v10330, %v10345
        %v10439 = vmul.f32 %v10331, %v10349
        %v10440 = vmul.f32 %v10332, %v10345
        %v10441 = vmul.f32 %v10333, %v10349
        %v10442 = vmul.f32 %v10334, %v10345
        %v10443 = vmul.f32 %v10335, %v10349
        %v10444 = vmul.f32 %v10336, %v10345
        %v10445 = vmul.f32 %v10337, %v10349
        %v10446 = vmul.f32 %v10338, %v10345
        %v10447 = vmul.f32 %v10339, %v10349
        %v10448 = vld [vmem:[#allocation13] sm:$0x3]
        %v10450 = vlaneseq
        %v10451 = vshrl.u32 %v10450, 7
        %v10452 = vsub.s32 0, %v10451
        %v10453 = vrot.slane %v10448, %v10452
        %v10454 = vlaneseq
        %v10455 = vshrl.u32 %v10454, 7
        %v10456 = vsub.s32 1, %v10455
        %v10457 = vrot.slane %v10448, %v10456
        %v10460 = vadd.f32 %v10352, %v10453
        %v10461 = vadd.f32 %v10353, %v10457
        %v10462 = vadd.f32 %v10354, %v10453
        %v10463 = vadd.f32 %v10355, %v10457
        %v10464 = vadd.f32 %v10356, %v10453
        %v10465 = vadd.f32 %v10357, %v10457
        %v10466 = vadd.f32 %v10358, %v10453
        %v10467 = vadd.f32 %v10359, %v10457
        %v10468 = vadd.f32 %v10360, %v10453
        %v10469 = vadd.f32 %v10361, %v10457
        %v10470 = vadd.f32 %v10362, %v10453
        %v10471 = vadd.f32 %v10363, %v10457
        %v10472 = vadd.f32 %v10364, %v10453
        %v10473 = vadd.f32 %v10365, %v10457
        %v10474 = vadd.f32 %v10366, %v10453
        %v10475 = vadd.f32 %v10367, %v10457
        %v10476 = vadd.f32 %v10368, %v10453
        %v10477 = vadd.f32 %v10369, %v10457
        %v10478 = vadd.f32 %v10370, %v10453
        %v10479 = vadd.f32 %v10371, %v10457
        %v10480 = vadd.f32 %v10372, %v10453
        %v10481 = vadd.f32 %v10373, %v10457
        %v10482 = vadd.f32 %v10374, %v10453
        %v10483 = vadd.f32 %v10375, %v10457
        %v10484 = vadd.f32 %v10376, %v10453
        %v10485 = vadd.f32 %v10377, %v10457
        %v10486 = vadd.f32 %v10378, %v10453
        %v10487 = vadd.f32 %v10379, %v10457
        %v10488 = vadd.f32 %v10380, %v10453
        %v10489 = vadd.f32 %v10381, %v10457
        %v10490 = vadd.f32 %v10382, %v10453
        %v10491 = vadd.f32 %v10383, %v10457
        %v10492 = vadd.f32 %v10384, %v10453
        %v10493 = vadd.f32 %v10385, %v10457
        %v10494 = vadd.f32 %v10386, %v10453
        %v10495 = vadd.f32 %v10387, %v10457
        %v10496 = vadd.f32 %v10388, %v10453
        %v10497 = vadd.f32 %v10389, %v10457
        %v10498 = vadd.f32 %v10390, %v10453
        %v10499 = vadd.f32 %v10391, %v10457
        %v10500 = vadd.f32 %v10392, %v10453
        %v10501 = vadd.f32 %v10393, %v10457
        %v10502 = vadd.f32 %v10394, %v10453
        %v10503 = vadd.f32 %v10395, %v10457
        %v10504 = vadd.f32 %v10396, %v10453
        %v10505 = vadd.f32 %v10397, %v10457
        %v10506 = vadd.f32 %v10398, %v10453
        %v10507 = vadd.f32 %v10399, %v10457
        %v10508 = vadd.f32 %v10400, %v10453
        %v10509 = vadd.f32 %v10401, %v10457
        %v10510 = vadd.f32 %v10402, %v10453
        %v10511 = vadd.f32 %v10403, %v10457
        %v10512 = vadd.f32 %v10404, %v10453
        %v10513 = vadd.f32 %v10405, %v10457
        %v10514 = vadd.f32 %v10406, %v10453
        %v10515 = vadd.f32 %v10407, %v10457
        %v10516 = vadd.f32 %v10408, %v10453
        %v10517 = vadd.f32 %v10409, %v10457
        %v10518 = vadd.f32 %v10410, %v10453
        %v10519 = vadd.f32 %v10411, %v10457
        %v10520 = vadd.f32 %v10412, %v10453
        %v10521 = vadd.f32 %v10413, %v10457
        %v10522 = vadd.f32 %v10414, %v10453
        %v10523 = vadd.f32 %v10415, %v10457
        %v10524 = vadd.f32 %v10416, %v10453
        %v10525 = vadd.f32 %v10417, %v10457
        %v10526 = vadd.f32 %v10418, %v10453
        %v10527 = vadd.f32 %v10419, %v10457
        %v10528 = vadd.f32 %v10420, %v10453
        %v10529 = vadd.f32 %v10421, %v10457
        %v10530 = vadd.f32 %v10422, %v10453
        %v10531 = vadd.f32 %v10423, %v10457
        %v10532 = vadd.f32 %v10424, %v10453
        %v10533 = vadd.f32 %v10425, %v10457
        %v10534 = vadd.f32 %v10426, %v10453
        %v10535 = vadd.f32 %v10427, %v10457
        %v10536 = vadd.f32 %v10428, %v10453
        %v10537 = vadd.f32 %v10429, %v10457
        %v10538 = vadd.f32 %v10430, %v10453
        %v10539 = vadd.f32 %v10431, %v10457
        %v10540 = vadd.f32 %v10432, %v10453
        %v10541 = vadd.f32 %v10433, %v10457
        %v10542 = vadd.f32 %v10434, %v10453
        %v10543 = vadd.f32 %v10435, %v10457
        %v10544 = vadd.f32 %v10436, %v10453
        %v10545 = vadd.f32 %v10437, %v10457
        %v10546 = vadd.f32 %v10438, %v10453
        %v10547 = vadd.f32 %v10439, %v10457
        %v10548 = vadd.f32 %v10440, %v10453
        %v10549 = vadd.f32 %v10441, %v10457
        %v10550 = vadd.f32 %v10442, %v10453
        %v10551 = vadd.f32 %v10443, %v10457
        %v10552 = vadd.f32 %v10444, %v10453
        %v10553 = vadd.f32 %v10445, %v10457
        %v10554 = vadd.f32 %v10446, %v10453
        %v10555 = vadd.f32 %v10447, %v10457
        %v10556 = vmax.f32 %v10460, 0.0
        %v10557 = vmax.f32 %v10461, 0.0
        %v10558 = vmax.f32 %v10462, 0.0
        %v10559 = vmax.f32 %v10463, 0.0
        %v10560 = vmax.f32 %v10464, 0.0
        %v10561 = vmax.f32 %v10465, 0.0
        %v10562 = vmax.f32 %v10466, 0.0
        %v10563 = vmax.f32 %v10467, 0.0
        %v10564 = vmax.f32 %v10468, 0.0
        %v10565 = vmax.f32 %v10469, 0.0
        %v10566 = vmax.f32 %v10470, 0.0
        %v10567 = vmax.f32 %v10471, 0.0
        %v10568 = vmax.f32 %v10472, 0.0
        %v10569 = vmax.f32 %v10473, 0.0
        %v10570 = vmax.f32 %v10474, 0.0
        %v10571 = vmax.f32 %v10475, 0.0
        %v10572 = vmax.f32 %v10476, 0.0
        %v10573 = vmax.f32 %v10477, 0.0
        %v10574 = vmax.f32 %v10478, 0.0
        %v10575 = vmax.f32 %v10479, 0.0
        %v10576 = vmax.f32 %v10480, 0.0
        %v10577 = vmax.f32 %v10481, 0.0
        %v10578 = vmax.f32 %v10482, 0.0
        %v10579 = vmax.f32 %v10483, 0.0
        %v10580 = vmax.f32 %v10484, 0.0
        %v10581 = vmax.f32 %v10485, 0.0
        %v10582 = vmax.f32 %v10486, 0.0
        %v10583 = vmax.f32 %v10487, 0.0
        %v10584 = vmax.f32 %v10488, 0.0
        %v10585 = vmax.f32 %v10489, 0.0
        %v10586 = vmax.f32 %v10490, 0.0
        %v10587 = vmax.f32 %v10491, 0.0
        %v10588 = vmax.f32 %v10492, 0.0
        %v10589 = vmax.f32 %v10493, 0.0
        %v10590 = vmax.f32 %v10494, 0.0
        %v10591 = vmax.f32 %v10495, 0.0
        %v10592 = vmax.f32 %v10496, 0.0
        %v10593 = vmax.f32 %v10497, 0.0
        %v10594 = vmax.f32 %v10498, 0.0
        %v10595 = vmax.f32 %v10499, 0.0
        %v10596 = vmax.f32 %v10500, 0.0
        %v10597 = vmax.f32 %v10501, 0.0
        %v10598 = vmax.f32 %v10502, 0.0
        %v10599 = vmax.f32 %v10503, 0.0
        %v10600 = vmax.f32 %v10504, 0.0
        %v10601 = vmax.f32 %v10505, 0.0
        %v10602 = vmax.f32 %v10506, 0.0
        %v10603 = vmax.f32 %v10507, 0.0
        %v10604 = vmax.f32 %v10508, 0.0
        %v10605 = vmax.f32 %v10509, 0.0
        %v10606 = vmax.f32 %v10510, 0.0
        %v10607 = vmax.f32 %v10511, 0.0
        %v10608 = vmax.f32 %v10512, 0.0
        %v10609 = vmax.f32 %v10513, 0.0
        %v10610 = vmax.f32 %v10514, 0.0
        %v10611 = vmax.f32 %v10515, 0.0
        %v10612 = vmax.f32 %v10516, 0.0
        %v10613 = vmax.f32 %v10517, 0.0
        %v10614 = vmax.f32 %v10518, 0.0
        %v10615 = vmax.f32 %v10519, 0.0
        %v10616 = vmax.f32 %v10520, 0.0
        %v10617 = vmax.f32 %v10521, 0.0
        %v10618 = vmax.f32 %v10522, 0.0
        %v10619 = vmax.f32 %v10523, 0.0
        %v10620 = vmax.f32 %v10524, 0.0
        %v10621 = vmax.f32 %v10525, 0.0
        %v10622 = vmax.f32 %v10526, 0.0
        %v10623 = vmax.f32 %v10527, 0.0
        %v10624 = vmax.f32 %v10528, 0.0
        %v10625 = vmax.f32 %v10529, 0.0
        %v10626 = vmax.f32 %v10530, 0.0
        %v10627 = vmax.f32 %v10531, 0.0
        %v10628 = vmax.f32 %v10532, 0.0
        %v10629 = vmax.f32 %v10533, 0.0
        %v10630 = vmax.f32 %v10534, 0.0
        %v10631 = vmax.f32 %v10535, 0.0
        %v10632 = vmax.f32 %v10536, 0.0
        %v10633 = vmax.f32 %v10537, 0.0
        %v10634 = vmax.f32 %v10538, 0.0
        %v10635 = vmax.f32 %v10539, 0.0
        %v10636 = vmax.f32 %v10540, 0.0
        %v10637 = vmax.f32 %v10541, 0.0
        %v10638 = vmax.f32 %v10542, 0.0
        %v10639 = vmax.f32 %v10543, 0.0
        %v10640 = vmax.f32 %v10544, 0.0
        %v10641 = vmax.f32 %v10545, 0.0
        %v10642 = vmax.f32 %v10546, 0.0
        %v10643 = vmax.f32 %v10547, 0.0
        %v10644 = vmax.f32 %v10548, 0.0
        %v10645 = vmax.f32 %v10549, 0.0
        %v10646 = vmax.f32 %v10550, 0.0
        %v10647 = vmax.f32 %v10551, 0.0
        %v10648 = vmax.f32 %v10552, 0.0
        %v10649 = vmax.f32 %v10553, 0.0
        %v10650 = vmax.f32 %v10554, 0.0
        %v10651 = vmax.f32 %v10555, 0.0
        %v10652 = vlaneseq
        %v10653 = vshrl.u32 %v10652, 7
        %v10654 = vadd.s32 %v10653, 8
        %v10655 = vadd.s32 %v10653, 16
        %vm10656 = vcmp.lt.s32.totalorder %v10653, 18
        %vm10657 = vcmp.lt.s32.totalorder %v10654, 18
        %vm10658 = vcmp.lt.s32.totalorder %v10655, 18
        %v10659 = vsel %vm10656, 1, 0
        %v10660 = vsel %vm10657, 1, 0
        %v10661 = vsel %vm10658, 1, 0
        %vm10662 = vcmp.eq.s32.totalorder %v10659, 1
        %vm10663 = vcmp.eq.s32.totalorder %v10660, 1
        %vm10664 = vcmp.eq.s32.totalorder %v10661, 1
        %v10665 = vsel %vm10662, %v10556, 0.0
        %v10666 = vsel %vm10662, %v10557, 0.0
        %v10667 = vsel %vm10663, %v10558, 0.0
        %v10668 = vsel %vm10663, %v10559, 0.0
        %v10669 = vsel %vm10664, %v10560, 0.0
        %v10670 = vsel %vm10664, %v10561, 0.0
        %v10671 = vsel %vm10662, %v10562, 0.0
        %v10672 = vsel %vm10662, %v10563, 0.0
        %v10673 = vsel %vm10663, %v10564, 0.0
        %v10674 = vsel %vm10663, %v10565, 0.0
        %v10675 = vsel %vm10664, %v10566, 0.0
        %v10676 = vsel %vm10664, %v10567, 0.0
        %v10677 = vsel %vm10662, %v10568, 0.0
        %v10678 = vsel %vm10662, %v10569, 0.0
        %v10679 = vsel %vm10663, %v10570, 0.0
        %v10680 = vsel %vm10663, %v10571, 0.0
        %v10681 = vsel %vm10664, %v10572, 0.0
        %v10682 = vsel %vm10664, %v10573, 0.0
        %v10683 = vsel %vm10662, %v10574, 0.0
        %v10684 = vsel %vm10662, %v10575, 0.0
        %v10685 = vsel %vm10663, %v10576, 0.0
        %v10686 = vsel %vm10663, %v10577, 0.0
        %v10687 = vsel %vm10664, %v10578, 0.0
        %v10688 = vsel %vm10664, %v10579, 0.0
        %v10689 = vsel %vm10662, %v10580, 0.0
        %v10690 = vsel %vm10662, %v10581, 0.0
        %v10691 = vsel %vm10663, %v10582, 0.0
        %v10692 = vsel %vm10663, %v10583, 0.0
        %v10693 = vsel %vm10664, %v10584, 0.0
        %v10694 = vsel %vm10664, %v10585, 0.0
        %v10695 = vsel %vm10662, %v10586, 0.0
        %v10696 = vsel %vm10662, %v10587, 0.0
        %v10697 = vsel %vm10663, %v10588, 0.0
        %v10698 = vsel %vm10663, %v10589, 0.0
        %v10699 = vsel %vm10664, %v10590, 0.0
        %v10700 = vsel %vm10664, %v10591, 0.0
        %v10701 = vsel %vm10662, %v10592, 0.0
        %v10702 = vsel %vm10662, %v10593, 0.0
        %v10703 = vsel %vm10663, %v10594, 0.0
        %v10704 = vsel %vm10663, %v10595, 0.0
        %v10705 = vsel %vm10664, %v10596, 0.0
        %v10706 = vsel %vm10664, %v10597, 0.0
        %v10707 = vsel %vm10662, %v10598, 0.0
        %v10708 = vsel %vm10662, %v10599, 0.0
        %v10709 = vsel %vm10663, %v10600, 0.0
        %v10710 = vsel %vm10663, %v10601, 0.0
        %v10711 = vsel %vm10664, %v10602, 0.0
        %v10712 = vsel %vm10664, %v10603, 0.0
        %v10713 = vsel %vm10662, %v10604, 0.0
        %v10714 = vsel %vm10662, %v10605, 0.0
        %v10715 = vsel %vm10663, %v10606, 0.0
        %v10716 = vsel %vm10663, %v10607, 0.0
        %v10717 = vsel %vm10664, %v10608, 0.0
        %v10718 = vsel %vm10664, %v10609, 0.0
        %v10719 = vsel %vm10662, %v10610, 0.0
        %v10720 = vsel %vm10662, %v10611, 0.0
        %v10721 = vsel %vm10663, %v10612, 0.0
        %v10722 = vsel %vm10663, %v10613, 0.0
        %v10723 = vsel %vm10664, %v10614, 0.0
        %v10724 = vsel %vm10664, %v10615, 0.0
        %v10725 = vsel %vm10662, %v10616, 0.0
        %v10726 = vsel %vm10662, %v10617, 0.0
        %v10727 = vsel %vm10663, %v10618, 0.0
        %v10728 = vsel %vm10663, %v10619, 0.0
        %v10729 = vsel %vm10664, %v10620, 0.0
        %v10730 = vsel %vm10664, %v10621, 0.0
        %v10731 = vsel %vm10662, %v10622, 0.0
        %v10732 = vsel %vm10662, %v10623, 0.0
        %v10733 = vsel %vm10663, %v10624, 0.0
        %v10734 = vsel %vm10663, %v10625, 0.0
        %v10735 = vsel %vm10664, %v10626, 0.0
        %v10736 = vsel %vm10664, %v10627, 0.0
        %v10737 = vsel %vm10662, %v10628, 0.0
        %v10738 = vsel %vm10662, %v10629, 0.0
        %v10739 = vsel %vm10663, %v10630, 0.0
        %v10740 = vsel %vm10663, %v10631, 0.0
        %v10741 = vsel %vm10664, %v10632, 0.0
        %v10742 = vsel %vm10664, %v10633, 0.0
        %v10743 = vsel %vm10662, %v10634, 0.0
        %v10744 = vsel %vm10662, %v10635, 0.0
        %v10745 = vsel %vm10663, %v10636, 0.0
        %v10746 = vsel %vm10663, %v10637, 0.0
        %v10747 = vsel %vm10664, %v10638, 0.0
        %v10748 = vsel %vm10664, %v10639, 0.0
        %v10749 = vsel %vm10662, %v10640, 0.0
        %v10750 = vsel %vm10662, %v10641, 0.0
        %v10751 = vsel %vm10663, %v10642, 0.0
        %v10752 = vsel %vm10663, %v10643, 0.0
        %v10753 = vsel %vm10664, %v10644, 0.0
        %v10754 = vsel %vm10664, %v10645, 0.0
        %v10755 = vsel %vm10662, %v10646, 0.0
        %v10756 = vsel %vm10662, %v10647, 0.0
        %v10757 = vsel %vm10663, %v10648, 0.0
        %v10758 = vsel %vm10663, %v10649, 0.0
        %v10759 = vsel %vm10664, %v10650, 0.0
        %v10760 = vsel %vm10664, %v10651, 0.0
        %v10761 = vadd.f32 %v10665, %v10667
        %v10762 = vadd.f32 %v10761, %v10669
        %v10763 = vrot.slane %v10762, 4
        %v10764 = vadd.f32 %v10762, %v10763
        %v10765 = vrot.slane %v10764, 2
        %v10766 = vadd.f32 %v10764, %v10765
        %v10767 = vrot.slane %v10766, 1
        %v10768 = vadd.f32 %v10766, %v10767
        %v10769 = vadd.f32 %v10666, %v10668
        %v10770 = vadd.f32 %v10769, %v10670
        %v10771 = vrot.slane %v10770, 4
        %v10772 = vadd.f32 %v10770, %v10771
        %v10773 = vrot.slane %v10772, 2
        %v10774 = vadd.f32 %v10772, %v10773
        %v10775 = vrot.slane %v10774, 1
        %v10776 = vadd.f32 %v10774, %v10775
        %v10777 = vadd.f32 %v10671, %v10673
        %v10778 = vadd.f32 %v10777, %v10675
        %v10779 = vrot.slane %v10778, 4
        %v10780 = vadd.f32 %v10778, %v10779
        %v10781 = vrot.slane %v10780, 2
        %v10782 = vadd.f32 %v10780, %v10781
        %v10783 = vrot.slane %v10782, 1
        %v10784 = vadd.f32 %v10782, %v10783
        %v10785 = vadd.f32 %v10672, %v10674
        %v10786 = vadd.f32 %v10785, %v10676
        %v10787 = vrot.slane %v10786, 4
        %v10788 = vadd.f32 %v10786, %v10787
        %v10789 = vrot.slane %v10788, 2
        %v10790 = vadd.f32 %v10788, %v10789
        %v10791 = vrot.slane %v10790, 1
        %v10792 = vadd.f32 %v10790, %v10791
        %v10793 = vadd.f32 %v10677, %v10679
        %v10794 = vadd.f32 %v10793, %v10681
        %v10795 = vrot.slane %v10794, 4
        %v10796 = vadd.f32 %v10794, %v10795
        %v10797 = vrot.slane %v10796, 2
        %v10798 = vadd.f32 %v10796, %v10797
        %v10799 = vrot.slane %v10798, 1
        %v10800 = vadd.f32 %v10798, %v10799
        %v10801 = vadd.f32 %v10678, %v10680
        %v10802 = vadd.f32 %v10801, %v10682
        %v10803 = vrot.slane %v10802, 4
        %v10804 = vadd.f32 %v10802, %v10803
        %v10805 = vrot.slane %v10804, 2
        %v10806 = vadd.f32 %v10804, %v10805
        %v10807 = vrot.slane %v10806, 1
        %v10808 = vadd.f32 %v10806, %v10807
        %v10809 = vadd.f32 %v10683, %v10685
        %v10810 = vadd.f32 %v10809, %v10687
        %v10811 = vrot.slane %v10810, 4
        %v10812 = vadd.f32 %v10810, %v10811
        %v10813 = vrot.slane %v10812, 2
        %v10814 = vadd.f32 %v10812, %v10813
        %v10815 = vrot.slane %v10814, 1
        %v10816 = vadd.f32 %v10814, %v10815
        %v10817 = vadd.f32 %v10684, %v10686
        %v10818 = vadd.f32 %v10817, %v10688
        %v10819 = vrot.slane %v10818, 4
        %v10820 = vadd.f32 %v10818, %v10819
        %v10821 = vrot.slane %v10820, 2
        %v10822 = vadd.f32 %v10820, %v10821
        %v10823 = vrot.slane %v10822, 1
        %v10824 = vadd.f32 %v10822, %v10823
        %v10825 = vadd.f32 %v10689, %v10691
        %v10826 = vadd.f32 %v10825, %v10693
        %v10827 = vrot.slane %v10826, 4
        %v10828 = vadd.f32 %v10826, %v10827
        %v10829 = vrot.slane %v10828, 2
        %v10830 = vadd.f32 %v10828, %v10829
        %v10831 = vrot.slane %v10830, 1
        %v10832 = vadd.f32 %v10830, %v10831
        %v10833 = vadd.f32 %v10690, %v10692
        %v10834 = vadd.f32 %v10833, %v10694
        %v10835 = vrot.slane %v10834, 4
        %v10836 = vadd.f32 %v10834, %v10835
        %v10837 = vrot.slane %v10836, 2
        %v10838 = vadd.f32 %v10836, %v10837
        %v10839 = vrot.slane %v10838, 1
        %v10840 = vadd.f32 %v10838, %v10839
        %v10841 = vadd.f32 %v10695, %v10697
        %v10842 = vadd.f32 %v10841, %v10699
        %v10843 = vrot.slane %v10842, 4
        %v10844 = vadd.f32 %v10842, %v10843
        %v10845 = vrot.slane %v10844, 2
        %v10846 = vadd.f32 %v10844, %v10845
        %v10847 = vrot.slane %v10846, 1
        %v10848 = vadd.f32 %v10846, %v10847
        %v10849 = vadd.f32 %v10696, %v10698
        %v10850 = vadd.f32 %v10849, %v10700
        %v10851 = vrot.slane %v10850, 4
        %v10852 = vadd.f32 %v10850, %v10851
        %v10853 = vrot.slane %v10852, 2
        %v10854 = vadd.f32 %v10852, %v10853
        %v10855 = vrot.slane %v10854, 1
        %v10856 = vadd.f32 %v10854, %v10855
        %v10857 = vadd.f32 %v10701, %v10703
        %v10858 = vadd.f32 %v10857, %v10705
        %v10859 = vrot.slane %v10858, 4
        %v10860 = vadd.f32 %v10858, %v10859
        %v10861 = vrot.slane %v10860, 2
        %v10862 = vadd.f32 %v10860, %v10861
        %v10863 = vrot.slane %v10862, 1
        %v10864 = vadd.f32 %v10862, %v10863
        %v10865 = vadd.f32 %v10702, %v10704
        %v10866 = vadd.f32 %v10865, %v10706
        %v10867 = vrot.slane %v10866, 4
        %v10868 = vadd.f32 %v10866, %v10867
        %v10869 = vrot.slane %v10868, 2
        %v10870 = vadd.f32 %v10868, %v10869
        %v10871 = vrot.slane %v10870, 1
        %v10872 = vadd.f32 %v10870, %v10871
        %v10873 = vadd.f32 %v10707, %v10709
        %v10874 = vadd.f32 %v10873, %v10711
        %v10875 = vrot.slane %v10874, 4
        %v10876 = vadd.f32 %v10874, %v10875
        %v10877 = vrot.slane %v10876, 2
        %v10878 = vadd.f32 %v10876, %v10877
        %v10879 = vrot.slane %v10878, 1
        %v10880 = vadd.f32 %v10878, %v10879
        %v10881 = vadd.f32 %v10708, %v10710
        %v10882 = vadd.f32 %v10881, %v10712
        %v10883 = vrot.slane %v10882, 4
        %v10884 = vadd.f32 %v10882, %v10883
        %v10885 = vrot.slane %v10884, 2
        %v10886 = vadd.f32 %v10884, %v10885
        %v10887 = vrot.slane %v10886, 1
        %v10888 = vadd.f32 %v10886, %v10887
        %v10889 = vadd.f32 %v10713, %v10715
        %v10890 = vadd.f32 %v10889, %v10717
        %v10891 = vrot.slane %v10890, 4
        %v10892 = vadd.f32 %v10890, %v10891
        %v10893 = vrot.slane %v10892, 2
        %v10894 = vadd.f32 %v10892, %v10893
        %v10895 = vrot.slane %v10894, 1
        %v10896 = vadd.f32 %v10894, %v10895
        %v10897 = vadd.f32 %v10714, %v10716
        %v10898 = vadd.f32 %v10897, %v10718
        %v10899 = vrot.slane %v10898, 4
        %v10900 = vadd.f32 %v10898, %v10899
        %v10901 = vrot.slane %v10900, 2
        %v10902 = vadd.f32 %v10900, %v10901
        %v10903 = vrot.slane %v10902, 1
        %v10904 = vadd.f32 %v10902, %v10903
        %v10905 = vadd.f32 %v10719, %v10721
        %v10906 = vadd.f32 %v10905, %v10723
        %v10907 = vrot.slane %v10906, 4
        %v10908 = vadd.f32 %v10906, %v10907
        %v10909 = vrot.slane %v10908, 2
        %v10910 = vadd.f32 %v10908, %v10909
        %v10911 = vrot.slane %v10910, 1
        %v10912 = vadd.f32 %v10910, %v10911
        %v10913 = vadd.f32 %v10720, %v10722
        %v10914 = vadd.f32 %v10913, %v10724
        %v10915 = vrot.slane %v10914, 4
        %v10916 = vadd.f32 %v10914, %v10915
        %v10917 = vrot.slane %v10916, 2
        %v10918 = vadd.f32 %v10916, %v10917
        %v10919 = vrot.slane %v10918, 1
        %v10920 = vadd.f32 %v10918, %v10919
        %v10921 = vadd.f32 %v10725, %v10727
        %v10922 = vadd.f32 %v10921, %v10729
        %v10923 = vrot.slane %v10922, 4
        %v10924 = vadd.f32 %v10922, %v10923
        %v10925 = vrot.slane %v10924, 2
        %v10926 = vadd.f32 %v10924, %v10925
        %v10927 = vrot.slane %v10926, 1
        %v10928 = vadd.f32 %v10926, %v10927
        %v10929 = vadd.f32 %v10726, %v10728
        %v10930 = vadd.f32 %v10929, %v10730
        %v10931 = vrot.slane %v10930, 4
        %v10932 = vadd.f32 %v10930, %v10931
        %v10933 = vrot.slane %v10932, 2
        %v10934 = vadd.f32 %v10932, %v10933
        %v10935 = vrot.slane %v10934, 1
        %v10936 = vadd.f32 %v10934, %v10935
        %v10937 = vadd.f32 %v10731, %v10733
        %v10938 = vadd.f32 %v10937, %v10735
        %v10939 = vrot.slane %v10938, 4
        %v10940 = vadd.f32 %v10938, %v10939
        %v10941 = vrot.slane %v10940, 2
        %v10942 = vadd.f32 %v10940, %v10941
        %v10943 = vrot.slane %v10942, 1
        %v10944 = vadd.f32 %v10942, %v10943
        %v10945 = vadd.f32 %v10732, %v10734
        %v10946 = vadd.f32 %v10945, %v10736
        %v10947 = vrot.slane %v10946, 4
        %v10948 = vadd.f32 %v10946, %v10947
        %v10949 = vrot.slane %v10948, 2
        %v10950 = vadd.f32 %v10948, %v10949
        %v10951 = vrot.slane %v10950, 1
        %v10952 = vadd.f32 %v10950, %v10951
        %v10953 = vadd.f32 %v10737, %v10739
        %v10954 = vadd.f32 %v10953, %v10741
        %v10955 = vrot.slane %v10954, 4
        %v10956 = vadd.f32 %v10954, %v10955
        %v10957 = vrot.slane %v10956, 2
        %v10958 = vadd.f32 %v10956, %v10957
        %v10959 = vrot.slane %v10958, 1
        %v10960 = vadd.f32 %v10958, %v10959
        %v10961 = vadd.f32 %v10738, %v10740
        %v10962 = vadd.f32 %v10961, %v10742
        %v10963 = vrot.slane %v10962, 4
        %v10964 = vadd.f32 %v10962, %v10963
        %v10965 = vrot.slane %v10964, 2
        %v10966 = vadd.f32 %v10964, %v10965
        %v10967 = vrot.slane %v10966, 1
        %v10968 = vadd.f32 %v10966, %v10967
        %v10969 = vadd.f32 %v10743, %v10745
        %v10970 = vadd.f32 %v10969, %v10747
        %v10971 = vrot.slane %v10970, 4
        %v10972 = vadd.f32 %v10970, %v10971
        %v10973 = vrot.slane %v10972, 2
        %v10974 = vadd.f32 %v10972, %v10973
        %v10975 = vrot.slane %v10974, 1
        %v10976 = vadd.f32 %v10974, %v10975
        %v10977 = vadd.f32 %v10744, %v10746
        %v10978 = vadd.f32 %v10977, %v10748
        %v10979 = vrot.slane %v10978, 4
        %v10980 = vadd.f32 %v10978, %v10979
        %v10981 = vrot.slane %v10980, 2
        %v10982 = vadd.f32 %v10980, %v10981
        %v10983 = vrot.slane %v10982, 1
        %v10984 = vadd.f32 %v10982, %v10983
        %v10985 = vadd.f32 %v10749, %v10751
        %v10986 = vadd.f32 %v10985, %v10753
        %v10987 = vrot.slane %v10986, 4
        %v10988 = vadd.f32 %v10986, %v10987
        %v10989 = vrot.slane %v10988, 2
        %v10990 = vadd.f32 %v10988, %v10989
        %v10991 = vrot.slane %v10990, 1
        %v10992 = vadd.f32 %v10990, %v10991
        %v10993 = vadd.f32 %v10750, %v10752
        %v10994 = vadd.f32 %v10993, %v10754
        %v10995 = vrot.slane %v10994, 4
        %v10996 = vadd.f32 %v10994, %v10995
        %v10997 = vrot.slane %v10996, 2
        %v10998 = vadd.f32 %v10996, %v10997
        %v10999 = vrot.slane %v10998, 1
        %v11000 = vadd.f32 %v10998, %v10999
        %v11001 = vadd.f32 %v10755, %v10757
        %v11002 = vadd.f32 %v11001, %v10759
        %v11003 = vrot.slane %v11002, 4
        %v11004 = vadd.f32 %v11002, %v11003
        %v11005 = vrot.slane %v11004, 2
        %v11006 = vadd.f32 %v11004, %v11005
        %v11007 = vrot.slane %v11006, 1
        %v11008 = vadd.f32 %v11006, %v11007
        %v11009 = vadd.f32 %v10756, %v10758
        %v11010 = vadd.f32 %v11009, %v10760
        %v11011 = vrot.slane %v11010, 4
        %v11012 = vadd.f32 %v11010, %v11011
        %v11013 = vrot.slane %v11012, 2
        %v11014 = vadd.f32 %v11012, %v11013
        %v11015 = vrot.slane %v11014, 1
        %v11016 = vadd.f32 %v11014, %v11015
        %v11017 = vld [vmem:[#allocation14] sm:$0xff]
        %v11018 = vld [vmem:[#allocation14 + $0x8] sm:$0xff]
        %v11019 = vld [vmem:[#allocation14 + $0x10] sm:$0xff]
        %v11020 = vld [vmem:[#allocation14 + $0x18] sm:$0xff]
        %v11021 = vld [vmem:[#allocation14 + $0x20] sm:$0xff]
        %v11022 = vld [vmem:[#allocation14 + $0x28] sm:$0xff]
        %v11023 = vld [vmem:[#allocation14 + $0x30] sm:$0xff]
        %v11024 = vld [vmem:[#allocation14 + $0x38] sm:$0xff]
        %v11025 = vld [vmem:[#allocation14 + $0x40] sm:$0xff]
        %v11026 = vld [vmem:[#allocation14 + $0x48] sm:$0xff]
        %v11027 = vld [vmem:[#allocation14 + $0x50] sm:$0xff]
        %v11028 = vld [vmem:[#allocation14 + $0x58] sm:$0xff]
        %v11029 = vld [vmem:[#allocation14 + $0x60] sm:$0xff]
        %v11030 = vld [vmem:[#allocation14 + $0x68] sm:$0xff]
        %v11031 = vld [vmem:[#allocation14 + $0x70] sm:$0xff]
        %v11032 = vld [vmem:[#allocation14 + $0x78] sm:$0xff]
        %v11033 = vld [vmem:[#allocation14 + $0x80] sm:$0xff]
        %v11034 = vld [vmem:[#allocation14 + $0x88] sm:$0xff]
        %v11035 = vld [vmem:[#allocation14 + $0x90] sm:$0xff]
        %v11036 = vld [vmem:[#allocation14 + $0x98] sm:$0xff]
        %v11037 = vld [vmem:[#allocation14 + $0xa0] sm:$0xff]
        %v11038 = vld [vmem:[#allocation14 + $0xa8] sm:$0xff]
        %v11039 = vld [vmem:[#allocation14 + $0xb0] sm:$0xff]
        %v11040 = vld [vmem:[#allocation14 + $0xb8] sm:$0xff]
        %v11041 = vld [vmem:[#allocation14 + $0xc0] sm:$0xff]
        %v11042 = vld [vmem:[#allocation14 + $0xc8] sm:$0xff]
        %v11043 = vld [vmem:[#allocation14 + $0xd0] sm:$0xff]
        %v11044 = vld [vmem:[#allocation14 + $0xd8] sm:$0xff]
        %v11045 = vld [vmem:[#allocation14 + $0xe0] sm:$0xff]
        %v11046 = vld [vmem:[#allocation14 + $0xe8] sm:$0xff]
        %v11047 = vld [vmem:[#allocation14 + $0xf0] sm:$0xff]
        %v11048 = vld [vmem:[#allocation14 + $0xf8] sm:$0xff]
        %v11049 = vld [vmem:[#allocation16] sm:$0x1]
        %v11051 = vlaneseq
        %v11052 = vshrl.u32 %v11051, 7
        %v11053 = vsub.s32 0, %v11052
        %v11054 = vrot.slane %v11049, %v11053
        %vm11088 = vcmask 1041409
        %v11089 = vsel %vm11088, %v10784, %v10768
        %vm11090 = vcmask 1042434
        %v11091 = vsel %vm11090, %v10800, %v11089
        %vm11092 = vcmask 1043459
        %v11093 = vsel %vm11092, %v10816, %v11091
        %vm11094 = vcmask 1044484
        %v11095 = vsel %vm11094, %v10832, %v11093
        %vm11096 = vcmask 1045509
        %v11097 = vsel %vm11096, %v10848, %v11095
        %vm11098 = vcmask 1046534
        %v11099 = vsel %vm11098, %v10864, %v11097
        %vm11100 = vcmask 1047559
        %v11101 = vsel %vm11100, %v10880, %v11099
        %v11102 = vsel %vm11088, %v10792, %v10776
        %v11103 = vsel %vm11090, %v10808, %v11102
        %v11104 = vsel %vm11092, %v10824, %v11103
        %v11105 = vsel %vm11094, %v10840, %v11104
        %v11106 = vsel %vm11096, %v10856, %v11105
        %v11107 = vsel %vm11098, %v10872, %v11106
        %v11108 = vsel %vm11100, %v10888, %v11107
        %v11109 = vsel %vm11088, %v10912, %v10896
        %v11110 = vsel %vm11090, %v10928, %v11109
        %v11111 = vsel %vm11092, %v10944, %v11110
        %v11112 = vsel %vm11094, %v10960, %v11111
        %v11113 = vsel %vm11096, %v10976, %v11112
        %v11114 = vsel %vm11098, %v10992, %v11113
        %v11115 = vsel %vm11100, %v11008, %v11114
        %v11116 = vsel %vm11088, %v10920, %v10904
        %v11117 = vsel %vm11090, %v10936, %v11116
        %v11118 = vsel %vm11092, %v10952, %v11117
        %v11119 = vsel %vm11094, %v10968, %v11118
        %v11120 = vsel %vm11096, %v10984, %v11119
        %v11121 = vsel %vm11098, %v11000, %v11120
        %v11122 = vsel %vm11100, %v11016, %v11121
        %11127 = vmatprep.subr.mxu0 0.0
        %11128 = vmatpush1.msra.mxu0 %v11017
        %11129 = vmatprep.subr.mxu0 0.0
        %11130 = vmatpush1.msra.mxu0 %v11018
        %11131 = vmatprep.subr.mxu0 0.0
        %11132 = vmatpush1.msra.mxu0 %v11019
        %11133 = vmatprep.subr.mxu0 0.0
        %11134 = vmatpush1.msra.mxu0 %v11020
        %11135 = vmatprep.subr.mxu0 0.0
        %11136 = vmatpush1.msra.mxu0 %v11021
        %11137 = vmatprep.subr.mxu0 0.0
        %11138 = vmatpush1.msra.mxu0 %v11022
        %11139 = vmatprep.subr.mxu0 0.0
        %11140 = vmatpush1.msra.mxu0 %v11023
        %11141 = vmatprep.subr.mxu0 0.0
        %11142 = vmatpush1.msra.mxu0 %v11024
        %11143 = vmatprep.subr.mxu0 0.0
        %11144 = vmatpush1.msra.mxu0 %v11025
        %11145 = vmatprep.subr.mxu0 0.0
        %11146 = vmatpush1.msra.mxu0 %v11026
        %11147 = vmatprep.subr.mxu0 0.0
        %11148 = vmatpush1.msra.mxu0 %v11027
        %11149 = vmatprep.subr.mxu0 0.0
        %11150 = vmatpush1.msra.mxu0 %v11028
        %11151 = vmatprep.subr.mxu0 0.0
        %11152 = vmatpush1.msra.mxu0 %v11029
        %11153 = vmatprep.subr.mxu0 0.0
        %11154 = vmatpush1.msra.mxu0 %v11030
        %11155 = vmatprep.subr.mxu0 0.0
        %11156 = vmatpush1.msra.mxu0 %v11031
        %11157 = vmatprep.subr.mxu0 0.0
        %11158 = vmatpush1.msra.mxu0 %v11032
        %11159 = vmatprep.subr.mxu0 0.0
        %11160 = vmatpush1.msra.mxu0 %v11033
        %11161 = vmatprep.subr.mxu0 0.0
        %11162 = vmatpush1.msra.mxu0 %v11034
        %11163 = vmatprep.subr.mxu0 0.0
        %11164 = vmatpush1.msra.mxu0 %v11035
        %11165 = vmatprep.subr.mxu0 0.0
        %11166 = vmatpush1.msra.mxu0 %v11036
        %11167 = vmatprep.subr.mxu0 0.0
        %11168 = vmatpush1.msra.mxu0 %v11037
        %11169 = vmatprep.subr.mxu0 0.0
        %11170 = vmatpush1.msra.mxu0 %v11038
        %11171 = vmatprep.subr.mxu0 0.0
        %11172 = vmatpush1.msra.mxu0 %v11039
        %11173 = vmatprep.subr.mxu0 0.0
        %11174 = vmatpush1.msra.mxu0 %v11040
        %11175 = vmatprep.subr.mxu0 0.0
        %11176 = vmatpush1.msra.mxu0 %v11041
        %11177 = vmatprep.subr.mxu0 0.0
        %11178 = vmatpush1.msra.mxu0 %v11042
        %11179 = vmatprep.subr.mxu0 0.0
        %11180 = vmatpush1.msra.mxu0 %v11043
        %11181 = vmatprep.subr.mxu0 0.0
        %11182 = vmatpush1.msra.mxu0 %v11044
        %11183 = vmatprep.subr.mxu0 0.0
        %11184 = vmatpush1.msra.mxu0 %v11045
        %11185 = vmatprep.subr.mxu0 0.0
        %11186 = vmatpush1.msra.mxu0 %v11046
        %11187 = vmatprep.subr.mxu0 0.0
        %11188 = vmatpush1.msra.mxu0 %v11047
        %11189 = vmatprep.subr.mxu0 0.0
        %11190 = vmatpush1.msra.mxu0 %v11048
        %11191 = vmatprep.mubr.f32.mxu0 %v11108
        %11192 = vmatmul.mubr.f32.gmra.mrb[0].mxu0 %v11101
        %v11193 = vpop.f32.mrb[0].mxu0
        %v11194 = vadd.f32 %v11054, %v11193
        %v11195 = vpop.f32.mrb[0].mxu0
        %11196 = vmatprep.mubr.f32.mxu0 %v11122
        %11197 = vmatmul.mubr.f32.gmra.mrb[0].mxu0 %v11115
        %v11198 = vpop.f32.mrb[0].mxu0
        %v11199 = vadd.f32 %v11054, %v11198
        %v11200 = vpop.f32.mrb[0].mxu0
        %11201 = vdwg.mxu0
        %11202 = vst [vmem:[%s457] sm:$0xff] %v11194
        %11203 = vst [vmem:[%s457 + $0x8] sm:$0xff] %v11199
        %s11204 = sand.u32 %s232, 1
        %s11205 = scalar_lea.sflag [#allocation4], %s11204
        %s11206 = sand.u32 %s232, 1
        %s11207 = smul.addr %s11206, 16
        %s11208 = scalar_lea.vmem [#allocation17], %s11207
        // Predicated region
        $region93: #{tpu_custom_call.1} parent=55 // pred_check
          %p11209 = pneg %p242
        $region94: #{tpu_custom_call.1} parent=55 // pred_check_branch
          %11211 = sbr.rel (%p11209) target = $region96
        $region95: #{tpu_custom_call.1} parent=55 // pred_region
          %s11212 = smul.u32 2, %s30
          %s11214 = ssub.s32 256, 256
          %11215 = vsyncadd %s11205, %s11214
          %s11216 = smul.addr %s11212, 128
          %s11217 = scalar_lea.hbm %s9, %s11216
          %s11218 = sshll.u32 %s11208, 4
          %s11219 = int_to_ptr.vmem [resolvable:$true] %s11218
          %11224 = dma.vmem_to_hbm [thread:$0]  %s11219, 256, %s11217, %s11205, 128, 128, 8
        $region96: #{tpu_custom_call.1} parent=55 // pred_fallthru
          _
      $region56: #{tpu_custom_call.1} parent=5 // pred_fallthru
        _
      %p11225 = scmp.le.s32.totalorder 2, %s25
      // Predicated region
      $region97: #{tpu_custom_call.1} parent=5 // pred_check
        %p11226 = pneg %p11225
      $region98: #{tpu_custom_call.1} parent=5 // pred_check_branch
        %11228 = sbr.rel (%p11226) target = $region100
      $region99: #{tpu_custom_call.1} parent=5 // pred_region
        %s11229 = ssub.s32 %s25, 2
        // Predicated region
        $region101: #{tpu_custom_call.1} parent=99 // pred_check
          %p11230 = pneg %p248
        $region102: #{tpu_custom_call.1} parent=99 // pred_check_branch
          %11232 = sbr.rel (%p11230) target = $region104
        $region103: #{tpu_custom_call.1} parent=99 // pred_region
          %s11233 = sand.u32 %s233, 1
          %s11234 = scalar_lea.sflag [#allocation4], %s11233
          %s11235 = sand.u32 %s233, 1
          %s11236 = smul.addr %s11235, 16
          %s11237 = scalar_lea.vmem [#allocation17], %s11236
          %11238 = dma.done %s11234, 256
        $region104: #{tpu_custom_call.1} parent=99 // pred_fallthru
          _
      $region100: #{tpu_custom_call.1} parent=5 // pred_fallthru
        _
    $region6: #{tpu_custom_call.1} parent=1 // loop_footer
      %s29 = sadd.s32 1, %s25
    $region7: #{tpu_custom_call.1} parent=1 // loop_footer_branch
      %24 = sbr.rel target = $region3
    $region8: #{tpu_custom_call.1} parent=1 // loop_exit
      _
    %11239 = vsyncpa [#allocation3], 1
    %s11240 = scalar_lea.sflag [#allocation3], 1
    %11241 = vsyncpa %s11240, 1
    %11242 = vsyncpa [#allocation6], 1
    %11243 = vsyncpa [#allocation9], 1
    %11244 = vsyncpa [#allocation12], 1
    %11245 = vsyncpa [#allocation15], 1
    %11246 = vsyncpa [#allocation4], 1
    %s11247 = scalar_lea.sflag [#allocation4], 1
    %11248 = vsyncpa %s11247, 1

</llo_original>
